<compile_context>
chip_gen: v7x
topology: tpu7x:2x2x1
jax: 0.10.0
libtpu: 0.0.40
codegen_flags: <defaults>
</compile_context>

<pallas_src>
import math

import jax
import jax.numpy as jnp
import numpy as np
from jax.experimental import pallas as pl
from jax.experimental.pallas import tpu as pltpu


RATIO = 16


def _conv_out_size(n):
    # kernel=3, stride=2, padding=1
    return (n + 2 * 1 - 3) // 2 + 1


def _make_selection(h, w):
    """Constant 0/1 gather matrices for a 3x3 / stride-2 / pad-1 conv.

    sel[t, oh*w_out + ow, ih*w + iw] = 1 iff output (oh, ow) reads input
    (ih, iw) for tap t = kh*3 + kw.  Taps that land in the zero padding keep
    an all-zero row, which reproduces the padding exactly.
    """
    h_out, w_out = _conv_out_size(h), _conv_out_size(w)
    sel = np.zeros((9, h_out * w_out, h * w), np.float32)
    for kh in range(3):
        for kw in range(3):
            t = kh * 3 + kw
            for oh in range(h_out):
                ih = 2 * oh + kh - 1
                if not 0 <= ih < h:
                    continue
                for ow in range(w_out):
                    iw = 2 * ow + kw - 1
                    if not 0 <= iw < w:
                        continue
                    sel[t, oh * w_out + ow, ih * w + iw] = 1.0
    return sel, (h_out, w_out)


# ----------------------------------------------------------------------------
# Fused Pallas kernel: conv1..conv4 (+ReLU) + fc, one image per grid step.
# ----------------------------------------------------------------------------
def _critic_kernel(x_ref,
                   s1_ref, w1_ref, b1_ref,
                   s2_ref, w2_ref, b2_ref,
                   s3_ref, w3_ref, b3_ref,
                   s4_ref, w4_ref, b4_ref,
                   fcw_ref, fcb_ref,
                   o_ref):
    def conv_relu(x, s_ref, w_ref, b_ref):
        s_out = s_ref.shape[1]
        c_out = w_ref.shape[2]
        acc = jnp.zeros((s_out, c_out), jnp.float32)
        for t in range(9):  # unrolled 3x3 taps: gather-by-matmul, then weights
            g = jnp.dot(s_ref[t], x, preferred_element_type=jnp.float32)
            acc = acc + jnp.dot(g.astype(jnp.bfloat16), w_ref[t],
                                preferred_element_type=jnp.float32)
        acc = acc + b_ref[...]                # (1, c_out) broadcast over rows
        return jnp.maximum(acc, 0.0).astype(jnp.bfloat16)

    x = x_ref[0]                              # (H*W, Cin) bf16, one image
    x = conv_relu(x, s1_ref, w1_ref, b1_ref)
    x = conv_relu(x, s2_ref, w2_ref, b2_ref)
    x = conv_relu(x, s3_ref, w3_ref, b3_ref)
    x = conv_relu(x, s4_ref, w4_ref, b4_ref)  # (S4, 128) bf16

    # fc (out_features=1): VPU multiply + reduce instead of an (M,1) matmul.
    prod = x.astype(jnp.float32) * fcw_ref[...]   # (S4, 128)
    y = jnp.sum(prod, axis=1, keepdims=True)      # lane reduce    -> (S4, 1)
    y = jnp.sum(y, axis=0, keepdims=True)         # sublane reduce -> (1, 1)
    y = y + fcb_ref[...]
    # Lane-dense output block; the scalar is broadcast across 128 lanes and
    # sliced out in the wrapper.
    o_ref[...] = jnp.zeros((1, 1, 128), jnp.float32) + y


# ----------------------------------------------------------------------------
# Parameter construction (mirrors Critic.__init__ / init_weights)
# ----------------------------------------------------------------------------
def make_params(key, num_people, city_size):
    cin0 = num_people * 3 + 3
    conv_shapes = [
        (32, cin0, 3, 3),
        (64, 32, 3, 3),
        (64, 64, 3, 3),
        (128, 64, 3, 3),
    ]
    params = {}
    keys = jax.random.split(key, 5)
    for i, shp in enumerate(conv_shapes):
        cout = shp[0]
        fan_out = cout * shp[2] * shp[3]
        std = math.sqrt(2.0 / fan_out)  # kaiming_normal_, mode='fan_out', relu
        params[f"conv{i+1}_w"] = std * jax.random.normal(keys[i], shp, jnp.float32)
        params[f"conv{i+1}_b"] = jnp.zeros((cout,), jnp.float32)

    fc_in = 128 * (city_size // RATIO) ** 2
    std = math.sqrt(2.0 / (fc_in + 1))  # xavier_normal_
    params["fc_w"] = std * jax.random.normal(keys[4], (1, fc_in), jnp.float32)
    params["fc_b"] = jnp.zeros((1,), jnp.float32)
    return params


def prepare(params, city_size):
    """One-time conversion of PyTorch-layout params into kernel-ready arrays."""
    cin = params["conv1_w"].shape[1]
    chans = [cin, 32, 64, 64, 128]
    prepared = {}
    h = w = city_size
    for i in range(4):
        sel, (h, w) = _make_selection(h, w)
        c_in, c_out = chans[i], chans[i + 1]
        # (Cout, Cin, 3, 3) -> (9, Cin, Cout), tap index t = kh*3 + kw.
        w9 = jnp.transpose(params[f"conv{i+1}_w"], (2, 3, 1, 0)).reshape(9, c_in, c_out)
        prepared[f"sel{i+1}"] = jnp.asarray(sel, jnp.bfloat16)
        prepared[f"w{i+1}"] = w9.astype(jnp.bfloat16)
        prepared[f"b{i+1}"] = params[f"conv{i+1}_b"].reshape(1, c_out).astype(jnp.float32)

    s4 = h * w  # spatial size after conv4 = (city_size // 16) ** 2
    # PyTorch flattens NCHW (flat index = c*S4 + s); kernel activations are
    # (s, c).  Pre-permute fc_w so the kernel needs no activation transpose.
    prepared["fcw"] = params["fc_w"].reshape(128, s4).T.astype(jnp.float32)  # (S4, 128)
    prepared["fcb"] = params["fc_b"].reshape(1, 1).astype(jnp.float32)
    return prepared


# ----------------------------------------------------------------------------
# Forward pass (matches Critic.forward)
# ----------------------------------------------------------------------------
@jax.jit
def critic_forward(prepared, x_nchw):
    n, c, h, w = x_nchw.shape
    # NCHW -> (N, H*W, C): channels-last so channels map to vreg lanes.
    x = jnp.transpose(x_nchw, (0, 2, 3, 1)).reshape(n, h * w, c).astype(jnp.bfloat16)

    operands = (x,
                prepared["sel1"], prepared["w1"], prepared["b1"],
                prepared["sel2"], prepared["w2"], prepared["b2"],
                prepared["sel3"], prepared["w3"], prepared["b3"],
                prepared["sel4"], prepared["w4"], prepared["b4"],
                prepared["fcw"], prepared["fcb"])

    def _full_spec(a):
        nd = a.ndim
        return pl.BlockSpec(a.shape, lambda b, _nd=nd: (0,) * _nd)

    in_specs = [pl.BlockSpec((1, h * w, c), lambda b: (b, 0, 0))]
    in_specs += [_full_spec(a) for a in operands[1:]]

    out = pl.pallas_call(
        _critic_kernel,
        out_shape=jax.ShapeDtypeStruct((n, 1, 128), jnp.float32),
        grid=(n,),
        in_specs=in_specs,
        out_specs=pl.BlockSpec((1, 1, 128), lambda b: (b, 0, 0)),
        compiler_params=pltpu.CompilerParams(
            dimension_semantics=("parallel",),
            vmem_limit_bytes=32 * 1024 * 1024,
        ),
    )(*operands)
    return out[:, 0, :1]  # (N, 1)


if __name__ == "__main__":
    # Synthetic "args": num_people=1 -> input channels = 6, city_size=16
    num_people = 1
    city_size = 16
    batch = 2
    cin = num_people * 3 + 3

    key = jax.random.PRNGKey(0)
    k_params, k_x = jax.random.split(key)
    params = make_params(k_params, num_people, city_size)
    prepared = prepare(params, city_size)

    x = jax.random.normal(k_x, (batch, cin, city_size, city_size), jnp.float32)

    y = critic_forward(prepared, x)
    y = jax.block_until_ready(y)
    assert y.shape == (batch, 1), y.shape
    assert bool(jnp.all(jnp.isfinite(y)))
    print("KERNEL_OK")
</pallas_src>

<mosaic_0001>
module attributes {stable_mosaic.version = 11 : i64} {
  func.func @_critic_kernel(%arg0: i32, %arg1: memref<1x256x6xbf16, #tpu.memory_space<vmem>>, %arg2: memref<9x64x256xbf16, #tpu.memory_space<vmem>>, %arg3: memref<9x6x32xbf16, #tpu.memory_space<vmem>>, %arg4: memref<1x32xf32, #tpu.memory_space<vmem>>, %arg5: memref<9x16x64xbf16, #tpu.memory_space<vmem>>, %arg6: memref<9x32x64xbf16, #tpu.memory_space<vmem>>, %arg7: memref<1x64xf32, #tpu.memory_space<vmem>>, %arg8: memref<9x4x16xbf16, #tpu.memory_space<vmem>>, %arg9: memref<9x64x64xbf16, #tpu.memory_space<vmem>>, %arg10: memref<1x64xf32, #tpu.memory_space<vmem>>, %arg11: memref<9x1x4xbf16, #tpu.memory_space<vmem>>, %arg12: memref<9x64x128xbf16, #tpu.memory_space<vmem>>, %arg13: memref<1x128xf32, #tpu.memory_space<vmem>>, %arg14: memref<1x128xf32, #tpu.memory_space<vmem>>, %arg15: memref<1x1xf32, #tpu.memory_space<vmem>>, %arg16: memref<1x1x128xf32, #tpu.memory_space<vmem>>) attributes {dimension_semantics = [#tpu.dimension_semantics<parallel>], iteration_bounds = array<i64: 2>, scalar_prefetch = 0 : i64, scratch_operands = 0 : i64, tpu.core_type = #tpu.core_type<tc>, window_params = [{transform_indices = @transform_0, window_bounds = array<i64: 1, 256, 6>}, {pipeline_mode = #tpu.pipeline_mode<synchronous>, transform_indices = @transform_1, window_bounds = array<i64: 9, 64, 256>}, {pipeline_mode = #tpu.pipeline_mode<synchronous>, transform_indices = @transform_2, window_bounds = array<i64: 9, 6, 32>}, {pipeline_mode = #tpu.pipeline_mode<synchronous>, transform_indices = @transform_3, window_bounds = array<i64: 1, 32>}, {pipeline_mode = #tpu.pipeline_mode<synchronous>, transform_indices = @transform_4, window_bounds = array<i64: 9, 16, 64>}, {pipeline_mode = #tpu.pipeline_mode<synchronous>, transform_indices = @transform_5, window_bounds = array<i64: 9, 32, 64>}, {pipeline_mode = #tpu.pipeline_mode<synchronous>, transform_indices = @transform_6, window_bounds = array<i64: 1, 64>}, {pipeline_mode = #tpu.pipeline_mode<synchronous>, transform_indices = @transform_7, window_bounds = array<i64: 9, 4, 16>}, {pipeline_mode = #tpu.pipeline_mode<synchronous>, transform_indices = @transform_8, window_bounds = array<i64: 9, 64, 64>}, {pipeline_mode = #tpu.pipeline_mode<synchronous>, transform_indices = @transform_9, window_bounds = array<i64: 1, 64>}, {pipeline_mode = #tpu.pipeline_mode<synchronous>, transform_indices = @transform_10, window_bounds = array<i64: 9, 1, 4>}, {pipeline_mode = #tpu.pipeline_mode<synchronous>, transform_indices = @transform_11, window_bounds = array<i64: 9, 64, 128>}, {pipeline_mode = #tpu.pipeline_mode<synchronous>, transform_indices = @transform_12, window_bounds = array<i64: 1, 128>}, {pipeline_mode = #tpu.pipeline_mode<synchronous>, transform_indices = @transform_13, window_bounds = array<i64: 1, 128>}, {pipeline_mode = #tpu.pipeline_mode<synchronous>, transform_indices = @transform_14, window_bounds = array<i64: 1, 1>}, {transform_indices = @transform_15, window_bounds = array<i64: 1, 1, 128>}]} {
    %c0 = arith.constant 0 : index
    %c0_0 = arith.constant 0 : index
    %c0_1 = arith.constant 0 : index
    %0 = vector.load %arg1[%c0, %c0_0, %c0_1] : memref<1x256x6xbf16, #tpu.memory_space<vmem>>, vector<1x256x6xbf16>
    %1 = vector.shape_cast %0 : vector<1x256x6xbf16> to vector<256x6xbf16>
    %cst = arith.constant 0.000000e+00 : f32
    %2 = vector.broadcast %cst : f32 to vector<64x32xf32>
    %c0_2 = arith.constant 0 : index
    %c0_3 = arith.constant 0 : index
    %c0_4 = arith.constant 0 : index
    %3 = vector.load %arg2[%c0_2, %c0_3, %c0_4] : memref<9x64x256xbf16, #tpu.memory_space<vmem>>, vector<1x64x256xbf16>
    %4 = vector.shape_cast %3 : vector<1x64x256xbf16> to vector<64x256xbf16>
    %cst_5 = arith.constant dense<0.000000e+00> : vector<64x6xf32>
    %5 = tpu.matmul %4, %1, %cst_5 {dimension_numbers = #tpu.dot_dimension_numbers<[1], [0], [0], [1], [0, 0, 1, 1], [], []>} : vector<64x256xbf16>, vector<256x6xbf16>, vector<64x6xf32> -> vector<64x6xf32>
    %6 = arith.truncf %5 : vector<64x6xf32> to vector<64x6xbf16>
    %c0_6 = arith.constant 0 : index
    %c0_7 = arith.constant 0 : index
    %c0_8 = arith.constant 0 : index
    %7 = vector.load %arg3[%c0_6, %c0_7, %c0_8] : memref<9x6x32xbf16, #tpu.memory_space<vmem>>, vector<1x6x32xbf16>
    %8 = vector.shape_cast %7 : vector<1x6x32xbf16> to vector<6x32xbf16>
    %cst_9 = arith.constant dense<0.000000e+00> : vector<64x32xf32>
    %9 = tpu.matmul %6, %8, %cst_9 {dimension_numbers = #tpu.dot_dimension_numbers<[1], [0], [0], [1], [0, 0, 1, 1], [], []>} : vector<64x6xbf16>, vector<6x32xbf16>, vector<64x32xf32> -> vector<64x32xf32>
    %10 = arith.addf %2, %9 : vector<64x32xf32>
    %c1 = arith.constant 1 : index
    %c0_10 = arith.constant 0 : index
    %c0_11 = arith.constant 0 : index
    %11 = vector.load %arg2[%c1, %c0_10, %c0_11] : memref<9x64x256xbf16, #tpu.memory_space<vmem>>, vector<1x64x256xbf16>
    %12 = vector.shape_cast %11 : vector<1x64x256xbf16> to vector<64x256xbf16>
    %cst_12 = arith.constant dense<0.000000e+00> : vector<64x6xf32>
    %13 = tpu.matmul %12, %1, %cst_12 {dimension_numbers = #tpu.dot_dimension_numbers<[1], [0], [0], [1], [0, 0, 1, 1], [], []>} : vector<64x256xbf16>, vector<256x6xbf16>, vector<64x6xf32> -> vector<64x6xf32>
    %14 = arith.truncf %13 : vector<64x6xf32> to vector<64x6xbf16>
    %c1_13 = arith.constant 1 : index
    %c0_14 = arith.constant 0 : index
    %c0_15 = arith.constant 0 : index
    %15 = vector.load %arg3[%c1_13, %c0_14, %c0_15] : memref<9x6x32xbf16, #tpu.memory_space<vmem>>, vector<1x6x32xbf16>
    %16 = vector.shape_cast %15 : vector<1x6x32xbf16> to vector<6x32xbf16>
    %cst_16 = arith.constant dense<0.000000e+00> : vector<64x32xf32>
    %17 = tpu.matmul %14, %16, %cst_16 {dimension_numbers = #tpu.dot_dimension_numbers<[1], [0], [0], [1], [0, 0, 1, 1], [], []>} : vector<64x6xbf16>, vector<6x32xbf16>, vector<64x32xf32> -> vector<64x32xf32>
    %18 = arith.addf %10, %17 : vector<64x32xf32>
    %c2 = arith.constant 2 : index
    %c0_17 = arith.constant 0 : index
    %c0_18 = arith.constant 0 : index
    %19 = vector.load %arg2[%c2, %c0_17, %c0_18] : memref<9x64x256xbf16, #tpu.memory_space<vmem>>, vector<1x64x256xbf16>
    %20 = vector.shape_cast %19 : vector<1x64x256xbf16> to vector<64x256xbf16>
    %cst_19 = arith.constant dense<0.000000e+00> : vector<64x6xf32>
    %21 = tpu.matmul %20, %1, %cst_19 {dimension_numbers = #tpu.dot_dimension_numbers<[1], [0], [0], [1], [0, 0, 1, 1], [], []>} : vector<64x256xbf16>, vector<256x6xbf16>, vector<64x6xf32> -> vector<64x6xf32>
    %22 = arith.truncf %21 : vector<64x6xf32> to vector<64x6xbf16>
    %c2_20 = arith.constant 2 : index
    %c0_21 = arith.constant 0 : index
    %c0_22 = arith.constant 0 : index
    %23 = vector.load %arg3[%c2_20, %c0_21, %c0_22] : memref<9x6x32xbf16, #tpu.memory_space<vmem>>, vector<1x6x32xbf16>
    %24 = vector.shape_cast %23 : vector<1x6x32xbf16> to vector<6x32xbf16>
    %cst_23 = arith.constant dense<0.000000e+00> : vector<64x32xf32>
    %25 = tpu.matmul %22, %24, %cst_23 {dimension_numbers = #tpu.dot_dimension_numbers<[1], [0], [0], [1], [0, 0, 1, 1], [], []>} : vector<64x6xbf16>, vector<6x32xbf16>, vector<64x32xf32> -> vector<64x32xf32>
    %26 = arith.addf %18, %25 : vector<64x32xf32>
    %c3 = arith.constant 3 : index
    %c0_24 = arith.constant 0 : index
    %c0_25 = arith.constant 0 : index
    %27 = vector.load %arg2[%c3, %c0_24, %c0_25] : memref<9x64x256xbf16, #tpu.memory_space<vmem>>, vector<1x64x256xbf16>
    %28 = vector.shape_cast %27 : vector<1x64x256xbf16> to vector<64x256xbf16>
    %cst_26 = arith.constant dense<0.000000e+00> : vector<64x6xf32>
    %29 = tpu.matmul %28, %1, %cst_26 {dimension_numbers = #tpu.dot_dimension_numbers<[1], [0], [0], [1], [0, 0, 1, 1], [], []>} : vector<64x256xbf16>, vector<256x6xbf16>, vector<64x6xf32> -> vector<64x6xf32>
    %30 = arith.truncf %29 : vector<64x6xf32> to vector<64x6xbf16>
    %c3_27 = arith.constant 3 : index
    %c0_28 = arith.constant 0 : index
    %c0_29 = arith.constant 0 : index
    %31 = vector.load %arg3[%c3_27, %c0_28, %c0_29] : memref<9x6x32xbf16, #tpu.memory_space<vmem>>, vector<1x6x32xbf16>
    %32 = vector.shape_cast %31 : vector<1x6x32xbf16> to vector<6x32xbf16>
    %cst_30 = arith.constant dense<0.000000e+00> : vector<64x32xf32>
    %33 = tpu.matmul %30, %32, %cst_30 {dimension_numbers = #tpu.dot_dimension_numbers<[1], [0], [0], [1], [0, 0, 1, 1], [], []>} : vector<64x6xbf16>, vector<6x32xbf16>, vector<64x32xf32> -> vector<64x32xf32>
    %34 = arith.addf %26, %33 : vector<64x32xf32>
    %c4 = arith.constant 4 : index
    %c0_31 = arith.constant 0 : index
    %c0_32 = arith.constant 0 : index
    %35 = vector.load %arg2[%c4, %c0_31, %c0_32] : memref<9x64x256xbf16, #tpu.memory_space<vmem>>, vector<1x64x256xbf16>
    %36 = vector.shape_cast %35 : vector<1x64x256xbf16> to vector<64x256xbf16>
    %cst_33 = arith.constant dense<0.000000e+00> : vector<64x6xf32>
    %37 = tpu.matmul %36, %1, %cst_33 {dimension_numbers = #tpu.dot_dimension_numbers<[1], [0], [0], [1], [0, 0, 1, 1], [], []>} : vector<64x256xbf16>, vector<256x6xbf16>, vector<64x6xf32> -> vector<64x6xf32>
    %38 = arith.truncf %37 : vector<64x6xf32> to vector<64x6xbf16>
    %c4_34 = arith.constant 4 : index
    %c0_35 = arith.constant 0 : index
    %c0_36 = arith.constant 0 : index
    %39 = vector.load %arg3[%c4_34, %c0_35, %c0_36] : memref<9x6x32xbf16, #tpu.memory_space<vmem>>, vector<1x6x32xbf16>
    %40 = vector.shape_cast %39 : vector<1x6x32xbf16> to vector<6x32xbf16>
    %cst_37 = arith.constant dense<0.000000e+00> : vector<64x32xf32>
    %41 = tpu.matmul %38, %40, %cst_37 {dimension_numbers = #tpu.dot_dimension_numbers<[1], [0], [0], [1], [0, 0, 1, 1], [], []>} : vector<64x6xbf16>, vector<6x32xbf16>, vector<64x32xf32> -> vector<64x32xf32>
    %42 = arith.addf %34, %41 : vector<64x32xf32>
    %c5 = arith.constant 5 : index
    %c0_38 = arith.constant 0 : index
    %c0_39 = arith.constant 0 : index
    %43 = vector.load %arg2[%c5, %c0_38, %c0_39] : memref<9x64x256xbf16, #tpu.memory_space<vmem>>, vector<1x64x256xbf16>
    %44 = vector.shape_cast %43 : vector<1x64x256xbf16> to vector<64x256xbf16>
    %cst_40 = arith.constant dense<0.000000e+00> : vector<64x6xf32>
    %45 = tpu.matmul %44, %1, %cst_40 {dimension_numbers = #tpu.dot_dimension_numbers<[1], [0], [0], [1], [0, 0, 1, 1], [], []>} : vector<64x256xbf16>, vector<256x6xbf16>, vector<64x6xf32> -> vector<64x6xf32>
    %46 = arith.truncf %45 : vector<64x6xf32> to vector<64x6xbf16>
    %c5_41 = arith.constant 5 : index
    %c0_42 = arith.constant 0 : index
    %c0_43 = arith.constant 0 : index
    %47 = vector.load %arg3[%c5_41, %c0_42, %c0_43] : memref<9x6x32xbf16, #tpu.memory_space<vmem>>, vector<1x6x32xbf16>
    %48 = vector.shape_cast %47 : vector<1x6x32xbf16> to vector<6x32xbf16>
    %cst_44 = arith.constant dense<0.000000e+00> : vector<64x32xf32>
    %49 = tpu.matmul %46, %48, %cst_44 {dimension_numbers = #tpu.dot_dimension_numbers<[1], [0], [0], [1], [0, 0, 1, 1], [], []>} : vector<64x6xbf16>, vector<6x32xbf16>, vector<64x32xf32> -> vector<64x32xf32>
    %50 = arith.addf %42, %49 : vector<64x32xf32>
    %c6 = arith.constant 6 : index
    %c0_45 = arith.constant 0 : index
    %c0_46 = arith.constant 0 : index
    %51 = vector.load %arg2[%c6, %c0_45, %c0_46] : memref<9x64x256xbf16, #tpu.memory_space<vmem>>, vector<1x64x256xbf16>
    %52 = vector.shape_cast %51 : vector<1x64x256xbf16> to vector<64x256xbf16>
    %cst_47 = arith.constant dense<0.000000e+00> : vector<64x6xf32>
    %53 = tpu.matmul %52, %1, %cst_47 {dimension_numbers = #tpu.dot_dimension_numbers<[1], [0], [0], [1], [0, 0, 1, 1], [], []>} : vector<64x256xbf16>, vector<256x6xbf16>, vector<64x6xf32> -> vector<64x6xf32>
    %54 = arith.truncf %53 : vector<64x6xf32> to vector<64x6xbf16>
    %c6_48 = arith.constant 6 : index
    %c0_49 = arith.constant 0 : index
    %c0_50 = arith.constant 0 : index
    %55 = vector.load %arg3[%c6_48, %c0_49, %c0_50] : memref<9x6x32xbf16, #tpu.memory_space<vmem>>, vector<1x6x32xbf16>
    %56 = vector.shape_cast %55 : vector<1x6x32xbf16> to vector<6x32xbf16>
    %cst_51 = arith.constant dense<0.000000e+00> : vector<64x32xf32>
    %57 = tpu.matmul %54, %56, %cst_51 {dimension_numbers = #tpu.dot_dimension_numbers<[1], [0], [0], [1], [0, 0, 1, 1], [], []>} : vector<64x6xbf16>, vector<6x32xbf16>, vector<64x32xf32> -> vector<64x32xf32>
    %58 = arith.addf %50, %57 : vector<64x32xf32>
    %c7 = arith.constant 7 : index
    %c0_52 = arith.constant 0 : index
    %c0_53 = arith.constant 0 : index
    %59 = vector.load %arg2[%c7, %c0_52, %c0_53] : memref<9x64x256xbf16, #tpu.memory_space<vmem>>, vector<1x64x256xbf16>
    %60 = vector.shape_cast %59 : vector<1x64x256xbf16> to vector<64x256xbf16>
    %cst_54 = arith.constant dense<0.000000e+00> : vector<64x6xf32>
    %61 = tpu.matmul %60, %1, %cst_54 {dimension_numbers = #tpu.dot_dimension_numbers<[1], [0], [0], [1], [0, 0, 1, 1], [], []>} : vector<64x256xbf16>, vector<256x6xbf16>, vector<64x6xf32> -> vector<64x6xf32>
    %62 = arith.truncf %61 : vector<64x6xf32> to vector<64x6xbf16>
    %c7_55 = arith.constant 7 : index
    %c0_56 = arith.constant 0 : index
    %c0_57 = arith.constant 0 : index
    %63 = vector.load %arg3[%c7_55, %c0_56, %c0_57] : memref<9x6x32xbf16, #tpu.memory_space<vmem>>, vector<1x6x32xbf16>
    %64 = vector.shape_cast %63 : vector<1x6x32xbf16> to vector<6x32xbf16>
    %cst_58 = arith.constant dense<0.000000e+00> : vector<64x32xf32>
    %65 = tpu.matmul %62, %64, %cst_58 {dimension_numbers = #tpu.dot_dimension_numbers<[1], [0], [0], [1], [0, 0, 1, 1], [], []>} : vector<64x6xbf16>, vector<6x32xbf16>, vector<64x32xf32> -> vector<64x32xf32>
    %66 = arith.addf %58, %65 : vector<64x32xf32>
    %c8 = arith.constant 8 : index
    %c0_59 = arith.constant 0 : index
    %c0_60 = arith.constant 0 : index
    %67 = vector.load %arg2[%c8, %c0_59, %c0_60] : memref<9x64x256xbf16, #tpu.memory_space<vmem>>, vector<1x64x256xbf16>
    %68 = vector.shape_cast %67 : vector<1x64x256xbf16> to vector<64x256xbf16>
    %cst_61 = arith.constant dense<0.000000e+00> : vector<64x6xf32>
    %69 = tpu.matmul %68, %1, %cst_61 {dimension_numbers = #tpu.dot_dimension_numbers<[1], [0], [0], [1], [0, 0, 1, 1], [], []>} : vector<64x256xbf16>, vector<256x6xbf16>, vector<64x6xf32> -> vector<64x6xf32>
    %70 = arith.truncf %69 : vector<64x6xf32> to vector<64x6xbf16>
    %c8_62 = arith.constant 8 : index
    %c0_63 = arith.constant 0 : index
    %c0_64 = arith.constant 0 : index
    %71 = vector.load %arg3[%c8_62, %c0_63, %c0_64] : memref<9x6x32xbf16, #tpu.memory_space<vmem>>, vector<1x6x32xbf16>
    %72 = vector.shape_cast %71 : vector<1x6x32xbf16> to vector<6x32xbf16>
    %cst_65 = arith.constant dense<0.000000e+00> : vector<64x32xf32>
    %73 = tpu.matmul %70, %72, %cst_65 {dimension_numbers = #tpu.dot_dimension_numbers<[1], [0], [0], [1], [0, 0, 1, 1], [], []>} : vector<64x6xbf16>, vector<6x32xbf16>, vector<64x32xf32> -> vector<64x32xf32>
    %74 = arith.addf %66, %73 : vector<64x32xf32>
    %c0_66 = arith.constant 0 : index
    %c0_67 = arith.constant 0 : index
    %75 = vector.load %arg4[%c0_66, %c0_67] : memref<1x32xf32, #tpu.memory_space<vmem>>, vector<1x32xf32>
    %76 = vector.broadcast %75 : vector<1x32xf32> to vector<64x32xf32>
    %77 = arith.addf %74, %76 : vector<64x32xf32>
    %cst_68 = arith.constant 0.000000e+00 : f32
    %78 = vector.broadcast %cst_68 : f32 to vector<64x32xf32>
    %79 = arith.maximumf %77, %78 : vector<64x32xf32>
    %80 = arith.truncf %79 : vector<64x32xf32> to vector<64x32xbf16>
    %cst_69 = arith.constant 0.000000e+00 : f32
    %81 = vector.broadcast %cst_69 : f32 to vector<16x64xf32>
    %c0_70 = arith.constant 0 : index
    %c0_71 = arith.constant 0 : index
    %c0_72 = arith.constant 0 : index
    %82 = vector.load %arg5[%c0_70, %c0_71, %c0_72] : memref<9x16x64xbf16, #tpu.memory_space<vmem>>, vector<1x16x64xbf16>
    %83 = vector.shape_cast %82 : vector<1x16x64xbf16> to vector<16x64xbf16>
    %cst_73 = arith.constant dense<0.000000e+00> : vector<16x32xf32>
    %84 = tpu.matmul %83, %80, %cst_73 {dimension_numbers = #tpu.dot_dimension_numbers<[1], [0], [0], [1], [0, 0, 1, 1], [], []>} : vector<16x64xbf16>, vector<64x32xbf16>, vector<16x32xf32> -> vector<16x32xf32>
    %85 = arith.truncf %84 : vector<16x32xf32> to vector<16x32xbf16>
    %c0_74 = arith.constant 0 : index
    %c0_75 = arith.constant 0 : index
    %c0_76 = arith.constant 0 : index
    %86 = vector.load %arg6[%c0_74, %c0_75, %c0_76] : memref<9x32x64xbf16, #tpu.memory_space<vmem>>, vector<1x32x64xbf16>
    %87 = vector.shape_cast %86 : vector<1x32x64xbf16> to vector<32x64xbf16>
    %cst_77 = arith.constant dense<0.000000e+00> : vector<16x64xf32>
    %88 = tpu.matmul %85, %87, %cst_77 {dimension_numbers = #tpu.dot_dimension_numbers<[1], [0], [0], [1], [0, 0, 1, 1], [], []>} : vector<16x32xbf16>, vector<32x64xbf16>, vector<16x64xf32> -> vector<16x64xf32>
    %89 = arith.addf %81, %88 : vector<16x64xf32>
    %c1_78 = arith.constant 1 : index
    %c0_79 = arith.constant 0 : index
    %c0_80 = arith.constant 0 : index
    %90 = vector.load %arg5[%c1_78, %c0_79, %c0_80] : memref<9x16x64xbf16, #tpu.memory_space<vmem>>, vector<1x16x64xbf16>
    %91 = vector.shape_cast %90 : vector<1x16x64xbf16> to vector<16x64xbf16>
    %cst_81 = arith.constant dense<0.000000e+00> : vector<16x32xf32>
    %92 = tpu.matmul %91, %80, %cst_81 {dimension_numbers = #tpu.dot_dimension_numbers<[1], [0], [0], [1], [0, 0, 1, 1], [], []>} : vector<16x64xbf16>, vector<64x32xbf16>, vector<16x32xf32> -> vector<16x32xf32>
    %93 = arith.truncf %92 : vector<16x32xf32> to vector<16x32xbf16>
    %c1_82 = arith.constant 1 : index
    %c0_83 = arith.constant 0 : index
    %c0_84 = arith.constant 0 : index
    %94 = vector.load %arg6[%c1_82, %c0_83, %c0_84] : memref<9x32x64xbf16, #tpu.memory_space<vmem>>, vector<1x32x64xbf16>
    %95 = vector.shape_cast %94 : vector<1x32x64xbf16> to vector<32x64xbf16>
    %cst_85 = arith.constant dense<0.000000e+00> : vector<16x64xf32>
    %96 = tpu.matmul %93, %95, %cst_85 {dimension_numbers = #tpu.dot_dimension_numbers<[1], [0], [0], [1], [0, 0, 1, 1], [], []>} : vector<16x32xbf16>, vector<32x64xbf16>, vector<16x64xf32> -> vector<16x64xf32>
    %97 = arith.addf %89, %96 : vector<16x64xf32>
    %c2_86 = arith.constant 2 : index
    %c0_87 = arith.constant 0 : index
    %c0_88 = arith.constant 0 : index
    %98 = vector.load %arg5[%c2_86, %c0_87, %c0_88] : memref<9x16x64xbf16, #tpu.memory_space<vmem>>, vector<1x16x64xbf16>
    %99 = vector.shape_cast %98 : vector<1x16x64xbf16> to vector<16x64xbf16>
    %cst_89 = arith.constant dense<0.000000e+00> : vector<16x32xf32>
    %100 = tpu.matmul %99, %80, %cst_89 {dimension_numbers = #tpu.dot_dimension_numbers<[1], [0], [0], [1], [0, 0, 1, 1], [], []>} : vector<16x64xbf16>, vector<64x32xbf16>, vector<16x32xf32> -> vector<16x32xf32>
    %101 = arith.truncf %100 : vector<16x32xf32> to vector<16x32xbf16>
    %c2_90 = arith.constant 2 : index
    %c0_91 = arith.constant 0 : index
    %c0_92 = arith.constant 0 : index
    %102 = vector.load %arg6[%c2_90, %c0_91, %c0_92] : memref<9x32x64xbf16, #tpu.memory_space<vmem>>, vector<1x32x64xbf16>
    %103 = vector.shape_cast %102 : vector<1x32x64xbf16> to vector<32x64xbf16>
    %cst_93 = arith.constant dense<0.000000e+00> : vector<16x64xf32>
    %104 = tpu.matmul %101, %103, %cst_93 {dimension_numbers = #tpu.dot_dimension_numbers<[1], [0], [0], [1], [0, 0, 1, 1], [], []>} : vector<16x32xbf16>, vector<32x64xbf16>, vector<16x64xf32> -> vector<16x64xf32>
    %105 = arith.addf %97, %104 : vector<16x64xf32>
    %c3_94 = arith.constant 3 : index
    %c0_95 = arith.constant 0 : index
    %c0_96 = arith.constant 0 : index
    %106 = vector.load %arg5[%c3_94, %c0_95, %c0_96] : memref<9x16x64xbf16, #tpu.memory_space<vmem>>, vector<1x16x64xbf16>
    %107 = vector.shape_cast %106 : vector<1x16x64xbf16> to vector<16x64xbf16>
    %cst_97 = arith.constant dense<0.000000e+00> : vector<16x32xf32>
    %108 = tpu.matmul %107, %80, %cst_97 {dimension_numbers = #tpu.dot_dimension_numbers<[1], [0], [0], [1], [0, 0, 1, 1], [], []>} : vector<16x64xbf16>, vector<64x32xbf16>, vector<16x32xf32> -> vector<16x32xf32>
    %109 = arith.truncf %108 : vector<16x32xf32> to vector<16x32xbf16>
    %c3_98 = arith.constant 3 : index
    %c0_99 = arith.constant 0 : index
    %c0_100 = arith.constant 0 : index
    %110 = vector.load %arg6[%c3_98, %c0_99, %c0_100] : memref<9x32x64xbf16, #tpu.memory_space<vmem>>, vector<1x32x64xbf16>
    %111 = vector.shape_cast %110 : vector<1x32x64xbf16> to vector<32x64xbf16>
    %cst_101 = arith.constant dense<0.000000e+00> : vector<16x64xf32>
    %112 = tpu.matmul %109, %111, %cst_101 {dimension_numbers = #tpu.dot_dimension_numbers<[1], [0], [0], [1], [0, 0, 1, 1], [], []>} : vector<16x32xbf16>, vector<32x64xbf16>, vector<16x64xf32> -> vector<16x64xf32>
    %113 = arith.addf %105, %112 : vector<16x64xf32>
    %c4_102 = arith.constant 4 : index
    %c0_103 = arith.constant 0 : index
    %c0_104 = arith.constant 0 : index
    %114 = vector.load %arg5[%c4_102, %c0_103, %c0_104] : memref<9x16x64xbf16, #tpu.memory_space<vmem>>, vector<1x16x64xbf16>
    %115 = vector.shape_cast %114 : vector<1x16x64xbf16> to vector<16x64xbf16>
    %cst_105 = arith.constant dense<0.000000e+00> : vector<16x32xf32>
    %116 = tpu.matmul %115, %80, %cst_105 {dimension_numbers = #tpu.dot_dimension_numbers<[1], [0], [0], [1], [0, 0, 1, 1], [], []>} : vector<16x64xbf16>, vector<64x32xbf16>, vector<16x32xf32> -> vector<16x32xf32>
    %117 = arith.truncf %116 : vector<16x32xf32> to vector<16x32xbf16>
    %c4_106 = arith.constant 4 : index
    %c0_107 = arith.constant 0 : index
    %c0_108 = arith.constant 0 : index
    %118 = vector.load %arg6[%c4_106, %c0_107, %c0_108] : memref<9x32x64xbf16, #tpu.memory_space<vmem>>, vector<1x32x64xbf16>
    %119 = vector.shape_cast %118 : vector<1x32x64xbf16> to vector<32x64xbf16>
    %cst_109 = arith.constant dense<0.000000e+00> : vector<16x64xf32>
    %120 = tpu.matmul %117, %119, %cst_109 {dimension_numbers = #tpu.dot_dimension_numbers<[1], [0], [0], [1], [0, 0, 1, 1], [], []>} : vector<16x32xbf16>, vector<32x64xbf16>, vector<16x64xf32> -> vector<16x64xf32>
    %121 = arith.addf %113, %120 : vector<16x64xf32>
    %c5_110 = arith.constant 5 : index
    %c0_111 = arith.constant 0 : index
    %c0_112 = arith.constant 0 : index
    %122 = vector.load %arg5[%c5_110, %c0_111, %c0_112] : memref<9x16x64xbf16, #tpu.memory_space<vmem>>, vector<1x16x64xbf16>
    %123 = vector.shape_cast %122 : vector<1x16x64xbf16> to vector<16x64xbf16>
    %cst_113 = arith.constant dense<0.000000e+00> : vector<16x32xf32>
    %124 = tpu.matmul %123, %80, %cst_113 {dimension_numbers = #tpu.dot_dimension_numbers<[1], [0], [0], [1], [0, 0, 1, 1], [], []>} : vector<16x64xbf16>, vector<64x32xbf16>, vector<16x32xf32> -> vector<16x32xf32>
    %125 = arith.truncf %124 : vector<16x32xf32> to vector<16x32xbf16>
    %c5_114 = arith.constant 5 : index
    %c0_115 = arith.constant 0 : index
    %c0_116 = arith.constant 0 : index
    %126 = vector.load %arg6[%c5_114, %c0_115, %c0_116] : memref<9x32x64xbf16, #tpu.memory_space<vmem>>, vector<1x32x64xbf16>
    %127 = vector.shape_cast %126 : vector<1x32x64xbf16> to vector<32x64xbf16>
    %cst_117 = arith.constant dense<0.000000e+00> : vector<16x64xf32>
    %128 = tpu.matmul %125, %127, %cst_117 {dimension_numbers = #tpu.dot_dimension_numbers<[1], [0], [0], [1], [0, 0, 1, 1], [], []>} : vector<16x32xbf16>, vector<32x64xbf16>, vector<16x64xf32> -> vector<16x64xf32>
    %129 = arith.addf %121, %128 : vector<16x64xf32>
    %c6_118 = arith.constant 6 : index
    %c0_119 = arith.constant 0 : index
    %c0_120 = arith.constant 0 : index
    %130 = vector.load %arg5[%c6_118, %c0_119, %c0_120] : memref<9x16x64xbf16, #tpu.memory_space<vmem>>, vector<1x16x64xbf16>
    %131 = vector.shape_cast %130 : vector<1x16x64xbf16> to vector<16x64xbf16>
    %cst_121 = arith.constant dense<0.000000e+00> : vector<16x32xf32>
    %132 = tpu.matmul %131, %80, %cst_121 {dimension_numbers = #tpu.dot_dimension_numbers<[1], [0], [0], [1], [0, 0, 1, 1], [], []>} : vector<16x64xbf16>, vector<64x32xbf16>, vector<16x32xf32> -> vector<16x32xf32>
    %133 = arith.truncf %132 : vector<16x32xf32> to vector<16x32xbf16>
    %c6_122 = arith.constant 6 : index
    %c0_123 = arith.constant 0 : index
    %c0_124 = arith.constant 0 : index
    %134 = vector.load %arg6[%c6_122, %c0_123, %c0_124] : memref<9x32x64xbf16, #tpu.memory_space<vmem>>, vector<1x32x64xbf16>
    %135 = vector.shape_cast %134 : vector<1x32x64xbf16> to vector<32x64xbf16>
    %cst_125 = arith.constant dense<0.000000e+00> : vector<16x64xf32>
    %136 = tpu.matmul %133, %135, %cst_125 {dimension_numbers = #tpu.dot_dimension_numbers<[1], [0], [0], [1], [0, 0, 1, 1], [], []>} : vector<16x32xbf16>, vector<32x64xbf16>, vector<16x64xf32> -> vector<16x64xf32>
    %137 = arith.addf %129, %136 : vector<16x64xf32>
    %c7_126 = arith.constant 7 : index
    %c0_127 = arith.constant 0 : index
    %c0_128 = arith.constant 0 : index
    %138 = vector.load %arg5[%c7_126, %c0_127, %c0_128] : memref<9x16x64xbf16, #tpu.memory_space<vmem>>, vector<1x16x64xbf16>
    %139 = vector.shape_cast %138 : vector<1x16x64xbf16> to vector<16x64xbf16>
    %cst_129 = arith.constant dense<0.000000e+00> : vector<16x32xf32>
    %140 = tpu.matmul %139, %80, %cst_129 {dimension_numbers = #tpu.dot_dimension_numbers<[1], [0], [0], [1], [0, 0, 1, 1], [], []>} : vector<16x64xbf16>, vector<64x32xbf16>, vector<16x32xf32> -> vector<16x32xf32>
    %141 = arith.truncf %140 : vector<16x32xf32> to vector<16x32xbf16>
    %c7_130 = arith.constant 7 : index
    %c0_131 = arith.constant 0 : index
    %c0_132 = arith.constant 0 : index
    %142 = vector.load %arg6[%c7_130, %c0_131, %c0_132] : memref<9x32x64xbf16, #tpu.memory_space<vmem>>, vector<1x32x64xbf16>
    %143 = vector.shape_cast %142 : vector<1x32x64xbf16> to vector<32x64xbf16>
    %cst_133 = arith.constant dense<0.000000e+00> : vector<16x64xf32>
    %144 = tpu.matmul %141, %143, %cst_133 {dimension_numbers = #tpu.dot_dimension_numbers<[1], [0], [0], [1], [0, 0, 1, 1], [], []>} : vector<16x32xbf16>, vector<32x64xbf16>, vector<16x64xf32> -> vector<16x64xf32>
    %145 = arith.addf %137, %144 : vector<16x64xf32>
    %c8_134 = arith.constant 8 : index
    %c0_135 = arith.constant 0 : index
    %c0_136 = arith.constant 0 : index
    %146 = vector.load %arg5[%c8_134, %c0_135, %c0_136] : memref<9x16x64xbf16, #tpu.memory_space<vmem>>, vector<1x16x64xbf16>
    %147 = vector.shape_cast %146 : vector<1x16x64xbf16> to vector<16x64xbf16>
    %cst_137 = arith.constant dense<0.000000e+00> : vector<16x32xf32>
    %148 = tpu.matmul %147, %80, %cst_137 {dimension_numbers = #tpu.dot_dimension_numbers<[1], [0], [0], [1], [0, 0, 1, 1], [], []>} : vector<16x64xbf16>, vector<64x32xbf16>, vector<16x32xf32> -> vector<16x32xf32>
    %149 = arith.truncf %148 : vector<16x32xf32> to vector<16x32xbf16>
    %c8_138 = arith.constant 8 : index
    %c0_139 = arith.constant 0 : index
    %c0_140 = arith.constant 0 : index
    %150 = vector.load %arg6[%c8_138, %c0_139, %c0_140] : memref<9x32x64xbf16, #tpu.memory_space<vmem>>, vector<1x32x64xbf16>
    %151 = vector.shape_cast %150 : vector<1x32x64xbf16> to vector<32x64xbf16>
    %cst_141 = arith.constant dense<0.000000e+00> : vector<16x64xf32>
    %152 = tpu.matmul %149, %151, %cst_141 {dimension_numbers = #tpu.dot_dimension_numbers<[1], [0], [0], [1], [0, 0, 1, 1], [], []>} : vector<16x32xbf16>, vector<32x64xbf16>, vector<16x64xf32> -> vector<16x64xf32>
    %153 = arith.addf %145, %152 : vector<16x64xf32>
    %c0_142 = arith.constant 0 : index
    %c0_143 = arith.constant 0 : index
    %154 = vector.load %arg7[%c0_142, %c0_143] : memref<1x64xf32, #tpu.memory_space<vmem>>, vector<1x64xf32>
    %155 = vector.broadcast %154 : vector<1x64xf32> to vector<16x64xf32>
    %156 = arith.addf %153, %155 : vector<16x64xf32>
    %cst_144 = arith.constant 0.000000e+00 : f32
    %157 = vector.broadcast %cst_144 : f32 to vector<16x64xf32>
    %158 = arith.maximumf %156, %157 : vector<16x64xf32>
    %159 = arith.truncf %158 : vector<16x64xf32> to vector<16x64xbf16>
    %cst_145 = arith.constant 0.000000e+00 : f32
    %160 = vector.broadcast %cst_145 : f32 to vector<4x64xf32>
    %c0_146 = arith.constant 0 : index
    %c0_147 = arith.constant 0 : index
    %c0_148 = arith.constant 0 : index
    %161 = vector.load %arg8[%c0_146, %c0_147, %c0_148] : memref<9x4x16xbf16, #tpu.memory_space<vmem>>, vector<1x4x16xbf16>
    %162 = vector.shape_cast %161 : vector<1x4x16xbf16> to vector<4x16xbf16>
    %cst_149 = arith.constant dense<0.000000e+00> : vector<4x64xf32>
    %163 = tpu.matmul %162, %159, %cst_149 {dimension_numbers = #tpu.dot_dimension_numbers<[1], [0], [0], [1], [0, 0, 1, 1], [], []>} : vector<4x16xbf16>, vector<16x64xbf16>, vector<4x64xf32> -> vector<4x64xf32>
    %164 = arith.truncf %163 : vector<4x64xf32> to vector<4x64xbf16>
    %c0_150 = arith.constant 0 : index
    %c0_151 = arith.constant 0 : index
    %c0_152 = arith.constant 0 : index
    %165 = vector.load %arg9[%c0_150, %c0_151, %c0_152] : memref<9x64x64xbf16, #tpu.memory_space<vmem>>, vector<1x64x64xbf16>
    %166 = vector.shape_cast %165 : vector<1x64x64xbf16> to vector<64x64xbf16>
    %cst_153 = arith.constant dense<0.000000e+00> : vector<4x64xf32>
    %167 = tpu.matmul %164, %166, %cst_153 {dimension_numbers = #tpu.dot_dimension_numbers<[1], [0], [0], [1], [0, 0, 1, 1], [], []>} : vector<4x64xbf16>, vector<64x64xbf16>, vector<4x64xf32> -> vector<4x64xf32>
    %168 = arith.addf %160, %167 : vector<4x64xf32>
    %c1_154 = arith.constant 1 : index
    %c0_155 = arith.constant 0 : index
    %c0_156 = arith.constant 0 : index
    %169 = vector.load %arg8[%c1_154, %c0_155, %c0_156] : memref<9x4x16xbf16, #tpu.memory_space<vmem>>, vector<1x4x16xbf16>
    %170 = vector.shape_cast %169 : vector<1x4x16xbf16> to vector<4x16xbf16>
    %cst_157 = arith.constant dense<0.000000e+00> : vector<4x64xf32>
    %171 = tpu.matmul %170, %159, %cst_157 {dimension_numbers = #tpu.dot_dimension_numbers<[1], [0], [0], [1], [0, 0, 1, 1], [], []>} : vector<4x16xbf16>, vector<16x64xbf16>, vector<4x64xf32> -> vector<4x64xf32>
    %172 = arith.truncf %171 : vector<4x64xf32> to vector<4x64xbf16>
    %c1_158 = arith.constant 1 : index
    %c0_159 = arith.constant 0 : index
    %c0_160 = arith.constant 0 : index
    %173 = vector.load %arg9[%c1_158, %c0_159, %c0_160] : memref<9x64x64xbf16, #tpu.memory_space<vmem>>, vector<1x64x64xbf16>
    %174 = vector.shape_cast %173 : vector<1x64x64xbf16> to vector<64x64xbf16>
    %cst_161 = arith.constant dense<0.000000e+00> : vector<4x64xf32>
    %175 = tpu.matmul %172, %174, %cst_161 {dimension_numbers = #tpu.dot_dimension_numbers<[1], [0], [0], [1], [0, 0, 1, 1], [], []>} : vector<4x64xbf16>, vector<64x64xbf16>, vector<4x64xf32> -> vector<4x64xf32>
    %176 = arith.addf %168, %175 : vector<4x64xf32>
    %c2_162 = arith.constant 2 : index
    %c0_163 = arith.constant 0 : index
    %c0_164 = arith.constant 0 : index
    %177 = vector.load %arg8[%c2_162, %c0_163, %c0_164] : memref<9x4x16xbf16, #tpu.memory_space<vmem>>, vector<1x4x16xbf16>
    %178 = vector.shape_cast %177 : vector<1x4x16xbf16> to vector<4x16xbf16>
    %cst_165 = arith.constant dense<0.000000e+00> : vector<4x64xf32>
    %179 = tpu.matmul %178, %159, %cst_165 {dimension_numbers = #tpu.dot_dimension_numbers<[1], [0], [0], [1], [0, 0, 1, 1], [], []>} : vector<4x16xbf16>, vector<16x64xbf16>, vector<4x64xf32> -> vector<4x64xf32>
    %180 = arith.truncf %179 : vector<4x64xf32> to vector<4x64xbf16>
    %c2_166 = arith.constant 2 : index
    %c0_167 = arith.constant 0 : index
    %c0_168 = arith.constant 0 : index
    %181 = vector.load %arg9[%c2_166, %c0_167, %c0_168] : memref<9x64x64xbf16, #tpu.memory_space<vmem>>, vector<1x64x64xbf16>
    %182 = vector.shape_cast %181 : vector<1x64x64xbf16> to vector<64x64xbf16>
    %cst_169 = arith.constant dense<0.000000e+00> : vector<4x64xf32>
    %183 = tpu.matmul %180, %182, %cst_169 {dimension_numbers = #tpu.dot_dimension_numbers<[1], [0], [0], [1], [0, 0, 1, 1], [], []>} : vector<4x64xbf16>, vector<64x64xbf16>, vector<4x64xf32> -> vector<4x64xf32>
    %184 = arith.addf %176, %183 : vector<4x64xf32>
    %c3_170 = arith.constant 3 : index
    %c0_171 = arith.constant 0 : index
    %c0_172 = arith.constant 0 : index
    %185 = vector.load %arg8[%c3_170, %c0_171, %c0_172] : memref<9x4x16xbf16, #tpu.memory_space<vmem>>, vector<1x4x16xbf16>
    %186 = vector.shape_cast %185 : vector<1x4x16xbf16> to vector<4x16xbf16>
    %cst_173 = arith.constant dense<0.000000e+00> : vector<4x64xf32>
    %187 = tpu.matmul %186, %159, %cst_173 {dimension_numbers = #tpu.dot_dimension_numbers<[1], [0], [0], [1], [0, 0, 1, 1], [], []>} : vector<4x16xbf16>, vector<16x64xbf16>, vector<4x64xf32> -> vector<4x64xf32>
    %188 = arith.truncf %187 : vector<4x64xf32> to vector<4x64xbf16>
    %c3_174 = arith.constant 3 : index
    %c0_175 = arith.constant 0 : index
    %c0_176 = arith.constant 0 : index
    %189 = vector.load %arg9[%c3_174, %c0_175, %c0_176] : memref<9x64x64xbf16, #tpu.memory_space<vmem>>, vector<1x64x64xbf16>
    %190 = vector.shape_cast %189 : vector<1x64x64xbf16> to vector<64x64xbf16>
    %cst_177 = arith.constant dense<0.000000e+00> : vector<4x64xf32>
    %191 = tpu.matmul %188, %190, %cst_177 {dimension_numbers = #tpu.dot_dimension_numbers<[1], [0], [0], [1], [0, 0, 1, 1], [], []>} : vector<4x64xbf16>, vector<64x64xbf16>, vector<4x64xf32> -> vector<4x64xf32>
    %192 = arith.addf %184, %191 : vector<4x64xf32>
    %c4_178 = arith.constant 4 : index
    %c0_179 = arith.constant 0 : index
    %c0_180 = arith.constant 0 : index
    %193 = vector.load %arg8[%c4_178, %c0_179, %c0_180] : memref<9x4x16xbf16, #tpu.memory_space<vmem>>, vector<1x4x16xbf16>
    %194 = vector.shape_cast %193 : vector<1x4x16xbf16> to vector<4x16xbf16>
    %cst_181 = arith.constant dense<0.000000e+00> : vector<4x64xf32>
    %195 = tpu.matmul %194, %159, %cst_181 {dimension_numbers = #tpu.dot_dimension_numbers<[1], [0], [0], [1], [0, 0, 1, 1], [], []>} : vector<4x16xbf16>, vector<16x64xbf16>, vector<4x64xf32> -> vector<4x64xf32>
    %196 = arith.truncf %195 : vector<4x64xf32> to vector<4x64xbf16>
    %c4_182 = arith.constant 4 : index
    %c0_183 = arith.constant 0 : index
    %c0_184 = arith.constant 0 : index
    %197 = vector.load %arg9[%c4_182, %c0_183, %c0_184] : memref<9x64x64xbf16, #tpu.memory_space<vmem>>, vector<1x64x64xbf16>
    %198 = vector.shape_cast %197 : vector<1x64x64xbf16> to vector<64x64xbf16>
    %cst_185 = arith.constant dense<0.000000e+00> : vector<4x64xf32>
    %199 = tpu.matmul %196, %198, %cst_185 {dimension_numbers = #tpu.dot_dimension_numbers<[1], [0], [0], [1], [0, 0, 1, 1], [], []>} : vector<4x64xbf16>, vector<64x64xbf16>, vector<4x64xf32> -> vector<4x64xf32>
    %200 = arith.addf %192, %199 : vector<4x64xf32>
    %c5_186 = arith.constant 5 : index
    %c0_187 = arith.constant 0 : index
    %c0_188 = arith.constant 0 : index
    %201 = vector.load %arg8[%c5_186, %c0_187, %c0_188] : memref<9x4x16xbf16, #tpu.memory_space<vmem>>, vector<1x4x16xbf16>
    %202 = vector.shape_cast %201 : vector<1x4x16xbf16> to vector<4x16xbf16>
    %cst_189 = arith.constant dense<0.000000e+00> : vector<4x64xf32>
    %203 = tpu.matmul %202, %159, %cst_189 {dimension_numbers = #tpu.dot_dimension_numbers<[1], [0], [0], [1], [0, 0, 1, 1], [], []>} : vector<4x16xbf16>, vector<16x64xbf16>, vector<4x64xf32> -> vector<4x64xf32>
    %204 = arith.truncf %203 : vector<4x64xf32> to vector<4x64xbf16>
    %c5_190 = arith.constant 5 : index
    %c0_191 = arith.constant 0 : index
    %c0_192 = arith.constant 0 : index
    %205 = vector.load %arg9[%c5_190, %c0_191, %c0_192] : memref<9x64x64xbf16, #tpu.memory_space<vmem>>, vector<1x64x64xbf16>
    %206 = vector.shape_cast %205 : vector<1x64x64xbf16> to vector<64x64xbf16>
    %cst_193 = arith.constant dense<0.000000e+00> : vector<4x64xf32>
    %207 = tpu.matmul %204, %206, %cst_193 {dimension_numbers = #tpu.dot_dimension_numbers<[1], [0], [0], [1], [0, 0, 1, 1], [], []>} : vector<4x64xbf16>, vector<64x64xbf16>, vector<4x64xf32> -> vector<4x64xf32>
    %208 = arith.addf %200, %207 : vector<4x64xf32>
    %c6_194 = arith.constant 6 : index
    %c0_195 = arith.constant 0 : index
    %c0_196 = arith.constant 0 : index
    %209 = vector.load %arg8[%c6_194, %c0_195, %c0_196] : memref<9x4x16xbf16, #tpu.memory_space<vmem>>, vector<1x4x16xbf16>
    %210 = vector.shape_cast %209 : vector<1x4x16xbf16> to vector<4x16xbf16>
    %cst_197 = arith.constant dense<0.000000e+00> : vector<4x64xf32>
    %211 = tpu.matmul %210, %159, %cst_197 {dimension_numbers = #tpu.dot_dimension_numbers<[1], [0], [0], [1], [0, 0, 1, 1], [], []>} : vector<4x16xbf16>, vector<16x64xbf16>, vector<4x64xf32> -> vector<4x64xf32>
    %212 = arith.truncf %211 : vector<4x64xf32> to vector<4x64xbf16>
    %c6_198 = arith.constant 6 : index
    %c0_199 = arith.constant 0 : index
    %c0_200 = arith.constant 0 : index
    %213 = vector.load %arg9[%c6_198, %c0_199, %c0_200] : memref<9x64x64xbf16, #tpu.memory_space<vmem>>, vector<1x64x64xbf16>
    %214 = vector.shape_cast %213 : vector<1x64x64xbf16> to vector<64x64xbf16>
    %cst_201 = arith.constant dense<0.000000e+00> : vector<4x64xf32>
    %215 = tpu.matmul %212, %214, %cst_201 {dimension_numbers = #tpu.dot_dimension_numbers<[1], [0], [0], [1], [0, 0, 1, 1], [], []>} : vector<4x64xbf16>, vector<64x64xbf16>, vector<4x64xf32> -> vector<4x64xf32>
    %216 = arith.addf %208, %215 : vector<4x64xf32>
    %c7_202 = arith.constant 7 : index
    %c0_203 = arith.constant 0 : index
    %c0_204 = arith.constant 0 : index
    %217 = vector.load %arg8[%c7_202, %c0_203, %c0_204] : memref<9x4x16xbf16, #tpu.memory_space<vmem>>, vector<1x4x16xbf16>
    %218 = vector.shape_cast %217 : vector<1x4x16xbf16> to vector<4x16xbf16>
    %cst_205 = arith.constant dense<0.000000e+00> : vector<4x64xf32>
    %219 = tpu.matmul %218, %159, %cst_205 {dimension_numbers = #tpu.dot_dimension_numbers<[1], [0], [0], [1], [0, 0, 1, 1], [], []>} : vector<4x16xbf16>, vector<16x64xbf16>, vector<4x64xf32> -> vector<4x64xf32>
    %220 = arith.truncf %219 : vector<4x64xf32> to vector<4x64xbf16>
    %c7_206 = arith.constant 7 : index
    %c0_207 = arith.constant 0 : index
    %c0_208 = arith.constant 0 : index
    %221 = vector.load %arg9[%c7_206, %c0_207, %c0_208] : memref<9x64x64xbf16, #tpu.memory_space<vmem>>, vector<1x64x64xbf16>
    %222 = vector.shape_cast %221 : vector<1x64x64xbf16> to vector<64x64xbf16>
    %cst_209 = arith.constant dense<0.000000e+00> : vector<4x64xf32>
    %223 = tpu.matmul %220, %222, %cst_209 {dimension_numbers = #tpu.dot_dimension_numbers<[1], [0], [0], [1], [0, 0, 1, 1], [], []>} : vector<4x64xbf16>, vector<64x64xbf16>, vector<4x64xf32> -> vector<4x64xf32>
    %224 = arith.addf %216, %223 : vector<4x64xf32>
    %c8_210 = arith.constant 8 : index
    %c0_211 = arith.constant 0 : index
    %c0_212 = arith.constant 0 : index
    %225 = vector.load %arg8[%c8_210, %c0_211, %c0_212] : memref<9x4x16xbf16, #tpu.memory_space<vmem>>, vector<1x4x16xbf16>
    %226 = vector.shape_cast %225 : vector<1x4x16xbf16> to vector<4x16xbf16>
    %cst_213 = arith.constant dense<0.000000e+00> : vector<4x64xf32>
    %227 = tpu.matmul %226, %159, %cst_213 {dimension_numbers = #tpu.dot_dimension_numbers<[1], [0], [0], [1], [0, 0, 1, 1], [], []>} : vector<4x16xbf16>, vector<16x64xbf16>, vector<4x64xf32> -> vector<4x64xf32>
    %228 = arith.truncf %227 : vector<4x64xf32> to vector<4x64xbf16>
    %c8_214 = arith.constant 8 : index
    %c0_215 = arith.constant 0 : index
    %c0_216 = arith.constant 0 : index
    %229 = vector.load %arg9[%c8_214, %c0_215, %c0_216] : memref<9x64x64xbf16, #tpu.memory_space<vmem>>, vector<1x64x64xbf16>
    %230 = vector.shape_cast %229 : vector<1x64x64xbf16> to vector<64x64xbf16>
    %cst_217 = arith.constant dense<0.000000e+00> : vector<4x64xf32>
    %231 = tpu.matmul %228, %230, %cst_217 {dimension_numbers = #tpu.dot_dimension_numbers<[1], [0], [0], [1], [0, 0, 1, 1], [], []>} : vector<4x64xbf16>, vector<64x64xbf16>, vector<4x64xf32> -> vector<4x64xf32>
    %232 = arith.addf %224, %231 : vector<4x64xf32>
    %c0_218 = arith.constant 0 : index
    %c0_219 = arith.constant 0 : index
    %233 = vector.load %arg10[%c0_218, %c0_219] : memref<1x64xf32, #tpu.memory_space<vmem>>, vector<1x64xf32>
    %234 = vector.broadcast %233 : vector<1x64xf32> to vector<4x64xf32>
    %235 = arith.addf %232, %234 : vector<4x64xf32>
    %cst_220 = arith.constant 0.000000e+00 : f32
    %236 = vector.broadcast %cst_220 : f32 to vector<4x64xf32>
    %237 = arith.maximumf %235, %236 : vector<4x64xf32>
    %238 = arith.truncf %237 : vector<4x64xf32> to vector<4x64xbf16>
    %cst_221 = arith.constant 0.000000e+00 : f32
    %239 = vector.broadcast %cst_221 : f32 to vector<1x128xf32>
    %c0_222 = arith.constant 0 : index
    %c0_223 = arith.constant 0 : index
    %c0_224 = arith.constant 0 : index
    %240 = vector.load %arg11[%c0_222, %c0_223, %c0_224] : memref<9x1x4xbf16, #tpu.memory_space<vmem>>, vector<1x1x4xbf16>
    %241 = vector.shape_cast %240 : vector<1x1x4xbf16> to vector<1x4xbf16>
    %cst_225 = arith.constant dense<0.000000e+00> : vector<1x64xf32>
    %242 = tpu.matmul %241, %238, %cst_225 {dimension_numbers = #tpu.dot_dimension_numbers<[1], [0], [0], [1], [0, 0, 1, 1], [], []>} : vector<1x4xbf16>, vector<4x64xbf16>, vector<1x64xf32> -> vector<1x64xf32>
    %243 = arith.truncf %242 : vector<1x64xf32> to vector<1x64xbf16>
    %c0_226 = arith.constant 0 : index
    %c0_227 = arith.constant 0 : index
    %c0_228 = arith.constant 0 : index
    %244 = vector.load %arg12[%c0_226, %c0_227, %c0_228] : memref<9x64x128xbf16, #tpu.memory_space<vmem>>, vector<1x64x128xbf16>
    %245 = vector.shape_cast %244 : vector<1x64x128xbf16> to vector<64x128xbf16>
    %cst_229 = arith.constant dense<0.000000e+00> : vector<1x128xf32>
    %246 = tpu.matmul %243, %245, %cst_229 {dimension_numbers = #tpu.dot_dimension_numbers<[1], [0], [0], [1], [0, 0, 1, 1], [], []>} : vector<1x64xbf16>, vector<64x128xbf16>, vector<1x128xf32> -> vector<1x128xf32>
    %247 = arith.addf %239, %246 : vector<1x128xf32>
    %c1_230 = arith.constant 1 : index
    %c0_231 = arith.constant 0 : index
    %c0_232 = arith.constant 0 : index
    %248 = vector.load %arg11[%c1_230, %c0_231, %c0_232] : memref<9x1x4xbf16, #tpu.memory_space<vmem>>, vector<1x1x4xbf16>
    %249 = vector.shape_cast %248 : vector<1x1x4xbf16> to vector<1x4xbf16>
    %cst_233 = arith.constant dense<0.000000e+00> : vector<1x64xf32>
    %250 = tpu.matmul %249, %238, %cst_233 {dimension_numbers = #tpu.dot_dimension_numbers<[1], [0], [0], [1], [0, 0, 1, 1], [], []>} : vector<1x4xbf16>, vector<4x64xbf16>, vector<1x64xf32> -> vector<1x64xf32>
    %251 = arith.truncf %250 : vector<1x64xf32> to vector<1x64xbf16>
    %c1_234 = arith.constant 1 : index
    %c0_235 = arith.constant 0 : index
    %c0_236 = arith.constant 0 : index
    %252 = vector.load %arg12[%c1_234, %c0_235, %c0_236] : memref<9x64x128xbf16, #tpu.memory_space<vmem>>, vector<1x64x128xbf16>
    %253 = vector.shape_cast %252 : vector<1x64x128xbf16> to vector<64x128xbf16>
    %cst_237 = arith.constant dense<0.000000e+00> : vector<1x128xf32>
    %254 = tpu.matmul %251, %253, %cst_237 {dimension_numbers = #tpu.dot_dimension_numbers<[1], [0], [0], [1], [0, 0, 1, 1], [], []>} : vector<1x64xbf16>, vector<64x128xbf16>, vector<1x128xf32> -> vector<1x128xf32>
    %255 = arith.addf %247, %254 : vector<1x128xf32>
    %c2_238 = arith.constant 2 : index
    %c0_239 = arith.constant 0 : index
    %c0_240 = arith.constant 0 : index
    %256 = vector.load %arg11[%c2_238, %c0_239, %c0_240] : memref<9x1x4xbf16, #tpu.memory_space<vmem>>, vector<1x1x4xbf16>
    %257 = vector.shape_cast %256 : vector<1x1x4xbf16> to vector<1x4xbf16>
    %cst_241 = arith.constant dense<0.000000e+00> : vector<1x64xf32>
    %258 = tpu.matmul %257, %238, %cst_241 {dimension_numbers = #tpu.dot_dimension_numbers<[1], [0], [0], [1], [0, 0, 1, 1], [], []>} : vector<1x4xbf16>, vector<4x64xbf16>, vector<1x64xf32> -> vector<1x64xf32>
    %259 = arith.truncf %258 : vector<1x64xf32> to vector<1x64xbf16>
    %c2_242 = arith.constant 2 : index
    %c0_243 = arith.constant 0 : index
    %c0_244 = arith.constant 0 : index
    %260 = vector.load %arg12[%c2_242, %c0_243, %c0_244] : memref<9x64x128xbf16, #tpu.memory_space<vmem>>, vector<1x64x128xbf16>
    %261 = vector.shape_cast %260 : vector<1x64x128xbf16> to vector<64x128xbf16>
    %cst_245 = arith.constant dense<0.000000e+00> : vector<1x128xf32>
    %262 = tpu.matmul %259, %261, %cst_245 {dimension_numbers = #tpu.dot_dimension_numbers<[1], [0], [0], [1], [0, 0, 1, 1], [], []>} : vector<1x64xbf16>, vector<64x128xbf16>, vector<1x128xf32> -> vector<1x128xf32>
    %263 = arith.addf %255, %262 : vector<1x128xf32>
    %c3_246 = arith.constant 3 : index
    %c0_247 = arith.constant 0 : index
    %c0_248 = arith.constant 0 : index
    %264 = vector.load %arg11[%c3_246, %c0_247, %c0_248] : memref<9x1x4xbf16, #tpu.memory_space<vmem>>, vector<1x1x4xbf16>
    %265 = vector.shape_cast %264 : vector<1x1x4xbf16> to vector<1x4xbf16>
    %cst_249 = arith.constant dense<0.000000e+00> : vector<1x64xf32>
    %266 = tpu.matmul %265, %238, %cst_249 {dimension_numbers = #tpu.dot_dimension_numbers<[1], [0], [0], [1], [0, 0, 1, 1], [], []>} : vector<1x4xbf16>, vector<4x64xbf16>, vector<1x64xf32> -> vector<1x64xf32>
    %267 = arith.truncf %266 : vector<1x64xf32> to vector<1x64xbf16>
    %c3_250 = arith.constant 3 : index
    %c0_251 = arith.constant 0 : index
    %c0_252 = arith.constant 0 : index
    %268 = vector.load %arg12[%c3_250, %c0_251, %c0_252] : memref<9x64x128xbf16, #tpu.memory_space<vmem>>, vector<1x64x128xbf16>
    %269 = vector.shape_cast %268 : vector<1x64x128xbf16> to vector<64x128xbf16>
    %cst_253 = arith.constant dense<0.000000e+00> : vector<1x128xf32>
    %270 = tpu.matmul %267, %269, %cst_253 {dimension_numbers = #tpu.dot_dimension_numbers<[1], [0], [0], [1], [0, 0, 1, 1], [], []>} : vector<1x64xbf16>, vector<64x128xbf16>, vector<1x128xf32> -> vector<1x128xf32>
    %271 = arith.addf %263, %270 : vector<1x128xf32>
    %c4_254 = arith.constant 4 : index
    %c0_255 = arith.constant 0 : index
    %c0_256 = arith.constant 0 : index
    %272 = vector.load %arg11[%c4_254, %c0_255, %c0_256] : memref<9x1x4xbf16, #tpu.memory_space<vmem>>, vector<1x1x4xbf16>
    %273 = vector.shape_cast %272 : vector<1x1x4xbf16> to vector<1x4xbf16>
    %cst_257 = arith.constant dense<0.000000e+00> : vector<1x64xf32>
    %274 = tpu.matmul %273, %238, %cst_257 {dimension_numbers = #tpu.dot_dimension_numbers<[1], [0], [0], [1], [0, 0, 1, 1], [], []>} : vector<1x4xbf16>, vector<4x64xbf16>, vector<1x64xf32> -> vector<1x64xf32>
    %275 = arith.truncf %274 : vector<1x64xf32> to vector<1x64xbf16>
    %c4_258 = arith.constant 4 : index
    %c0_259 = arith.constant 0 : index
    %c0_260 = arith.constant 0 : index
    %276 = vector.load %arg12[%c4_258, %c0_259, %c0_260] : memref<9x64x128xbf16, #tpu.memory_space<vmem>>, vector<1x64x128xbf16>
    %277 = vector.shape_cast %276 : vector<1x64x128xbf16> to vector<64x128xbf16>
    %cst_261 = arith.constant dense<0.000000e+00> : vector<1x128xf32>
    %278 = tpu.matmul %275, %277, %cst_261 {dimension_numbers = #tpu.dot_dimension_numbers<[1], [0], [0], [1], [0, 0, 1, 1], [], []>} : vector<1x64xbf16>, vector<64x128xbf16>, vector<1x128xf32> -> vector<1x128xf32>
    %279 = arith.addf %271, %278 : vector<1x128xf32>
    %c5_262 = arith.constant 5 : index
    %c0_263 = arith.constant 0 : index
    %c0_264 = arith.constant 0 : index
    %280 = vector.load %arg11[%c5_262, %c0_263, %c0_264] : memref<9x1x4xbf16, #tpu.memory_space<vmem>>, vector<1x1x4xbf16>
    %281 = vector.shape_cast %280 : vector<1x1x4xbf16> to vector<1x4xbf16>
    %cst_265 = arith.constant dense<0.000000e+00> : vector<1x64xf32>
    %282 = tpu.matmul %281, %238, %cst_265 {dimension_numbers = #tpu.dot_dimension_numbers<[1], [0], [0], [1], [0, 0, 1, 1], [], []>} : vector<1x4xbf16>, vector<4x64xbf16>, vector<1x64xf32> -> vector<1x64xf32>
    %283 = arith.truncf %282 : vector<1x64xf32> to vector<1x64xbf16>
    %c5_266 = arith.constant 5 : index
    %c0_267 = arith.constant 0 : index
    %c0_268 = arith.constant 0 : index
    %284 = vector.load %arg12[%c5_266, %c0_267, %c0_268] : memref<9x64x128xbf16, #tpu.memory_space<vmem>>, vector<1x64x128xbf16>
    %285 = vector.shape_cast %284 : vector<1x64x128xbf16> to vector<64x128xbf16>
    %cst_269 = arith.constant dense<0.000000e+00> : vector<1x128xf32>
    %286 = tpu.matmul %283, %285, %cst_269 {dimension_numbers = #tpu.dot_dimension_numbers<[1], [0], [0], [1], [0, 0, 1, 1], [], []>} : vector<1x64xbf16>, vector<64x128xbf16>, vector<1x128xf32> -> vector<1x128xf32>
    %287 = arith.addf %279, %286 : vector<1x128xf32>
    %c6_270 = arith.constant 6 : index
    %c0_271 = arith.constant 0 : index
    %c0_272 = arith.constant 0 : index
    %288 = vector.load %arg11[%c6_270, %c0_271, %c0_272] : memref<9x1x4xbf16, #tpu.memory_space<vmem>>, vector<1x1x4xbf16>
    %289 = vector.shape_cast %288 : vector<1x1x4xbf16> to vector<1x4xbf16>
    %cst_273 = arith.constant dense<0.000000e+00> : vector<1x64xf32>
    %290 = tpu.matmul %289, %238, %cst_273 {dimension_numbers = #tpu.dot_dimension_numbers<[1], [0], [0], [1], [0, 0, 1, 1], [], []>} : vector<1x4xbf16>, vector<4x64xbf16>, vector<1x64xf32> -> vector<1x64xf32>
    %291 = arith.truncf %290 : vector<1x64xf32> to vector<1x64xbf16>
    %c6_274 = arith.constant 6 : index
    %c0_275 = arith.constant 0 : index
    %c0_276 = arith.constant 0 : index
    %292 = vector.load %arg12[%c6_274, %c0_275, %c0_276] : memref<9x64x128xbf16, #tpu.memory_space<vmem>>, vector<1x64x128xbf16>
    %293 = vector.shape_cast %292 : vector<1x64x128xbf16> to vector<64x128xbf16>
    %cst_277 = arith.constant dense<0.000000e+00> : vector<1x128xf32>
    %294 = tpu.matmul %291, %293, %cst_277 {dimension_numbers = #tpu.dot_dimension_numbers<[1], [0], [0], [1], [0, 0, 1, 1], [], []>} : vector<1x64xbf16>, vector<64x128xbf16>, vector<1x128xf32> -> vector<1x128xf32>
    %295 = arith.addf %287, %294 : vector<1x128xf32>
    %c7_278 = arith.constant 7 : index
    %c0_279 = arith.constant 0 : index
    %c0_280 = arith.constant 0 : index
    %296 = vector.load %arg11[%c7_278, %c0_279, %c0_280] : memref<9x1x4xbf16, #tpu.memory_space<vmem>>, vector<1x1x4xbf16>
    %297 = vector.shape_cast %296 : vector<1x1x4xbf16> to vector<1x4xbf16>
    %cst_281 = arith.constant dense<0.000000e+00> : vector<1x64xf32>
    %298 = tpu.matmul %297, %238, %cst_281 {dimension_numbers = #tpu.dot_dimension_numbers<[1], [0], [0], [1], [0, 0, 1, 1], [], []>} : vector<1x4xbf16>, vector<4x64xbf16>, vector<1x64xf32> -> vector<1x64xf32>
    %299 = arith.truncf %298 : vector<1x64xf32> to vector<1x64xbf16>
    %c7_282 = arith.constant 7 : index
    %c0_283 = arith.constant 0 : index
    %c0_284 = arith.constant 0 : index
    %300 = vector.load %arg12[%c7_282, %c0_283, %c0_284] : memref<9x64x128xbf16, #tpu.memory_space<vmem>>, vector<1x64x128xbf16>
    %301 = vector.shape_cast %300 : vector<1x64x128xbf16> to vector<64x128xbf16>
    %cst_285 = arith.constant dense<0.000000e+00> : vector<1x128xf32>
    %302 = tpu.matmul %299, %301, %cst_285 {dimension_numbers = #tpu.dot_dimension_numbers<[1], [0], [0], [1], [0, 0, 1, 1], [], []>} : vector<1x64xbf16>, vector<64x128xbf16>, vector<1x128xf32> -> vector<1x128xf32>
    %303 = arith.addf %295, %302 : vector<1x128xf32>
    %c8_286 = arith.constant 8 : index
    %c0_287 = arith.constant 0 : index
    %c0_288 = arith.constant 0 : index
    %304 = vector.load %arg11[%c8_286, %c0_287, %c0_288] : memref<9x1x4xbf16, #tpu.memory_space<vmem>>, vector<1x1x4xbf16>
    %305 = vector.shape_cast %304 : vector<1x1x4xbf16> to vector<1x4xbf16>
    %cst_289 = arith.constant dense<0.000000e+00> : vector<1x64xf32>
    %306 = tpu.matmul %305, %238, %cst_289 {dimension_numbers = #tpu.dot_dimension_numbers<[1], [0], [0], [1], [0, 0, 1, 1], [], []>} : vector<1x4xbf16>, vector<4x64xbf16>, vector<1x64xf32> -> vector<1x64xf32>
    %307 = arith.truncf %306 : vector<1x64xf32> to vector<1x64xbf16>
    %c8_290 = arith.constant 8 : index
    %c0_291 = arith.constant 0 : index
    %c0_292 = arith.constant 0 : index
    %308 = vector.load %arg12[%c8_290, %c0_291, %c0_292] : memref<9x64x128xbf16, #tpu.memory_space<vmem>>, vector<1x64x128xbf16>
    %309 = vector.shape_cast %308 : vector<1x64x128xbf16> to vector<64x128xbf16>
    %cst_293 = arith.constant dense<0.000000e+00> : vector<1x128xf32>
    %310 = tpu.matmul %307, %309, %cst_293 {dimension_numbers = #tpu.dot_dimension_numbers<[1], [0], [0], [1], [0, 0, 1, 1], [], []>} : vector<1x64xbf16>, vector<64x128xbf16>, vector<1x128xf32> -> vector<1x128xf32>
    %311 = arith.addf %303, %310 : vector<1x128xf32>
    %c0_294 = arith.constant 0 : index
    %c0_295 = arith.constant 0 : index
    %312 = vector.load %arg13[%c0_294, %c0_295] : memref<1x128xf32, #tpu.memory_space<vmem>>, vector<1x128xf32>
    %313 = arith.addf %311, %312 : vector<1x128xf32>
    %cst_296 = arith.constant 0.000000e+00 : f32
    %314 = vector.broadcast %cst_296 : f32 to vector<1x128xf32>
    %315 = arith.maximumf %313, %314 : vector<1x128xf32>
    %316 = arith.truncf %315 : vector<1x128xf32> to vector<1x128xbf16>
    %317 = arith.extf %316 : vector<1x128xbf16> to vector<1x128xf32>
    %c0_297 = arith.constant 0 : index
    %c0_298 = arith.constant 0 : index
    %318 = vector.load %arg14[%c0_297, %c0_298] : memref<1x128xf32, #tpu.memory_space<vmem>>, vector<1x128xf32>
    %319 = arith.mulf %317, %318 : vector<1x128xf32>
    %cst_299 = arith.constant dense<0.000000e+00> : vector<1xf32>
    %320 = vector.multi_reduction <add>, %319, %cst_299 [1] : vector<1x128xf32> to vector<1xf32>
    %321 = vector.shape_cast %320 : vector<1xf32> to vector<1x1xf32>
    %cst_300 = arith.constant dense<0.000000e+00> : vector<1xf32>
    %322 = vector.multi_reduction <add>, %321, %cst_300 [0] : vector<1x1xf32> to vector<1xf32>
    %323 = vector.shape_cast %322 : vector<1xf32> to vector<1x1xf32>
    %c0_301 = arith.constant 0 : index
    %c0_302 = arith.constant 0 : index
    %324 = vector.load %arg15[%c0_301, %c0_302] : memref<1x1xf32, #tpu.memory_space<vmem>>, vector<1x1xf32>
    %325 = arith.addf %323, %324 : vector<1x1xf32>
    %cst_303 = arith.constant 0.000000e+00 : f32
    %326 = vector.broadcast %cst_303 : f32 to vector<1x1x128xf32>
    %327 = vector.shape_cast %325 : vector<1x1xf32> to vector<1x1x1xf32>
    %328 = vector.broadcast %327 : vector<1x1x1xf32> to vector<1x1x128xf32>
    %329 = arith.addf %326, %328 : vector<1x1x128xf32>
    %c0_304 = arith.constant 0 : index
    %c0_305 = arith.constant 0 : index
    %c0_306 = arith.constant 0 : index
    %330 = vector.load %arg16[%c0_304, %c0_305, %c0_306] : memref<1x1x128xf32, #tpu.memory_space<vmem>>, vector<1x1x128xf32>
    tpu.vector_store %arg16[%c0_304, %c0_305, %c0_306], %329 {strides = array<i32>} : memref<1x1x128xf32, #tpu.memory_space<vmem>>, vector<1x1x128xf32>,
    return
  }
  func.func @transform_0(%arg0: i32) -> (i32, i32, i32) {
    %c0_i32 = arith.constant 0 : i32
    %c0_i32_0 = arith.constant 0 : i32
    %c0_i32_1 = arith.constant 0 : i32
    return %arg0, %c0_i32, %c0_i32_0 : i32, i32, i32
  }
  func.func @transform_1(%arg0: i32) -> (i32, i32, i32) {
    %c0_i32 = arith.constant 0 : i32
    %c0_i32_0 = arith.constant 0 : i32
    %c0_i32_1 = arith.constant 0 : i32
    %c0_i32_2 = arith.constant 0 : i32
    return %c0_i32, %c0_i32_0, %c0_i32_1 : i32, i32, i32
  }
  func.func @transform_2(%arg0: i32) -> (i32, i32, i32) {
    %c0_i32 = arith.constant 0 : i32
    %c0_i32_0 = arith.constant 0 : i32
    %c0_i32_1 = arith.constant 0 : i32
    %c0_i32_2 = arith.constant 0 : i32
    return %c0_i32, %c0_i32_0, %c0_i32_1 : i32, i32, i32
  }
  func.func @transform_3(%arg0: i32) -> (i32, i32) {
    %c0_i32 = arith.constant 0 : i32
    %c0_i32_0 = arith.constant 0 : i32
    %c0_i32_1 = arith.constant 0 : i32
    return %c0_i32, %c0_i32_0 : i32, i32
  }
  func.func @transform_4(%arg0: i32) -> (i32, i32, i32) {
    %c0_i32 = arith.constant 0 : i32
    %c0_i32_0 = arith.constant 0 : i32
    %c0_i32_1 = arith.constant 0 : i32
    %c0_i32_2 = arith.constant 0 : i32
    return %c0_i32, %c0_i32_0, %c0_i32_1 : i32, i32, i32
  }
  func.func @transform_5(%arg0: i32) -> (i32, i32, i32) {
    %c0_i32 = arith.constant 0 : i32
    %c0_i32_0 = arith.constant 0 : i32
    %c0_i32_1 = arith.constant 0 : i32
    %c0_i32_2 = arith.constant 0 : i32
    return %c0_i32, %c0_i32_0, %c0_i32_1 : i32, i32, i32
  }
  func.func @transform_6(%arg0: i32) -> (i32, i32) {
    %c0_i32 = arith.constant 0 : i32
    %c0_i32_0 = arith.constant 0 : i32
    %c0_i32_1 = arith.constant 0 : i32
    return %c0_i32, %c0_i32_0 : i32, i32
  }
  func.func @transform_7(%arg0: i32) -> (i32, i32, i32) {
    %c0_i32 = arith.constant 0 : i32
    %c0_i32_0 = arith.constant 0 : i32
    %c0_i32_1 = arith.constant 0 : i32
    %c0_i32_2 = arith.constant 0 : i32
    return %c0_i32, %c0_i32_0, %c0_i32_1 : i32, i32, i32
  }
  func.func @transform_8(%arg0: i32) -> (i32, i32, i32) {
    %c0_i32 = arith.constant 0 : i32
    %c0_i32_0 = arith.constant 0 : i32
    %c0_i32_1 = arith.constant 0 : i32
    %c0_i32_2 = arith.constant 0 : i32
    return %c0_i32, %c0_i32_0, %c0_i32_1 : i32, i32, i32
  }
  func.func @transform_9(%arg0: i32) -> (i32, i32) {
    %c0_i32 = arith.constant 0 : i32
    %c0_i32_0 = arith.constant 0 : i32
    %c0_i32_1 = arith.constant 0 : i32
    return %c0_i32, %c0_i32_0 : i32, i32
  }
  func.func @transform_10(%arg0: i32) -> (i32, i32, i32) {
    %c0_i32 = arith.constant 0 : i32
    %c0_i32_0 = arith.constant 0 : i32
    %c0_i32_1 = arith.constant 0 : i32
    %c0_i32_2 = arith.constant 0 : i32
    return %c0_i32, %c0_i32_0, %c0_i32_1 : i32, i32, i32
  }
  func.func @transform_11(%arg0: i32) -> (i32, i32, i32) {
    %c0_i32 = arith.constant 0 : i32
    %c0_i32_0 = arith.constant 0 : i32
    %c0_i32_1 = arith.constant 0 : i32
    %c0_i32_2 = arith.constant 0 : i32
    return %c0_i32, %c0_i32_0, %c0_i32_1 : i32, i32, i32
  }
  func.func @transform_12(%arg0: i32) -> (i32, i32) {
    %c0_i32 = arith.constant 0 : i32
    %c0_i32_0 = arith.constant 0 : i32
    %c0_i32_1 = arith.constant 0 : i32
    return %c0_i32, %c0_i32_0 : i32, i32
  }
  func.func @transform_13(%arg0: i32) -> (i32, i32) {
    %c0_i32 = arith.constant 0 : i32
    %c0_i32_0 = arith.constant 0 : i32
    %c0_i32_1 = arith.constant 0 : i32
    return %c0_i32, %c0_i32_0 : i32, i32
  }
  func.func @transform_14(%arg0: i32) -> (i32, i32) {
    %c0_i32 = arith.constant 0 : i32
    %c0_i32_0 = arith.constant 0 : i32
    %c0_i32_1 = arith.constant 0 : i32
    return %c0_i32, %c0_i32_0 : i32, i32
  }
  func.func @transform_15(%arg0: i32) -> (i32, i32, i32) {
    %c0_i32 = arith.constant 0 : i32
    %c0_i32_0 = arith.constant 0 : i32
    %c0_i32_1 = arith.constant 0 : i32
    return %arg0, %c0_i32, %c0_i32_0 : i32, i32, i32
  }
}

</mosaic_0001>

<llo_original>
// kernel: critic_forward.1
$region0: #{critic_forward.1}
  #allocation0 [shape = 'u32[]', space=smem, size = 0x4, offset = 0x4, fixed_abs, tag = 'smem constant byte address 0x4 - core index']
  #allocation1 [shape = 'u32[144,128]{1,0:T(1,128)}', space=vmem, size = 0x12000, scoped, tag = 'internal scratch']
  #allocation2 [shape = 'f32[1,1]{1,0:T(1,128)S(1)}', space=vmem, size = 0x200, scoped, tag = 'scoped memory for critic_forward.1']
  %s0 = inlined_call_operand.vmem [shape: bf16[2,256,6], index: 0, kind: input, shape index: {}]
  %s1 = inlined_call_operand.vmem [shape: bf16[9,64,256], index: 1, kind: input, shape index: {}]
  %s2 = inlined_call_operand.hbm [shape: bf16[9,6,32], index: 2, kind: input, shape index: {}]
  %s3 = inlined_call_operand.vmem [shape: f32[1,32], index: 3, kind: input, shape index: {}]
  %s4 = inlined_call_operand.vmem [shape: bf16[9,16,64], index: 4, kind: input, shape index: {}]
  %s5 = inlined_call_operand.hbm [shape: bf16[9,32,64], index: 5, kind: input, shape index: {}]
  %s6 = inlined_call_operand.vmem [shape: f32[1,64], index: 6, kind: input, shape index: {}]
  %s7 = inlined_call_operand.vmem [shape: bf16[9,4,16], index: 7, kind: input, shape index: {}]
  %s8 = inlined_call_operand.hbm [shape: bf16[9,64,64], index: 8, kind: input, shape index: {}]
  %s9 = inlined_call_operand.vmem [shape: f32[1,64], index: 9, kind: input, shape index: {}]
  %s10 = inlined_call_operand.vmem [shape: bf16[9,1,4], index: 10, kind: input, shape index: {}]
  %s11 = inlined_call_operand.hbm [shape: bf16[9,64,128], index: 11, kind: input, shape index: {}]
  %s12 = inlined_call_operand.vmem [shape: f32[1,128], index: 12, kind: input, shape index: {}]
  %s13 = inlined_call_operand.vmem [shape: f32[1,128], index: 13, kind: input, shape index: {}]
  %s14 = inlined_call_operand.<no memory space> [shape: f32[1,1], index: 14, kind: input, shape index: {}]
  %s15 = inlined_call_operand.vmem [shape: f32[2,1,128], index: 15, kind: output, shape index: {}]
  %s16 = sld [smem:[#allocation0]]
  $region109: #{critic_forward.1} parent=0
    _
  %s18 = ssub.s32 1, %s16
  %s19 = scalar_select 0, %s18, %s16
  %v20 = vstv %s14
  %21 = vst [vmem:[#allocation2] sm:$0x1] %v20
  $region1: #{critic_forward.1} parent=0
    #allocation3 [shape = 'u8[18432]{0}', space=vmem, size = 0x4800, scoped, tag = 'input window, operand 2, single buffered']
    #allocation4 [shape = 's32[2]{0}', space=sflag, size = 0x8, scoped, tag = 'scoped memory for critic_forward.1']
    #allocation5 [shape = 'u8[73728]{0}', space=vmem, size = 0x12000, scoped, tag = 'input window, operand 5, single buffered']
    #allocation6 [shape = 's32[1]{0}', space=sflag, size = 0x4, scoped, tag = 'scoped memory for critic_forward.1']
    #allocation7 [shape = 'u8[147456]{0}', space=vmem, size = 0x24000, scoped, tag = 'input window, operand 8, single buffered']
    #allocation8 [shape = 'u8[147456]{0}', space=vmem, size = 0x24000, scoped, tag = 'input window, operand 11, single buffered']
    #allocation9 [shape = 's32[1]{0}', space=sflag, size = 0x4, scoped, tag = 'scoped memory for critic_forward.1']
    %22 = vsyncpa [#allocation4], 0
    %23 = vsyncpa [#allocation6], 0
    %24 = vsyncpa [#allocation9], 0
    loop: start=0, step=1, limit=4
    $region2: #{critic_forward.1} parent=1 // loop_pre_header
      _
    $region3: #{critic_forward.1} parent=1 // loop_header
      %s26 = sphi 0, %s30
      %p27 = scmp.ge.s32.totalorder %s26, 4
      %s36 = sphi 0, %s38
      %s39 = sphi 0, %s36
      %s40 = sphi 0, %s39
      %s56 = sphi 0, %s40
      %s60 = sphi 0, %s60
      %s62 = sphi 0, %s60
      %s63 = sphi 0, %s62
      %s77 = sphi 0, %s63
      %s81 = sphi 0, %s81
      %s83 = sphi 0, %s81
      %s84 = sphi 0, %s83
      %s98 = sphi 0, %s84
      %s102 = sphi 0, %s102
      %s104 = sphi 0, %s102
      %s105 = sphi 0, %s104
      %s119 = sphi 0, %s105
      %s123 = sphi 0, %s123
      %s125 = sphi 0, %s123
      %s126 = sphi 0, %s125
      %s140 = sphi 0, %s126
      %s144 = sphi 0, %s144
      %s146 = sphi 0, %s144
      %s147 = sphi 0, %s146
      %s161 = sphi 0, %s147
      %s165 = sphi 0, %s165
      %s167 = sphi 0, %s165
      %s168 = sphi 0, %s167
      %s182 = sphi 0, %s168
      %s186 = sphi 0, %s186
      %s188 = sphi 0, %s186
      %s189 = sphi 0, %s188
      %s203 = sphi 0, %s189
      %s207 = sphi 0, %s207
      %s209 = sphi 0, %s207
      %s210 = sphi 0, %s209
      %s224 = sphi 0, %s210
      %s228 = sphi 0, %s228
      %s230 = sphi 0, %s228
      %s231 = sphi 0, %s230
      %s245 = sphi 0, %s231
      %s249 = sphi 0, %s249
      %s251 = sphi 0, %s249
      %s252 = sphi 0, %s251
      %s266 = sphi 0, %s252
      %s270 = sphi 0, %s270
      %s272 = sphi 0, %s270
      %s273 = sphi 0, %s272
      %s287 = sphi 0, %s273
      %s291 = sphi 0, %s291
      %s293 = sphi 0, %s291
      %s294 = sphi 0, %s293
      %s308 = sphi 0, %s294
      %s312 = sphi 0, %s312
      %s314 = sphi 0, %s312
      %s315 = sphi 0, %s314
      %s329 = sphi 0, %s315
      %s333 = sphi 0, %s333
      %s335 = sphi 0, %s333
      %s336 = sphi 0, %s335
      %s350 = sphi 0, %s336
      %s356 = sphi 0, %s358
      %s359 = sphi 0, %s356
      %s360 = sphi 0, %s359
      %s376 = sphi 0, %s360
    $region4: #{critic_forward.1} parent=1 // loop_header_branch
      %29 = sbr.rel (%p27) target = $region8
    $region5: #{critic_forward.1} parent=1 // loop_body
      %s31 = ssub.s32 %s26, 1
      %s32 = ssub.s32 %s26, 2
      %s33 = sadd.s32 %s26, 1
      %s34 = ssub.s32 %s26, %s33
      %p35 = scmp.eq.s32.totalorder %s34, 0
      %s37 = sadd.s32 %s36, 1
      %s38 = scalar_select %p35, %s36, %s37
      %p41 = pneg %p35
      %p42 = scmp.eq.s32.totalorder %s26, 1
      %p43 = por %p41, %p42
      %p44 = scmp.ne.s32.totalorder %s36, %s39
      %p45 = scmp.eq.s32.totalorder %s26, 0
      %p46 = por %p44, %p45
      %p47 = scmp.ne.s32.totalorder %s36, %s39
      %p48 = scmp.eq.s32.totalorder %s31, 1
      %p49 = por %p47, %p48
      %p50 = scmp.ne.s32.totalorder %s39, %s40
      %p51 = scmp.eq.s32.totalorder %s31, 0
      %p52 = por %p50, %p51
      %p53 = scmp.ne.s32.totalorder %s39, %s40
      %p54 = scmp.eq.s32.totalorder %s32, 1
      %p55 = por %p53, %p54
      %p57 = scmp.ne.s32.totalorder %s40, %s56
      %p58 = scmp.eq.s32.totalorder %s32, 0
      %p59 = por %p57, %p58
      %s61 = sadd.s32 %s60, 1
      %p64 = scmp.eq.s32.totalorder %s26, 1
      %p65 = scmp.ne.s32.totalorder %s60, %s62
      %p66 = scmp.eq.s32.totalorder %s26, 0
      %p67 = por %p65, %p66
      %p68 = scmp.ne.s32.totalorder %s60, %s62
      %p69 = scmp.eq.s32.totalorder %s31, 1
      %p70 = por %p68, %p69
      %p71 = scmp.ne.s32.totalorder %s62, %s63
      %p72 = scmp.eq.s32.totalorder %s31, 0
      %p73 = por %p71, %p72
      %p74 = scmp.ne.s32.totalorder %s62, %s63
      %p75 = scmp.eq.s32.totalorder %s32, 1
      %p76 = por %p74, %p75
      %p78 = scmp.ne.s32.totalorder %s63, %s77
      %p79 = scmp.eq.s32.totalorder %s32, 0
      %p80 = por %p78, %p79
      %s82 = sadd.s32 %s81, 1
      %p85 = scmp.eq.s32.totalorder %s26, 1
      %p86 = scmp.ne.s32.totalorder %s81, %s83
      %p87 = scmp.eq.s32.totalorder %s26, 0
      %p88 = por %p86, %p87
      %p89 = scmp.ne.s32.totalorder %s81, %s83
      %p90 = scmp.eq.s32.totalorder %s31, 1
      %p91 = por %p89, %p90
      %p92 = scmp.ne.s32.totalorder %s83, %s84
      %p93 = scmp.eq.s32.totalorder %s31, 0
      %p94 = por %p92, %p93
      %p95 = scmp.ne.s32.totalorder %s83, %s84
      %p96 = scmp.eq.s32.totalorder %s32, 1
      %p97 = por %p95, %p96
      %p99 = scmp.ne.s32.totalorder %s84, %s98
      %p100 = scmp.eq.s32.totalorder %s32, 0
      %p101 = por %p99, %p100
      %s103 = sadd.s32 %s102, 1
      %p106 = scmp.eq.s32.totalorder %s26, 1
      %p107 = scmp.ne.s32.totalorder %s102, %s104
      %p108 = scmp.eq.s32.totalorder %s26, 0
      %p109 = por %p107, %p108
      %p110 = scmp.ne.s32.totalorder %s102, %s104
      %p111 = scmp.eq.s32.totalorder %s31, 1
      %p112 = por %p110, %p111
      %p113 = scmp.ne.s32.totalorder %s104, %s105
      %p114 = scmp.eq.s32.totalorder %s31, 0
      %p115 = por %p113, %p114
      %p116 = scmp.ne.s32.totalorder %s104, %s105
      %p117 = scmp.eq.s32.totalorder %s32, 1
      %p118 = por %p116, %p117
      %p120 = scmp.ne.s32.totalorder %s105, %s119
      %p121 = scmp.eq.s32.totalorder %s32, 0
      %p122 = por %p120, %p121
      %s124 = sadd.s32 %s123, 1
      %p127 = scmp.eq.s32.totalorder %s26, 1
      %p128 = scmp.ne.s32.totalorder %s123, %s125
      %p129 = scmp.eq.s32.totalorder %s26, 0
      %p130 = por %p128, %p129
      %p131 = scmp.ne.s32.totalorder %s123, %s125
      %p132 = scmp.eq.s32.totalorder %s31, 1
      %p133 = por %p131, %p132
      %p134 = scmp.ne.s32.totalorder %s125, %s126
      %p135 = scmp.eq.s32.totalorder %s31, 0
      %p136 = por %p134, %p135
      %p137 = scmp.ne.s32.totalorder %s125, %s126
      %p138 = scmp.eq.s32.totalorder %s32, 1
      %p139 = por %p137, %p138
      %p141 = scmp.ne.s32.totalorder %s126, %s140
      %p142 = scmp.eq.s32.totalorder %s32, 0
      %p143 = por %p141, %p142
      %s145 = sadd.s32 %s144, 1
      %p148 = scmp.eq.s32.totalorder %s26, 1
      %p149 = scmp.ne.s32.totalorder %s144, %s146
      %p150 = scmp.eq.s32.totalorder %s26, 0
      %p151 = por %p149, %p150
      %p152 = scmp.ne.s32.totalorder %s144, %s146
      %p153 = scmp.eq.s32.totalorder %s31, 1
      %p154 = por %p152, %p153
      %p155 = scmp.ne.s32.totalorder %s146, %s147
      %p156 = scmp.eq.s32.totalorder %s31, 0
      %p157 = por %p155, %p156
      %p158 = scmp.ne.s32.totalorder %s146, %s147
      %p159 = scmp.eq.s32.totalorder %s32, 1
      %p160 = por %p158, %p159
      %p162 = scmp.ne.s32.totalorder %s147, %s161
      %p163 = scmp.eq.s32.totalorder %s32, 0
      %p164 = por %p162, %p163
      %s166 = sadd.s32 %s165, 1
      %p169 = scmp.eq.s32.totalorder %s26, 1
      %p170 = scmp.ne.s32.totalorder %s165, %s167
      %p171 = scmp.eq.s32.totalorder %s26, 0
      %p172 = por %p170, %p171
      %p173 = scmp.ne.s32.totalorder %s165, %s167
      %p174 = scmp.eq.s32.totalorder %s31, 1
      %p175 = por %p173, %p174
      %p176 = scmp.ne.s32.totalorder %s167, %s168
      %p177 = scmp.eq.s32.totalorder %s31, 0
      %p178 = por %p176, %p177
      %p179 = scmp.ne.s32.totalorder %s167, %s168
      %p180 = scmp.eq.s32.totalorder %s32, 1
      %p181 = por %p179, %p180
      %p183 = scmp.ne.s32.totalorder %s168, %s182
      %p184 = scmp.eq.s32.totalorder %s32, 0
      %p185 = por %p183, %p184
      %s187 = sadd.s32 %s186, 1
      %p190 = scmp.eq.s32.totalorder %s26, 1
      %p191 = scmp.ne.s32.totalorder %s186, %s188
      %p192 = scmp.eq.s32.totalorder %s26, 0
      %p193 = por %p191, %p192
      %p194 = scmp.ne.s32.totalorder %s186, %s188
      %p195 = scmp.eq.s32.totalorder %s31, 1
      %p196 = por %p194, %p195
      %p197 = scmp.ne.s32.totalorder %s188, %s189
      %p198 = scmp.eq.s32.totalorder %s31, 0
      %p199 = por %p197, %p198
      %p200 = scmp.ne.s32.totalorder %s188, %s189
      %p201 = scmp.eq.s32.totalorder %s32, 1
      %p202 = por %p200, %p201
      %p204 = scmp.ne.s32.totalorder %s189, %s203
      %p205 = scmp.eq.s32.totalorder %s32, 0
      %p206 = por %p204, %p205
      %s208 = sadd.s32 %s207, 1
      %p211 = scmp.eq.s32.totalorder %s26, 1
      %p212 = scmp.ne.s32.totalorder %s207, %s209
      %p213 = scmp.eq.s32.totalorder %s26, 0
      %p214 = por %p212, %p213
      %p215 = scmp.ne.s32.totalorder %s207, %s209
      %p216 = scmp.eq.s32.totalorder %s31, 1
      %p217 = por %p215, %p216
      %p218 = scmp.ne.s32.totalorder %s209, %s210
      %p219 = scmp.eq.s32.totalorder %s31, 0
      %p220 = por %p218, %p219
      %p221 = scmp.ne.s32.totalorder %s209, %s210
      %p222 = scmp.eq.s32.totalorder %s32, 1
      %p223 = por %p221, %p222
      %p225 = scmp.ne.s32.totalorder %s210, %s224
      %p226 = scmp.eq.s32.totalorder %s32, 0
      %p227 = por %p225, %p226
      %s229 = sadd.s32 %s228, 1
      %p232 = scmp.eq.s32.totalorder %s26, 1
      %p233 = scmp.ne.s32.totalorder %s228, %s230
      %p234 = scmp.eq.s32.totalorder %s26, 0
      %p235 = por %p233, %p234
      %p236 = scmp.ne.s32.totalorder %s228, %s230
      %p237 = scmp.eq.s32.totalorder %s31, 1
      %p238 = por %p236, %p237
      %p239 = scmp.ne.s32.totalorder %s230, %s231
      %p240 = scmp.eq.s32.totalorder %s31, 0
      %p241 = por %p239, %p240
      %p242 = scmp.ne.s32.totalorder %s230, %s231
      %p243 = scmp.eq.s32.totalorder %s32, 1
      %p244 = por %p242, %p243
      %p246 = scmp.ne.s32.totalorder %s231, %s245
      %p247 = scmp.eq.s32.totalorder %s32, 0
      %p248 = por %p246, %p247
      %s250 = sadd.s32 %s249, 1
      %p253 = scmp.eq.s32.totalorder %s26, 1
      %p254 = scmp.ne.s32.totalorder %s249, %s251
      %p255 = scmp.eq.s32.totalorder %s26, 0
      %p256 = por %p254, %p255
      %p257 = scmp.ne.s32.totalorder %s249, %s251
      %p258 = scmp.eq.s32.totalorder %s31, 1
      %p259 = por %p257, %p258
      %p260 = scmp.ne.s32.totalorder %s251, %s252
      %p261 = scmp.eq.s32.totalorder %s31, 0
      %p262 = por %p260, %p261
      %p263 = scmp.ne.s32.totalorder %s251, %s252
      %p264 = scmp.eq.s32.totalorder %s32, 1
      %p265 = por %p263, %p264
      %p267 = scmp.ne.s32.totalorder %s252, %s266
      %p268 = scmp.eq.s32.totalorder %s32, 0
      %p269 = por %p267, %p268
      %s271 = sadd.s32 %s270, 1
      %p274 = scmp.eq.s32.totalorder %s26, 1
      %p275 = scmp.ne.s32.totalorder %s270, %s272
      %p276 = scmp.eq.s32.totalorder %s26, 0
      %p277 = por %p275, %p276
      %p278 = scmp.ne.s32.totalorder %s270, %s272
      %p279 = scmp.eq.s32.totalorder %s31, 1
      %p280 = por %p278, %p279
      %p281 = scmp.ne.s32.totalorder %s272, %s273
      %p282 = scmp.eq.s32.totalorder %s31, 0
      %p283 = por %p281, %p282
      %p284 = scmp.ne.s32.totalorder %s272, %s273
      %p285 = scmp.eq.s32.totalorder %s32, 1
      %p286 = por %p284, %p285
      %p288 = scmp.ne.s32.totalorder %s273, %s287
      %p289 = scmp.eq.s32.totalorder %s32, 0
      %p290 = por %p288, %p289
      %s292 = sadd.s32 %s291, 1
      %p295 = scmp.eq.s32.totalorder %s26, 1
      %p296 = scmp.ne.s32.totalorder %s291, %s293
      %p297 = scmp.eq.s32.totalorder %s26, 0
      %p298 = por %p296, %p297
      %p299 = scmp.ne.s32.totalorder %s291, %s293
      %p300 = scmp.eq.s32.totalorder %s31, 1
      %p301 = por %p299, %p300
      %p302 = scmp.ne.s32.totalorder %s293, %s294
      %p303 = scmp.eq.s32.totalorder %s31, 0
      %p304 = por %p302, %p303
      %p305 = scmp.ne.s32.totalorder %s293, %s294
      %p306 = scmp.eq.s32.totalorder %s32, 1
      %p307 = por %p305, %p306
      %p309 = scmp.ne.s32.totalorder %s294, %s308
      %p310 = scmp.eq.s32.totalorder %s32, 0
      %p311 = por %p309, %p310
      %s313 = sadd.s32 %s312, 1
      %p316 = scmp.eq.s32.totalorder %s26, 1
      %p317 = scmp.ne.s32.totalorder %s312, %s314
      %p318 = scmp.eq.s32.totalorder %s26, 0
      %p319 = por %p317, %p318
      %p320 = scmp.ne.s32.totalorder %s312, %s314
      %p321 = scmp.eq.s32.totalorder %s31, 1
      %p322 = por %p320, %p321
      %p323 = scmp.ne.s32.totalorder %s314, %s315
      %p324 = scmp.eq.s32.totalorder %s31, 0
      %p325 = por %p323, %p324
      %p326 = scmp.ne.s32.totalorder %s314, %s315
      %p327 = scmp.eq.s32.totalorder %s32, 1
      %p328 = por %p326, %p327
      %p330 = scmp.ne.s32.totalorder %s315, %s329
      %p331 = scmp.eq.s32.totalorder %s32, 0
      %p332 = por %p330, %p331
      %s334 = sadd.s32 %s333, 1
      %p337 = scmp.eq.s32.totalorder %s26, 1
      %p338 = scmp.ne.s32.totalorder %s333, %s335
      %p339 = scmp.eq.s32.totalorder %s26, 0
      %p340 = por %p338, %p339
      %p341 = scmp.ne.s32.totalorder %s333, %s335
      %p342 = scmp.eq.s32.totalorder %s31, 1
      %p343 = por %p341, %p342
      %p344 = scmp.ne.s32.totalorder %s335, %s336
      %p345 = scmp.eq.s32.totalorder %s31, 0
      %p346 = por %p344, %p345
      %p347 = scmp.ne.s32.totalorder %s335, %s336
      %p348 = scmp.eq.s32.totalorder %s32, 1
      %p349 = por %p347, %p348
      %p351 = scmp.ne.s32.totalorder %s336, %s350
      %p352 = scmp.eq.s32.totalorder %s32, 0
      %p353 = por %p351, %p352
      %s354 = ssub.s32 %s26, %s33
      %p355 = scmp.eq.s32.totalorder %s354, 0
      %s357 = sadd.s32 %s356, 1
      %s358 = scalar_select %p355, %s356, %s357
      %p361 = pneg %p355
      %p362 = scmp.eq.s32.totalorder %s26, 1
      %p363 = por %p361, %p362
      %p364 = scmp.ne.s32.totalorder %s356, %s359
      %p365 = scmp.eq.s32.totalorder %s26, 0
      %p366 = por %p364, %p365
      %p367 = scmp.ne.s32.totalorder %s356, %s359
      %p368 = scmp.eq.s32.totalorder %s31, 1
      %p369 = por %p367, %p368
      %p370 = scmp.ne.s32.totalorder %s359, %s360
      %p371 = scmp.eq.s32.totalorder %s31, 0
      %p372 = por %p370, %p371
      %p373 = scmp.ne.s32.totalorder %s359, %s360
      %p374 = scmp.eq.s32.totalorder %s32, 1
      %p375 = por %p373, %p374
      %p377 = scmp.ne.s32.totalorder %s360, %s376
      %p378 = scmp.eq.s32.totalorder %s32, 0
      %p379 = por %p377, %p378
      %p380 = scmp.le.s32.totalorder 1, %s26
      %p381 = scmp.lt.s32.totalorder %s26, 3
      %p382 = pnand %p380, %p381
      %p383 = pneg %p382
      // Predicated region
      $region9: #{critic_forward.1} parent=5 // pred_check
        _
      $region10: #{critic_forward.1} parent=5 // pred_check_branch
        %385 = sbr.rel (%p382) target = $region12
      $region11: #{critic_forward.1} parent=5 // pred_region
        %s386 = ssub.s32 %s26, 1
        // Predicated region
        $region13: #{critic_forward.1} parent=11 // pred_check
          %p387 = pneg %p73
        $region14: #{critic_forward.1} parent=11 // pred_check_branch
          %389 = sbr.rel (%p387) target = $region16
        $region15: #{critic_forward.1} parent=11 // pred_region
          _
        $region16: #{critic_forward.1} parent=11 // pred_fallthru
          _
        // Predicated region
        $region17: #{critic_forward.1} parent=11 // pred_check
          %p390 = pneg %p94
        $region18: #{critic_forward.1} parent=11 // pred_check_branch
          %392 = sbr.rel (%p390) target = $region20
        $region19: #{critic_forward.1} parent=11 // pred_region
          %s394 = ssub.s32 576, 576
          %395 = vsyncadd [#allocation4], %s394
          %s396 = sshll.u32 [#allocation3], 4
          %s397 = int_to_ptr.vmem [resolvable:$true] %s396
          %402 = dma.hbm_to_vmem [thread:$0]  %s2, 576, %s397, [#allocation4], 64, 64, 4
        $region20: #{critic_forward.1} parent=11 // pred_fallthru
          _
        // Predicated region
        $region21: #{critic_forward.1} parent=11 // pred_check
          %p403 = pneg %p115
        $region22: #{critic_forward.1} parent=11 // pred_check_branch
          %405 = sbr.rel (%p403) target = $region24
        $region23: #{critic_forward.1} parent=11 // pred_region
          _
        $region24: #{critic_forward.1} parent=11 // pred_fallthru
          _
        // Predicated region
        $region25: #{critic_forward.1} parent=11 // pred_check
          %p406 = pneg %p136
        $region26: #{critic_forward.1} parent=11 // pred_check_branch
          %408 = sbr.rel (%p406) target = $region28
        $region27: #{critic_forward.1} parent=11 // pred_region
          _
        $region28: #{critic_forward.1} parent=11 // pred_fallthru
          _
        // Predicated region
        $region29: #{critic_forward.1} parent=11 // pred_check
          %p409 = pneg %p157
        $region30: #{critic_forward.1} parent=11 // pred_check_branch
          %411 = sbr.rel (%p409) target = $region32
        $region31: #{critic_forward.1} parent=11 // pred_region
          %s413 = ssub.s32 2304, 2304
          %414 = vsyncadd [#allocation6], %s413
          %s415 = sshll.u32 [#allocation5], 4
          %s416 = int_to_ptr.vmem [resolvable:$true] %s415
          %421 = dma.hbm_to_vmem [thread:$0]  %s5, 2304, %s416, [#allocation6], 64, 64, 4
        $region32: #{critic_forward.1} parent=11 // pred_fallthru
          _
        // Predicated region
        $region33: #{critic_forward.1} parent=11 // pred_check
          %p422 = pneg %p178
        $region34: #{critic_forward.1} parent=11 // pred_check_branch
          %424 = sbr.rel (%p422) target = $region36
        $region35: #{critic_forward.1} parent=11 // pred_region
          _
        $region36: #{critic_forward.1} parent=11 // pred_fallthru
          _
        // Predicated region
        $region37: #{critic_forward.1} parent=11 // pred_check
          %p425 = pneg %p199
        $region38: #{critic_forward.1} parent=11 // pred_check_branch
          %427 = sbr.rel (%p425) target = $region40
        $region39: #{critic_forward.1} parent=11 // pred_region
          _
        $region40: #{critic_forward.1} parent=11 // pred_fallthru
          _
        // Predicated region
        $region41: #{critic_forward.1} parent=11 // pred_check
          %p428 = pneg %p220
        $region42: #{critic_forward.1} parent=11 // pred_check_branch
          %430 = sbr.rel (%p428) target = $region44
        $region43: #{critic_forward.1} parent=11 // pred_region
          %s432 = ssub.s32 4608, 4608
          %433 = vsyncadd [#allocation6], %s432
          %s434 = sshll.u32 [#allocation7], 4
          %s435 = int_to_ptr.vmem [resolvable:$true] %s434
          %440 = dma.hbm_to_vmem [thread:$0]  %s8, 4608, %s435, [#allocation6], 64, 64, 4
        $region44: #{critic_forward.1} parent=11 // pred_fallthru
          _
        // Predicated region
        $region45: #{critic_forward.1} parent=11 // pred_check
          %p441 = pneg %p241
        $region46: #{critic_forward.1} parent=11 // pred_check_branch
          %443 = sbr.rel (%p441) target = $region48
        $region47: #{critic_forward.1} parent=11 // pred_region
          _
        $region48: #{critic_forward.1} parent=11 // pred_fallthru
          _
        // Predicated region
        $region49: #{critic_forward.1} parent=11 // pred_check
          %p444 = pneg %p262
        $region50: #{critic_forward.1} parent=11 // pred_check_branch
          %446 = sbr.rel (%p444) target = $region52
        $region51: #{critic_forward.1} parent=11 // pred_region
          _
        $region52: #{critic_forward.1} parent=11 // pred_fallthru
          _
        // Predicated region
        $region53: #{critic_forward.1} parent=11 // pred_check
          %p447 = pneg %p283
        $region54: #{critic_forward.1} parent=11 // pred_check_branch
          %449 = sbr.rel (%p447) target = $region56
        $region55: #{critic_forward.1} parent=11 // pred_region
          %s451 = ssub.s32 4608, 4608
          %452 = vsyncadd [#allocation9], %s451
          %s453 = sshll.u32 [#allocation8], 4
          %s454 = int_to_ptr.vmem [resolvable:$true] %s453
          %459 = dma.hbm_to_vmem [thread:$0]  %s11, 4608, %s454, [#allocation9], 64, 64, 4
        $region56: #{critic_forward.1} parent=11 // pred_fallthru
          _
        // Predicated region
        $region57: #{critic_forward.1} parent=11 // pred_check
          %p460 = pneg %p304
        $region58: #{critic_forward.1} parent=11 // pred_check_branch
          %462 = sbr.rel (%p460) target = $region60
        $region59: #{critic_forward.1} parent=11 // pred_region
          _
        $region60: #{critic_forward.1} parent=11 // pred_fallthru
          _
        // Predicated region
        $region61: #{critic_forward.1} parent=11 // pred_check
          %p463 = pneg %p325
        $region62: #{critic_forward.1} parent=11 // pred_check_branch
          %465 = sbr.rel (%p463) target = $region64
        $region63: #{critic_forward.1} parent=11 // pred_region
          _
        $region64: #{critic_forward.1} parent=11 // pred_fallthru
          _
        // Predicated region
        $region65: #{critic_forward.1} parent=11 // pred_check
          %p466 = pneg %p346
        $region66: #{critic_forward.1} parent=11 // pred_check_branch
          %468 = sbr.rel (%p466) target = $region68
        $region67: #{critic_forward.1} parent=11 // pred_region
          _
        $region68: #{critic_forward.1} parent=11 // pred_fallthru
          _
      $region12: #{critic_forward.1} parent=5 // pred_fallthru
        _
      %p469 = scmp.lt.s32.totalorder %s26, 2
      // Predicated region
      $region69: #{critic_forward.1} parent=5 // pred_check
        %p470 = pneg %p469
      $region70: #{critic_forward.1} parent=5 // pred_check_branch
        %472 = sbr.rel (%p470) target = $region72
      $region71: #{critic_forward.1} parent=5 // pred_region
        // Predicated region
        $region73: #{critic_forward.1} parent=71 // pred_check
          %p473 = pneg %p46
        $region74: #{critic_forward.1} parent=71 // pred_check_branch
          %475 = sbr.rel (%p473) target = $region76
        $region75: #{critic_forward.1} parent=71 // pred_region
          %p476 = scmp.lt.s32.totalorder %s26, 1
          %s477 = scalar_select %p476, %s26, 1
          %s478 = smul.addr %s477, 32
          %s479 = smul.addr %s478, 4
          %s480 = scalar_lea.vmem %s0, %s479
        $region76: #{critic_forward.1} parent=71 // pred_fallthru
          _
      $region72: #{critic_forward.1} parent=5 // pred_fallthru
        _
      %p481 = scmp.le.s32.totalorder 1, %s26
      %p482 = scmp.lt.s32.totalorder %s26, 3
      %p483 = pnand %p481, %p482
      %p484 = pneg %p483
      // Predicated region
      $region77: #{critic_forward.1} parent=5 // pred_check
        _
      $region78: #{critic_forward.1} parent=5 // pred_check_branch
        %486 = sbr.rel (%p483) target = $region80
      $region79: #{critic_forward.1} parent=5 // pred_region
        %s487 = ssub.s32 %s26, 1
        // Predicated region
        $region81: #{critic_forward.1} parent=79 // pred_check
          %p488 = pneg %p94
        $region82: #{critic_forward.1} parent=79 // pred_check_branch
          %490 = sbr.rel (%p488) target = $region84
        $region83: #{critic_forward.1} parent=79 // pred_region
          %491 = dma.done [#allocation4], 576
        $region84: #{critic_forward.1} parent=79 // pred_fallthru
          _
        // Predicated region
        $region85: #{critic_forward.1} parent=79 // pred_check
          %p492 = pneg %p157
        $region86: #{critic_forward.1} parent=79 // pred_check_branch
          %494 = sbr.rel (%p492) target = $region88
        $region87: #{critic_forward.1} parent=79 // pred_region
          %495 = dma.done [#allocation6], 2304
        $region88: #{critic_forward.1} parent=79 // pred_fallthru
          _
        // Predicated region
        $region89: #{critic_forward.1} parent=79 // pred_check
          %p496 = pneg %p220
        $region90: #{critic_forward.1} parent=79 // pred_check_branch
          %498 = sbr.rel (%p496) target = $region92
        $region91: #{critic_forward.1} parent=79 // pred_region
          %499 = dma.done [#allocation6], 4608
        $region92: #{critic_forward.1} parent=79 // pred_fallthru
          _
        // Predicated region
        $region93: #{critic_forward.1} parent=79 // pred_check
          %p500 = pneg %p283
        $region94: #{critic_forward.1} parent=79 // pred_check_branch
          %502 = sbr.rel (%p500) target = $region96
        $region95: #{critic_forward.1} parent=79 // pred_region
          %503 = dma.done [#allocation9], 4608
        $region96: #{critic_forward.1} parent=79 // pred_fallthru
          _
        %p504 = scmp.lt.s32.totalorder %s31, 1
        %s505 = scalar_select %p504, %s31, 1
        %s506 = smul.addr %s505, 32
        %s507 = smul.addr %s506, 4
        %s508 = scalar_lea.vmem %s0, %s507
        %p509 = pneg %p52
        %p510 = pneg %p49
        %p511 = pneg %p73
        %p512 = pneg %p70
        %p513 = pneg %p94
        %p514 = pneg %p91
        %p515 = pneg %p115
        %p516 = pneg %p112
        %p517 = pneg %p136
        %p518 = pneg %p133
        %p519 = pneg %p157
        %p520 = pneg %p154
        %p521 = pneg %p178
        %p522 = pneg %p175
        %p523 = pneg %p199
        %p524 = pneg %p196
        %p525 = pneg %p220
        %p526 = pneg %p217
        %p527 = pneg %p241
        %p528 = pneg %p238
        %p529 = pneg %p262
        %p530 = pneg %p259
        %p531 = pneg %p283
        %p532 = pneg %p280
        %p533 = pneg %p304
        %p534 = pneg %p301
        %p535 = pneg %p325
        %p536 = pneg %p322
        %p537 = pneg %p346
        %p538 = pneg %p343
        %p539 = pneg %p372
        %p540 = pneg %p369
        %p541 = scmp.lt.s32.totalorder %s31, 1
        %s542 = scalar_select %p541, %s31, 1
        %s543 = scalar_lea.vmem %s15, %s542
        %p544 = scmp.lt.s32.totalorder %s31, 1
        %s545 = scalar_select %p544, %s31, 1
        %s546 = smul.addr %s545, 32
        %s547 = smul.addr %s546, 4
        %s548 = scalar_lea.vmem %s0, %s547
        %p549 = scmp.lt.s32.totalorder %s31, 1
        %s550 = scalar_select %p549, %s31, 1
        %s551 = scalar_lea.vmem %s15, %s550
        %v553 = vld [vmem:[%s548] sm:$0xf]
        %v554 = vld [vmem:[%s548 + $0x4] sm:$0xf]
        %v555 = vld [vmem:[%s548 + $0x8] sm:$0xf]
        %v556 = vld [vmem:[%s548 + $0xc] sm:$0xf]
        %v557 = vld [vmem:[%s548 + $0x10] sm:$0xf]
        %v558 = vld [vmem:[%s548 + $0x14] sm:$0xf]
        %v559 = vld [vmem:[%s548 + $0x18] sm:$0xf]
        %v560 = vld [vmem:[%s548 + $0x1c] sm:$0xf]
        %v561 = vld [vmem:[%s548 + $0x20] sm:$0xf]
        %v562 = vld [vmem:[%s548 + $0x24] sm:$0xf]
        %v563 = vld [vmem:[%s548 + $0x28] sm:$0xf]
        %v564 = vld [vmem:[%s548 + $0x2c] sm:$0xf]
        %v565 = vld [vmem:[%s548 + $0x30] sm:$0xf]
        %v566 = vld [vmem:[%s548 + $0x34] sm:$0xf]
        %v567 = vld [vmem:[%s548 + $0x38] sm:$0xf]
        %v568 = vld [vmem:[%s548 + $0x3c] sm:$0xf]
        %v569 = vld [vmem:[%s548 + $0x40] sm:$0xf]
        %v570 = vld [vmem:[%s548 + $0x44] sm:$0xf]
        %v571 = vld [vmem:[%s548 + $0x48] sm:$0xf]
        %v572 = vld [vmem:[%s548 + $0x4c] sm:$0xf]
        %v573 = vld [vmem:[%s548 + $0x50] sm:$0xf]
        %v574 = vld [vmem:[%s548 + $0x54] sm:$0xf]
        %v575 = vld [vmem:[%s548 + $0x58] sm:$0xf]
        %v576 = vld [vmem:[%s548 + $0x5c] sm:$0xf]
        %v577 = vld [vmem:[%s548 + $0x60] sm:$0xf]
        %v578 = vld [vmem:[%s548 + $0x64] sm:$0xf]
        %v579 = vld [vmem:[%s548 + $0x68] sm:$0xf]
        %v580 = vld [vmem:[%s548 + $0x6c] sm:$0xf]
        %v581 = vld [vmem:[%s548 + $0x70] sm:$0xf]
        %v582 = vld [vmem:[%s548 + $0x74] sm:$0xf]
        %v583 = vld [vmem:[%s548 + $0x78] sm:$0xf]
        %v584 = vld [vmem:[%s548 + $0x7c] sm:$0xf]
        %v585 = vld [vmem:[%s1] sm:$0xff]
        %v586 = vld [vmem:[%s1 + $0x8] sm:$0xff]
        %v587 = vld [vmem:[%s1 + $0x10] sm:$0xff]
        %v588 = vld [vmem:[%s1 + $0x18] sm:$0xff]
        %v589 = vld [vmem:[%s1 + $0x20] sm:$0xff]
        %v590 = vld [vmem:[%s1 + $0x28] sm:$0xff]
        %v591 = vld [vmem:[%s1 + $0x30] sm:$0xff]
        %v592 = vld [vmem:[%s1 + $0x38] sm:$0xff]
        %v601 = vunpack.c.l.b16 %v585
        %v602 = vunpack.c.h.b16 %v585
        %v603 = vunpack.c.l.b16 %v586
        %v604 = vunpack.c.h.b16 %v586
        %v605 = vunpack.c.l.b16 %v587
        %v606 = vunpack.c.h.b16 %v587
        %v607 = vunpack.c.l.b16 %v588
        %v608 = vunpack.c.h.b16 %v588
        %v609 = vunpack.c.l.b16 %v589
        %v610 = vunpack.c.h.b16 %v589
        %v611 = vunpack.c.l.b16 %v590
        %v612 = vunpack.c.h.b16 %v590
        %v613 = vunpack.c.l.b16 %v591
        %v614 = vunpack.c.h.b16 %v591
        %v615 = vunpack.c.l.b16 %v592
        %v616 = vunpack.c.h.b16 %v592
        %v617 = vpack.c.b16 %v603, %v601
        %v618 = vpack.c.b16 %v604, %v602
        %v619 = vpack.c.b16 %v607, %v605
        %v620 = vpack.c.b16 %v608, %v606
        %v621 = vpack.c.b16 %v611, %v609
        %v622 = vpack.c.b16 %v612, %v610
        %v623 = vpack.c.b16 %v615, %v613
        %v624 = vpack.c.b16 %v616, %v614
        %v665 = vunpack.c.l.b16 %v553
        %v666 = vunpack.c.l.b16 %v554
        %v667 = vunpack.c.l.b16 %v555
        %v668 = vunpack.c.l.b16 %v556
        %v669 = vunpack.c.l.b16 %v557
        %v670 = vunpack.c.l.b16 %v558
        %v671 = vunpack.c.l.b16 %v559
        %v672 = vunpack.c.l.b16 %v560
        %v673 = vunpack.c.l.b16 %v561
        %v674 = vunpack.c.l.b16 %v562
        %v675 = vunpack.c.l.b16 %v563
        %v676 = vunpack.c.l.b16 %v564
        %v677 = vunpack.c.l.b16 %v565
        %v678 = vunpack.c.l.b16 %v566
        %v679 = vunpack.c.l.b16 %v567
        %v680 = vunpack.c.l.b16 %v568
        %v681 = vunpack.c.l.b16 %v569
        %v682 = vunpack.c.l.b16 %v570
        %v683 = vunpack.c.l.b16 %v571
        %v684 = vunpack.c.l.b16 %v572
        %v685 = vunpack.c.l.b16 %v573
        %v686 = vunpack.c.l.b16 %v574
        %v687 = vunpack.c.l.b16 %v575
        %v688 = vunpack.c.l.b16 %v576
        %v689 = vunpack.c.l.b16 %v577
        %v690 = vunpack.c.l.b16 %v578
        %v691 = vunpack.c.l.b16 %v579
        %v692 = vunpack.c.l.b16 %v580
        %v693 = vunpack.c.l.b16 %v581
        %v694 = vunpack.c.l.b16 %v582
        %v695 = vunpack.c.l.b16 %v583
        %v696 = vunpack.c.l.b16 %v584
        %v697 = vpack.c.b16 %v666, %v665
        %v698 = vpack.c.b16 %v668, %v667
        %v699 = vpack.c.b16 %v670, %v669
        %v700 = vpack.c.b16 %v672, %v671
        %v701 = vpack.c.b16 %v674, %v673
        %v702 = vpack.c.b16 %v676, %v675
        %v703 = vpack.c.b16 %v678, %v677
        %v704 = vpack.c.b16 %v680, %v679
        %v705 = vpack.c.b16 %v682, %v681
        %v706 = vpack.c.b16 %v684, %v683
        %v707 = vpack.c.b16 %v686, %v685
        %v708 = vpack.c.b16 %v688, %v687
        %v709 = vpack.c.b16 %v690, %v689
        %v710 = vpack.c.b16 %v692, %v691
        %v711 = vpack.c.b16 %v694, %v693
        %v712 = vpack.c.b16 %v696, %v695
        %729 = vmatprep.subr.bf16.mxu0 0
        %730 = vmatpush1.bf16.msra.mxu0 %v697
        %731 = vmatprep.subr.bf16.mxu0 0
        %732 = vmatpush1.bf16.msra.mxu0 %v698
        %733 = vmatprep.subr.bf16.mxu0 0
        %734 = vmatpush1.bf16.msra.mxu0 %v699
        %735 = vmatprep.subr.bf16.mxu0 0
        %736 = vmatpush1.bf16.msra.mxu0 %v700
        %737 = vmatprep.subr.bf16.mxu0 0
        %738 = vmatpush1.bf16.msra.mxu0 %v701
        %739 = vmatprep.subr.bf16.mxu0 0
        %740 = vmatpush1.bf16.msra.mxu0 %v702
        %741 = vmatprep.subr.bf16.mxu0 0
        %742 = vmatpush1.bf16.msra.mxu0 %v703
        %743 = vmatprep.subr.bf16.mxu0 0
        %744 = vmatpush1.bf16.msra.mxu0 %v704
        %745 = vmatprep.subr.bf16.mxu0 0
        %746 = vmatpush1.bf16.msra.mxu0 %v705
        %747 = vmatprep.subr.bf16.mxu0 0
        %748 = vmatpush1.bf16.msra.mxu0 %v706
        %749 = vmatprep.subr.bf16.mxu0 0
        %750 = vmatpush1.bf16.msra.mxu0 %v707
        %751 = vmatprep.subr.bf16.mxu0 0
        %752 = vmatpush1.bf16.msra.mxu0 %v708
        %753 = vmatprep.subr.bf16.mxu0 0
        %754 = vmatpush1.bf16.msra.mxu0 %v709
        %755 = vmatprep.subr.bf16.mxu0 0
        %756 = vmatpush1.bf16.msra.mxu0 %v710
        %757 = vmatprep.subr.bf16.mxu0 0
        %758 = vmatpush1.bf16.msra.mxu0 %v711
        %759 = vmatprep.subr.bf16.mxu0 0
        %760 = vmatpush1.bf16.msra.mxu0 %v712
        %761 = vmatprep.mubr.bf16.mxu0 %v618
        %762 = vmatmul.mubr.bf16.gmra.mrb[0].mxu0 %v617
        %v763 = vpop.f32.mrb[0].mxu0
        %v764 = vadd.f32 0.0, %v763
        %v765 = vpop.f32.mrb[0].mxu0
        %v766 = vpop.f32.mrb[0].mxu0
        %v767 = vadd.f32 0.0, %v766
        %v768 = vpop.f32.mrb[0].mxu0
        %769 = vmatprep.mubr.bf16.mxu0 %v620
        %770 = vmatmul.mubr.bf16.gmra.mrb[0].mxu0 %v619
        %v771 = vpop.f32.mrb[0].mxu0
        %v772 = vadd.f32 0.0, %v771
        %v773 = vpop.f32.mrb[0].mxu0
        %v774 = vpop.f32.mrb[0].mxu0
        %v775 = vadd.f32 0.0, %v774
        %v776 = vpop.f32.mrb[0].mxu0
        %777 = vmatprep.mubr.bf16.mxu0 %v622
        %778 = vmatmul.mubr.bf16.gmra.mrb[0].mxu0 %v621
        %v779 = vpop.f32.mrb[0].mxu0
        %v780 = vadd.f32 0.0, %v779
        %v781 = vpop.f32.mrb[0].mxu0
        %v782 = vpop.f32.mrb[0].mxu0
        %v783 = vadd.f32 0.0, %v782
        %v784 = vpop.f32.mrb[0].mxu0
        %785 = vmatprep.mubr.bf16.mxu0 %v624
        %786 = vmatmul.mubr.bf16.gmra.mrb[0].mxu0 %v623
        %v787 = vpop.f32.mrb[0].mxu0
        %v788 = vadd.f32 0.0, %v787
        %v789 = vpop.f32.mrb[0].mxu0
        %v790 = vpop.f32.mrb[0].mxu0
        %v791 = vadd.f32 0.0, %v790
        %v792 = vpop.f32.mrb[0].mxu0
        %793 = vdwg.mxu0
        %v794 = vpack.c.bf16 %v767, %v764
        %v795 = vpack.c.bf16 %v775, %v772
        %v796 = vpack.c.bf16 %v783, %v780
        %v797 = vpack.c.bf16 %v791, %v788
        %v798 = vld [vmem:[#allocation3] sm:$0x7]
        %s799 = scalar_lea.vmem %s1, 64
        %v800 = vld [vmem:[%s799] sm:$0xff]
        %v801 = vld [vmem:[%s799 + $0x8] sm:$0xff]
        %v802 = vld [vmem:[%s799 + $0x10] sm:$0xff]
        %v803 = vld [vmem:[%s799 + $0x18] sm:$0xff]
        %v804 = vld [vmem:[%s799 + $0x20] sm:$0xff]
        %v805 = vld [vmem:[%s799 + $0x28] sm:$0xff]
        %v806 = vld [vmem:[%s799 + $0x30] sm:$0xff]
        %v807 = vld [vmem:[%s799 + $0x38] sm:$0xff]
        %v816 = vunpack.c.l.b16 %v800
        %v817 = vunpack.c.h.b16 %v800
        %v818 = vunpack.c.l.b16 %v801
        %v819 = vunpack.c.h.b16 %v801
        %v820 = vunpack.c.l.b16 %v802
        %v821 = vunpack.c.h.b16 %v802
        %v822 = vunpack.c.l.b16 %v803
        %v823 = vunpack.c.h.b16 %v803
        %v824 = vunpack.c.l.b16 %v804
        %v825 = vunpack.c.h.b16 %v804
        %v826 = vunpack.c.l.b16 %v805
        %v827 = vunpack.c.h.b16 %v805
        %v828 = vunpack.c.l.b16 %v806
        %v829 = vunpack.c.h.b16 %v806
        %v830 = vunpack.c.l.b16 %v807
        %v831 = vunpack.c.h.b16 %v807
        %v832 = vpack.c.b16 %v818, %v816
        %v833 = vpack.c.b16 %v819, %v817
        %v834 = vpack.c.b16 %v822, %v820
        %v835 = vpack.c.b16 %v823, %v821
        %v836 = vpack.c.b16 %v826, %v824
        %v837 = vpack.c.b16 %v827, %v825
        %v838 = vpack.c.b16 %v830, %v828
        %v839 = vpack.c.b16 %v831, %v829
        %848 = vmatprep.subr.bf16.mxu0 0
        %849 = vmatpush1.bf16.msra.mxu0 %v697
        %850 = vmatprep.subr.bf16.mxu0 0
        %851 = vmatpush1.bf16.msra.mxu0 %v698
        %852 = vmatprep.subr.bf16.mxu0 0
        %853 = vmatpush1.bf16.msra.mxu0 %v699
        %854 = vmatprep.subr.bf16.mxu0 0
        %855 = vmatpush1.bf16.msra.mxu0 %v700
        %856 = vmatprep.subr.bf16.mxu0 0
        %857 = vmatpush1.bf16.msra.mxu0 %v701
        %858 = vmatprep.subr.bf16.mxu0 0
        %859 = vmatpush1.bf16.msra.mxu0 %v702
        %860 = vmatprep.subr.bf16.mxu0 0
        %861 = vmatpush1.bf16.msra.mxu0 %v703
        %862 = vmatprep.subr.bf16.mxu0 0
        %863 = vmatpush1.bf16.msra.mxu0 %v704
        %864 = vmatprep.subr.bf16.mxu0 0
        %865 = vmatpush1.bf16.msra.mxu0 %v705
        %866 = vmatprep.subr.bf16.mxu0 0
        %867 = vmatpush1.bf16.msra.mxu0 %v706
        %868 = vmatprep.subr.bf16.mxu0 0
        %869 = vmatpush1.bf16.msra.mxu0 %v707
        %870 = vmatprep.subr.bf16.mxu0 0
        %871 = vmatpush1.bf16.msra.mxu0 %v708
        %872 = vmatprep.subr.bf16.mxu0 0
        %873 = vmatpush1.bf16.msra.mxu0 %v709
        %874 = vmatprep.subr.bf16.mxu0 0
        %875 = vmatpush1.bf16.msra.mxu0 %v710
        %876 = vmatprep.subr.bf16.mxu0 0
        %877 = vmatpush1.bf16.msra.mxu0 %v711
        %878 = vmatprep.subr.bf16.mxu0 0
        %879 = vmatpush1.bf16.msra.mxu0 %v712
        %880 = vmatprep.mubr.bf16.mxu0 %v833
        %881 = vmatmul.mubr.bf16.gmra.mrb[0].mxu0 %v832
        %v882 = vpop.f32.mrb[0].mxu0
        %v883 = vadd.f32 0.0, %v882
        %v884 = vpop.f32.mrb[0].mxu0
        %v885 = vpop.f32.mrb[0].mxu0
        %v886 = vadd.f32 0.0, %v885
        %v887 = vpop.f32.mrb[0].mxu0
        %888 = vmatprep.mubr.bf16.mxu0 %v835
        %889 = vmatmul.mubr.bf16.gmra.mrb[0].mxu0 %v834
        %v890 = vpop.f32.mrb[0].mxu0
        %v891 = vadd.f32 0.0, %v890
        %v892 = vpop.f32.mrb[0].mxu0
        %v893 = vpop.f32.mrb[0].mxu0
        %v894 = vadd.f32 0.0, %v893
        %v895 = vpop.f32.mrb[0].mxu0
        %896 = vmatprep.mubr.bf16.mxu0 %v837
        %897 = vmatmul.mubr.bf16.gmra.mrb[0].mxu0 %v836
        %v898 = vpop.f32.mrb[0].mxu0
        %v899 = vadd.f32 0.0, %v898
        %v900 = vpop.f32.mrb[0].mxu0
        %v901 = vpop.f32.mrb[0].mxu0
        %v902 = vadd.f32 0.0, %v901
        %v903 = vpop.f32.mrb[0].mxu0
        %904 = vmatprep.mubr.bf16.mxu0 %v839
        %905 = vmatmul.mubr.bf16.gmra.mrb[0].mxu0 %v838
        %v906 = vpop.f32.mrb[0].mxu0
        %v907 = vadd.f32 0.0, %v906
        %v908 = vpop.f32.mrb[0].mxu0
        %v909 = vpop.f32.mrb[0].mxu0
        %v910 = vadd.f32 0.0, %v909
        %v911 = vpop.f32.mrb[0].mxu0
        %912 = vdwg.mxu0
        %v913 = vpack.c.bf16 %v886, %v883
        %v914 = vpack.c.bf16 %v894, %v891
        %v915 = vpack.c.bf16 %v902, %v899
        %v916 = vpack.c.bf16 %v910, %v907
        %s917 = scalar_lea.vmem [#allocation3], 4
        %v918 = vld [vmem:[%s917] sm:$0x7]
        %vm919 = vcmask 48128
        %v921 = vsel %vm919, %v913, 0
        %v924 = vsel %vm919, %v914, 0
        %v927 = vsel %vm919, %v915, 0
        %v930 = vsel %vm919, %v916, 0
        %vm932 = vcmask 1042432
        %v934 = vsel %vm932, %v918, 0
        %936 = vmatprep.subr.bf16.mxu0 0
        %937 = vmatpush1.bf16.msra.mxu0 %v934
        %938 = vmatprep.subr.bf16.mxu0 0
        %939 = vmatpush1.bf16.msra.mxu0 0
        %940 = vmatprep.subr.bf16.mxu0 0
        %941 = vmatpush1.bf16.msra.mxu0 0
        %942 = vmatprep.subr.bf16.mxu0 0
        %943 = vmatpush1.bf16.msra.mxu0 0
        %944 = vmatprep.subr.bf16.mxu0 0
        %945 = vmatpush1.bf16.msra.mxu0 0
        %946 = vmatprep.subr.bf16.mxu0 0
        %947 = vmatpush1.bf16.msra.mxu0 0
        %948 = vmatprep.subr.bf16.mxu0 0
        %949 = vmatpush1.bf16.msra.mxu0 0
        %950 = vmatprep.subr.bf16.mxu0 0
        %951 = vmatpush1.bf16.msra.mxu0 0
        %952 = vmatprep.subr.bf16.mxu0 0
        %953 = vmatpush1.bf16.msra.mxu0 0
        %954 = vmatprep.subr.bf16.mxu0 0
        %955 = vmatpush1.bf16.msra.mxu0 0
        %956 = vmatprep.subr.bf16.mxu0 0
        %957 = vmatpush1.bf16.msra.mxu0 0
        %958 = vmatprep.subr.bf16.mxu0 0
        %959 = vmatpush1.bf16.msra.mxu0 0
        %960 = vmatprep.subr.bf16.mxu0 0
        %961 = vmatpush1.bf16.msra.mxu0 0
        %962 = vmatprep.subr.bf16.mxu0 0
        %963 = vmatpush1.bf16.msra.mxu0 0
        %964 = vmatprep.subr.bf16.mxu0 0
        %965 = vmatpush1.bf16.msra.mxu0 0
        %966 = vmatprep.subr.bf16.mxu0 0
        %967 = vmatpush1.bf16.msra.mxu0 0
        %968 = vmatprep.mubr.bf16.mxu0 0
        %969 = vmatmul.mubr.bf16.gmra.mrb[0].mxu0 %v921
        %v970 = vpop.f32.mrb[0].mxu0
        %v971 = vadd.f32 0.0, %v970
        %v972 = vpop.f32.mrb[0].mxu0
        %v973 = vpop.f32.mrb[0].mxu0
        %v974 = vadd.f32 0.0, %v973
        %v975 = vpop.f32.mrb[0].mxu0
        %976 = vmatprep.mubr.bf16.mxu0 0
        %977 = vmatmul.mubr.bf16.gmra.mrb[0].mxu0 %v924
        %v978 = vpop.f32.mrb[0].mxu0
        %v979 = vadd.f32 0.0, %v978
        %v980 = vpop.f32.mrb[0].mxu0
        %v981 = vpop.f32.mrb[0].mxu0
        %v982 = vadd.f32 0.0, %v981
        %v983 = vpop.f32.mrb[0].mxu0
        %984 = vmatprep.mubr.bf16.mxu0 0
        %985 = vmatmul.mubr.bf16.gmra.mrb[0].mxu0 %v927
        %v986 = vpop.f32.mrb[0].mxu0
        %v987 = vadd.f32 0.0, %v986
        %v988 = vpop.f32.mrb[0].mxu0
        %v989 = vpop.f32.mrb[0].mxu0
        %v990 = vadd.f32 0.0, %v989
        %v991 = vpop.f32.mrb[0].mxu0
        %992 = vmatprep.mubr.bf16.mxu0 0
        %993 = vmatmul.mubr.bf16.gmra.mrb[0].mxu0 %v930
        %v994 = vpop.f32.mrb[0].mxu0
        %v995 = vadd.f32 0.0, %v994
        %v996 = vpop.f32.mrb[0].mxu0
        %v997 = vpop.f32.mrb[0].mxu0
        %v998 = vadd.f32 0.0, %v997
        %v999 = vpop.f32.mrb[0].mxu0
        %1000 = vdwg.mxu0
        %v1002 = vsel %vm919, %v794, 0
        %v1005 = vsel %vm919, %v795, 0
        %v1008 = vsel %vm919, %v796, 0
        %v1011 = vsel %vm919, %v797, 0
        %v1014 = vsel %vm932, %v798, 0
        %1016 = vmatprep.subr.bf16.mxu0 0
        %1017 = vmatpush1.bf16.msra.mxu0 %v1014
        %1018 = vmatprep.subr.bf16.mxu0 0
        %1019 = vmatpush1.bf16.msra.mxu0 0
        %1020 = vmatprep.subr.bf16.mxu0 0
        %1021 = vmatpush1.bf16.msra.mxu0 0
        %1022 = vmatprep.subr.bf16.mxu0 0
        %1023 = vmatpush1.bf16.msra.mxu0 0
        %1024 = vmatprep.subr.bf16.mxu0 0
        %1025 = vmatpush1.bf16.msra.mxu0 0
        %1026 = vmatprep.subr.bf16.mxu0 0
        %1027 = vmatpush1.bf16.msra.mxu0 0
        %1028 = vmatprep.subr.bf16.mxu0 0
        %1029 = vmatpush1.bf16.msra.mxu0 0
        %1030 = vmatprep.subr.bf16.mxu0 0
        %1031 = vmatpush1.bf16.msra.mxu0 0
        %1032 = vmatprep.subr.bf16.mxu0 0
        %1033 = vmatpush1.bf16.msra.mxu0 0
        %1034 = vmatprep.subr.bf16.mxu0 0
        %1035 = vmatpush1.bf16.msra.mxu0 0
        %1036 = vmatprep.subr.bf16.mxu0 0
        %1037 = vmatpush1.bf16.msra.mxu0 0
        %1038 = vmatprep.subr.bf16.mxu0 0
        %1039 = vmatpush1.bf16.msra.mxu0 0
        %1040 = vmatprep.subr.bf16.mxu0 0
        %1041 = vmatpush1.bf16.msra.mxu0 0
        %1042 = vmatprep.subr.bf16.mxu0 0
        %1043 = vmatpush1.bf16.msra.mxu0 0
        %1044 = vmatprep.subr.bf16.mxu0 0
        %1045 = vmatpush1.bf16.msra.mxu0 0
        %1046 = vmatprep.subr.bf16.mxu0 0
        %1047 = vmatpush1.bf16.msra.mxu0 0
        %1048 = vmatprep.mubr.bf16.mxu0 0
        %1049 = vmatmul.mubr.bf16.gmra.mrb[0].mxu0 %v1002
        %v1050 = vpop.f32.mrb[0].mxu0
        %v1051 = vadd.f32 %v971, %v1050
        %v1052 = vpop.f32.mrb[0].mxu0
        %v1053 = vpop.f32.mrb[0].mxu0
        %v1054 = vadd.f32 %v974, %v1053
        %v1055 = vpop.f32.mrb[0].mxu0
        %1056 = vmatprep.mubr.bf16.mxu0 0
        %1057 = vmatmul.mubr.bf16.gmra.mrb[0].mxu0 %v1005
        %v1058 = vpop.f32.mrb[0].mxu0
        %v1059 = vadd.f32 %v979, %v1058
        %v1060 = vpop.f32.mrb[0].mxu0
        %v1061 = vpop.f32.mrb[0].mxu0
        %v1062 = vadd.f32 %v982, %v1061
        %v1063 = vpop.f32.mrb[0].mxu0
        %1064 = vmatprep.mubr.bf16.mxu0 0
        %1065 = vmatmul.mubr.bf16.gmra.mrb[0].mxu0 %v1008
        %v1066 = vpop.f32.mrb[0].mxu0
        %v1067 = vadd.f32 %v987, %v1066
        %v1068 = vpop.f32.mrb[0].mxu0
        %v1069 = vpop.f32.mrb[0].mxu0
        %v1070 = vadd.f32 %v990, %v1069
        %v1071 = vpop.f32.mrb[0].mxu0
        %1072 = vmatprep.mubr.bf16.mxu0 0
        %1073 = vmatmul.mubr.bf16.gmra.mrb[0].mxu0 %v1011
        %v1074 = vpop.f32.mrb[0].mxu0
        %v1075 = vadd.f32 %v995, %v1074
        %v1076 = vpop.f32.mrb[0].mxu0
        %v1077 = vpop.f32.mrb[0].mxu0
        %v1078 = vadd.f32 %v998, %v1077
        %v1079 = vpop.f32.mrb[0].mxu0
        %1080 = vdwg.mxu0
        %s1081 = scalar_lea.vmem %s1, 128
        %v1082 = vld [vmem:[%s1081] sm:$0xff]
        %v1083 = vld [vmem:[%s1081 + $0x8] sm:$0xff]
        %v1084 = vld [vmem:[%s1081 + $0x10] sm:$0xff]
        %v1085 = vld [vmem:[%s1081 + $0x18] sm:$0xff]
        %v1086 = vld [vmem:[%s1081 + $0x20] sm:$0xff]
        %v1087 = vld [vmem:[%s1081 + $0x28] sm:$0xff]
        %v1088 = vld [vmem:[%s1081 + $0x30] sm:$0xff]
        %v1089 = vld [vmem:[%s1081 + $0x38] sm:$0xff]
        %v1098 = vunpack.c.l.b16 %v1082
        %v1099 = vunpack.c.h.b16 %v1082
        %v1100 = vunpack.c.l.b16 %v1083
        %v1101 = vunpack.c.h.b16 %v1083
        %v1102 = vunpack.c.l.b16 %v1084
        %v1103 = vunpack.c.h.b16 %v1084
        %v1104 = vunpack.c.l.b16 %v1085
        %v1105 = vunpack.c.h.b16 %v1085
        %v1106 = vunpack.c.l.b16 %v1086
        %v1107 = vunpack.c.h.b16 %v1086
        %v1108 = vunpack.c.l.b16 %v1087
        %v1109 = vunpack.c.h.b16 %v1087
        %v1110 = vunpack.c.l.b16 %v1088
        %v1111 = vunpack.c.h.b16 %v1088
        %v1112 = vunpack.c.l.b16 %v1089
        %v1113 = vunpack.c.h.b16 %v1089
        %v1114 = vpack.c.b16 %v1100, %v1098
        %v1115 = vpack.c.b16 %v1101, %v1099
        %v1116 = vpack.c.b16 %v1104, %v1102
        %v1117 = vpack.c.b16 %v1105, %v1103
        %v1118 = vpack.c.b16 %v1108, %v1106
        %v1119 = vpack.c.b16 %v1109, %v1107
        %v1120 = vpack.c.b16 %v1112, %v1110
        %v1121 = vpack.c.b16 %v1113, %v1111
        %1130 = vmatprep.subr.bf16.mxu0 0
        %1131 = vmatpush1.bf16.msra.mxu0 %v697
        %1132 = vmatprep.subr.bf16.mxu0 0
        %1133 = vmatpush1.bf16.msra.mxu0 %v698
        %1134 = vmatprep.subr.bf16.mxu0 0
        %1135 = vmatpush1.bf16.msra.mxu0 %v699
        %1136 = vmatprep.subr.bf16.mxu0 0
        %1137 = vmatpush1.bf16.msra.mxu0 %v700
        %1138 = vmatprep.subr.bf16.mxu0 0
        %1139 = vmatpush1.bf16.msra.mxu0 %v701
        %1140 = vmatprep.subr.bf16.mxu0 0
        %1141 = vmatpush1.bf16.msra.mxu0 %v702
        %1142 = vmatprep.subr.bf16.mxu0 0
        %1143 = vmatpush1.bf16.msra.mxu0 %v703
        %1144 = vmatprep.subr.bf16.mxu0 0
        %1145 = vmatpush1.bf16.msra.mxu0 %v704
        %1146 = vmatprep.subr.bf16.mxu0 0
        %1147 = vmatpush1.bf16.msra.mxu0 %v705
        %1148 = vmatprep.subr.bf16.mxu0 0
        %1149 = vmatpush1.bf16.msra.mxu0 %v706
        %1150 = vmatprep.subr.bf16.mxu0 0
        %1151 = vmatpush1.bf16.msra.mxu0 %v707
        %1152 = vmatprep.subr.bf16.mxu0 0
        %1153 = vmatpush1.bf16.msra.mxu0 %v708
        %1154 = vmatprep.subr.bf16.mxu0 0
        %1155 = vmatpush1.bf16.msra.mxu0 %v709
        %1156 = vmatprep.subr.bf16.mxu0 0
        %1157 = vmatpush1.bf16.msra.mxu0 %v710
        %1158 = vmatprep.subr.bf16.mxu0 0
        %1159 = vmatpush1.bf16.msra.mxu0 %v711
        %1160 = vmatprep.subr.bf16.mxu0 0
        %1161 = vmatpush1.bf16.msra.mxu0 %v712
        %1162 = vmatprep.mubr.bf16.mxu0 %v1115
        %1163 = vmatmul.mubr.bf16.gmra.mrb[0].mxu0 %v1114
        %v1164 = vpop.f32.mrb[0].mxu0
        %v1165 = vadd.f32 0.0, %v1164
        %v1166 = vpop.f32.mrb[0].mxu0
        %v1167 = vpop.f32.mrb[0].mxu0
        %v1168 = vadd.f32 0.0, %v1167
        %v1169 = vpop.f32.mrb[0].mxu0
        %1170 = vmatprep.mubr.bf16.mxu0 %v1117
        %1171 = vmatmul.mubr.bf16.gmra.mrb[0].mxu0 %v1116
        %v1172 = vpop.f32.mrb[0].mxu0
        %v1173 = vadd.f32 0.0, %v1172
        %v1174 = vpop.f32.mrb[0].mxu0
        %v1175 = vpop.f32.mrb[0].mxu0
        %v1176 = vadd.f32 0.0, %v1175
        %v1177 = vpop.f32.mrb[0].mxu0
        %1178 = vmatprep.mubr.bf16.mxu0 %v1119
        %1179 = vmatmul.mubr.bf16.gmra.mrb[0].mxu0 %v1118
        %v1180 = vpop.f32.mrb[0].mxu0
        %v1181 = vadd.f32 0.0, %v1180
        %v1182 = vpop.f32.mrb[0].mxu0
        %v1183 = vpop.f32.mrb[0].mxu0
        %v1184 = vadd.f32 0.0, %v1183
        %v1185 = vpop.f32.mrb[0].mxu0
        %1186 = vmatprep.mubr.bf16.mxu0 %v1121
        %1187 = vmatmul.mubr.bf16.gmra.mrb[0].mxu0 %v1120
        %v1188 = vpop.f32.mrb[0].mxu0
        %v1189 = vadd.f32 0.0, %v1188
        %v1190 = vpop.f32.mrb[0].mxu0
        %v1191 = vpop.f32.mrb[0].mxu0
        %v1192 = vadd.f32 0.0, %v1191
        %v1193 = vpop.f32.mrb[0].mxu0
        %1194 = vdwg.mxu0
        %v1195 = vpack.c.bf16 %v1168, %v1165
        %v1196 = vpack.c.bf16 %v1176, %v1173
        %v1197 = vpack.c.bf16 %v1184, %v1181
        %v1198 = vpack.c.bf16 %v1192, %v1189
        %s1199 = scalar_lea.vmem [#allocation3], 8
        %v1200 = vld [vmem:[%s1199] sm:$0x7]
        %v1202 = vsel %vm919, %v1195, 0
        %v1205 = vsel %vm919, %v1196, 0
        %v1208 = vsel %vm919, %v1197, 0
        %v1211 = vsel %vm919, %v1198, 0
        %v1214 = vsel %vm932, %v1200, 0
        %1216 = vmatprep.subr.bf16.mxu0 0
        %1217 = vmatpush1.bf16.msra.mxu0 %v1214
        %1218 = vmatprep.subr.bf16.mxu0 0
        %1219 = vmatpush1.bf16.msra.mxu0 0
        %1220 = vmatprep.subr.bf16.mxu0 0
        %1221 = vmatpush1.bf16.msra.mxu0 0
        %1222 = vmatprep.subr.bf16.mxu0 0
        %1223 = vmatpush1.bf16.msra.mxu0 0
        %1224 = vmatprep.subr.bf16.mxu0 0
        %1225 = vmatpush1.bf16.msra.mxu0 0
        %1226 = vmatprep.subr.bf16.mxu0 0
        %1227 = vmatpush1.bf16.msra.mxu0 0
        %1228 = vmatprep.subr.bf16.mxu0 0
        %1229 = vmatpush1.bf16.msra.mxu0 0
        %1230 = vmatprep.subr.bf16.mxu0 0
        %1231 = vmatpush1.bf16.msra.mxu0 0
        %1232 = vmatprep.subr.bf16.mxu0 0
        %1233 = vmatpush1.bf16.msra.mxu0 0
        %1234 = vmatprep.subr.bf16.mxu0 0
        %1235 = vmatpush1.bf16.msra.mxu0 0
        %1236 = vmatprep.subr.bf16.mxu0 0
        %1237 = vmatpush1.bf16.msra.mxu0 0
        %1238 = vmatprep.subr.bf16.mxu0 0
        %1239 = vmatpush1.bf16.msra.mxu0 0
        %1240 = vmatprep.subr.bf16.mxu0 0
        %1241 = vmatpush1.bf16.msra.mxu0 0
        %1242 = vmatprep.subr.bf16.mxu0 0
        %1243 = vmatpush1.bf16.msra.mxu0 0
        %1244 = vmatprep.subr.bf16.mxu0 0
        %1245 = vmatpush1.bf16.msra.mxu0 0
        %1246 = vmatprep.subr.bf16.mxu0 0
        %1247 = vmatpush1.bf16.msra.mxu0 0
        %1248 = vmatprep.mubr.bf16.mxu0 0
        %1249 = vmatmul.mubr.bf16.gmra.mrb[0].mxu0 %v1202
        %v1250 = vpop.f32.mrb[0].mxu0
        %v1251 = vadd.f32 0.0, %v1250
        %v1252 = vpop.f32.mrb[0].mxu0
        %v1253 = vpop.f32.mrb[0].mxu0
        %v1254 = vadd.f32 0.0, %v1253
        %v1255 = vpop.f32.mrb[0].mxu0
        %1256 = vmatprep.mubr.bf16.mxu0 0
        %1257 = vmatmul.mubr.bf16.gmra.mrb[0].mxu0 %v1205
        %v1258 = vpop.f32.mrb[0].mxu0
        %v1259 = vadd.f32 0.0, %v1258
        %v1260 = vpop.f32.mrb[0].mxu0
        %v1261 = vpop.f32.mrb[0].mxu0
        %v1262 = vadd.f32 0.0, %v1261
        %v1263 = vpop.f32.mrb[0].mxu0
        %1264 = vmatprep.mubr.bf16.mxu0 0
        %1265 = vmatmul.mubr.bf16.gmra.mrb[0].mxu0 %v1208
        %v1266 = vpop.f32.mrb[0].mxu0
        %v1267 = vadd.f32 0.0, %v1266
        %v1268 = vpop.f32.mrb[0].mxu0
        %v1269 = vpop.f32.mrb[0].mxu0
        %v1270 = vadd.f32 0.0, %v1269
        %v1271 = vpop.f32.mrb[0].mxu0
        %1272 = vmatprep.mubr.bf16.mxu0 0
        %1273 = vmatmul.mubr.bf16.gmra.mrb[0].mxu0 %v1211
        %v1274 = vpop.f32.mrb[0].mxu0
        %v1275 = vadd.f32 0.0, %v1274
        %v1276 = vpop.f32.mrb[0].mxu0
        %v1277 = vpop.f32.mrb[0].mxu0
        %v1278 = vadd.f32 0.0, %v1277
        %v1279 = vpop.f32.mrb[0].mxu0
        %1280 = vdwg.mxu0
        %v1281 = vadd.f32 %v1051, %v1251
        %v1282 = vadd.f32 %v1054, %v1254
        %v1283 = vadd.f32 %v1059, %v1259
        %v1284 = vadd.f32 %v1062, %v1262
        %v1285 = vadd.f32 %v1067, %v1267
        %v1286 = vadd.f32 %v1070, %v1270
        %v1287 = vadd.f32 %v1075, %v1275
        %v1288 = vadd.f32 %v1078, %v1278
        %s1289 = scalar_lea.vmem %s1, 192
        %v1290 = vld [vmem:[%s1289] sm:$0xff]
        %v1291 = vld [vmem:[%s1289 + $0x8] sm:$0xff]
        %v1292 = vld [vmem:[%s1289 + $0x10] sm:$0xff]
        %v1293 = vld [vmem:[%s1289 + $0x18] sm:$0xff]
        %v1294 = vld [vmem:[%s1289 + $0x20] sm:$0xff]
        %v1295 = vld [vmem:[%s1289 + $0x28] sm:$0xff]
        %v1296 = vld [vmem:[%s1289 + $0x30] sm:$0xff]
        %v1297 = vld [vmem:[%s1289 + $0x38] sm:$0xff]
        %v1306 = vunpack.c.l.b16 %v1290
        %v1307 = vunpack.c.h.b16 %v1290
        %v1308 = vunpack.c.l.b16 %v1291
        %v1309 = vunpack.c.h.b16 %v1291
        %v1310 = vunpack.c.l.b16 %v1292
        %v1311 = vunpack.c.h.b16 %v1292
        %v1312 = vunpack.c.l.b16 %v1293
        %v1313 = vunpack.c.h.b16 %v1293
        %v1314 = vunpack.c.l.b16 %v1294
        %v1315 = vunpack.c.h.b16 %v1294
        %v1316 = vunpack.c.l.b16 %v1295
        %v1317 = vunpack.c.h.b16 %v1295
        %v1318 = vunpack.c.l.b16 %v1296
        %v1319 = vunpack.c.h.b16 %v1296
        %v1320 = vunpack.c.l.b16 %v1297
        %v1321 = vunpack.c.h.b16 %v1297
        %v1322 = vpack.c.b16 %v1308, %v1306
        %v1323 = vpack.c.b16 %v1309, %v1307
        %v1324 = vpack.c.b16 %v1312, %v1310
        %v1325 = vpack.c.b16 %v1313, %v1311
        %v1326 = vpack.c.b16 %v1316, %v1314
        %v1327 = vpack.c.b16 %v1317, %v1315
        %v1328 = vpack.c.b16 %v1320, %v1318
        %v1329 = vpack.c.b16 %v1321, %v1319
        %1338 = vmatprep.subr.bf16.mxu0 0
        %1339 = vmatpush1.bf16.msra.mxu0 %v697
        %1340 = vmatprep.subr.bf16.mxu0 0
        %1341 = vmatpush1.bf16.msra.mxu0 %v698
        %1342 = vmatprep.subr.bf16.mxu0 0
        %1343 = vmatpush1.bf16.msra.mxu0 %v699
        %1344 = vmatprep.subr.bf16.mxu0 0
        %1345 = vmatpush1.bf16.msra.mxu0 %v700
        %1346 = vmatprep.subr.bf16.mxu0 0
        %1347 = vmatpush1.bf16.msra.mxu0 %v701
        %1348 = vmatprep.subr.bf16.mxu0 0
        %1349 = vmatpush1.bf16.msra.mxu0 %v702
        %1350 = vmatprep.subr.bf16.mxu0 0
        %1351 = vmatpush1.bf16.msra.mxu0 %v703
        %1352 = vmatprep.subr.bf16.mxu0 0
        %1353 = vmatpush1.bf16.msra.mxu0 %v704
        %1354 = vmatprep.subr.bf16.mxu0 0
        %1355 = vmatpush1.bf16.msra.mxu0 %v705
        %1356 = vmatprep.subr.bf16.mxu0 0
        %1357 = vmatpush1.bf16.msra.mxu0 %v706
        %1358 = vmatprep.subr.bf16.mxu0 0
        %1359 = vmatpush1.bf16.msra.mxu0 %v707
        %1360 = vmatprep.subr.bf16.mxu0 0
        %1361 = vmatpush1.bf16.msra.mxu0 %v708
        %1362 = vmatprep.subr.bf16.mxu0 0
        %1363 = vmatpush1.bf16.msra.mxu0 %v709
        %1364 = vmatprep.subr.bf16.mxu0 0
        %1365 = vmatpush1.bf16.msra.mxu0 %v710
        %1366 = vmatprep.subr.bf16.mxu0 0
        %1367 = vmatpush1.bf16.msra.mxu0 %v711
        %1368 = vmatprep.subr.bf16.mxu0 0
        %1369 = vmatpush1.bf16.msra.mxu0 %v712
        %1370 = vmatprep.mubr.bf16.mxu0 %v1323
        %1371 = vmatmul.mubr.bf16.gmra.mrb[0].mxu0 %v1322
        %v1372 = vpop.f32.mrb[0].mxu0
        %v1373 = vadd.f32 0.0, %v1372
        %v1374 = vpop.f32.mrb[0].mxu0
        %v1375 = vpop.f32.mrb[0].mxu0
        %v1376 = vadd.f32 0.0, %v1375
        %v1377 = vpop.f32.mrb[0].mxu0
        %1378 = vmatprep.mubr.bf16.mxu0 %v1325
        %1379 = vmatmul.mubr.bf16.gmra.mrb[0].mxu0 %v1324
        %v1380 = vpop.f32.mrb[0].mxu0
        %v1381 = vadd.f32 0.0, %v1380
        %v1382 = vpop.f32.mrb[0].mxu0
        %v1383 = vpop.f32.mrb[0].mxu0
        %v1384 = vadd.f32 0.0, %v1383
        %v1385 = vpop.f32.mrb[0].mxu0
        %1386 = vmatprep.mubr.bf16.mxu0 %v1327
        %1387 = vmatmul.mubr.bf16.gmra.mrb[0].mxu0 %v1326
        %v1388 = vpop.f32.mrb[0].mxu0
        %v1389 = vadd.f32 0.0, %v1388
        %v1390 = vpop.f32.mrb[0].mxu0
        %v1391 = vpop.f32.mrb[0].mxu0
        %v1392 = vadd.f32 0.0, %v1391
        %v1393 = vpop.f32.mrb[0].mxu0
        %1394 = vmatprep.mubr.bf16.mxu0 %v1329
        %1395 = vmatmul.mubr.bf16.gmra.mrb[0].mxu0 %v1328
        %v1396 = vpop.f32.mrb[0].mxu0
        %v1397 = vadd.f32 0.0, %v1396
        %v1398 = vpop.f32.mrb[0].mxu0
        %v1399 = vpop.f32.mrb[0].mxu0
        %v1400 = vadd.f32 0.0, %v1399
        %v1401 = vpop.f32.mrb[0].mxu0
        %1402 = vdwg.mxu0
        %v1403 = vpack.c.bf16 %v1376, %v1373
        %v1404 = vpack.c.bf16 %v1384, %v1381
        %v1405 = vpack.c.bf16 %v1392, %v1389
        %v1406 = vpack.c.bf16 %v1400, %v1397
        %s1407 = scalar_lea.vmem [#allocation3], 12
        %v1408 = vld [vmem:[%s1407] sm:$0x7]
        %v1410 = vsel %vm919, %v1403, 0
        %v1413 = vsel %vm919, %v1404, 0
        %v1416 = vsel %vm919, %v1405, 0
        %v1419 = vsel %vm919, %v1406, 0
        %v1422 = vsel %vm932, %v1408, 0
        %1424 = vmatprep.subr.bf16.mxu0 0
        %1425 = vmatpush1.bf16.msra.mxu0 %v1422
        %1426 = vmatprep.subr.bf16.mxu0 0
        %1427 = vmatpush1.bf16.msra.mxu0 0
        %1428 = vmatprep.subr.bf16.mxu0 0
        %1429 = vmatpush1.bf16.msra.mxu0 0
        %1430 = vmatprep.subr.bf16.mxu0 0
        %1431 = vmatpush1.bf16.msra.mxu0 0
        %1432 = vmatprep.subr.bf16.mxu0 0
        %1433 = vmatpush1.bf16.msra.mxu0 0
        %1434 = vmatprep.subr.bf16.mxu0 0
        %1435 = vmatpush1.bf16.msra.mxu0 0
        %1436 = vmatprep.subr.bf16.mxu0 0
        %1437 = vmatpush1.bf16.msra.mxu0 0
        %1438 = vmatprep.subr.bf16.mxu0 0
        %1439 = vmatpush1.bf16.msra.mxu0 0
        %1440 = vmatprep.subr.bf16.mxu0 0
        %1441 = vmatpush1.bf16.msra.mxu0 0
        %1442 = vmatprep.subr.bf16.mxu0 0
        %1443 = vmatpush1.bf16.msra.mxu0 0
        %1444 = vmatprep.subr.bf16.mxu0 0
        %1445 = vmatpush1.bf16.msra.mxu0 0
        %1446 = vmatprep.subr.bf16.mxu0 0
        %1447 = vmatpush1.bf16.msra.mxu0 0
        %1448 = vmatprep.subr.bf16.mxu0 0
        %1449 = vmatpush1.bf16.msra.mxu0 0
        %1450 = vmatprep.subr.bf16.mxu0 0
        %1451 = vmatpush1.bf16.msra.mxu0 0
        %1452 = vmatprep.subr.bf16.mxu0 0
        %1453 = vmatpush1.bf16.msra.mxu0 0
        %1454 = vmatprep.subr.bf16.mxu0 0
        %1455 = vmatpush1.bf16.msra.mxu0 0
        %1456 = vmatprep.mubr.bf16.mxu0 0
        %1457 = vmatmul.mubr.bf16.gmra.mrb[0].mxu0 %v1410
        %v1458 = vpop.f32.mrb[0].mxu0
        %v1459 = vadd.f32 0.0, %v1458
        %v1460 = vpop.f32.mrb[0].mxu0
        %v1461 = vpop.f32.mrb[0].mxu0
        %v1462 = vadd.f32 0.0, %v1461
        %v1463 = vpop.f32.mrb[0].mxu0
        %1464 = vmatprep.mubr.bf16.mxu0 0
        %1465 = vmatmul.mubr.bf16.gmra.mrb[0].mxu0 %v1413
        %v1466 = vpop.f32.mrb[0].mxu0
        %v1467 = vadd.f32 0.0, %v1466
        %v1468 = vpop.f32.mrb[0].mxu0
        %v1469 = vpop.f32.mrb[0].mxu0
        %v1470 = vadd.f32 0.0, %v1469
        %v1471 = vpop.f32.mrb[0].mxu0
        %1472 = vmatprep.mubr.bf16.mxu0 0
        %1473 = vmatmul.mubr.bf16.gmra.mrb[0].mxu0 %v1416
        %v1474 = vpop.f32.mrb[0].mxu0
        %v1475 = vadd.f32 0.0, %v1474
        %v1476 = vpop.f32.mrb[0].mxu0
        %v1477 = vpop.f32.mrb[0].mxu0
        %v1478 = vadd.f32 0.0, %v1477
        %v1479 = vpop.f32.mrb[0].mxu0
        %1480 = vmatprep.mubr.bf16.mxu0 0
        %1481 = vmatmul.mubr.bf16.gmra.mrb[0].mxu0 %v1419
        %v1482 = vpop.f32.mrb[0].mxu0
        %v1483 = vadd.f32 0.0, %v1482
        %v1484 = vpop.f32.mrb[0].mxu0
        %v1485 = vpop.f32.mrb[0].mxu0
        %v1486 = vadd.f32 0.0, %v1485
        %v1487 = vpop.f32.mrb[0].mxu0
        %1488 = vdwg.mxu0
        %v1489 = vadd.f32 %v1281, %v1459
        %v1490 = vadd.f32 %v1282, %v1462
        %v1491 = vadd.f32 %v1283, %v1467
        %v1492 = vadd.f32 %v1284, %v1470
        %v1493 = vadd.f32 %v1285, %v1475
        %v1494 = vadd.f32 %v1286, %v1478
        %v1495 = vadd.f32 %v1287, %v1483
        %v1496 = vadd.f32 %v1288, %v1486
        %s1497 = scalar_lea.vmem %s1, 256
        %v1498 = vld [vmem:[%s1497] sm:$0xff]
        %v1499 = vld [vmem:[%s1497 + $0x8] sm:$0xff]
        %v1500 = vld [vmem:[%s1497 + $0x10] sm:$0xff]
        %v1501 = vld [vmem:[%s1497 + $0x18] sm:$0xff]
        %v1502 = vld [vmem:[%s1497 + $0x20] sm:$0xff]
        %v1503 = vld [vmem:[%s1497 + $0x28] sm:$0xff]
        %v1504 = vld [vmem:[%s1497 + $0x30] sm:$0xff]
        %v1505 = vld [vmem:[%s1497 + $0x38] sm:$0xff]
        %v1514 = vunpack.c.l.b16 %v1498
        %v1515 = vunpack.c.h.b16 %v1498
        %v1516 = vunpack.c.l.b16 %v1499
        %v1517 = vunpack.c.h.b16 %v1499
        %v1518 = vunpack.c.l.b16 %v1500
        %v1519 = vunpack.c.h.b16 %v1500
        %v1520 = vunpack.c.l.b16 %v1501
        %v1521 = vunpack.c.h.b16 %v1501
        %v1522 = vunpack.c.l.b16 %v1502
        %v1523 = vunpack.c.h.b16 %v1502
        %v1524 = vunpack.c.l.b16 %v1503
        %v1525 = vunpack.c.h.b16 %v1503
        %v1526 = vunpack.c.l.b16 %v1504
        %v1527 = vunpack.c.h.b16 %v1504
        %v1528 = vunpack.c.l.b16 %v1505
        %v1529 = vunpack.c.h.b16 %v1505
        %v1530 = vpack.c.b16 %v1516, %v1514
        %v1531 = vpack.c.b16 %v1517, %v1515
        %v1532 = vpack.c.b16 %v1520, %v1518
        %v1533 = vpack.c.b16 %v1521, %v1519
        %v1534 = vpack.c.b16 %v1524, %v1522
        %v1535 = vpack.c.b16 %v1525, %v1523
        %v1536 = vpack.c.b16 %v1528, %v1526
        %v1537 = vpack.c.b16 %v1529, %v1527
        %1546 = vmatprep.subr.bf16.mxu0 0
        %1547 = vmatpush1.bf16.msra.mxu0 %v697
        %1548 = vmatprep.subr.bf16.mxu0 0
        %1549 = vmatpush1.bf16.msra.mxu0 %v698
        %1550 = vmatprep.subr.bf16.mxu0 0
        %1551 = vmatpush1.bf16.msra.mxu0 %v699
        %1552 = vmatprep.subr.bf16.mxu0 0
        %1553 = vmatpush1.bf16.msra.mxu0 %v700
        %1554 = vmatprep.subr.bf16.mxu0 0
        %1555 = vmatpush1.bf16.msra.mxu0 %v701
        %1556 = vmatprep.subr.bf16.mxu0 0
        %1557 = vmatpush1.bf16.msra.mxu0 %v702
        %1558 = vmatprep.subr.bf16.mxu0 0
        %1559 = vmatpush1.bf16.msra.mxu0 %v703
        %1560 = vmatprep.subr.bf16.mxu0 0
        %1561 = vmatpush1.bf16.msra.mxu0 %v704
        %1562 = vmatprep.subr.bf16.mxu0 0
        %1563 = vmatpush1.bf16.msra.mxu0 %v705
        %1564 = vmatprep.subr.bf16.mxu0 0
        %1565 = vmatpush1.bf16.msra.mxu0 %v706
        %1566 = vmatprep.subr.bf16.mxu0 0
        %1567 = vmatpush1.bf16.msra.mxu0 %v707
        %1568 = vmatprep.subr.bf16.mxu0 0
        %1569 = vmatpush1.bf16.msra.mxu0 %v708
        %1570 = vmatprep.subr.bf16.mxu0 0
        %1571 = vmatpush1.bf16.msra.mxu0 %v709
        %1572 = vmatprep.subr.bf16.mxu0 0
        %1573 = vmatpush1.bf16.msra.mxu0 %v710
        %1574 = vmatprep.subr.bf16.mxu0 0
        %1575 = vmatpush1.bf16.msra.mxu0 %v711
        %1576 = vmatprep.subr.bf16.mxu0 0
        %1577 = vmatpush1.bf16.msra.mxu0 %v712
        %1578 = vmatprep.mubr.bf16.mxu0 %v1531
        %1579 = vmatmul.mubr.bf16.gmra.mrb[0].mxu0 %v1530
        %v1580 = vpop.f32.mrb[0].mxu0
        %v1581 = vadd.f32 0.0, %v1580
        %v1582 = vpop.f32.mrb[0].mxu0
        %v1583 = vpop.f32.mrb[0].mxu0
        %v1584 = vadd.f32 0.0, %v1583
        %v1585 = vpop.f32.mrb[0].mxu0
        %1586 = vmatprep.mubr.bf16.mxu0 %v1533
        %1587 = vmatmul.mubr.bf16.gmra.mrb[0].mxu0 %v1532
        %v1588 = vpop.f32.mrb[0].mxu0
        %v1589 = vadd.f32 0.0, %v1588
        %v1590 = vpop.f32.mrb[0].mxu0
        %v1591 = vpop.f32.mrb[0].mxu0
        %v1592 = vadd.f32 0.0, %v1591
        %v1593 = vpop.f32.mrb[0].mxu0
        %1594 = vmatprep.mubr.bf16.mxu0 %v1535
        %1595 = vmatmul.mubr.bf16.gmra.mrb[0].mxu0 %v1534
        %v1596 = vpop.f32.mrb[0].mxu0
        %v1597 = vadd.f32 0.0, %v1596
        %v1598 = vpop.f32.mrb[0].mxu0
        %v1599 = vpop.f32.mrb[0].mxu0
        %v1600 = vadd.f32 0.0, %v1599
        %v1601 = vpop.f32.mrb[0].mxu0
        %1602 = vmatprep.mubr.bf16.mxu0 %v1537
        %1603 = vmatmul.mubr.bf16.gmra.mrb[0].mxu0 %v1536
        %v1604 = vpop.f32.mrb[0].mxu0
        %v1605 = vadd.f32 0.0, %v1604
        %v1606 = vpop.f32.mrb[0].mxu0
        %v1607 = vpop.f32.mrb[0].mxu0
        %v1608 = vadd.f32 0.0, %v1607
        %v1609 = vpop.f32.mrb[0].mxu0
        %1610 = vdwg.mxu0
        %v1611 = vpack.c.bf16 %v1584, %v1581
        %v1612 = vpack.c.bf16 %v1592, %v1589
        %v1613 = vpack.c.bf16 %v1600, %v1597
        %v1614 = vpack.c.bf16 %v1608, %v1605
        %s1615 = scalar_lea.vmem [#allocation3], 16
        %v1616 = vld [vmem:[%s1615] sm:$0x7]
        %v1618 = vsel %vm919, %v1611, 0
        %v1621 = vsel %vm919, %v1612, 0
        %v1624 = vsel %vm919, %v1613, 0
        %v1627 = vsel %vm919, %v1614, 0
        %v1630 = vsel %vm932, %v1616, 0
        %1632 = vmatprep.subr.bf16.mxu0 0
        %1633 = vmatpush1.bf16.msra.mxu0 %v1630
        %1634 = vmatprep.subr.bf16.mxu0 0
        %1635 = vmatpush1.bf16.msra.mxu0 0
        %1636 = vmatprep.subr.bf16.mxu0 0
        %1637 = vmatpush1.bf16.msra.mxu0 0
        %1638 = vmatprep.subr.bf16.mxu0 0
        %1639 = vmatpush1.bf16.msra.mxu0 0
        %1640 = vmatprep.subr.bf16.mxu0 0
        %1641 = vmatpush1.bf16.msra.mxu0 0
        %1642 = vmatprep.subr.bf16.mxu0 0
        %1643 = vmatpush1.bf16.msra.mxu0 0
        %1644 = vmatprep.subr.bf16.mxu0 0
        %1645 = vmatpush1.bf16.msra.mxu0 0
        %1646 = vmatprep.subr.bf16.mxu0 0
        %1647 = vmatpush1.bf16.msra.mxu0 0
        %1648 = vmatprep.subr.bf16.mxu0 0
        %1649 = vmatpush1.bf16.msra.mxu0 0
        %1650 = vmatprep.subr.bf16.mxu0 0
        %1651 = vmatpush1.bf16.msra.mxu0 0
        %1652 = vmatprep.subr.bf16.mxu0 0
        %1653 = vmatpush1.bf16.msra.mxu0 0
        %1654 = vmatprep.subr.bf16.mxu0 0
        %1655 = vmatpush1.bf16.msra.mxu0 0
        %1656 = vmatprep.subr.bf16.mxu0 0
        %1657 = vmatpush1.bf16.msra.mxu0 0
        %1658 = vmatprep.subr.bf16.mxu0 0
        %1659 = vmatpush1.bf16.msra.mxu0 0
        %1660 = vmatprep.subr.bf16.mxu0 0
        %1661 = vmatpush1.bf16.msra.mxu0 0
        %1662 = vmatprep.subr.bf16.mxu0 0
        %1663 = vmatpush1.bf16.msra.mxu0 0
        %1664 = vmatprep.mubr.bf16.mxu0 0
        %1665 = vmatmul.mubr.bf16.gmra.mrb[0].mxu0 %v1618
        %v1666 = vpop.f32.mrb[0].mxu0
        %v1667 = vadd.f32 0.0, %v1666
        %v1668 = vpop.f32.mrb[0].mxu0
        %v1669 = vpop.f32.mrb[0].mxu0
        %v1670 = vadd.f32 0.0, %v1669
        %v1671 = vpop.f32.mrb[0].mxu0
        %1672 = vmatprep.mubr.bf16.mxu0 0
        %1673 = vmatmul.mubr.bf16.gmra.mrb[0].mxu0 %v1621
        %v1674 = vpop.f32.mrb[0].mxu0
        %v1675 = vadd.f32 0.0, %v1674
        %v1676 = vpop.f32.mrb[0].mxu0
        %v1677 = vpop.f32.mrb[0].mxu0
        %v1678 = vadd.f32 0.0, %v1677
        %v1679 = vpop.f32.mrb[0].mxu0
        %1680 = vmatprep.mubr.bf16.mxu0 0
        %1681 = vmatmul.mubr.bf16.gmra.mrb[0].mxu0 %v1624
        %v1682 = vpop.f32.mrb[0].mxu0
        %v1683 = vadd.f32 0.0, %v1682
        %v1684 = vpop.f32.mrb[0].mxu0
        %v1685 = vpop.f32.mrb[0].mxu0
        %v1686 = vadd.f32 0.0, %v1685
        %v1687 = vpop.f32.mrb[0].mxu0
        %1688 = vmatprep.mubr.bf16.mxu0 0
        %1689 = vmatmul.mubr.bf16.gmra.mrb[0].mxu0 %v1627
        %v1690 = vpop.f32.mrb[0].mxu0
        %v1691 = vadd.f32 0.0, %v1690
        %v1692 = vpop.f32.mrb[0].mxu0
        %v1693 = vpop.f32.mrb[0].mxu0
        %v1694 = vadd.f32 0.0, %v1693
        %v1695 = vpop.f32.mrb[0].mxu0
        %1696 = vdwg.mxu0
        %v1697 = vadd.f32 %v1489, %v1667
        %v1698 = vadd.f32 %v1490, %v1670
        %v1699 = vadd.f32 %v1491, %v1675
        %v1700 = vadd.f32 %v1492, %v1678
        %v1701 = vadd.f32 %v1493, %v1683
        %v1702 = vadd.f32 %v1494, %v1686
        %v1703 = vadd.f32 %v1495, %v1691
        %v1704 = vadd.f32 %v1496, %v1694
        %s1705 = scalar_lea.vmem %s1, 320
        %v1706 = vld [vmem:[%s1705] sm:$0xff]
        %v1707 = vld [vmem:[%s1705 + $0x8] sm:$0xff]
        %v1708 = vld [vmem:[%s1705 + $0x10] sm:$0xff]
        %v1709 = vld [vmem:[%s1705 + $0x18] sm:$0xff]
        %v1710 = vld [vmem:[%s1705 + $0x20] sm:$0xff]
        %v1711 = vld [vmem:[%s1705 + $0x28] sm:$0xff]
        %v1712 = vld [vmem:[%s1705 + $0x30] sm:$0xff]
        %v1713 = vld [vmem:[%s1705 + $0x38] sm:$0xff]
        %v1722 = vunpack.c.l.b16 %v1706
        %v1723 = vunpack.c.h.b16 %v1706
        %v1724 = vunpack.c.l.b16 %v1707
        %v1725 = vunpack.c.h.b16 %v1707
        %v1726 = vunpack.c.l.b16 %v1708
        %v1727 = vunpack.c.h.b16 %v1708
        %v1728 = vunpack.c.l.b16 %v1709
        %v1729 = vunpack.c.h.b16 %v1709
        %v1730 = vunpack.c.l.b16 %v1710
        %v1731 = vunpack.c.h.b16 %v1710
        %v1732 = vunpack.c.l.b16 %v1711
        %v1733 = vunpack.c.h.b16 %v1711
        %v1734 = vunpack.c.l.b16 %v1712
        %v1735 = vunpack.c.h.b16 %v1712
        %v1736 = vunpack.c.l.b16 %v1713
        %v1737 = vunpack.c.h.b16 %v1713
        %v1738 = vpack.c.b16 %v1724, %v1722
        %v1739 = vpack.c.b16 %v1725, %v1723
        %v1740 = vpack.c.b16 %v1728, %v1726
        %v1741 = vpack.c.b16 %v1729, %v1727
        %v1742 = vpack.c.b16 %v1732, %v1730
        %v1743 = vpack.c.b16 %v1733, %v1731
        %v1744 = vpack.c.b16 %v1736, %v1734
        %v1745 = vpack.c.b16 %v1737, %v1735
        %1754 = vmatprep.subr.bf16.mxu0 0
        %1755 = vmatpush1.bf16.msra.mxu0 %v697
        %1756 = vmatprep.subr.bf16.mxu0 0
        %1757 = vmatpush1.bf16.msra.mxu0 %v698
        %1758 = vmatprep.subr.bf16.mxu0 0
        %1759 = vmatpush1.bf16.msra.mxu0 %v699
        %1760 = vmatprep.subr.bf16.mxu0 0
        %1761 = vmatpush1.bf16.msra.mxu0 %v700
        %1762 = vmatprep.subr.bf16.mxu0 0
        %1763 = vmatpush1.bf16.msra.mxu0 %v701
        %1764 = vmatprep.subr.bf16.mxu0 0
        %1765 = vmatpush1.bf16.msra.mxu0 %v702
        %1766 = vmatprep.subr.bf16.mxu0 0
        %1767 = vmatpush1.bf16.msra.mxu0 %v703
        %1768 = vmatprep.subr.bf16.mxu0 0
        %1769 = vmatpush1.bf16.msra.mxu0 %v704
        %1770 = vmatprep.subr.bf16.mxu0 0
        %1771 = vmatpush1.bf16.msra.mxu0 %v705
        %1772 = vmatprep.subr.bf16.mxu0 0
        %1773 = vmatpush1.bf16.msra.mxu0 %v706
        %1774 = vmatprep.subr.bf16.mxu0 0
        %1775 = vmatpush1.bf16.msra.mxu0 %v707
        %1776 = vmatprep.subr.bf16.mxu0 0
        %1777 = vmatpush1.bf16.msra.mxu0 %v708
        %1778 = vmatprep.subr.bf16.mxu0 0
        %1779 = vmatpush1.bf16.msra.mxu0 %v709
        %1780 = vmatprep.subr.bf16.mxu0 0
        %1781 = vmatpush1.bf16.msra.mxu0 %v710
        %1782 = vmatprep.subr.bf16.mxu0 0
        %1783 = vmatpush1.bf16.msra.mxu0 %v711
        %1784 = vmatprep.subr.bf16.mxu0 0
        %1785 = vmatpush1.bf16.msra.mxu0 %v712
        %1786 = vmatprep.mubr.bf16.mxu0 %v1739
        %1787 = vmatmul.mubr.bf16.gmra.mrb[0].mxu0 %v1738
        %v1788 = vpop.f32.mrb[0].mxu0
        %v1789 = vadd.f32 0.0, %v1788
        %v1790 = vpop.f32.mrb[0].mxu0
        %v1791 = vpop.f32.mrb[0].mxu0
        %v1792 = vadd.f32 0.0, %v1791
        %v1793 = vpop.f32.mrb[0].mxu0
        %1794 = vmatprep.mubr.bf16.mxu0 %v1741
        %1795 = vmatmul.mubr.bf16.gmra.mrb[0].mxu0 %v1740
        %v1796 = vpop.f32.mrb[0].mxu0
        %v1797 = vadd.f32 0.0, %v1796
        %v1798 = vpop.f32.mrb[0].mxu0
        %v1799 = vpop.f32.mrb[0].mxu0
        %v1800 = vadd.f32 0.0, %v1799
        %v1801 = vpop.f32.mrb[0].mxu0
        %1802 = vmatprep.mubr.bf16.mxu0 %v1743
        %1803 = vmatmul.mubr.bf16.gmra.mrb[0].mxu0 %v1742
        %v1804 = vpop.f32.mrb[0].mxu0
        %v1805 = vadd.f32 0.0, %v1804
        %v1806 = vpop.f32.mrb[0].mxu0
        %v1807 = vpop.f32.mrb[0].mxu0
        %v1808 = vadd.f32 0.0, %v1807
        %v1809 = vpop.f32.mrb[0].mxu0
        %1810 = vmatprep.mubr.bf16.mxu0 %v1745
        %1811 = vmatmul.mubr.bf16.gmra.mrb[0].mxu0 %v1744
        %v1812 = vpop.f32.mrb[0].mxu0
        %v1813 = vadd.f32 0.0, %v1812
        %v1814 = vpop.f32.mrb[0].mxu0
        %v1815 = vpop.f32.mrb[0].mxu0
        %v1816 = vadd.f32 0.0, %v1815
        %v1817 = vpop.f32.mrb[0].mxu0
        %1818 = vdwg.mxu0
        %v1819 = vpack.c.bf16 %v1792, %v1789
        %v1820 = vpack.c.bf16 %v1800, %v1797
        %v1821 = vpack.c.bf16 %v1808, %v1805
        %v1822 = vpack.c.bf16 %v1816, %v1813
        %s1823 = scalar_lea.vmem [#allocation3], 20
        %v1824 = vld [vmem:[%s1823] sm:$0x7]
        %v1826 = vsel %vm919, %v1819, 0
        %v1829 = vsel %vm919, %v1820, 0
        %v1832 = vsel %vm919, %v1821, 0
        %v1835 = vsel %vm919, %v1822, 0
        %v1838 = vsel %vm932, %v1824, 0
        %1840 = vmatprep.subr.bf16.mxu0 0
        %1841 = vmatpush1.bf16.msra.mxu0 %v1838
        %1842 = vmatprep.subr.bf16.mxu0 0
        %1843 = vmatpush1.bf16.msra.mxu0 0
        %1844 = vmatprep.subr.bf16.mxu0 0
        %1845 = vmatpush1.bf16.msra.mxu0 0
        %1846 = vmatprep.subr.bf16.mxu0 0
        %1847 = vmatpush1.bf16.msra.mxu0 0
        %1848 = vmatprep.subr.bf16.mxu0 0
        %1849 = vmatpush1.bf16.msra.mxu0 0
        %1850 = vmatprep.subr.bf16.mxu0 0
        %1851 = vmatpush1.bf16.msra.mxu0 0
        %1852 = vmatprep.subr.bf16.mxu0 0
        %1853 = vmatpush1.bf16.msra.mxu0 0
        %1854 = vmatprep.subr.bf16.mxu0 0
        %1855 = vmatpush1.bf16.msra.mxu0 0
        %1856 = vmatprep.subr.bf16.mxu0 0
        %1857 = vmatpush1.bf16.msra.mxu0 0
        %1858 = vmatprep.subr.bf16.mxu0 0
        %1859 = vmatpush1.bf16.msra.mxu0 0
        %1860 = vmatprep.subr.bf16.mxu0 0
        %1861 = vmatpush1.bf16.msra.mxu0 0
        %1862 = vmatprep.subr.bf16.mxu0 0
        %1863 = vmatpush1.bf16.msra.mxu0 0
        %1864 = vmatprep.subr.bf16.mxu0 0
        %1865 = vmatpush1.bf16.msra.mxu0 0
        %1866 = vmatprep.subr.bf16.mxu0 0
        %1867 = vmatpush1.bf16.msra.mxu0 0
        %1868 = vmatprep.subr.bf16.mxu0 0
        %1869 = vmatpush1.bf16.msra.mxu0 0
        %1870 = vmatprep.subr.bf16.mxu0 0
        %1871 = vmatpush1.bf16.msra.mxu0 0
        %1872 = vmatprep.mubr.bf16.mxu0 0
        %1873 = vmatmul.mubr.bf16.gmra.mrb[0].mxu0 %v1826
        %v1874 = vpop.f32.mrb[0].mxu0
        %v1875 = vadd.f32 0.0, %v1874
        %v1876 = vpop.f32.mrb[0].mxu0
        %v1877 = vpop.f32.mrb[0].mxu0
        %v1878 = vadd.f32 0.0, %v1877
        %v1879 = vpop.f32.mrb[0].mxu0
        %1880 = vmatprep.mubr.bf16.mxu0 0
        %1881 = vmatmul.mubr.bf16.gmra.mrb[0].mxu0 %v1829
        %v1882 = vpop.f32.mrb[0].mxu0
        %v1883 = vadd.f32 0.0, %v1882
        %v1884 = vpop.f32.mrb[0].mxu0
        %v1885 = vpop.f32.mrb[0].mxu0
        %v1886 = vadd.f32 0.0, %v1885
        %v1887 = vpop.f32.mrb[0].mxu0
        %1888 = vmatprep.mubr.bf16.mxu0 0
        %1889 = vmatmul.mubr.bf16.gmra.mrb[0].mxu0 %v1832
        %v1890 = vpop.f32.mrb[0].mxu0
        %v1891 = vadd.f32 0.0, %v1890
        %v1892 = vpop.f32.mrb[0].mxu0
        %v1893 = vpop.f32.mrb[0].mxu0
        %v1894 = vadd.f32 0.0, %v1893
        %v1895 = vpop.f32.mrb[0].mxu0
        %1896 = vmatprep.mubr.bf16.mxu0 0
        %1897 = vmatmul.mubr.bf16.gmra.mrb[0].mxu0 %v1835
        %v1898 = vpop.f32.mrb[0].mxu0
        %v1899 = vadd.f32 0.0, %v1898
        %v1900 = vpop.f32.mrb[0].mxu0
        %v1901 = vpop.f32.mrb[0].mxu0
        %v1902 = vadd.f32 0.0, %v1901
        %v1903 = vpop.f32.mrb[0].mxu0
        %1904 = vdwg.mxu0
        %v1905 = vadd.f32 %v1697, %v1875
        %v1906 = vadd.f32 %v1698, %v1878
        %v1907 = vadd.f32 %v1699, %v1883
        %v1908 = vadd.f32 %v1700, %v1886
        %v1909 = vadd.f32 %v1701, %v1891
        %v1910 = vadd.f32 %v1702, %v1894
        %v1911 = vadd.f32 %v1703, %v1899
        %v1912 = vadd.f32 %v1704, %v1902
        %s1913 = scalar_lea.vmem %s1, 384
        %v1914 = vld [vmem:[%s1913] sm:$0xff]
        %v1915 = vld [vmem:[%s1913 + $0x8] sm:$0xff]
        %v1916 = vld [vmem:[%s1913 + $0x10] sm:$0xff]
        %v1917 = vld [vmem:[%s1913 + $0x18] sm:$0xff]
        %v1918 = vld [vmem:[%s1913 + $0x20] sm:$0xff]
        %v1919 = vld [vmem:[%s1913 + $0x28] sm:$0xff]
        %v1920 = vld [vmem:[%s1913 + $0x30] sm:$0xff]
        %v1921 = vld [vmem:[%s1913 + $0x38] sm:$0xff]
        %v1930 = vunpack.c.l.b16 %v1914
        %v1931 = vunpack.c.h.b16 %v1914
        %v1932 = vunpack.c.l.b16 %v1915
        %v1933 = vunpack.c.h.b16 %v1915
        %v1934 = vunpack.c.l.b16 %v1916
        %v1935 = vunpack.c.h.b16 %v1916
        %v1936 = vunpack.c.l.b16 %v1917
        %v1937 = vunpack.c.h.b16 %v1917
        %v1938 = vunpack.c.l.b16 %v1918
        %v1939 = vunpack.c.h.b16 %v1918
        %v1940 = vunpack.c.l.b16 %v1919
        %v1941 = vunpack.c.h.b16 %v1919
        %v1942 = vunpack.c.l.b16 %v1920
        %v1943 = vunpack.c.h.b16 %v1920
        %v1944 = vunpack.c.l.b16 %v1921
        %v1945 = vunpack.c.h.b16 %v1921
        %v1946 = vpack.c.b16 %v1932, %v1930
        %v1947 = vpack.c.b16 %v1933, %v1931
        %v1948 = vpack.c.b16 %v1936, %v1934
        %v1949 = vpack.c.b16 %v1937, %v1935
        %v1950 = vpack.c.b16 %v1940, %v1938
        %v1951 = vpack.c.b16 %v1941, %v1939
        %v1952 = vpack.c.b16 %v1944, %v1942
        %v1953 = vpack.c.b16 %v1945, %v1943
        %1962 = vmatprep.subr.bf16.mxu0 0
        %1963 = vmatpush1.bf16.msra.mxu0 %v697
        %1964 = vmatprep.subr.bf16.mxu0 0
        %1965 = vmatpush1.bf16.msra.mxu0 %v698
        %1966 = vmatprep.subr.bf16.mxu0 0
        %1967 = vmatpush1.bf16.msra.mxu0 %v699
        %1968 = vmatprep.subr.bf16.mxu0 0
        %1969 = vmatpush1.bf16.msra.mxu0 %v700
        %1970 = vmatprep.subr.bf16.mxu0 0
        %1971 = vmatpush1.bf16.msra.mxu0 %v701
        %1972 = vmatprep.subr.bf16.mxu0 0
        %1973 = vmatpush1.bf16.msra.mxu0 %v702
        %1974 = vmatprep.subr.bf16.mxu0 0
        %1975 = vmatpush1.bf16.msra.mxu0 %v703
        %1976 = vmatprep.subr.bf16.mxu0 0
        %1977 = vmatpush1.bf16.msra.mxu0 %v704
        %1978 = vmatprep.subr.bf16.mxu0 0
        %1979 = vmatpush1.bf16.msra.mxu0 %v705
        %1980 = vmatprep.subr.bf16.mxu0 0
        %1981 = vmatpush1.bf16.msra.mxu0 %v706
        %1982 = vmatprep.subr.bf16.mxu0 0
        %1983 = vmatpush1.bf16.msra.mxu0 %v707
        %1984 = vmatprep.subr.bf16.mxu0 0
        %1985 = vmatpush1.bf16.msra.mxu0 %v708
        %1986 = vmatprep.subr.bf16.mxu0 0
        %1987 = vmatpush1.bf16.msra.mxu0 %v709
        %1988 = vmatprep.subr.bf16.mxu0 0
        %1989 = vmatpush1.bf16.msra.mxu0 %v710
        %1990 = vmatprep.subr.bf16.mxu0 0
        %1991 = vmatpush1.bf16.msra.mxu0 %v711
        %1992 = vmatprep.subr.bf16.mxu0 0
        %1993 = vmatpush1.bf16.msra.mxu0 %v712
        %1994 = vmatprep.mubr.bf16.mxu0 %v1947
        %1995 = vmatmul.mubr.bf16.gmra.mrb[0].mxu0 %v1946
        %v1996 = vpop.f32.mrb[0].mxu0
        %v1997 = vadd.f32 0.0, %v1996
        %v1998 = vpop.f32.mrb[0].mxu0
        %v1999 = vpop.f32.mrb[0].mxu0
        %v2000 = vadd.f32 0.0, %v1999
        %v2001 = vpop.f32.mrb[0].mxu0
        %2002 = vmatprep.mubr.bf16.mxu0 %v1949
        %2003 = vmatmul.mubr.bf16.gmra.mrb[0].mxu0 %v1948
        %v2004 = vpop.f32.mrb[0].mxu0
        %v2005 = vadd.f32 0.0, %v2004
        %v2006 = vpop.f32.mrb[0].mxu0
        %v2007 = vpop.f32.mrb[0].mxu0
        %v2008 = vadd.f32 0.0, %v2007
        %v2009 = vpop.f32.mrb[0].mxu0
        %2010 = vmatprep.mubr.bf16.mxu0 %v1951
        %2011 = vmatmul.mubr.bf16.gmra.mrb[0].mxu0 %v1950
        %v2012 = vpop.f32.mrb[0].mxu0
        %v2013 = vadd.f32 0.0, %v2012
        %v2014 = vpop.f32.mrb[0].mxu0
        %v2015 = vpop.f32.mrb[0].mxu0
        %v2016 = vadd.f32 0.0, %v2015
        %v2017 = vpop.f32.mrb[0].mxu0
        %2018 = vmatprep.mubr.bf16.mxu0 %v1953
        %2019 = vmatmul.mubr.bf16.gmra.mrb[0].mxu0 %v1952
        %v2020 = vpop.f32.mrb[0].mxu0
        %v2021 = vadd.f32 0.0, %v2020
        %v2022 = vpop.f32.mrb[0].mxu0
        %v2023 = vpop.f32.mrb[0].mxu0
        %v2024 = vadd.f32 0.0, %v2023
        %v2025 = vpop.f32.mrb[0].mxu0
        %2026 = vdwg.mxu0
        %v2027 = vpack.c.bf16 %v2000, %v1997
        %v2028 = vpack.c.bf16 %v2008, %v2005
        %v2029 = vpack.c.bf16 %v2016, %v2013
        %v2030 = vpack.c.bf16 %v2024, %v2021
        %s2031 = scalar_lea.vmem [#allocation3], 24
        %v2032 = vld [vmem:[%s2031] sm:$0x7]
        %v2034 = vsel %vm919, %v2027, 0
        %v2037 = vsel %vm919, %v2028, 0
        %v2040 = vsel %vm919, %v2029, 0
        %v2043 = vsel %vm919, %v2030, 0
        %v2046 = vsel %vm932, %v2032, 0
        %2048 = vmatprep.subr.bf16.mxu0 0
        %2049 = vmatpush1.bf16.msra.mxu0 %v2046
        %2050 = vmatprep.subr.bf16.mxu0 0
        %2051 = vmatpush1.bf16.msra.mxu0 0
        %2052 = vmatprep.subr.bf16.mxu0 0
        %2053 = vmatpush1.bf16.msra.mxu0 0
        %2054 = vmatprep.subr.bf16.mxu0 0
        %2055 = vmatpush1.bf16.msra.mxu0 0
        %2056 = vmatprep.subr.bf16.mxu0 0
        %2057 = vmatpush1.bf16.msra.mxu0 0
        %2058 = vmatprep.subr.bf16.mxu0 0
        %2059 = vmatpush1.bf16.msra.mxu0 0
        %2060 = vmatprep.subr.bf16.mxu0 0
        %2061 = vmatpush1.bf16.msra.mxu0 0
        %2062 = vmatprep.subr.bf16.mxu0 0
        %2063 = vmatpush1.bf16.msra.mxu0 0
        %2064 = vmatprep.subr.bf16.mxu0 0
        %2065 = vmatpush1.bf16.msra.mxu0 0
        %2066 = vmatprep.subr.bf16.mxu0 0
        %2067 = vmatpush1.bf16.msra.mxu0 0
        %2068 = vmatprep.subr.bf16.mxu0 0
        %2069 = vmatpush1.bf16.msra.mxu0 0
        %2070 = vmatprep.subr.bf16.mxu0 0
        %2071 = vmatpush1.bf16.msra.mxu0 0
        %2072 = vmatprep.subr.bf16.mxu0 0
        %2073 = vmatpush1.bf16.msra.mxu0 0
        %2074 = vmatprep.subr.bf16.mxu0 0
        %2075 = vmatpush1.bf16.msra.mxu0 0
        %2076 = vmatprep.subr.bf16.mxu0 0
        %2077 = vmatpush1.bf16.msra.mxu0 0
        %2078 = vmatprep.subr.bf16.mxu0 0
        %2079 = vmatpush1.bf16.msra.mxu0 0
        %2080 = vmatprep.mubr.bf16.mxu0 0
        %2081 = vmatmul.mubr.bf16.gmra.mrb[0].mxu0 %v2034
        %v2082 = vpop.f32.mrb[0].mxu0
        %v2083 = vadd.f32 0.0, %v2082
        %v2084 = vpop.f32.mrb[0].mxu0
        %v2085 = vpop.f32.mrb[0].mxu0
        %v2086 = vadd.f32 0.0, %v2085
        %v2087 = vpop.f32.mrb[0].mxu0
        %2088 = vmatprep.mubr.bf16.mxu0 0
        %2089 = vmatmul.mubr.bf16.gmra.mrb[0].mxu0 %v2037
        %v2090 = vpop.f32.mrb[0].mxu0
        %v2091 = vadd.f32 0.0, %v2090
        %v2092 = vpop.f32.mrb[0].mxu0
        %v2093 = vpop.f32.mrb[0].mxu0
        %v2094 = vadd.f32 0.0, %v2093
        %v2095 = vpop.f32.mrb[0].mxu0
        %2096 = vmatprep.mubr.bf16.mxu0 0
        %2097 = vmatmul.mubr.bf16.gmra.mrb[0].mxu0 %v2040
        %v2098 = vpop.f32.mrb[0].mxu0
        %v2099 = vadd.f32 0.0, %v2098
        %v2100 = vpop.f32.mrb[0].mxu0
        %v2101 = vpop.f32.mrb[0].mxu0
        %v2102 = vadd.f32 0.0, %v2101
        %v2103 = vpop.f32.mrb[0].mxu0
        %2104 = vmatprep.mubr.bf16.mxu0 0
        %2105 = vmatmul.mubr.bf16.gmra.mrb[0].mxu0 %v2043
        %v2106 = vpop.f32.mrb[0].mxu0
        %v2107 = vadd.f32 0.0, %v2106
        %v2108 = vpop.f32.mrb[0].mxu0
        %v2109 = vpop.f32.mrb[0].mxu0
        %v2110 = vadd.f32 0.0, %v2109
        %v2111 = vpop.f32.mrb[0].mxu0
        %2112 = vdwg.mxu0
        %v2113 = vadd.f32 %v1905, %v2083
        %v2114 = vadd.f32 %v1906, %v2086
        %v2115 = vadd.f32 %v1907, %v2091
        %v2116 = vadd.f32 %v1908, %v2094
        %v2117 = vadd.f32 %v1909, %v2099
        %v2118 = vadd.f32 %v1910, %v2102
        %v2119 = vadd.f32 %v1911, %v2107
        %v2120 = vadd.f32 %v1912, %v2110
        %s2121 = scalar_lea.vmem %s1, 448
        %v2122 = vld [vmem:[%s2121] sm:$0xff]
        %v2123 = vld [vmem:[%s2121 + $0x8] sm:$0xff]
        %v2124 = vld [vmem:[%s2121 + $0x10] sm:$0xff]
        %v2125 = vld [vmem:[%s2121 + $0x18] sm:$0xff]
        %v2126 = vld [vmem:[%s2121 + $0x20] sm:$0xff]
        %v2127 = vld [vmem:[%s2121 + $0x28] sm:$0xff]
        %v2128 = vld [vmem:[%s2121 + $0x30] sm:$0xff]
        %v2129 = vld [vmem:[%s2121 + $0x38] sm:$0xff]
        %v2138 = vunpack.c.l.b16 %v2122
        %v2139 = vunpack.c.h.b16 %v2122
        %v2140 = vunpack.c.l.b16 %v2123
        %v2141 = vunpack.c.h.b16 %v2123
        %v2142 = vunpack.c.l.b16 %v2124
        %v2143 = vunpack.c.h.b16 %v2124
        %v2144 = vunpack.c.l.b16 %v2125
        %v2145 = vunpack.c.h.b16 %v2125
        %v2146 = vunpack.c.l.b16 %v2126
        %v2147 = vunpack.c.h.b16 %v2126
        %v2148 = vunpack.c.l.b16 %v2127
        %v2149 = vunpack.c.h.b16 %v2127
        %v2150 = vunpack.c.l.b16 %v2128
        %v2151 = vunpack.c.h.b16 %v2128
        %v2152 = vunpack.c.l.b16 %v2129
        %v2153 = vunpack.c.h.b16 %v2129
        %v2154 = vpack.c.b16 %v2140, %v2138
        %v2155 = vpack.c.b16 %v2141, %v2139
        %v2156 = vpack.c.b16 %v2144, %v2142
        %v2157 = vpack.c.b16 %v2145, %v2143
        %v2158 = vpack.c.b16 %v2148, %v2146
        %v2159 = vpack.c.b16 %v2149, %v2147
        %v2160 = vpack.c.b16 %v2152, %v2150
        %v2161 = vpack.c.b16 %v2153, %v2151
        %2170 = vmatprep.subr.bf16.mxu0 0
        %2171 = vmatpush1.bf16.msra.mxu0 %v697
        %2172 = vmatprep.subr.bf16.mxu0 0
        %2173 = vmatpush1.bf16.msra.mxu0 %v698
        %2174 = vmatprep.subr.bf16.mxu0 0
        %2175 = vmatpush1.bf16.msra.mxu0 %v699
        %2176 = vmatprep.subr.bf16.mxu0 0
        %2177 = vmatpush1.bf16.msra.mxu0 %v700
        %2178 = vmatprep.subr.bf16.mxu0 0
        %2179 = vmatpush1.bf16.msra.mxu0 %v701
        %2180 = vmatprep.subr.bf16.mxu0 0
        %2181 = vmatpush1.bf16.msra.mxu0 %v702
        %2182 = vmatprep.subr.bf16.mxu0 0
        %2183 = vmatpush1.bf16.msra.mxu0 %v703
        %2184 = vmatprep.subr.bf16.mxu0 0
        %2185 = vmatpush1.bf16.msra.mxu0 %v704
        %2186 = vmatprep.subr.bf16.mxu0 0
        %2187 = vmatpush1.bf16.msra.mxu0 %v705
        %2188 = vmatprep.subr.bf16.mxu0 0
        %2189 = vmatpush1.bf16.msra.mxu0 %v706
        %2190 = vmatprep.subr.bf16.mxu0 0
        %2191 = vmatpush1.bf16.msra.mxu0 %v707
        %2192 = vmatprep.subr.bf16.mxu0 0
        %2193 = vmatpush1.bf16.msra.mxu0 %v708
        %2194 = vmatprep.subr.bf16.mxu0 0
        %2195 = vmatpush1.bf16.msra.mxu0 %v709
        %2196 = vmatprep.subr.bf16.mxu0 0
        %2197 = vmatpush1.bf16.msra.mxu0 %v710
        %2198 = vmatprep.subr.bf16.mxu0 0
        %2199 = vmatpush1.bf16.msra.mxu0 %v711
        %2200 = vmatprep.subr.bf16.mxu0 0
        %2201 = vmatpush1.bf16.msra.mxu0 %v712
        %2202 = vmatprep.mubr.bf16.mxu0 %v2155
        %2203 = vmatmul.mubr.bf16.gmra.mrb[0].mxu0 %v2154
        %v2204 = vpop.f32.mrb[0].mxu0
        %v2205 = vadd.f32 0.0, %v2204
        %v2206 = vpop.f32.mrb[0].mxu0
        %v2207 = vpop.f32.mrb[0].mxu0
        %v2208 = vadd.f32 0.0, %v2207
        %v2209 = vpop.f32.mrb[0].mxu0
        %2210 = vmatprep.mubr.bf16.mxu0 %v2157
        %2211 = vmatmul.mubr.bf16.gmra.mrb[0].mxu0 %v2156
        %v2212 = vpop.f32.mrb[0].mxu0
        %v2213 = vadd.f32 0.0, %v2212
        %v2214 = vpop.f32.mrb[0].mxu0
        %v2215 = vpop.f32.mrb[0].mxu0
        %v2216 = vadd.f32 0.0, %v2215
        %v2217 = vpop.f32.mrb[0].mxu0
        %2218 = vmatprep.mubr.bf16.mxu0 %v2159
        %2219 = vmatmul.mubr.bf16.gmra.mrb[0].mxu0 %v2158
        %v2220 = vpop.f32.mrb[0].mxu0
        %v2221 = vadd.f32 0.0, %v2220
        %v2222 = vpop.f32.mrb[0].mxu0
        %v2223 = vpop.f32.mrb[0].mxu0
        %v2224 = vadd.f32 0.0, %v2223
        %v2225 = vpop.f32.mrb[0].mxu0
        %2226 = vmatprep.mubr.bf16.mxu0 %v2161
        %2227 = vmatmul.mubr.bf16.gmra.mrb[0].mxu0 %v2160
        %v2228 = vpop.f32.mrb[0].mxu0
        %v2229 = vadd.f32 0.0, %v2228
        %v2230 = vpop.f32.mrb[0].mxu0
        %v2231 = vpop.f32.mrb[0].mxu0
        %v2232 = vadd.f32 0.0, %v2231
        %v2233 = vpop.f32.mrb[0].mxu0
        %2234 = vdwg.mxu0
        %v2235 = vpack.c.bf16 %v2208, %v2205
        %v2236 = vpack.c.bf16 %v2216, %v2213
        %v2237 = vpack.c.bf16 %v2224, %v2221
        %v2238 = vpack.c.bf16 %v2232, %v2229
        %s2239 = scalar_lea.vmem [#allocation3], 28
        %v2240 = vld [vmem:[%s2239] sm:$0x7]
        %v2242 = vsel %vm919, %v2235, 0
        %v2245 = vsel %vm919, %v2236, 0
        %v2248 = vsel %vm919, %v2237, 0
        %v2251 = vsel %vm919, %v2238, 0
        %v2254 = vsel %vm932, %v2240, 0
        %2256 = vmatprep.subr.bf16.mxu0 0
        %2257 = vmatpush1.bf16.msra.mxu0 %v2254
        %2258 = vmatprep.subr.bf16.mxu0 0
        %2259 = vmatpush1.bf16.msra.mxu0 0
        %2260 = vmatprep.subr.bf16.mxu0 0
        %2261 = vmatpush1.bf16.msra.mxu0 0
        %2262 = vmatprep.subr.bf16.mxu0 0
        %2263 = vmatpush1.bf16.msra.mxu0 0
        %2264 = vmatprep.subr.bf16.mxu0 0
        %2265 = vmatpush1.bf16.msra.mxu0 0
        %2266 = vmatprep.subr.bf16.mxu0 0
        %2267 = vmatpush1.bf16.msra.mxu0 0
        %2268 = vmatprep.subr.bf16.mxu0 0
        %2269 = vmatpush1.bf16.msra.mxu0 0
        %2270 = vmatprep.subr.bf16.mxu0 0
        %2271 = vmatpush1.bf16.msra.mxu0 0
        %2272 = vmatprep.subr.bf16.mxu0 0
        %2273 = vmatpush1.bf16.msra.mxu0 0
        %2274 = vmatprep.subr.bf16.mxu0 0
        %2275 = vmatpush1.bf16.msra.mxu0 0
        %2276 = vmatprep.subr.bf16.mxu0 0
        %2277 = vmatpush1.bf16.msra.mxu0 0
        %2278 = vmatprep.subr.bf16.mxu0 0
        %2279 = vmatpush1.bf16.msra.mxu0 0
        %2280 = vmatprep.subr.bf16.mxu0 0
        %2281 = vmatpush1.bf16.msra.mxu0 0
        %2282 = vmatprep.subr.bf16.mxu0 0
        %2283 = vmatpush1.bf16.msra.mxu0 0
        %2284 = vmatprep.subr.bf16.mxu0 0
        %2285 = vmatpush1.bf16.msra.mxu0 0
        %2286 = vmatprep.subr.bf16.mxu0 0
        %2287 = vmatpush1.bf16.msra.mxu0 0
        %2288 = vmatprep.mubr.bf16.mxu0 0
        %2289 = vmatmul.mubr.bf16.gmra.mrb[0].mxu0 %v2242
        %v2290 = vpop.f32.mrb[0].mxu0
        %v2291 = vadd.f32 0.0, %v2290
        %v2292 = vpop.f32.mrb[0].mxu0
        %v2293 = vpop.f32.mrb[0].mxu0
        %v2294 = vadd.f32 0.0, %v2293
        %v2295 = vpop.f32.mrb[0].mxu0
        %2296 = vmatprep.mubr.bf16.mxu0 0
        %2297 = vmatmul.mubr.bf16.gmra.mrb[0].mxu0 %v2245
        %v2298 = vpop.f32.mrb[0].mxu0
        %v2299 = vadd.f32 0.0, %v2298
        %v2300 = vpop.f32.mrb[0].mxu0
        %v2301 = vpop.f32.mrb[0].mxu0
        %v2302 = vadd.f32 0.0, %v2301
        %v2303 = vpop.f32.mrb[0].mxu0
        %2304 = vmatprep.mubr.bf16.mxu0 0
        %2305 = vmatmul.mubr.bf16.gmra.mrb[0].mxu0 %v2248
        %v2306 = vpop.f32.mrb[0].mxu0
        %v2307 = vadd.f32 0.0, %v2306
        %v2308 = vpop.f32.mrb[0].mxu0
        %v2309 = vpop.f32.mrb[0].mxu0
        %v2310 = vadd.f32 0.0, %v2309
        %v2311 = vpop.f32.mrb[0].mxu0
        %2312 = vmatprep.mubr.bf16.mxu0 0
        %2313 = vmatmul.mubr.bf16.gmra.mrb[0].mxu0 %v2251
        %v2314 = vpop.f32.mrb[0].mxu0
        %v2315 = vadd.f32 0.0, %v2314
        %v2316 = vpop.f32.mrb[0].mxu0
        %v2317 = vpop.f32.mrb[0].mxu0
        %v2318 = vadd.f32 0.0, %v2317
        %v2319 = vpop.f32.mrb[0].mxu0
        %2320 = vdwg.mxu0
        %v2321 = vadd.f32 %v2113, %v2291
        %v2322 = vadd.f32 %v2114, %v2294
        %v2323 = vadd.f32 %v2115, %v2299
        %v2324 = vadd.f32 %v2116, %v2302
        %v2325 = vadd.f32 %v2117, %v2307
        %v2326 = vadd.f32 %v2118, %v2310
        %v2327 = vadd.f32 %v2119, %v2315
        %v2328 = vadd.f32 %v2120, %v2318
        %s2329 = scalar_lea.vmem %s1, 512
        %v2330 = vld [vmem:[%s2329] sm:$0xff]
        %v2331 = vld [vmem:[%s2329 + $0x8] sm:$0xff]
        %v2332 = vld [vmem:[%s2329 + $0x10] sm:$0xff]
        %v2333 = vld [vmem:[%s2329 + $0x18] sm:$0xff]
        %v2334 = vld [vmem:[%s2329 + $0x20] sm:$0xff]
        %v2335 = vld [vmem:[%s2329 + $0x28] sm:$0xff]
        %v2336 = vld [vmem:[%s2329 + $0x30] sm:$0xff]
        %v2337 = vld [vmem:[%s2329 + $0x38] sm:$0xff]
        %v2346 = vunpack.c.l.b16 %v2330
        %v2347 = vunpack.c.h.b16 %v2330
        %v2348 = vunpack.c.l.b16 %v2331
        %v2349 = vunpack.c.h.b16 %v2331
        %v2350 = vunpack.c.l.b16 %v2332
        %v2351 = vunpack.c.h.b16 %v2332
        %v2352 = vunpack.c.l.b16 %v2333
        %v2353 = vunpack.c.h.b16 %v2333
        %v2354 = vunpack.c.l.b16 %v2334
        %v2355 = vunpack.c.h.b16 %v2334
        %v2356 = vunpack.c.l.b16 %v2335
        %v2357 = vunpack.c.h.b16 %v2335
        %v2358 = vunpack.c.l.b16 %v2336
        %v2359 = vunpack.c.h.b16 %v2336
        %v2360 = vunpack.c.l.b16 %v2337
        %v2361 = vunpack.c.h.b16 %v2337
        %v2362 = vpack.c.b16 %v2348, %v2346
        %v2363 = vpack.c.b16 %v2349, %v2347
        %v2364 = vpack.c.b16 %v2352, %v2350
        %v2365 = vpack.c.b16 %v2353, %v2351
        %v2366 = vpack.c.b16 %v2356, %v2354
        %v2367 = vpack.c.b16 %v2357, %v2355
        %v2368 = vpack.c.b16 %v2360, %v2358
        %v2369 = vpack.c.b16 %v2361, %v2359
        %2378 = vmatprep.subr.bf16.mxu0 0
        %2379 = vmatpush1.bf16.msra.mxu0 %v697
        %2380 = vmatprep.subr.bf16.mxu0 0
        %2381 = vmatpush1.bf16.msra.mxu0 %v698
        %2382 = vmatprep.subr.bf16.mxu0 0
        %2383 = vmatpush1.bf16.msra.mxu0 %v699
        %2384 = vmatprep.subr.bf16.mxu0 0
        %2385 = vmatpush1.bf16.msra.mxu0 %v700
        %2386 = vmatprep.subr.bf16.mxu0 0
        %2387 = vmatpush1.bf16.msra.mxu0 %v701
        %2388 = vmatprep.subr.bf16.mxu0 0
        %2389 = vmatpush1.bf16.msra.mxu0 %v702
        %2390 = vmatprep.subr.bf16.mxu0 0
        %2391 = vmatpush1.bf16.msra.mxu0 %v703
        %2392 = vmatprep.subr.bf16.mxu0 0
        %2393 = vmatpush1.bf16.msra.mxu0 %v704
        %2394 = vmatprep.subr.bf16.mxu0 0
        %2395 = vmatpush1.bf16.msra.mxu0 %v705
        %2396 = vmatprep.subr.bf16.mxu0 0
        %2397 = vmatpush1.bf16.msra.mxu0 %v706
        %2398 = vmatprep.subr.bf16.mxu0 0
        %2399 = vmatpush1.bf16.msra.mxu0 %v707
        %2400 = vmatprep.subr.bf16.mxu0 0
        %2401 = vmatpush1.bf16.msra.mxu0 %v708
        %2402 = vmatprep.subr.bf16.mxu0 0
        %2403 = vmatpush1.bf16.msra.mxu0 %v709
        %2404 = vmatprep.subr.bf16.mxu0 0
        %2405 = vmatpush1.bf16.msra.mxu0 %v710
        %2406 = vmatprep.subr.bf16.mxu0 0
        %2407 = vmatpush1.bf16.msra.mxu0 %v711
        %2408 = vmatprep.subr.bf16.mxu0 0
        %2409 = vmatpush1.bf16.msra.mxu0 %v712
        %2410 = vmatprep.mubr.bf16.mxu0 %v2363
        %2411 = vmatmul.mubr.bf16.gmra.mrb[0].mxu0 %v2362
        %v2412 = vpop.f32.mrb[0].mxu0
        %v2413 = vadd.f32 0.0, %v2412
        %v2414 = vpop.f32.mrb[0].mxu0
        %v2415 = vpop.f32.mrb[0].mxu0
        %v2416 = vadd.f32 0.0, %v2415
        %v2417 = vpop.f32.mrb[0].mxu0
        %2418 = vmatprep.mubr.bf16.mxu0 %v2365
        %2419 = vmatmul.mubr.bf16.gmra.mrb[0].mxu0 %v2364
        %v2420 = vpop.f32.mrb[0].mxu0
        %v2421 = vadd.f32 0.0, %v2420
        %v2422 = vpop.f32.mrb[0].mxu0
        %v2423 = vpop.f32.mrb[0].mxu0
        %v2424 = vadd.f32 0.0, %v2423
        %v2425 = vpop.f32.mrb[0].mxu0
        %2426 = vmatprep.mubr.bf16.mxu0 %v2367
        %2427 = vmatmul.mubr.bf16.gmra.mrb[0].mxu0 %v2366
        %v2428 = vpop.f32.mrb[0].mxu0
        %v2429 = vadd.f32 0.0, %v2428
        %v2430 = vpop.f32.mrb[0].mxu0
        %v2431 = vpop.f32.mrb[0].mxu0
        %v2432 = vadd.f32 0.0, %v2431
        %v2433 = vpop.f32.mrb[0].mxu0
        %2434 = vmatprep.mubr.bf16.mxu0 %v2369
        %2435 = vmatmul.mubr.bf16.gmra.mrb[0].mxu0 %v2368
        %v2436 = vpop.f32.mrb[0].mxu0
        %v2437 = vadd.f32 0.0, %v2436
        %v2438 = vpop.f32.mrb[0].mxu0
        %v2439 = vpop.f32.mrb[0].mxu0
        %v2440 = vadd.f32 0.0, %v2439
        %v2441 = vpop.f32.mrb[0].mxu0
        %2442 = vdwg.mxu0
        %v2443 = vpack.c.bf16 %v2416, %v2413
        %v2444 = vpack.c.bf16 %v2424, %v2421
        %v2445 = vpack.c.bf16 %v2432, %v2429
        %v2446 = vpack.c.bf16 %v2440, %v2437
        %s2447 = scalar_lea.vmem [#allocation3], 32
        %v2448 = vld [vmem:[%s2447] sm:$0x7]
        %v2450 = vsel %vm919, %v2443, 0
        %v2453 = vsel %vm919, %v2444, 0
        %v2456 = vsel %vm919, %v2445, 0
        %v2459 = vsel %vm919, %v2446, 0
        %v2462 = vsel %vm932, %v2448, 0
        %2464 = vmatprep.subr.bf16.mxu0 0
        %2465 = vmatpush1.bf16.msra.mxu0 %v2462
        %2466 = vmatprep.subr.bf16.mxu0 0
        %2467 = vmatpush1.bf16.msra.mxu0 0
        %2468 = vmatprep.subr.bf16.mxu0 0
        %2469 = vmatpush1.bf16.msra.mxu0 0
        %2470 = vmatprep.subr.bf16.mxu0 0
        %2471 = vmatpush1.bf16.msra.mxu0 0
        %2472 = vmatprep.subr.bf16.mxu0 0
        %2473 = vmatpush1.bf16.msra.mxu0 0
        %2474 = vmatprep.subr.bf16.mxu0 0
        %2475 = vmatpush1.bf16.msra.mxu0 0
        %2476 = vmatprep.subr.bf16.mxu0 0
        %2477 = vmatpush1.bf16.msra.mxu0 0
        %2478 = vmatprep.subr.bf16.mxu0 0
        %2479 = vmatpush1.bf16.msra.mxu0 0
        %2480 = vmatprep.subr.bf16.mxu0 0
        %2481 = vmatpush1.bf16.msra.mxu0 0
        %2482 = vmatprep.subr.bf16.mxu0 0
        %2483 = vmatpush1.bf16.msra.mxu0 0
        %2484 = vmatprep.subr.bf16.mxu0 0
        %2485 = vmatpush1.bf16.msra.mxu0 0
        %2486 = vmatprep.subr.bf16.mxu0 0
        %2487 = vmatpush1.bf16.msra.mxu0 0
        %2488 = vmatprep.subr.bf16.mxu0 0
        %2489 = vmatpush1.bf16.msra.mxu0 0
        %2490 = vmatprep.subr.bf16.mxu0 0
        %2491 = vmatpush1.bf16.msra.mxu0 0
        %2492 = vmatprep.subr.bf16.mxu0 0
        %2493 = vmatpush1.bf16.msra.mxu0 0
        %2494 = vmatprep.subr.bf16.mxu0 0
        %2495 = vmatpush1.bf16.msra.mxu0 0
        %2496 = vmatprep.mubr.bf16.mxu0 0
        %2497 = vmatmul.mubr.bf16.gmra.mrb[0].mxu0 %v2450
        %v2498 = vpop.f32.mrb[0].mxu0
        %v2499 = vadd.f32 0.0, %v2498
        %v2500 = vpop.f32.mrb[0].mxu0
        %v2501 = vpop.f32.mrb[0].mxu0
        %v2502 = vadd.f32 0.0, %v2501
        %v2503 = vpop.f32.mrb[0].mxu0
        %2504 = vmatprep.mubr.bf16.mxu0 0
        %2505 = vmatmul.mubr.bf16.gmra.mrb[0].mxu0 %v2453
        %v2506 = vpop.f32.mrb[0].mxu0
        %v2507 = vadd.f32 0.0, %v2506
        %v2508 = vpop.f32.mrb[0].mxu0
        %v2509 = vpop.f32.mrb[0].mxu0
        %v2510 = vadd.f32 0.0, %v2509
        %v2511 = vpop.f32.mrb[0].mxu0
        %2512 = vmatprep.mubr.bf16.mxu0 0
        %2513 = vmatmul.mubr.bf16.gmra.mrb[0].mxu0 %v2456
        %v2514 = vpop.f32.mrb[0].mxu0
        %v2515 = vadd.f32 0.0, %v2514
        %v2516 = vpop.f32.mrb[0].mxu0
        %v2517 = vpop.f32.mrb[0].mxu0
        %v2518 = vadd.f32 0.0, %v2517
        %v2519 = vpop.f32.mrb[0].mxu0
        %2520 = vmatprep.mubr.bf16.mxu0 0
        %2521 = vmatmul.mubr.bf16.gmra.mrb[0].mxu0 %v2459
        %v2522 = vpop.f32.mrb[0].mxu0
        %v2523 = vadd.f32 0.0, %v2522
        %v2524 = vpop.f32.mrb[0].mxu0
        %v2525 = vpop.f32.mrb[0].mxu0
        %v2526 = vadd.f32 0.0, %v2525
        %v2527 = vpop.f32.mrb[0].mxu0
        %2528 = vdwg.mxu0
        %v2529 = vadd.f32 %v2321, %v2499
        %v2530 = vadd.f32 %v2322, %v2502
        %v2531 = vadd.f32 %v2323, %v2507
        %v2532 = vadd.f32 %v2324, %v2510
        %v2533 = vadd.f32 %v2325, %v2515
        %v2534 = vadd.f32 %v2326, %v2518
        %v2535 = vadd.f32 %v2327, %v2523
        %v2536 = vadd.f32 %v2328, %v2526
        %v2537 = vld [vmem:[%s3] sm:$0x1]
        %v2539 = vlaneseq
        %v2540 = vshrl.u32 %v2539, 7
        %v2541 = vsub.s32 0, %v2540
        %v2542 = vrot.slane %v2537, %v2541
        %v2544 = vadd.f32 %v2529, %v2542
        %v2545 = vadd.f32 %v2530, %v2542
        %v2546 = vadd.f32 %v2531, %v2542
        %v2547 = vadd.f32 %v2532, %v2542
        %v2548 = vadd.f32 %v2533, %v2542
        %v2549 = vadd.f32 %v2534, %v2542
        %v2550 = vadd.f32 %v2535, %v2542
        %v2551 = vadd.f32 %v2536, %v2542
        %v2552 = vmax.f32 %v2544, 0.0
        %v2553 = vmax.f32 %v2545, 0.0
        %v2554 = vmax.f32 %v2546, 0.0
        %v2555 = vmax.f32 %v2547, 0.0
        %v2556 = vmax.f32 %v2548, 0.0
        %v2557 = vmax.f32 %v2549, 0.0
        %v2558 = vmax.f32 %v2550, 0.0
        %v2559 = vmax.f32 %v2551, 0.0
        %v2560 = vpack.c.bf16 %v2553, %v2552
        %v2561 = vpack.c.bf16 %v2555, %v2554
        %v2562 = vpack.c.bf16 %v2557, %v2556
        %v2563 = vpack.c.bf16 %v2559, %v2558
        %v2564 = vld [vmem:[%s4] sm:$0xf]
        %v2565 = vld [vmem:[%s4 + $0x4] sm:$0xf]
        %v2568 = vunpack.c.l.b16 %v2564
        %v2569 = vunpack.c.l.b16 %v2565
        %v2570 = vpack.c.b16 %v2569, %v2568
        %vm2571 = vcmask 523264
        %v2573 = vsel %vm2571, %v2570, 0
        %2575 = vmatprep.subr.bf16.mxu0 0
        %2576 = vmatpush1.bf16.msra.mxu0 %v2560
        %2577 = vmatprep.subr.bf16.mxu0 0
        %2578 = vmatpush1.bf16.msra.mxu0 %v2561
        %2579 = vmatprep.subr.bf16.mxu0 0
        %2580 = vmatpush1.bf16.msra.mxu0 %v2562
        %2581 = vmatprep.subr.bf16.mxu0 0
        %2582 = vmatpush1.bf16.msra.mxu0 %v2563
        %2583 = vmatprep.subr.bf16.mxu0 0
        %2584 = vmatpush1.bf16.msra.mxu0 0
        %2585 = vmatprep.subr.bf16.mxu0 0
        %2586 = vmatpush1.bf16.msra.mxu0 0
        %2587 = vmatprep.subr.bf16.mxu0 0
        %2588 = vmatpush1.bf16.msra.mxu0 0
        %2589 = vmatprep.subr.bf16.mxu0 0
        %2590 = vmatpush1.bf16.msra.mxu0 0
        %2591 = vmatprep.subr.bf16.mxu0 0
        %2592 = vmatpush1.bf16.msra.mxu0 0
        %2593 = vmatprep.subr.bf16.mxu0 0
        %2594 = vmatpush1.bf16.msra.mxu0 0
        %2595 = vmatprep.subr.bf16.mxu0 0
        %2596 = vmatpush1.bf16.msra.mxu0 0
        %2597 = vmatprep.subr.bf16.mxu0 0
        %2598 = vmatpush1.bf16.msra.mxu0 0
        %2599 = vmatprep.subr.bf16.mxu0 0
        %2600 = vmatpush1.bf16.msra.mxu0 0
        %2601 = vmatprep.subr.bf16.mxu0 0
        %2602 = vmatpush1.bf16.msra.mxu0 0
        %2603 = vmatprep.subr.bf16.mxu0 0
        %2604 = vmatpush1.bf16.msra.mxu0 0
        %2605 = vmatprep.subr.bf16.mxu0 0
        %2606 = vmatpush1.bf16.msra.mxu0 0
        %2607 = vmatprep.mubr.bf16.mxu0 0
        %2608 = vmatmul.mubr.bf16.gmra.mrb[0].mxu0 %v2573
        %v2609 = vpop.f32.mrb[0].mxu0
        %v2610 = vadd.f32 0.0, %v2609
        %v2611 = vpop.f32.mrb[0].mxu0
        %v2612 = vpop.f32.mrb[0].mxu0
        %v2613 = vadd.f32 0.0, %v2612
        %v2614 = vpop.f32.mrb[0].mxu0
        %2615 = vdwg.mxu0
        %v2616 = vpack.c.bf16 %v2613, %v2610
        %v2617 = vld [vmem:[#allocation5] sm:$0xf]
        %v2618 = vld [vmem:[#allocation5 + $0x4] sm:$0xf]
        %v2619 = vld [vmem:[#allocation5 + $0x8] sm:$0xf]
        %v2620 = vld [vmem:[#allocation5 + $0xc] sm:$0xf]
        %s2621 = scalar_lea.vmem %s4, 8
        %v2622 = vld [vmem:[%s2621] sm:$0xf]
        %v2623 = vld [vmem:[%s2621 + $0x4] sm:$0xf]
        %v2626 = vunpack.c.l.b16 %v2622
        %v2627 = vunpack.c.l.b16 %v2623
        %v2628 = vpack.c.b16 %v2627, %v2626
        %v2630 = vsel %vm2571, %v2628, 0
        %2632 = vmatprep.subr.bf16.mxu0 0
        %2633 = vmatpush1.bf16.msra.mxu0 %v2560
        %2634 = vmatprep.subr.bf16.mxu0 0
        %2635 = vmatpush1.bf16.msra.mxu0 %v2561
        %2636 = vmatprep.subr.bf16.mxu0 0
        %2637 = vmatpush1.bf16.msra.mxu0 %v2562
        %2638 = vmatprep.subr.bf16.mxu0 0
        %2639 = vmatpush1.bf16.msra.mxu0 %v2563
        %2640 = vmatprep.subr.bf16.mxu0 0
        %2641 = vmatpush1.bf16.msra.mxu0 0
        %2642 = vmatprep.subr.bf16.mxu0 0
        %2643 = vmatpush1.bf16.msra.mxu0 0
        %2644 = vmatprep.subr.bf16.mxu0 0
        %2645 = vmatpush1.bf16.msra.mxu0 0
        %2646 = vmatprep.subr.bf16.mxu0 0
        %2647 = vmatpush1.bf16.msra.mxu0 0
        %2648 = vmatprep.subr.bf16.mxu0 0
        %2649 = vmatpush1.bf16.msra.mxu0 0
        %2650 = vmatprep.subr.bf16.mxu0 0
        %2651 = vmatpush1.bf16.msra.mxu0 0
        %2652 = vmatprep.subr.bf16.mxu0 0
        %2653 = vmatpush1.bf16.msra.mxu0 0
        %2654 = vmatprep.subr.bf16.mxu0 0
        %2655 = vmatpush1.bf16.msra.mxu0 0
        %2656 = vmatprep.subr.bf16.mxu0 0
        %2657 = vmatpush1.bf16.msra.mxu0 0
        %2658 = vmatprep.subr.bf16.mxu0 0
        %2659 = vmatpush1.bf16.msra.mxu0 0
        %2660 = vmatprep.subr.bf16.mxu0 0
        %2661 = vmatpush1.bf16.msra.mxu0 0
        %2662 = vmatprep.subr.bf16.mxu0 0
        %2663 = vmatpush1.bf16.msra.mxu0 0
        %2664 = vmatprep.mubr.bf16.mxu0 0
        %2665 = vmatmul.mubr.bf16.gmra.mrb[0].mxu0 %v2630
        %v2666 = vpop.f32.mrb[0].mxu0
        %v2667 = vadd.f32 0.0, %v2666
        %v2668 = vpop.f32.mrb[0].mxu0
        %v2669 = vpop.f32.mrb[0].mxu0
        %v2670 = vadd.f32 0.0, %v2669
        %v2671 = vpop.f32.mrb[0].mxu0
        %2672 = vdwg.mxu0
        %v2673 = vpack.c.bf16 %v2670, %v2667
        %s2674 = scalar_lea.vmem [#allocation5], 16
        %v2675 = vld [vmem:[%s2674] sm:$0xf]
        %v2676 = vld [vmem:[%s2674 + $0x4] sm:$0xf]
        %v2677 = vld [vmem:[%s2674 + $0x8] sm:$0xf]
        %v2678 = vld [vmem:[%s2674 + $0xc] sm:$0xf]
        %v2683 = vunpack.c.l.b16 %v2675
        %v2684 = vunpack.c.l.b16 %v2676
        %v2685 = vunpack.c.l.b16 %v2677
        %v2686 = vunpack.c.l.b16 %v2678
        %v2687 = vpack.c.b16 %v2684, %v2683
        %v2688 = vpack.c.b16 %v2686, %v2685
        %vm2691 = vcmask 261120
        %v2693 = vsel %vm2691, %v2673, 0
        %2695 = vmatprep.subr.bf16.mxu0 0
        %2696 = vmatpush1.bf16.msra.mxu0 %v2687
        %2697 = vmatprep.subr.bf16.mxu0 0
        %2698 = vmatpush1.bf16.msra.mxu0 %v2688
        %2699 = vmatprep.subr.bf16.mxu0 0
        %2700 = vmatpush1.bf16.msra.mxu0 0
        %2701 = vmatprep.subr.bf16.mxu0 0
        %2702 = vmatpush1.bf16.msra.mxu0 0
        %2703 = vmatprep.subr.bf16.mxu0 0
        %2704 = vmatpush1.bf16.msra.mxu0 0
        %2705 = vmatprep.subr.bf16.mxu0 0
        %2706 = vmatpush1.bf16.msra.mxu0 0
        %2707 = vmatprep.subr.bf16.mxu0 0
        %2708 = vmatpush1.bf16.msra.mxu0 0
        %2709 = vmatprep.subr.bf16.mxu0 0
        %2710 = vmatpush1.bf16.msra.mxu0 0
        %2711 = vmatprep.subr.bf16.mxu0 0
        %2712 = vmatpush1.bf16.msra.mxu0 0
        %2713 = vmatprep.subr.bf16.mxu0 0
        %2714 = vmatpush1.bf16.msra.mxu0 0
        %2715 = vmatprep.subr.bf16.mxu0 0
        %2716 = vmatpush1.bf16.msra.mxu0 0
        %2717 = vmatprep.subr.bf16.mxu0 0
        %2718 = vmatpush1.bf16.msra.mxu0 0
        %2719 = vmatprep.subr.bf16.mxu0 0
        %2720 = vmatpush1.bf16.msra.mxu0 0
        %2721 = vmatprep.subr.bf16.mxu0 0
        %2722 = vmatpush1.bf16.msra.mxu0 0
        %2723 = vmatprep.subr.bf16.mxu0 0
        %2724 = vmatpush1.bf16.msra.mxu0 0
        %2725 = vmatprep.subr.bf16.mxu0 0
        %2726 = vmatpush1.bf16.msra.mxu0 0
        %2727 = vmatprep.mubr.bf16.mxu0 0
        %2728 = vmatmul.mubr.bf16.gmra.mrb[0].mxu0 %v2693
        %v2729 = vpop.f32.mrb[0].mxu0
        %v2730 = vadd.f32 0.0, %v2729
        %v2731 = vpop.f32.mrb[0].mxu0
        %v2732 = vpop.f32.mrb[0].mxu0
        %v2733 = vadd.f32 0.0, %v2732
        %v2734 = vpop.f32.mrb[0].mxu0
        %2735 = vdwg.mxu0
        %v2740 = vunpack.c.l.b16 %v2617
        %v2741 = vunpack.c.l.b16 %v2618
        %v2742 = vunpack.c.l.b16 %v2619
        %v2743 = vunpack.c.l.b16 %v2620
        %v2744 = vpack.c.b16 %v2741, %v2740
        %v2745 = vpack.c.b16 %v2743, %v2742
        %v2749 = vsel %vm2691, %v2616, 0
        %2751 = vmatprep.subr.bf16.mxu0 0
        %2752 = vmatpush1.bf16.msra.mxu0 %v2744
        %2753 = vmatprep.subr.bf16.mxu0 0
        %2754 = vmatpush1.bf16.msra.mxu0 %v2745
        %2755 = vmatprep.subr.bf16.mxu0 0
        %2756 = vmatpush1.bf16.msra.mxu0 0
        %2757 = vmatprep.subr.bf16.mxu0 0
        %2758 = vmatpush1.bf16.msra.mxu0 0
        %2759 = vmatprep.subr.bf16.mxu0 0
        %2760 = vmatpush1.bf16.msra.mxu0 0
        %2761 = vmatprep.subr.bf16.mxu0 0
        %2762 = vmatpush1.bf16.msra.mxu0 0
        %2763 = vmatprep.subr.bf16.mxu0 0
        %2764 = vmatpush1.bf16.msra.mxu0 0
        %2765 = vmatprep.subr.bf16.mxu0 0
        %2766 = vmatpush1.bf16.msra.mxu0 0
        %2767 = vmatprep.subr.bf16.mxu0 0
        %2768 = vmatpush1.bf16.msra.mxu0 0
        %2769 = vmatprep.subr.bf16.mxu0 0
        %2770 = vmatpush1.bf16.msra.mxu0 0
        %2771 = vmatprep.subr.bf16.mxu0 0
        %2772 = vmatpush1.bf16.msra.mxu0 0
        %2773 = vmatprep.subr.bf16.mxu0 0
        %2774 = vmatpush1.bf16.msra.mxu0 0
        %2775 = vmatprep.subr.bf16.mxu0 0
        %2776 = vmatpush1.bf16.msra.mxu0 0
        %2777 = vmatprep.subr.bf16.mxu0 0
        %2778 = vmatpush1.bf16.msra.mxu0 0
        %2779 = vmatprep.subr.bf16.mxu0 0
        %2780 = vmatpush1.bf16.msra.mxu0 0
        %2781 = vmatprep.subr.bf16.mxu0 0
        %2782 = vmatpush1.bf16.msra.mxu0 0
        %2783 = vmatprep.mubr.bf16.mxu0 0
        %2784 = vmatmul.mubr.bf16.gmra.mrb[0].mxu0 %v2749
        %v2785 = vpop.f32.mrb[0].mxu0
        %v2786 = vadd.f32 %v2730, %v2785
        %v2787 = vpop.f32.mrb[0].mxu0
        %v2788 = vpop.f32.mrb[0].mxu0
        %v2789 = vadd.f32 %v2733, %v2788
        %v2790 = vpop.f32.mrb[0].mxu0
        %2791 = vdwg.mxu0
        %s2792 = scalar_lea.vmem %s4, 16
        %v2793 = vld [vmem:[%s2792] sm:$0xf]
        %v2794 = vld [vmem:[%s2792 + $0x4] sm:$0xf]
        %v2797 = vunpack.c.l.b16 %v2793
        %v2798 = vunpack.c.l.b16 %v2794
        %v2799 = vpack.c.b16 %v2798, %v2797
        %v2801 = vsel %vm2571, %v2799, 0
        %2803 = vmatprep.subr.bf16.mxu0 0
        %2804 = vmatpush1.bf16.msra.mxu0 %v2560
        %2805 = vmatprep.subr.bf16.mxu0 0
        %2806 = vmatpush1.bf16.msra.mxu0 %v2561
        %2807 = vmatprep.subr.bf16.mxu0 0
        %2808 = vmatpush1.bf16.msra.mxu0 %v2562
        %2809 = vmatprep.subr.bf16.mxu0 0
        %2810 = vmatpush1.bf16.msra.mxu0 %v2563
        %2811 = vmatprep.subr.bf16.mxu0 0
        %2812 = vmatpush1.bf16.msra.mxu0 0
        %2813 = vmatprep.subr.bf16.mxu0 0
        %2814 = vmatpush1.bf16.msra.mxu0 0
        %2815 = vmatprep.subr.bf16.mxu0 0
        %2816 = vmatpush1.bf16.msra.mxu0 0
        %2817 = vmatprep.subr.bf16.mxu0 0
        %2818 = vmatpush1.bf16.msra.mxu0 0
        %2819 = vmatprep.subr.bf16.mxu0 0
        %2820 = vmatpush1.bf16.msra.mxu0 0
        %2821 = vmatprep.subr.bf16.mxu0 0
        %2822 = vmatpush1.bf16.msra.mxu0 0
        %2823 = vmatprep.subr.bf16.mxu0 0
        %2824 = vmatpush1.bf16.msra.mxu0 0
        %2825 = vmatprep.subr.bf16.mxu0 0
        %2826 = vmatpush1.bf16.msra.mxu0 0
        %2827 = vmatprep.subr.bf16.mxu0 0
        %2828 = vmatpush1.bf16.msra.mxu0 0
        %2829 = vmatprep.subr.bf16.mxu0 0
        %2830 = vmatpush1.bf16.msra.mxu0 0
        %2831 = vmatprep.subr.bf16.mxu0 0
        %2832 = vmatpush1.bf16.msra.mxu0 0
        %2833 = vmatprep.subr.bf16.mxu0 0
        %2834 = vmatpush1.bf16.msra.mxu0 0
        %2835 = vmatprep.mubr.bf16.mxu0 0
        %2836 = vmatmul.mubr.bf16.gmra.mrb[0].mxu0 %v2801
        %v2837 = vpop.f32.mrb[0].mxu0
        %v2838 = vadd.f32 0.0, %v2837
        %v2839 = vpop.f32.mrb[0].mxu0
        %v2840 = vpop.f32.mrb[0].mxu0
        %v2841 = vadd.f32 0.0, %v2840
        %v2842 = vpop.f32.mrb[0].mxu0
        %2843 = vdwg.mxu0
        %v2844 = vpack.c.bf16 %v2841, %v2838
        %s2845 = scalar_lea.vmem [#allocation5], 32
        %v2846 = vld [vmem:[%s2845] sm:$0xf]
        %v2847 = vld [vmem:[%s2845 + $0x4] sm:$0xf]
        %v2848 = vld [vmem:[%s2845 + $0x8] sm:$0xf]
        %v2849 = vld [vmem:[%s2845 + $0xc] sm:$0xf]
        %v2854 = vunpack.c.l.b16 %v2846
        %v2855 = vunpack.c.l.b16 %v2847
        %v2856 = vunpack.c.l.b16 %v2848
        %v2857 = vunpack.c.l.b16 %v2849
        %v2858 = vpack.c.b16 %v2855, %v2854
        %v2859 = vpack.c.b16 %v2857, %v2856
        %v2863 = vsel %vm2691, %v2844, 0
        %2865 = vmatprep.subr.bf16.mxu0 0
        %2866 = vmatpush1.bf16.msra.mxu0 %v2858
        %2867 = vmatprep.subr.bf16.mxu0 0
        %2868 = vmatpush1.bf16.msra.mxu0 %v2859
        %2869 = vmatprep.subr.bf16.mxu0 0
        %2870 = vmatpush1.bf16.msra.mxu0 0
        %2871 = vmatprep.subr.bf16.mxu0 0
        %2872 = vmatpush1.bf16.msra.mxu0 0
        %2873 = vmatprep.subr.bf16.mxu0 0
        %2874 = vmatpush1.bf16.msra.mxu0 0
        %2875 = vmatprep.subr.bf16.mxu0 0
        %2876 = vmatpush1.bf16.msra.mxu0 0
        %2877 = vmatprep.subr.bf16.mxu0 0
        %2878 = vmatpush1.bf16.msra.mxu0 0
        %2879 = vmatprep.subr.bf16.mxu0 0
        %2880 = vmatpush1.bf16.msra.mxu0 0
        %2881 = vmatprep.subr.bf16.mxu0 0
        %2882 = vmatpush1.bf16.msra.mxu0 0
        %2883 = vmatprep.subr.bf16.mxu0 0
        %2884 = vmatpush1.bf16.msra.mxu0 0
        %2885 = vmatprep.subr.bf16.mxu0 0
        %2886 = vmatpush1.bf16.msra.mxu0 0
        %2887 = vmatprep.subr.bf16.mxu0 0
        %2888 = vmatpush1.bf16.msra.mxu0 0
        %2889 = vmatprep.subr.bf16.mxu0 0
        %2890 = vmatpush1.bf16.msra.mxu0 0
        %2891 = vmatprep.subr.bf16.mxu0 0
        %2892 = vmatpush1.bf16.msra.mxu0 0
        %2893 = vmatprep.subr.bf16.mxu0 0
        %2894 = vmatpush1.bf16.msra.mxu0 0
        %2895 = vmatprep.subr.bf16.mxu0 0
        %2896 = vmatpush1.bf16.msra.mxu0 0
        %2897 = vmatprep.mubr.bf16.mxu0 0
        %2898 = vmatmul.mubr.bf16.gmra.mrb[0].mxu0 %v2863
        %v2899 = vpop.f32.mrb[0].mxu0
        %v2900 = vadd.f32 0.0, %v2899
        %v2901 = vpop.f32.mrb[0].mxu0
        %v2902 = vpop.f32.mrb[0].mxu0
        %v2903 = vadd.f32 0.0, %v2902
        %v2904 = vpop.f32.mrb[0].mxu0
        %2905 = vdwg.mxu0
        %v2906 = vadd.f32 %v2786, %v2900
        %v2907 = vadd.f32 %v2789, %v2903
        %s2908 = scalar_lea.vmem %s4, 24
        %v2909 = vld [vmem:[%s2908] sm:$0xf]
        %v2910 = vld [vmem:[%s2908 + $0x4] sm:$0xf]
        %v2913 = vunpack.c.l.b16 %v2909
        %v2914 = vunpack.c.l.b16 %v2910
        %v2915 = vpack.c.b16 %v2914, %v2913
        %v2917 = vsel %vm2571, %v2915, 0
        %2919 = vmatprep.subr.bf16.mxu0 0
        %2920 = vmatpush1.bf16.msra.mxu0 %v2560
        %2921 = vmatprep.subr.bf16.mxu0 0
        %2922 = vmatpush1.bf16.msra.mxu0 %v2561
        %2923 = vmatprep.subr.bf16.mxu0 0
        %2924 = vmatpush1.bf16.msra.mxu0 %v2562
        %2925 = vmatprep.subr.bf16.mxu0 0
        %2926 = vmatpush1.bf16.msra.mxu0 %v2563
        %2927 = vmatprep.subr.bf16.mxu0 0
        %2928 = vmatpush1.bf16.msra.mxu0 0
        %2929 = vmatprep.subr.bf16.mxu0 0
        %2930 = vmatpush1.bf16.msra.mxu0 0
        %2931 = vmatprep.subr.bf16.mxu0 0
        %2932 = vmatpush1.bf16.msra.mxu0 0
        %2933 = vmatprep.subr.bf16.mxu0 0
        %2934 = vmatpush1.bf16.msra.mxu0 0
        %2935 = vmatprep.subr.bf16.mxu0 0
        %2936 = vmatpush1.bf16.msra.mxu0 0
        %2937 = vmatprep.subr.bf16.mxu0 0
        %2938 = vmatpush1.bf16.msra.mxu0 0
        %2939 = vmatprep.subr.bf16.mxu0 0
        %2940 = vmatpush1.bf16.msra.mxu0 0
        %2941 = vmatprep.subr.bf16.mxu0 0
        %2942 = vmatpush1.bf16.msra.mxu0 0
        %2943 = vmatprep.subr.bf16.mxu0 0
        %2944 = vmatpush1.bf16.msra.mxu0 0
        %2945 = vmatprep.subr.bf16.mxu0 0
        %2946 = vmatpush1.bf16.msra.mxu0 0
        %2947 = vmatprep.subr.bf16.mxu0 0
        %2948 = vmatpush1.bf16.msra.mxu0 0
        %2949 = vmatprep.subr.bf16.mxu0 0
        %2950 = vmatpush1.bf16.msra.mxu0 0
        %2951 = vmatprep.mubr.bf16.mxu0 0
        %2952 = vmatmul.mubr.bf16.gmra.mrb[0].mxu0 %v2917
        %v2953 = vpop.f32.mrb[0].mxu0
        %v2954 = vadd.f32 0.0, %v2953
        %v2955 = vpop.f32.mrb[0].mxu0
        %v2956 = vpop.f32.mrb[0].mxu0
        %v2957 = vadd.f32 0.0, %v2956
        %v2958 = vpop.f32.mrb[0].mxu0
        %2959 = vdwg.mxu0
        %v2960 = vpack.c.bf16 %v2957, %v2954
        %s2961 = scalar_lea.vmem [#allocation5], 48
        %v2962 = vld [vmem:[%s2961] sm:$0xf]
        %v2963 = vld [vmem:[%s2961 + $0x4] sm:$0xf]
        %v2964 = vld [vmem:[%s2961 + $0x8] sm:$0xf]
        %v2965 = vld [vmem:[%s2961 + $0xc] sm:$0xf]
        %v2970 = vunpack.c.l.b16 %v2962
        %v2971 = vunpack.c.l.b16 %v2963
        %v2972 = vunpack.c.l.b16 %v2964
        %v2973 = vunpack.c.l.b16 %v2965
        %v2974 = vpack.c.b16 %v2971, %v2970
        %v2975 = vpack.c.b16 %v2973, %v2972
        %v2979 = vsel %vm2691, %v2960, 0
        %2981 = vmatprep.subr.bf16.mxu0 0
        %2982 = vmatpush1.bf16.msra.mxu0 %v2974
        %2983 = vmatprep.subr.bf16.mxu0 0
        %2984 = vmatpush1.bf16.msra.mxu0 %v2975
        %2985 = vmatprep.subr.bf16.mxu0 0
        %2986 = vmatpush1.bf16.msra.mxu0 0
        %2987 = vmatprep.subr.bf16.mxu0 0
        %2988 = vmatpush1.bf16.msra.mxu0 0
        %2989 = vmatprep.subr.bf16.mxu0 0
        %2990 = vmatpush1.bf16.msra.mxu0 0
        %2991 = vmatprep.subr.bf16.mxu0 0
        %2992 = vmatpush1.bf16.msra.mxu0 0
        %2993 = vmatprep.subr.bf16.mxu0 0
        %2994 = vmatpush1.bf16.msra.mxu0 0
        %2995 = vmatprep.subr.bf16.mxu0 0
        %2996 = vmatpush1.bf16.msra.mxu0 0
        %2997 = vmatprep.subr.bf16.mxu0 0
        %2998 = vmatpush1.bf16.msra.mxu0 0
        %2999 = vmatprep.subr.bf16.mxu0 0
        %3000 = vmatpush1.bf16.msra.mxu0 0
        %3001 = vmatprep.subr.bf16.mxu0 0
        %3002 = vmatpush1.bf16.msra.mxu0 0
        %3003 = vmatprep.subr.bf16.mxu0 0
        %3004 = vmatpush1.bf16.msra.mxu0 0
        %3005 = vmatprep.subr.bf16.mxu0 0
        %3006 = vmatpush1.bf16.msra.mxu0 0
        %3007 = vmatprep.subr.bf16.mxu0 0
        %3008 = vmatpush1.bf16.msra.mxu0 0
        %3009 = vmatprep.subr.bf16.mxu0 0
        %3010 = vmatpush1.bf16.msra.mxu0 0
        %3011 = vmatprep.subr.bf16.mxu0 0
        %3012 = vmatpush1.bf16.msra.mxu0 0
        %3013 = vmatprep.mubr.bf16.mxu0 0
        %3014 = vmatmul.mubr.bf16.gmra.mrb[0].mxu0 %v2979
        %v3015 = vpop.f32.mrb[0].mxu0
        %v3016 = vadd.f32 0.0, %v3015
        %v3017 = vpop.f32.mrb[0].mxu0
        %v3018 = vpop.f32.mrb[0].mxu0
        %v3019 = vadd.f32 0.0, %v3018
        %v3020 = vpop.f32.mrb[0].mxu0
        %3021 = vdwg.mxu0
        %v3022 = vadd.f32 %v2906, %v3016
        %v3023 = vadd.f32 %v2907, %v3019
        %s3024 = scalar_lea.vmem %s4, 32
        %v3025 = vld [vmem:[%s3024] sm:$0xf]
        %v3026 = vld [vmem:[%s3024 + $0x4] sm:$0xf]
        %v3029 = vunpack.c.l.b16 %v3025
        %v3030 = vunpack.c.l.b16 %v3026
        %v3031 = vpack.c.b16 %v3030, %v3029
        %v3033 = vsel %vm2571, %v3031, 0
        %3035 = vmatprep.subr.bf16.mxu0 0
        %3036 = vmatpush1.bf16.msra.mxu0 %v2560
        %3037 = vmatprep.subr.bf16.mxu0 0
        %3038 = vmatpush1.bf16.msra.mxu0 %v2561
        %3039 = vmatprep.subr.bf16.mxu0 0
        %3040 = vmatpush1.bf16.msra.mxu0 %v2562
        %3041 = vmatprep.subr.bf16.mxu0 0
        %3042 = vmatpush1.bf16.msra.mxu0 %v2563
        %3043 = vmatprep.subr.bf16.mxu0 0
        %3044 = vmatpush1.bf16.msra.mxu0 0
        %3045 = vmatprep.subr.bf16.mxu0 0
        %3046 = vmatpush1.bf16.msra.mxu0 0
        %3047 = vmatprep.subr.bf16.mxu0 0
        %3048 = vmatpush1.bf16.msra.mxu0 0
        %3049 = vmatprep.subr.bf16.mxu0 0
        %3050 = vmatpush1.bf16.msra.mxu0 0
        %3051 = vmatprep.subr.bf16.mxu0 0
        %3052 = vmatpush1.bf16.msra.mxu0 0
        %3053 = vmatprep.subr.bf16.mxu0 0
        %3054 = vmatpush1.bf16.msra.mxu0 0
        %3055 = vmatprep.subr.bf16.mxu0 0
        %3056 = vmatpush1.bf16.msra.mxu0 0
        %3057 = vmatprep.subr.bf16.mxu0 0
        %3058 = vmatpush1.bf16.msra.mxu0 0
        %3059 = vmatprep.subr.bf16.mxu0 0
        %3060 = vmatpush1.bf16.msra.mxu0 0
        %3061 = vmatprep.subr.bf16.mxu0 0
        %3062 = vmatpush1.bf16.msra.mxu0 0
        %3063 = vmatprep.subr.bf16.mxu0 0
        %3064 = vmatpush1.bf16.msra.mxu0 0
        %3065 = vmatprep.subr.bf16.mxu0 0
        %3066 = vmatpush1.bf16.msra.mxu0 0
        %3067 = vmatprep.mubr.bf16.mxu0 0
        %3068 = vmatmul.mubr.bf16.gmra.mrb[0].mxu0 %v3033
        %v3069 = vpop.f32.mrb[0].mxu0
        %v3070 = vadd.f32 0.0, %v3069
        %v3071 = vpop.f32.mrb[0].mxu0
        %v3072 = vpop.f32.mrb[0].mxu0
        %v3073 = vadd.f32 0.0, %v3072
        %v3074 = vpop.f32.mrb[0].mxu0
        %3075 = vdwg.mxu0
        %v3076 = vpack.c.bf16 %v3073, %v3070
        %s3077 = scalar_lea.vmem [#allocation5], 64
        %v3078 = vld [vmem:[%s3077] sm:$0xf]
        %v3079 = vld [vmem:[%s3077 + $0x4] sm:$0xf]
        %v3080 = vld [vmem:[%s3077 + $0x8] sm:$0xf]
        %v3081 = vld [vmem:[%s3077 + $0xc] sm:$0xf]
        %v3086 = vunpack.c.l.b16 %v3078
        %v3087 = vunpack.c.l.b16 %v3079
        %v3088 = vunpack.c.l.b16 %v3080
        %v3089 = vunpack.c.l.b16 %v3081
        %v3090 = vpack.c.b16 %v3087, %v3086
        %v3091 = vpack.c.b16 %v3089, %v3088
        %v3095 = vsel %vm2691, %v3076, 0
        %3097 = vmatprep.subr.bf16.mxu0 0
        %3098 = vmatpush1.bf16.msra.mxu0 %v3090
        %3099 = vmatprep.subr.bf16.mxu0 0
        %3100 = vmatpush1.bf16.msra.mxu0 %v3091
        %3101 = vmatprep.subr.bf16.mxu0 0
        %3102 = vmatpush1.bf16.msra.mxu0 0
        %3103 = vmatprep.subr.bf16.mxu0 0
        %3104 = vmatpush1.bf16.msra.mxu0 0
        %3105 = vmatprep.subr.bf16.mxu0 0
        %3106 = vmatpush1.bf16.msra.mxu0 0
        %3107 = vmatprep.subr.bf16.mxu0 0
        %3108 = vmatpush1.bf16.msra.mxu0 0
        %3109 = vmatprep.subr.bf16.mxu0 0
        %3110 = vmatpush1.bf16.msra.mxu0 0
        %3111 = vmatprep.subr.bf16.mxu0 0
        %3112 = vmatpush1.bf16.msra.mxu0 0
        %3113 = vmatprep.subr.bf16.mxu0 0
        %3114 = vmatpush1.bf16.msra.mxu0 0
        %3115 = vmatprep.subr.bf16.mxu0 0
        %3116 = vmatpush1.bf16.msra.mxu0 0
        %3117 = vmatprep.subr.bf16.mxu0 0
        %3118 = vmatpush1.bf16.msra.mxu0 0
        %3119 = vmatprep.subr.bf16.mxu0 0
        %3120 = vmatpush1.bf16.msra.mxu0 0
        %3121 = vmatprep.subr.bf16.mxu0 0
        %3122 = vmatpush1.bf16.msra.mxu0 0
        %3123 = vmatprep.subr.bf16.mxu0 0
        %3124 = vmatpush1.bf16.msra.mxu0 0
        %3125 = vmatprep.subr.bf16.mxu0 0
        %3126 = vmatpush1.bf16.msra.mxu0 0
        %3127 = vmatprep.subr.bf16.mxu0 0
        %3128 = vmatpush1.bf16.msra.mxu0 0
        %3129 = vmatprep.mubr.bf16.mxu0 0
        %3130 = vmatmul.mubr.bf16.gmra.mrb[0].mxu0 %v3095
        %v3131 = vpop.f32.mrb[0].mxu0
        %v3132 = vadd.f32 0.0, %v3131
        %v3133 = vpop.f32.mrb[0].mxu0
        %v3134 = vpop.f32.mrb[0].mxu0
        %v3135 = vadd.f32 0.0, %v3134
        %v3136 = vpop.f32.mrb[0].mxu0
        %3137 = vdwg.mxu0
        %v3138 = vadd.f32 %v3022, %v3132
        %v3139 = vadd.f32 %v3023, %v3135
        %s3140 = scalar_lea.vmem %s4, 40
        %v3141 = vld [vmem:[%s3140] sm:$0xf]
        %v3142 = vld [vmem:[%s3140 + $0x4] sm:$0xf]
        %v3145 = vunpack.c.l.b16 %v3141
        %v3146 = vunpack.c.l.b16 %v3142
        %v3147 = vpack.c.b16 %v3146, %v3145
        %v3149 = vsel %vm2571, %v3147, 0
        %3151 = vmatprep.subr.bf16.mxu0 0
        %3152 = vmatpush1.bf16.msra.mxu0 %v2560
        %3153 = vmatprep.subr.bf16.mxu0 0
        %3154 = vmatpush1.bf16.msra.mxu0 %v2561
        %3155 = vmatprep.subr.bf16.mxu0 0
        %3156 = vmatpush1.bf16.msra.mxu0 %v2562
        %3157 = vmatprep.subr.bf16.mxu0 0
        %3158 = vmatpush1.bf16.msra.mxu0 %v2563
        %3159 = vmatprep.subr.bf16.mxu0 0
        %3160 = vmatpush1.bf16.msra.mxu0 0
        %3161 = vmatprep.subr.bf16.mxu0 0
        %3162 = vmatpush1.bf16.msra.mxu0 0
        %3163 = vmatprep.subr.bf16.mxu0 0
        %3164 = vmatpush1.bf16.msra.mxu0 0
        %3165 = vmatprep.subr.bf16.mxu0 0
        %3166 = vmatpush1.bf16.msra.mxu0 0
        %3167 = vmatprep.subr.bf16.mxu0 0
        %3168 = vmatpush1.bf16.msra.mxu0 0
        %3169 = vmatprep.subr.bf16.mxu0 0
        %3170 = vmatpush1.bf16.msra.mxu0 0
        %3171 = vmatprep.subr.bf16.mxu0 0
        %3172 = vmatpush1.bf16.msra.mxu0 0
        %3173 = vmatprep.subr.bf16.mxu0 0
        %3174 = vmatpush1.bf16.msra.mxu0 0
        %3175 = vmatprep.subr.bf16.mxu0 0
        %3176 = vmatpush1.bf16.msra.mxu0 0
        %3177 = vmatprep.subr.bf16.mxu0 0
        %3178 = vmatpush1.bf16.msra.mxu0 0
        %3179 = vmatprep.subr.bf16.mxu0 0
        %3180 = vmatpush1.bf16.msra.mxu0 0
        %3181 = vmatprep.subr.bf16.mxu0 0
        %3182 = vmatpush1.bf16.msra.mxu0 0
        %3183 = vmatprep.mubr.bf16.mxu0 0
        %3184 = vmatmul.mubr.bf16.gmra.mrb[0].mxu0 %v3149
        %v3185 = vpop.f32.mrb[0].mxu0
        %v3186 = vadd.f32 0.0, %v3185
        %v3187 = vpop.f32.mrb[0].mxu0
        %v3188 = vpop.f32.mrb[0].mxu0
        %v3189 = vadd.f32 0.0, %v3188
        %v3190 = vpop.f32.mrb[0].mxu0
        %3191 = vdwg.mxu0
        %v3192 = vpack.c.bf16 %v3189, %v3186
        %s3193 = scalar_lea.vmem [#allocation5], 80
        %v3194 = vld [vmem:[%s3193] sm:$0xf]
        %v3195 = vld [vmem:[%s3193 + $0x4] sm:$0xf]
        %v3196 = vld [vmem:[%s3193 + $0x8] sm:$0xf]
        %v3197 = vld [vmem:[%s3193 + $0xc] sm:$0xf]
        %v3202 = vunpack.c.l.b16 %v3194
        %v3203 = vunpack.c.l.b16 %v3195
        %v3204 = vunpack.c.l.b16 %v3196
        %v3205 = vunpack.c.l.b16 %v3197
        %v3206 = vpack.c.b16 %v3203, %v3202
        %v3207 = vpack.c.b16 %v3205, %v3204
        %v3211 = vsel %vm2691, %v3192, 0
        %3213 = vmatprep.subr.bf16.mxu0 0
        %3214 = vmatpush1.bf16.msra.mxu0 %v3206
        %3215 = vmatprep.subr.bf16.mxu0 0
        %3216 = vmatpush1.bf16.msra.mxu0 %v3207
        %3217 = vmatprep.subr.bf16.mxu0 0
        %3218 = vmatpush1.bf16.msra.mxu0 0
        %3219 = vmatprep.subr.bf16.mxu0 0
        %3220 = vmatpush1.bf16.msra.mxu0 0
        %3221 = vmatprep.subr.bf16.mxu0 0
        %3222 = vmatpush1.bf16.msra.mxu0 0
        %3223 = vmatprep.subr.bf16.mxu0 0
        %3224 = vmatpush1.bf16.msra.mxu0 0
        %3225 = vmatprep.subr.bf16.mxu0 0
        %3226 = vmatpush1.bf16.msra.mxu0 0
        %3227 = vmatprep.subr.bf16.mxu0 0
        %3228 = vmatpush1.bf16.msra.mxu0 0
        %3229 = vmatprep.subr.bf16.mxu0 0
        %3230 = vmatpush1.bf16.msra.mxu0 0
        %3231 = vmatprep.subr.bf16.mxu0 0
        %3232 = vmatpush1.bf16.msra.mxu0 0
        %3233 = vmatprep.subr.bf16.mxu0 0
        %3234 = vmatpush1.bf16.msra.mxu0 0
        %3235 = vmatprep.subr.bf16.mxu0 0
        %3236 = vmatpush1.bf16.msra.mxu0 0
        %3237 = vmatprep.subr.bf16.mxu0 0
        %3238 = vmatpush1.bf16.msra.mxu0 0
        %3239 = vmatprep.subr.bf16.mxu0 0
        %3240 = vmatpush1.bf16.msra.mxu0 0
        %3241 = vmatprep.subr.bf16.mxu0 0
        %3242 = vmatpush1.bf16.msra.mxu0 0
        %3243 = vmatprep.subr.bf16.mxu0 0
        %3244 = vmatpush1.bf16.msra.mxu0 0
        %3245 = vmatprep.mubr.bf16.mxu0 0
        %3246 = vmatmul.mubr.bf16.gmra.mrb[0].mxu0 %v3211
        %v3247 = vpop.f32.mrb[0].mxu0
        %v3248 = vadd.f32 0.0, %v3247
        %v3249 = vpop.f32.mrb[0].mxu0
        %v3250 = vpop.f32.mrb[0].mxu0
        %v3251 = vadd.f32 0.0, %v3250
        %v3252 = vpop.f32.mrb[0].mxu0
        %3253 = vdwg.mxu0
        %v3254 = vadd.f32 %v3138, %v3248
        %v3255 = vadd.f32 %v3139, %v3251
        %s3256 = scalar_lea.vmem %s4, 48
        %v3257 = vld [vmem:[%s3256] sm:$0xf]
        %v3258 = vld [vmem:[%s3256 + $0x4] sm:$0xf]
        %v3261 = vunpack.c.l.b16 %v3257
        %v3262 = vunpack.c.l.b16 %v3258
        %v3263 = vpack.c.b16 %v3262, %v3261
        %v3265 = vsel %vm2571, %v3263, 0
        %3267 = vmatprep.subr.bf16.mxu0 0
        %3268 = vmatpush1.bf16.msra.mxu0 %v2560
        %3269 = vmatprep.subr.bf16.mxu0 0
        %3270 = vmatpush1.bf16.msra.mxu0 %v2561
        %3271 = vmatprep.subr.bf16.mxu0 0
        %3272 = vmatpush1.bf16.msra.mxu0 %v2562
        %3273 = vmatprep.subr.bf16.mxu0 0
        %3274 = vmatpush1.bf16.msra.mxu0 %v2563
        %3275 = vmatprep.subr.bf16.mxu0 0
        %3276 = vmatpush1.bf16.msra.mxu0 0
        %3277 = vmatprep.subr.bf16.mxu0 0
        %3278 = vmatpush1.bf16.msra.mxu0 0
        %3279 = vmatprep.subr.bf16.mxu0 0
        %3280 = vmatpush1.bf16.msra.mxu0 0
        %3281 = vmatprep.subr.bf16.mxu0 0
        %3282 = vmatpush1.bf16.msra.mxu0 0
        %3283 = vmatprep.subr.bf16.mxu0 0
        %3284 = vmatpush1.bf16.msra.mxu0 0
        %3285 = vmatprep.subr.bf16.mxu0 0
        %3286 = vmatpush1.bf16.msra.mxu0 0
        %3287 = vmatprep.subr.bf16.mxu0 0
        %3288 = vmatpush1.bf16.msra.mxu0 0
        %3289 = vmatprep.subr.bf16.mxu0 0
        %3290 = vmatpush1.bf16.msra.mxu0 0
        %3291 = vmatprep.subr.bf16.mxu0 0
        %3292 = vmatpush1.bf16.msra.mxu0 0
        %3293 = vmatprep.subr.bf16.mxu0 0
        %3294 = vmatpush1.bf16.msra.mxu0 0
        %3295 = vmatprep.subr.bf16.mxu0 0
        %3296 = vmatpush1.bf16.msra.mxu0 0
        %3297 = vmatprep.subr.bf16.mxu0 0
        %3298 = vmatpush1.bf16.msra.mxu0 0
        %3299 = vmatprep.mubr.bf16.mxu0 0
        %3300 = vmatmul.mubr.bf16.gmra.mrb[0].mxu0 %v3265
        %v3301 = vpop.f32.mrb[0].mxu0
        %v3302 = vadd.f32 0.0, %v3301
        %v3303 = vpop.f32.mrb[0].mxu0
        %v3304 = vpop.f32.mrb[0].mxu0
        %v3305 = vadd.f32 0.0, %v3304
        %v3306 = vpop.f32.mrb[0].mxu0
        %3307 = vdwg.mxu0
        %v3308 = vpack.c.bf16 %v3305, %v3302
        %s3309 = scalar_lea.vmem [#allocation5], 96
        %v3310 = vld [vmem:[%s3309] sm:$0xf]
        %v3311 = vld [vmem:[%s3309 + $0x4] sm:$0xf]
        %v3312 = vld [vmem:[%s3309 + $0x8] sm:$0xf]
        %v3313 = vld [vmem:[%s3309 + $0xc] sm:$0xf]
        %v3318 = vunpack.c.l.b16 %v3310
        %v3319 = vunpack.c.l.b16 %v3311
        %v3320 = vunpack.c.l.b16 %v3312
        %v3321 = vunpack.c.l.b16 %v3313
        %v3322 = vpack.c.b16 %v3319, %v3318
        %v3323 = vpack.c.b16 %v3321, %v3320
        %v3327 = vsel %vm2691, %v3308, 0
        %3329 = vmatprep.subr.bf16.mxu0 0
        %3330 = vmatpush1.bf16.msra.mxu0 %v3322
        %3331 = vmatprep.subr.bf16.mxu0 0
        %3332 = vmatpush1.bf16.msra.mxu0 %v3323
        %3333 = vmatprep.subr.bf16.mxu0 0
        %3334 = vmatpush1.bf16.msra.mxu0 0
        %3335 = vmatprep.subr.bf16.mxu0 0
        %3336 = vmatpush1.bf16.msra.mxu0 0
        %3337 = vmatprep.subr.bf16.mxu0 0
        %3338 = vmatpush1.bf16.msra.mxu0 0
        %3339 = vmatprep.subr.bf16.mxu0 0
        %3340 = vmatpush1.bf16.msra.mxu0 0
        %3341 = vmatprep.subr.bf16.mxu0 0
        %3342 = vmatpush1.bf16.msra.mxu0 0
        %3343 = vmatprep.subr.bf16.mxu0 0
        %3344 = vmatpush1.bf16.msra.mxu0 0
        %3345 = vmatprep.subr.bf16.mxu0 0
        %3346 = vmatpush1.bf16.msra.mxu0 0
        %3347 = vmatprep.subr.bf16.mxu0 0
        %3348 = vmatpush1.bf16.msra.mxu0 0
        %3349 = vmatprep.subr.bf16.mxu0 0
        %3350 = vmatpush1.bf16.msra.mxu0 0
        %3351 = vmatprep.subr.bf16.mxu0 0
        %3352 = vmatpush1.bf16.msra.mxu0 0
        %3353 = vmatprep.subr.bf16.mxu0 0
        %3354 = vmatpush1.bf16.msra.mxu0 0
        %3355 = vmatprep.subr.bf16.mxu0 0
        %3356 = vmatpush1.bf16.msra.mxu0 0
        %3357 = vmatprep.subr.bf16.mxu0 0
        %3358 = vmatpush1.bf16.msra.mxu0 0
        %3359 = vmatprep.subr.bf16.mxu0 0
        %3360 = vmatpush1.bf16.msra.mxu0 0
        %3361 = vmatprep.mubr.bf16.mxu0 0
        %3362 = vmatmul.mubr.bf16.gmra.mrb[0].mxu0 %v3327
        %v3363 = vpop.f32.mrb[0].mxu0
        %v3364 = vadd.f32 0.0, %v3363
        %v3365 = vpop.f32.mrb[0].mxu0
        %v3366 = vpop.f32.mrb[0].mxu0
        %v3367 = vadd.f32 0.0, %v3366
        %v3368 = vpop.f32.mrb[0].mxu0
        %3369 = vdwg.mxu0
        %v3370 = vadd.f32 %v3254, %v3364
        %v3371 = vadd.f32 %v3255, %v3367
        %s3372 = scalar_lea.vmem %s4, 56
        %v3373 = vld [vmem:[%s3372] sm:$0xf]
        %v3374 = vld [vmem:[%s3372 + $0x4] sm:$0xf]
        %v3377 = vunpack.c.l.b16 %v3373
        %v3378 = vunpack.c.l.b16 %v3374
        %v3379 = vpack.c.b16 %v3378, %v3377
        %v3381 = vsel %vm2571, %v3379, 0
        %3383 = vmatprep.subr.bf16.mxu0 0
        %3384 = vmatpush1.bf16.msra.mxu0 %v2560
        %3385 = vmatprep.subr.bf16.mxu0 0
        %3386 = vmatpush1.bf16.msra.mxu0 %v2561
        %3387 = vmatprep.subr.bf16.mxu0 0
        %3388 = vmatpush1.bf16.msra.mxu0 %v2562
        %3389 = vmatprep.subr.bf16.mxu0 0
        %3390 = vmatpush1.bf16.msra.mxu0 %v2563
        %3391 = vmatprep.subr.bf16.mxu0 0
        %3392 = vmatpush1.bf16.msra.mxu0 0
        %3393 = vmatprep.subr.bf16.mxu0 0
        %3394 = vmatpush1.bf16.msra.mxu0 0
        %3395 = vmatprep.subr.bf16.mxu0 0
        %3396 = vmatpush1.bf16.msra.mxu0 0
        %3397 = vmatprep.subr.bf16.mxu0 0
        %3398 = vmatpush1.bf16.msra.mxu0 0
        %3399 = vmatprep.subr.bf16.mxu0 0
        %3400 = vmatpush1.bf16.msra.mxu0 0
        %3401 = vmatprep.subr.bf16.mxu0 0
        %3402 = vmatpush1.bf16.msra.mxu0 0
        %3403 = vmatprep.subr.bf16.mxu0 0
        %3404 = vmatpush1.bf16.msra.mxu0 0
        %3405 = vmatprep.subr.bf16.mxu0 0
        %3406 = vmatpush1.bf16.msra.mxu0 0
        %3407 = vmatprep.subr.bf16.mxu0 0
        %3408 = vmatpush1.bf16.msra.mxu0 0
        %3409 = vmatprep.subr.bf16.mxu0 0
        %3410 = vmatpush1.bf16.msra.mxu0 0
        %3411 = vmatprep.subr.bf16.mxu0 0
        %3412 = vmatpush1.bf16.msra.mxu0 0
        %3413 = vmatprep.subr.bf16.mxu0 0
        %3414 = vmatpush1.bf16.msra.mxu0 0
        %3415 = vmatprep.mubr.bf16.mxu0 0
        %3416 = vmatmul.mubr.bf16.gmra.mrb[0].mxu0 %v3381
        %v3417 = vpop.f32.mrb[0].mxu0
        %v3418 = vadd.f32 0.0, %v3417
        %v3419 = vpop.f32.mrb[0].mxu0
        %v3420 = vpop.f32.mrb[0].mxu0
        %v3421 = vadd.f32 0.0, %v3420
        %v3422 = vpop.f32.mrb[0].mxu0
        %3423 = vdwg.mxu0
        %v3424 = vpack.c.bf16 %v3421, %v3418
        %s3425 = scalar_lea.vmem [#allocation5], 112
        %v3426 = vld [vmem:[%s3425] sm:$0xf]
        %v3427 = vld [vmem:[%s3425 + $0x4] sm:$0xf]
        %v3428 = vld [vmem:[%s3425 + $0x8] sm:$0xf]
        %v3429 = vld [vmem:[%s3425 + $0xc] sm:$0xf]
        %v3434 = vunpack.c.l.b16 %v3426
        %v3435 = vunpack.c.l.b16 %v3427
        %v3436 = vunpack.c.l.b16 %v3428
        %v3437 = vunpack.c.l.b16 %v3429
        %v3438 = vpack.c.b16 %v3435, %v3434
        %v3439 = vpack.c.b16 %v3437, %v3436
        %v3443 = vsel %vm2691, %v3424, 0
        %3445 = vmatprep.subr.bf16.mxu0 0
        %3446 = vmatpush1.bf16.msra.mxu0 %v3438
        %3447 = vmatprep.subr.bf16.mxu0 0
        %3448 = vmatpush1.bf16.msra.mxu0 %v3439
        %3449 = vmatprep.subr.bf16.mxu0 0
        %3450 = vmatpush1.bf16.msra.mxu0 0
        %3451 = vmatprep.subr.bf16.mxu0 0
        %3452 = vmatpush1.bf16.msra.mxu0 0
        %3453 = vmatprep.subr.bf16.mxu0 0
        %3454 = vmatpush1.bf16.msra.mxu0 0
        %3455 = vmatprep.subr.bf16.mxu0 0
        %3456 = vmatpush1.bf16.msra.mxu0 0
        %3457 = vmatprep.subr.bf16.mxu0 0
        %3458 = vmatpush1.bf16.msra.mxu0 0
        %3459 = vmatprep.subr.bf16.mxu0 0
        %3460 = vmatpush1.bf16.msra.mxu0 0
        %3461 = vmatprep.subr.bf16.mxu0 0
        %3462 = vmatpush1.bf16.msra.mxu0 0
        %3463 = vmatprep.subr.bf16.mxu0 0
        %3464 = vmatpush1.bf16.msra.mxu0 0
        %3465 = vmatprep.subr.bf16.mxu0 0
        %3466 = vmatpush1.bf16.msra.mxu0 0
        %3467 = vmatprep.subr.bf16.mxu0 0
        %3468 = vmatpush1.bf16.msra.mxu0 0
        %3469 = vmatprep.subr.bf16.mxu0 0
        %3470 = vmatpush1.bf16.msra.mxu0 0
        %3471 = vmatprep.subr.bf16.mxu0 0
        %3472 = vmatpush1.bf16.msra.mxu0 0
        %3473 = vmatprep.subr.bf16.mxu0 0
        %3474 = vmatpush1.bf16.msra.mxu0 0
        %3475 = vmatprep.subr.bf16.mxu0 0
        %3476 = vmatpush1.bf16.msra.mxu0 0
        %3477 = vmatprep.mubr.bf16.mxu0 0
        %3478 = vmatmul.mubr.bf16.gmra.mrb[0].mxu0 %v3443
        %v3479 = vpop.f32.mrb[0].mxu0
        %v3480 = vadd.f32 0.0, %v3479
        %v3481 = vpop.f32.mrb[0].mxu0
        %v3482 = vpop.f32.mrb[0].mxu0
        %v3483 = vadd.f32 0.0, %v3482
        %v3484 = vpop.f32.mrb[0].mxu0
        %3485 = vdwg.mxu0
        %v3486 = vadd.f32 %v3370, %v3480
        %v3487 = vadd.f32 %v3371, %v3483
        %s3488 = scalar_lea.vmem %s4, 64
        %v3489 = vld [vmem:[%s3488] sm:$0xf]
        %v3490 = vld [vmem:[%s3488 + $0x4] sm:$0xf]
        %v3493 = vunpack.c.l.b16 %v3489
        %v3494 = vunpack.c.l.b16 %v3490
        %v3495 = vpack.c.b16 %v3494, %v3493
        %v3497 = vsel %vm2571, %v3495, 0
        %3499 = vmatprep.subr.bf16.mxu0 0
        %3500 = vmatpush1.bf16.msra.mxu0 %v2560
        %3501 = vmatprep.subr.bf16.mxu0 0
        %3502 = vmatpush1.bf16.msra.mxu0 %v2561
        %3503 = vmatprep.subr.bf16.mxu0 0
        %3504 = vmatpush1.bf16.msra.mxu0 %v2562
        %3505 = vmatprep.subr.bf16.mxu0 0
        %3506 = vmatpush1.bf16.msra.mxu0 %v2563
        %3507 = vmatprep.subr.bf16.mxu0 0
        %3508 = vmatpush1.bf16.msra.mxu0 0
        %3509 = vmatprep.subr.bf16.mxu0 0
        %3510 = vmatpush1.bf16.msra.mxu0 0
        %3511 = vmatprep.subr.bf16.mxu0 0
        %3512 = vmatpush1.bf16.msra.mxu0 0
        %3513 = vmatprep.subr.bf16.mxu0 0
        %3514 = vmatpush1.bf16.msra.mxu0 0
        %3515 = vmatprep.subr.bf16.mxu0 0
        %3516 = vmatpush1.bf16.msra.mxu0 0
        %3517 = vmatprep.subr.bf16.mxu0 0
        %3518 = vmatpush1.bf16.msra.mxu0 0
        %3519 = vmatprep.subr.bf16.mxu0 0
        %3520 = vmatpush1.bf16.msra.mxu0 0
        %3521 = vmatprep.subr.bf16.mxu0 0
        %3522 = vmatpush1.bf16.msra.mxu0 0
        %3523 = vmatprep.subr.bf16.mxu0 0
        %3524 = vmatpush1.bf16.msra.mxu0 0
        %3525 = vmatprep.subr.bf16.mxu0 0
        %3526 = vmatpush1.bf16.msra.mxu0 0
        %3527 = vmatprep.subr.bf16.mxu0 0
        %3528 = vmatpush1.bf16.msra.mxu0 0
        %3529 = vmatprep.subr.bf16.mxu0 0
        %3530 = vmatpush1.bf16.msra.mxu0 0
        %3531 = vmatprep.mubr.bf16.mxu0 0
        %3532 = vmatmul.mubr.bf16.gmra.mrb[0].mxu0 %v3497
        %v3533 = vpop.f32.mrb[0].mxu0
        %v3534 = vadd.f32 0.0, %v3533
        %v3535 = vpop.f32.mrb[0].mxu0
        %v3536 = vpop.f32.mrb[0].mxu0
        %v3537 = vadd.f32 0.0, %v3536
        %v3538 = vpop.f32.mrb[0].mxu0
        %3539 = vdwg.mxu0
        %v3540 = vpack.c.bf16 %v3537, %v3534
        %s3541 = scalar_lea.vmem [#allocation5], 128
        %v3542 = vld [vmem:[%s3541] sm:$0xf]
        %v3543 = vld [vmem:[%s3541 + $0x4] sm:$0xf]
        %v3544 = vld [vmem:[%s3541 + $0x8] sm:$0xf]
        %v3545 = vld [vmem:[%s3541 + $0xc] sm:$0xf]
        %v3550 = vunpack.c.l.b16 %v3542
        %v3551 = vunpack.c.l.b16 %v3543
        %v3552 = vunpack.c.l.b16 %v3544
        %v3553 = vunpack.c.l.b16 %v3545
        %v3554 = vpack.c.b16 %v3551, %v3550
        %v3555 = vpack.c.b16 %v3553, %v3552
        %v3559 = vsel %vm2691, %v3540, 0
        %3561 = vmatprep.subr.bf16.mxu0 0
        %3562 = vmatpush1.bf16.msra.mxu0 %v3554
        %3563 = vmatprep.subr.bf16.mxu0 0
        %3564 = vmatpush1.bf16.msra.mxu0 %v3555
        %3565 = vmatprep.subr.bf16.mxu0 0
        %3566 = vmatpush1.bf16.msra.mxu0 0
        %3567 = vmatprep.subr.bf16.mxu0 0
        %3568 = vmatpush1.bf16.msra.mxu0 0
        %3569 = vmatprep.subr.bf16.mxu0 0
        %3570 = vmatpush1.bf16.msra.mxu0 0
        %3571 = vmatprep.subr.bf16.mxu0 0
        %3572 = vmatpush1.bf16.msra.mxu0 0
        %3573 = vmatprep.subr.bf16.mxu0 0
        %3574 = vmatpush1.bf16.msra.mxu0 0
        %3575 = vmatprep.subr.bf16.mxu0 0
        %3576 = vmatpush1.bf16.msra.mxu0 0
        %3577 = vmatprep.subr.bf16.mxu0 0
        %3578 = vmatpush1.bf16.msra.mxu0 0
        %3579 = vmatprep.subr.bf16.mxu0 0
        %3580 = vmatpush1.bf16.msra.mxu0 0
        %3581 = vmatprep.subr.bf16.mxu0 0
        %3582 = vmatpush1.bf16.msra.mxu0 0
        %3583 = vmatprep.subr.bf16.mxu0 0
        %3584 = vmatpush1.bf16.msra.mxu0 0
        %3585 = vmatprep.subr.bf16.mxu0 0
        %3586 = vmatpush1.bf16.msra.mxu0 0
        %3587 = vmatprep.subr.bf16.mxu0 0
        %3588 = vmatpush1.bf16.msra.mxu0 0
        %3589 = vmatprep.subr.bf16.mxu0 0
        %3590 = vmatpush1.bf16.msra.mxu0 0
        %3591 = vmatprep.subr.bf16.mxu0 0
        %3592 = vmatpush1.bf16.msra.mxu0 0
        %3593 = vmatprep.mubr.bf16.mxu0 0
        %3594 = vmatmul.mubr.bf16.gmra.mrb[0].mxu0 %v3559
        %v3595 = vpop.f32.mrb[0].mxu0
        %v3596 = vadd.f32 0.0, %v3595
        %v3597 = vpop.f32.mrb[0].mxu0
        %v3598 = vpop.f32.mrb[0].mxu0
        %v3599 = vadd.f32 0.0, %v3598
        %v3600 = vpop.f32.mrb[0].mxu0
        %3601 = vdwg.mxu0
        %v3602 = vadd.f32 %v3486, %v3596
        %v3603 = vadd.f32 %v3487, %v3599
        %v3604 = vld [vmem:[%s6] sm:$0x1]
        %v3606 = vlaneseq
        %v3607 = vshrl.u32 %v3606, 7
        %v3608 = vsub.s32 0, %v3607
        %v3609 = vrot.slane %v3604, %v3608
        %v3611 = vadd.f32 %v3602, %v3609
        %v3612 = vadd.f32 %v3603, %v3609
        %v3613 = vmax.f32 %v3611, 0.0
        %v3614 = vmax.f32 %v3612, 0.0
        %v3615 = vpack.c.bf16 %v3614, %v3613
        %v3616 = vld [vmem:[%s7] sm:$0x3]
        %vm3617 = vcmask 130048
        %v3619 = vsel %vm3617, %v3616, 0
        %3621 = vmatprep.subr.bf16.mxu0 0
        %3622 = vmatpush1.bf16.msra.mxu0 %v3615
        %3623 = vmatprep.subr.bf16.mxu0 0
        %3624 = vmatpush1.bf16.msra.mxu0 0
        %3625 = vmatprep.subr.bf16.mxu0 0
        %3626 = vmatpush1.bf16.msra.mxu0 0
        %3627 = vmatprep.subr.bf16.mxu0 0
        %3628 = vmatpush1.bf16.msra.mxu0 0
        %3629 = vmatprep.subr.bf16.mxu0 0
        %3630 = vmatpush1.bf16.msra.mxu0 0
        %3631 = vmatprep.subr.bf16.mxu0 0
        %3632 = vmatpush1.bf16.msra.mxu0 0
        %3633 = vmatprep.subr.bf16.mxu0 0
        %3634 = vmatpush1.bf16.msra.mxu0 0
        %3635 = vmatprep.subr.bf16.mxu0 0
        %3636 = vmatpush1.bf16.msra.mxu0 0
        %3637 = vmatprep.subr.bf16.mxu0 0
        %3638 = vmatpush1.bf16.msra.mxu0 0
        %3639 = vmatprep.subr.bf16.mxu0 0
        %3640 = vmatpush1.bf16.msra.mxu0 0
        %3641 = vmatprep.subr.bf16.mxu0 0
        %3642 = vmatpush1.bf16.msra.mxu0 0
        %3643 = vmatprep.subr.bf16.mxu0 0
        %3644 = vmatpush1.bf16.msra.mxu0 0
        %3645 = vmatprep.subr.bf16.mxu0 0
        %3646 = vmatpush1.bf16.msra.mxu0 0
        %3647 = vmatprep.subr.bf16.mxu0 0
        %3648 = vmatpush1.bf16.msra.mxu0 0
        %3649 = vmatprep.subr.bf16.mxu0 0
        %3650 = vmatpush1.bf16.msra.mxu0 0
        %3651 = vmatprep.subr.bf16.mxu0 0
        %3652 = vmatpush1.bf16.msra.mxu0 0
        %3653 = vmatprep.mubr.bf16.mxu0 0
        %3654 = vmatmul.mubr.bf16.gmra.mrb[0].mxu0 %v3619
        %v3655 = vpop.f32.mrb[0].mxu0
        %v3656 = vadd.f32 0.0, %v3655
        %v3657 = vpop.f32.mrb[0].mxu0
        %v3658 = vpop.f32.mrb[0].mxu0
        %v3659 = vpop.f32.mrb[0].mxu0
        %3660 = vdwg.mxu0
        %v3661 = vpack.c.bf16 %v3656, %v3656
        %v3662 = vld [vmem:[#allocation7] sm:$0xf]
        %v3663 = vld [vmem:[#allocation7 + $0x4] sm:$0xf]
        %v3664 = vld [vmem:[#allocation7 + $0x8] sm:$0xf]
        %v3665 = vld [vmem:[#allocation7 + $0xc] sm:$0xf]
        %v3666 = vld [vmem:[#allocation7 + $0x10] sm:$0xf]
        %v3667 = vld [vmem:[#allocation7 + $0x14] sm:$0xf]
        %v3668 = vld [vmem:[#allocation7 + $0x18] sm:$0xf]
        %v3669 = vld [vmem:[#allocation7 + $0x1c] sm:$0xf]
        %s3670 = scalar_lea.vmem %s7, 2
        %v3671 = vld [vmem:[%s3670] sm:$0x3]
        %v3673 = vsel %vm3617, %v3671, 0
        %3675 = vmatprep.subr.bf16.mxu0 0
        %3676 = vmatpush1.bf16.msra.mxu0 %v3615
        %3677 = vmatprep.subr.bf16.mxu0 0
        %3678 = vmatpush1.bf16.msra.mxu0 0
        %3679 = vmatprep.subr.bf16.mxu0 0
        %3680 = vmatpush1.bf16.msra.mxu0 0
        %3681 = vmatprep.subr.bf16.mxu0 0
        %3682 = vmatpush1.bf16.msra.mxu0 0
        %3683 = vmatprep.subr.bf16.mxu0 0
        %3684 = vmatpush1.bf16.msra.mxu0 0
        %3685 = vmatprep.subr.bf16.mxu0 0
        %3686 = vmatpush1.bf16.msra.mxu0 0
        %3687 = vmatprep.subr.bf16.mxu0 0
        %3688 = vmatpush1.bf16.msra.mxu0 0
        %3689 = vmatprep.subr.bf16.mxu0 0
        %3690 = vmatpush1.bf16.msra.mxu0 0
        %3691 = vmatprep.subr.bf16.mxu0 0
        %3692 = vmatpush1.bf16.msra.mxu0 0
        %3693 = vmatprep.subr.bf16.mxu0 0
        %3694 = vmatpush1.bf16.msra.mxu0 0
        %3695 = vmatprep.subr.bf16.mxu0 0
        %3696 = vmatpush1.bf16.msra.mxu0 0
        %3697 = vmatprep.subr.bf16.mxu0 0
        %3698 = vmatpush1.bf16.msra.mxu0 0
        %3699 = vmatprep.subr.bf16.mxu0 0
        %3700 = vmatpush1.bf16.msra.mxu0 0
        %3701 = vmatprep.subr.bf16.mxu0 0
        %3702 = vmatpush1.bf16.msra.mxu0 0
        %3703 = vmatprep.subr.bf16.mxu0 0
        %3704 = vmatpush1.bf16.msra.mxu0 0
        %3705 = vmatprep.subr.bf16.mxu0 0
        %3706 = vmatpush1.bf16.msra.mxu0 0
        %3707 = vmatprep.mubr.bf16.mxu0 0
        %3708 = vmatmul.mubr.bf16.gmra.mrb[0].mxu0 %v3673
        %v3709 = vpop.f32.mrb[0].mxu0
        %v3710 = vadd.f32 0.0, %v3709
        %v3711 = vpop.f32.mrb[0].mxu0
        %v3712 = vpop.f32.mrb[0].mxu0
        %v3713 = vpop.f32.mrb[0].mxu0
        %3714 = vdwg.mxu0
        %v3715 = vpack.c.bf16 %v3710, %v3710
        %s3716 = scalar_lea.vmem [#allocation7], 32
        %v3717 = vld [vmem:[%s3716] sm:$0xf]
        %v3718 = vld [vmem:[%s3716 + $0x4] sm:$0xf]
        %v3719 = vld [vmem:[%s3716 + $0x8] sm:$0xf]
        %v3720 = vld [vmem:[%s3716 + $0xc] sm:$0xf]
        %v3721 = vld [vmem:[%s3716 + $0x10] sm:$0xf]
        %v3722 = vld [vmem:[%s3716 + $0x14] sm:$0xf]
        %v3723 = vld [vmem:[%s3716 + $0x18] sm:$0xf]
        %v3724 = vld [vmem:[%s3716 + $0x1c] sm:$0xf]
        %v3733 = vunpack.c.l.b16 %v3717
        %v3734 = vunpack.c.l.b16 %v3718
        %v3735 = vunpack.c.l.b16 %v3719
        %v3736 = vunpack.c.l.b16 %v3720
        %v3737 = vunpack.c.l.b16 %v3721
        %v3738 = vunpack.c.l.b16 %v3722
        %v3739 = vunpack.c.l.b16 %v3723
        %v3740 = vunpack.c.l.b16 %v3724
        %v3741 = vpack.c.b16 %v3734, %v3733
        %v3742 = vpack.c.b16 %v3736, %v3735
        %v3743 = vpack.c.b16 %v3738, %v3737
        %v3744 = vpack.c.b16 %v3740, %v3739
        %v3750 = vsel %vm2571, %v3715, 0
        %3752 = vmatprep.subr.bf16.mxu0 0
        %3753 = vmatpush1.bf16.msra.mxu0 %v3741
        %3754 = vmatprep.subr.bf16.mxu0 0
        %3755 = vmatpush1.bf16.msra.mxu0 %v3742
        %3756 = vmatprep.subr.bf16.mxu0 0
        %3757 = vmatpush1.bf16.msra.mxu0 %v3743
        %3758 = vmatprep.subr.bf16.mxu0 0
        %3759 = vmatpush1.bf16.msra.mxu0 %v3744
        %3760 = vmatprep.subr.bf16.mxu0 0
        %3761 = vmatpush1.bf16.msra.mxu0 0
        %3762 = vmatprep.subr.bf16.mxu0 0
        %3763 = vmatpush1.bf16.msra.mxu0 0
        %3764 = vmatprep.subr.bf16.mxu0 0
        %3765 = vmatpush1.bf16.msra.mxu0 0
        %3766 = vmatprep.subr.bf16.mxu0 0
        %3767 = vmatpush1.bf16.msra.mxu0 0
        %3768 = vmatprep.subr.bf16.mxu0 0
        %3769 = vmatpush1.bf16.msra.mxu0 0
        %3770 = vmatprep.subr.bf16.mxu0 0
        %3771 = vmatpush1.bf16.msra.mxu0 0
        %3772 = vmatprep.subr.bf16.mxu0 0
        %3773 = vmatpush1.bf16.msra.mxu0 0
        %3774 = vmatprep.subr.bf16.mxu0 0
        %3775 = vmatpush1.bf16.msra.mxu0 0
        %3776 = vmatprep.subr.bf16.mxu0 0
        %3777 = vmatpush1.bf16.msra.mxu0 0
        %3778 = vmatprep.subr.bf16.mxu0 0
        %3779 = vmatpush1.bf16.msra.mxu0 0
        %3780 = vmatprep.subr.bf16.mxu0 0
        %3781 = vmatpush1.bf16.msra.mxu0 0
        %3782 = vmatprep.subr.bf16.mxu0 0
        %3783 = vmatpush1.bf16.msra.mxu0 0
        %3784 = vmatprep.mubr.bf16.mxu0 0
        %3785 = vmatmul.mubr.bf16.gmra.mrb[0].mxu0 %v3750
        %v3786 = vpop.f32.mrb[0].mxu0
        %v3787 = vadd.f32 0.0, %v3786
        %v3788 = vpop.f32.mrb[0].mxu0
        %v3789 = vpop.f32.mrb[0].mxu0
        %v3790 = vpop.f32.mrb[0].mxu0
        %3791 = vdwg.mxu0
        %v3800 = vunpack.c.l.b16 %v3662
        %v3801 = vunpack.c.l.b16 %v3663
        %v3802 = vunpack.c.l.b16 %v3664
        %v3803 = vunpack.c.l.b16 %v3665
        %v3804 = vunpack.c.l.b16 %v3666
        %v3805 = vunpack.c.l.b16 %v3667
        %v3806 = vunpack.c.l.b16 %v3668
        %v3807 = vunpack.c.l.b16 %v3669
        %v3808 = vpack.c.b16 %v3801, %v3800
        %v3809 = vpack.c.b16 %v3803, %v3802
        %v3810 = vpack.c.b16 %v3805, %v3804
        %v3811 = vpack.c.b16 %v3807, %v3806
        %v3817 = vsel %vm2571, %v3661, 0
        %3819 = vmatprep.subr.bf16.mxu0 0
        %3820 = vmatpush1.bf16.msra.mxu0 %v3808
        %3821 = vmatprep.subr.bf16.mxu0 0
        %3822 = vmatpush1.bf16.msra.mxu0 %v3809
        %3823 = vmatprep.subr.bf16.mxu0 0
        %3824 = vmatpush1.bf16.msra.mxu0 %v3810
        %3825 = vmatprep.subr.bf16.mxu0 0
        %3826 = vmatpush1.bf16.msra.mxu0 %v3811
        %3827 = vmatprep.subr.bf16.mxu0 0
        %3828 = vmatpush1.bf16.msra.mxu0 0
        %3829 = vmatprep.subr.bf16.mxu0 0
        %3830 = vmatpush1.bf16.msra.mxu0 0
        %3831 = vmatprep.subr.bf16.mxu0 0
        %3832 = vmatpush1.bf16.msra.mxu0 0
        %3833 = vmatprep.subr.bf16.mxu0 0
        %3834 = vmatpush1.bf16.msra.mxu0 0
        %3835 = vmatprep.subr.bf16.mxu0 0
        %3836 = vmatpush1.bf16.msra.mxu0 0
        %3837 = vmatprep.subr.bf16.mxu0 0
        %3838 = vmatpush1.bf16.msra.mxu0 0
        %3839 = vmatprep.subr.bf16.mxu0 0
        %3840 = vmatpush1.bf16.msra.mxu0 0
        %3841 = vmatprep.subr.bf16.mxu0 0
        %3842 = vmatpush1.bf16.msra.mxu0 0
        %3843 = vmatprep.subr.bf16.mxu0 0
        %3844 = vmatpush1.bf16.msra.mxu0 0
        %3845 = vmatprep.subr.bf16.mxu0 0
        %3846 = vmatpush1.bf16.msra.mxu0 0
        %3847 = vmatprep.subr.bf16.mxu0 0
        %3848 = vmatpush1.bf16.msra.mxu0 0
        %3849 = vmatprep.subr.bf16.mxu0 0
        %3850 = vmatpush1.bf16.msra.mxu0 0
        %3851 = vmatprep.mubr.bf16.mxu0 0
        %3852 = vmatmul.mubr.bf16.gmra.mrb[0].mxu0 %v3817
        %v3853 = vpop.f32.mrb[0].mxu0
        %v3854 = vadd.f32 %v3787, %v3853
        %v3855 = vpop.f32.mrb[0].mxu0
        %v3856 = vpop.f32.mrb[0].mxu0
        %v3857 = vpop.f32.mrb[0].mxu0
        %3858 = vdwg.mxu0
        %s3859 = scalar_lea.vmem %s7, 4
        %v3860 = vld [vmem:[%s3859] sm:$0x3]
        %v3862 = vsel %vm3617, %v3860, 0
        %3864 = vmatprep.subr.bf16.mxu0 0
        %3865 = vmatpush1.bf16.msra.mxu0 %v3615
        %3866 = vmatprep.subr.bf16.mxu0 0
        %3867 = vmatpush1.bf16.msra.mxu0 0
        %3868 = vmatprep.subr.bf16.mxu0 0
        %3869 = vmatpush1.bf16.msra.mxu0 0
        %3870 = vmatprep.subr.bf16.mxu0 0
        %3871 = vmatpush1.bf16.msra.mxu0 0
        %3872 = vmatprep.subr.bf16.mxu0 0
        %3873 = vmatpush1.bf16.msra.mxu0 0
        %3874 = vmatprep.subr.bf16.mxu0 0
        %3875 = vmatpush1.bf16.msra.mxu0 0
        %3876 = vmatprep.subr.bf16.mxu0 0
        %3877 = vmatpush1.bf16.msra.mxu0 0
        %3878 = vmatprep.subr.bf16.mxu0 0
        %3879 = vmatpush1.bf16.msra.mxu0 0
        %3880 = vmatprep.subr.bf16.mxu0 0
        %3881 = vmatpush1.bf16.msra.mxu0 0
        %3882 = vmatprep.subr.bf16.mxu0 0
        %3883 = vmatpush1.bf16.msra.mxu0 0
        %3884 = vmatprep.subr.bf16.mxu0 0
        %3885 = vmatpush1.bf16.msra.mxu0 0
        %3886 = vmatprep.subr.bf16.mxu0 0
        %3887 = vmatpush1.bf16.msra.mxu0 0
        %3888 = vmatprep.subr.bf16.mxu0 0
        %3889 = vmatpush1.bf16.msra.mxu0 0
        %3890 = vmatprep.subr.bf16.mxu0 0
        %3891 = vmatpush1.bf16.msra.mxu0 0
        %3892 = vmatprep.subr.bf16.mxu0 0
        %3893 = vmatpush1.bf16.msra.mxu0 0
        %3894 = vmatprep.subr.bf16.mxu0 0
        %3895 = vmatpush1.bf16.msra.mxu0 0
        %3896 = vmatprep.mubr.bf16.mxu0 0
        %3897 = vmatmul.mubr.bf16.gmra.mrb[0].mxu0 %v3862
        %v3898 = vpop.f32.mrb[0].mxu0
        %v3899 = vadd.f32 0.0, %v3898
        %v3900 = vpop.f32.mrb[0].mxu0
        %v3901 = vpop.f32.mrb[0].mxu0
        %v3902 = vpop.f32.mrb[0].mxu0
        %3903 = vdwg.mxu0
        %v3904 = vpack.c.bf16 %v3899, %v3899
        %s3905 = scalar_lea.vmem [#allocation7], 64
        %v3906 = vld [vmem:[%s3905] sm:$0xf]
        %v3907 = vld [vmem:[%s3905 + $0x4] sm:$0xf]
        %v3908 = vld [vmem:[%s3905 + $0x8] sm:$0xf]
        %v3909 = vld [vmem:[%s3905 + $0xc] sm:$0xf]
        %v3910 = vld [vmem:[%s3905 + $0x10] sm:$0xf]
        %v3911 = vld [vmem:[%s3905 + $0x14] sm:$0xf]
        %v3912 = vld [vmem:[%s3905 + $0x18] sm:$0xf]
        %v3913 = vld [vmem:[%s3905 + $0x1c] sm:$0xf]
        %v3922 = vunpack.c.l.b16 %v3906
        %v3923 = vunpack.c.l.b16 %v3907
        %v3924 = vunpack.c.l.b16 %v3908
        %v3925 = vunpack.c.l.b16 %v3909
        %v3926 = vunpack.c.l.b16 %v3910
        %v3927 = vunpack.c.l.b16 %v3911
        %v3928 = vunpack.c.l.b16 %v3912
        %v3929 = vunpack.c.l.b16 %v3913
        %v3930 = vpack.c.b16 %v3923, %v3922
        %v3931 = vpack.c.b16 %v3925, %v3924
        %v3932 = vpack.c.b16 %v3927, %v3926
        %v3933 = vpack.c.b16 %v3929, %v3928
        %v3939 = vsel %vm2571, %v3904, 0
        %3941 = vmatprep.subr.bf16.mxu0 0
        %3942 = vmatpush1.bf16.msra.mxu0 %v3930
        %3943 = vmatprep.subr.bf16.mxu0 0
        %3944 = vmatpush1.bf16.msra.mxu0 %v3931
        %3945 = vmatprep.subr.bf16.mxu0 0
        %3946 = vmatpush1.bf16.msra.mxu0 %v3932
        %3947 = vmatprep.subr.bf16.mxu0 0
        %3948 = vmatpush1.bf16.msra.mxu0 %v3933
        %3949 = vmatprep.subr.bf16.mxu0 0
        %3950 = vmatpush1.bf16.msra.mxu0 0
        %3951 = vmatprep.subr.bf16.mxu0 0
        %3952 = vmatpush1.bf16.msra.mxu0 0
        %3953 = vmatprep.subr.bf16.mxu0 0
        %3954 = vmatpush1.bf16.msra.mxu0 0
        %3955 = vmatprep.subr.bf16.mxu0 0
        %3956 = vmatpush1.bf16.msra.mxu0 0
        %3957 = vmatprep.subr.bf16.mxu0 0
        %3958 = vmatpush1.bf16.msra.mxu0 0
        %3959 = vmatprep.subr.bf16.mxu0 0
        %3960 = vmatpush1.bf16.msra.mxu0 0
        %3961 = vmatprep.subr.bf16.mxu0 0
        %3962 = vmatpush1.bf16.msra.mxu0 0
        %3963 = vmatprep.subr.bf16.mxu0 0
        %3964 = vmatpush1.bf16.msra.mxu0 0
        %3965 = vmatprep.subr.bf16.mxu0 0
        %3966 = vmatpush1.bf16.msra.mxu0 0
        %3967 = vmatprep.subr.bf16.mxu0 0
        %3968 = vmatpush1.bf16.msra.mxu0 0
        %3969 = vmatprep.subr.bf16.mxu0 0
        %3970 = vmatpush1.bf16.msra.mxu0 0
        %3971 = vmatprep.subr.bf16.mxu0 0
        %3972 = vmatpush1.bf16.msra.mxu0 0
        %3973 = vmatprep.mubr.bf16.mxu0 0
        %3974 = vmatmul.mubr.bf16.gmra.mrb[0].mxu0 %v3939
        %v3975 = vpop.f32.mrb[0].mxu0
        %v3976 = vadd.f32 0.0, %v3975
        %v3977 = vpop.f32.mrb[0].mxu0
        %v3978 = vpop.f32.mrb[0].mxu0
        %v3979 = vpop.f32.mrb[0].mxu0
        %3980 = vdwg.mxu0
        %v3981 = vadd.f32 %v3854, %v3976
        %s3982 = scalar_lea.vmem %s7, 6
        %v3983 = vld [vmem:[%s3982] sm:$0x3]
        %v3985 = vsel %vm3617, %v3983, 0
        %3987 = vmatprep.subr.bf16.mxu0 0
        %3988 = vmatpush1.bf16.msra.mxu0 %v3615
        %3989 = vmatprep.subr.bf16.mxu0 0
        %3990 = vmatpush1.bf16.msra.mxu0 0
        %3991 = vmatprep.subr.bf16.mxu0 0
        %3992 = vmatpush1.bf16.msra.mxu0 0
        %3993 = vmatprep.subr.bf16.mxu0 0
        %3994 = vmatpush1.bf16.msra.mxu0 0
        %3995 = vmatprep.subr.bf16.mxu0 0
        %3996 = vmatpush1.bf16.msra.mxu0 0
        %3997 = vmatprep.subr.bf16.mxu0 0
        %3998 = vmatpush1.bf16.msra.mxu0 0
        %3999 = vmatprep.subr.bf16.mxu0 0
        %4000 = vmatpush1.bf16.msra.mxu0 0
        %4001 = vmatprep.subr.bf16.mxu0 0
        %4002 = vmatpush1.bf16.msra.mxu0 0
        %4003 = vmatprep.subr.bf16.mxu0 0
        %4004 = vmatpush1.bf16.msra.mxu0 0
        %4005 = vmatprep.subr.bf16.mxu0 0
        %4006 = vmatpush1.bf16.msra.mxu0 0
        %4007 = vmatprep.subr.bf16.mxu0 0
        %4008 = vmatpush1.bf16.msra.mxu0 0
        %4009 = vmatprep.subr.bf16.mxu0 0
        %4010 = vmatpush1.bf16.msra.mxu0 0
        %4011 = vmatprep.subr.bf16.mxu0 0
        %4012 = vmatpush1.bf16.msra.mxu0 0
        %4013 = vmatprep.subr.bf16.mxu0 0
        %4014 = vmatpush1.bf16.msra.mxu0 0
        %4015 = vmatprep.subr.bf16.mxu0 0
        %4016 = vmatpush1.bf16.msra.mxu0 0
        %4017 = vmatprep.subr.bf16.mxu0 0
        %4018 = vmatpush1.bf16.msra.mxu0 0
        %4019 = vmatprep.mubr.bf16.mxu0 0
        %4020 = vmatmul.mubr.bf16.gmra.mrb[0].mxu0 %v3985
        %v4021 = vpop.f32.mrb[0].mxu0
        %v4022 = vadd.f32 0.0, %v4021
        %v4023 = vpop.f32.mrb[0].mxu0
        %v4024 = vpop.f32.mrb[0].mxu0
        %v4025 = vpop.f32.mrb[0].mxu0
        %4026 = vdwg.mxu0
        %v4027 = vpack.c.bf16 %v4022, %v4022
        %s4028 = scalar_lea.vmem [#allocation7], 96
        %v4029 = vld [vmem:[%s4028] sm:$0xf]
        %v4030 = vld [vmem:[%s4028 + $0x4] sm:$0xf]
        %v4031 = vld [vmem:[%s4028 + $0x8] sm:$0xf]
        %v4032 = vld [vmem:[%s4028 + $0xc] sm:$0xf]
        %v4033 = vld [vmem:[%s4028 + $0x10] sm:$0xf]
        %v4034 = vld [vmem:[%s4028 + $0x14] sm:$0xf]
        %v4035 = vld [vmem:[%s4028 + $0x18] sm:$0xf]
        %v4036 = vld [vmem:[%s4028 + $0x1c] sm:$0xf]
        %v4045 = vunpack.c.l.b16 %v4029
        %v4046 = vunpack.c.l.b16 %v4030
        %v4047 = vunpack.c.l.b16 %v4031
        %v4048 = vunpack.c.l.b16 %v4032
        %v4049 = vunpack.c.l.b16 %v4033
        %v4050 = vunpack.c.l.b16 %v4034
        %v4051 = vunpack.c.l.b16 %v4035
        %v4052 = vunpack.c.l.b16 %v4036
        %v4053 = vpack.c.b16 %v4046, %v4045
        %v4054 = vpack.c.b16 %v4048, %v4047
        %v4055 = vpack.c.b16 %v4050, %v4049
        %v4056 = vpack.c.b16 %v4052, %v4051
        %v4062 = vsel %vm2571, %v4027, 0
        %4064 = vmatprep.subr.bf16.mxu0 0
        %4065 = vmatpush1.bf16.msra.mxu0 %v4053
        %4066 = vmatprep.subr.bf16.mxu0 0
        %4067 = vmatpush1.bf16.msra.mxu0 %v4054
        %4068 = vmatprep.subr.bf16.mxu0 0
        %4069 = vmatpush1.bf16.msra.mxu0 %v4055
        %4070 = vmatprep.subr.bf16.mxu0 0
        %4071 = vmatpush1.bf16.msra.mxu0 %v4056
        %4072 = vmatprep.subr.bf16.mxu0 0
        %4073 = vmatpush1.bf16.msra.mxu0 0
        %4074 = vmatprep.subr.bf16.mxu0 0
        %4075 = vmatpush1.bf16.msra.mxu0 0
        %4076 = vmatprep.subr.bf16.mxu0 0
        %4077 = vmatpush1.bf16.msra.mxu0 0
        %4078 = vmatprep.subr.bf16.mxu0 0
        %4079 = vmatpush1.bf16.msra.mxu0 0
        %4080 = vmatprep.subr.bf16.mxu0 0
        %4081 = vmatpush1.bf16.msra.mxu0 0
        %4082 = vmatprep.subr.bf16.mxu0 0
        %4083 = vmatpush1.bf16.msra.mxu0 0
        %4084 = vmatprep.subr.bf16.mxu0 0
        %4085 = vmatpush1.bf16.msra.mxu0 0
        %4086 = vmatprep.subr.bf16.mxu0 0
        %4087 = vmatpush1.bf16.msra.mxu0 0
        %4088 = vmatprep.subr.bf16.mxu0 0
        %4089 = vmatpush1.bf16.msra.mxu0 0
        %4090 = vmatprep.subr.bf16.mxu0 0
        %4091 = vmatpush1.bf16.msra.mxu0 0
        %4092 = vmatprep.subr.bf16.mxu0 0
        %4093 = vmatpush1.bf16.msra.mxu0 0
        %4094 = vmatprep.subr.bf16.mxu0 0
        %4095 = vmatpush1.bf16.msra.mxu0 0
        %4096 = vmatprep.mubr.bf16.mxu0 0
        %4097 = vmatmul.mubr.bf16.gmra.mrb[0].mxu0 %v4062
        %v4098 = vpop.f32.mrb[0].mxu0
        %v4099 = vadd.f32 0.0, %v4098
        %v4100 = vpop.f32.mrb[0].mxu0
        %v4101 = vpop.f32.mrb[0].mxu0
        %v4102 = vpop.f32.mrb[0].mxu0
        %4103 = vdwg.mxu0
        %v4104 = vadd.f32 %v3981, %v4099
        %s4105 = scalar_lea.vmem %s7, 8
        %v4106 = vld [vmem:[%s4105] sm:$0x3]
        %v4108 = vsel %vm3617, %v4106, 0
        %4110 = vmatprep.subr.bf16.mxu0 0
        %4111 = vmatpush1.bf16.msra.mxu0 %v3615
        %4112 = vmatprep.subr.bf16.mxu0 0
        %4113 = vmatpush1.bf16.msra.mxu0 0
        %4114 = vmatprep.subr.bf16.mxu0 0
        %4115 = vmatpush1.bf16.msra.mxu0 0
        %4116 = vmatprep.subr.bf16.mxu0 0
        %4117 = vmatpush1.bf16.msra.mxu0 0
        %4118 = vmatprep.subr.bf16.mxu0 0
        %4119 = vmatpush1.bf16.msra.mxu0 0
        %4120 = vmatprep.subr.bf16.mxu0 0
        %4121 = vmatpush1.bf16.msra.mxu0 0
        %4122 = vmatprep.subr.bf16.mxu0 0
        %4123 = vmatpush1.bf16.msra.mxu0 0
        %4124 = vmatprep.subr.bf16.mxu0 0
        %4125 = vmatpush1.bf16.msra.mxu0 0
        %4126 = vmatprep.subr.bf16.mxu0 0
        %4127 = vmatpush1.bf16.msra.mxu0 0
        %4128 = vmatprep.subr.bf16.mxu0 0
        %4129 = vmatpush1.bf16.msra.mxu0 0
        %4130 = vmatprep.subr.bf16.mxu0 0
        %4131 = vmatpush1.bf16.msra.mxu0 0
        %4132 = vmatprep.subr.bf16.mxu0 0
        %4133 = vmatpush1.bf16.msra.mxu0 0
        %4134 = vmatprep.subr.bf16.mxu0 0
        %4135 = vmatpush1.bf16.msra.mxu0 0
        %4136 = vmatprep.subr.bf16.mxu0 0
        %4137 = vmatpush1.bf16.msra.mxu0 0
        %4138 = vmatprep.subr.bf16.mxu0 0
        %4139 = vmatpush1.bf16.msra.mxu0 0
        %4140 = vmatprep.subr.bf16.mxu0 0
        %4141 = vmatpush1.bf16.msra.mxu0 0
        %4142 = vmatprep.mubr.bf16.mxu0 0
        %4143 = vmatmul.mubr.bf16.gmra.mrb[0].mxu0 %v4108
        %v4144 = vpop.f32.mrb[0].mxu0
        %v4145 = vadd.f32 0.0, %v4144
        %v4146 = vpop.f32.mrb[0].mxu0
        %v4147 = vpop.f32.mrb[0].mxu0
        %v4148 = vpop.f32.mrb[0].mxu0
        %4149 = vdwg.mxu0
        %v4150 = vpack.c.bf16 %v4145, %v4145
        %s4151 = scalar_lea.vmem [#allocation7], 128
        %v4152 = vld [vmem:[%s4151] sm:$0xf]
        %v4153 = vld [vmem:[%s4151 + $0x4] sm:$0xf]
        %v4154 = vld [vmem:[%s4151 + $0x8] sm:$0xf]
        %v4155 = vld [vmem:[%s4151 + $0xc] sm:$0xf]
        %v4156 = vld [vmem:[%s4151 + $0x10] sm:$0xf]
        %v4157 = vld [vmem:[%s4151 + $0x14] sm:$0xf]
        %v4158 = vld [vmem:[%s4151 + $0x18] sm:$0xf]
        %v4159 = vld [vmem:[%s4151 + $0x1c] sm:$0xf]
        %v4168 = vunpack.c.l.b16 %v4152
        %v4169 = vunpack.c.l.b16 %v4153
        %v4170 = vunpack.c.l.b16 %v4154
        %v4171 = vunpack.c.l.b16 %v4155
        %v4172 = vunpack.c.l.b16 %v4156
        %v4173 = vunpack.c.l.b16 %v4157
        %v4174 = vunpack.c.l.b16 %v4158
        %v4175 = vunpack.c.l.b16 %v4159
        %v4176 = vpack.c.b16 %v4169, %v4168
        %v4177 = vpack.c.b16 %v4171, %v4170
        %v4178 = vpack.c.b16 %v4173, %v4172
        %v4179 = vpack.c.b16 %v4175, %v4174
        %v4185 = vsel %vm2571, %v4150, 0
        %4187 = vmatprep.subr.bf16.mxu0 0
        %4188 = vmatpush1.bf16.msra.mxu0 %v4176
        %4189 = vmatprep.subr.bf16.mxu0 0
        %4190 = vmatpush1.bf16.msra.mxu0 %v4177
        %4191 = vmatprep.subr.bf16.mxu0 0
        %4192 = vmatpush1.bf16.msra.mxu0 %v4178
        %4193 = vmatprep.subr.bf16.mxu0 0
        %4194 = vmatpush1.bf16.msra.mxu0 %v4179
        %4195 = vmatprep.subr.bf16.mxu0 0
        %4196 = vmatpush1.bf16.msra.mxu0 0
        %4197 = vmatprep.subr.bf16.mxu0 0
        %4198 = vmatpush1.bf16.msra.mxu0 0
        %4199 = vmatprep.subr.bf16.mxu0 0
        %4200 = vmatpush1.bf16.msra.mxu0 0
        %4201 = vmatprep.subr.bf16.mxu0 0
        %4202 = vmatpush1.bf16.msra.mxu0 0
        %4203 = vmatprep.subr.bf16.mxu0 0
        %4204 = vmatpush1.bf16.msra.mxu0 0
        %4205 = vmatprep.subr.bf16.mxu0 0
        %4206 = vmatpush1.bf16.msra.mxu0 0
        %4207 = vmatprep.subr.bf16.mxu0 0
        %4208 = vmatpush1.bf16.msra.mxu0 0
        %4209 = vmatprep.subr.bf16.mxu0 0
        %4210 = vmatpush1.bf16.msra.mxu0 0
        %4211 = vmatprep.subr.bf16.mxu0 0
        %4212 = vmatpush1.bf16.msra.mxu0 0
        %4213 = vmatprep.subr.bf16.mxu0 0
        %4214 = vmatpush1.bf16.msra.mxu0 0
        %4215 = vmatprep.subr.bf16.mxu0 0
        %4216 = vmatpush1.bf16.msra.mxu0 0
        %4217 = vmatprep.subr.bf16.mxu0 0
        %4218 = vmatpush1.bf16.msra.mxu0 0
        %4219 = vmatprep.mubr.bf16.mxu0 0
        %4220 = vmatmul.mubr.bf16.gmra.mrb[0].mxu0 %v4185
        %v4221 = vpop.f32.mrb[0].mxu0
        %v4222 = vadd.f32 0.0, %v4221
        %v4223 = vpop.f32.mrb[0].mxu0
        %v4224 = vpop.f32.mrb[0].mxu0
        %v4225 = vpop.f32.mrb[0].mxu0
        %4226 = vdwg.mxu0
        %v4227 = vadd.f32 %v4104, %v4222
        %s4228 = scalar_lea.vmem %s7, 10
        %v4229 = vld [vmem:[%s4228] sm:$0x3]
        %v4231 = vsel %vm3617, %v4229, 0
        %4233 = vmatprep.subr.bf16.mxu0 0
        %4234 = vmatpush1.bf16.msra.mxu0 %v3615
        %4235 = vmatprep.subr.bf16.mxu0 0
        %4236 = vmatpush1.bf16.msra.mxu0 0
        %4237 = vmatprep.subr.bf16.mxu0 0
        %4238 = vmatpush1.bf16.msra.mxu0 0
        %4239 = vmatprep.subr.bf16.mxu0 0
        %4240 = vmatpush1.bf16.msra.mxu0 0
        %4241 = vmatprep.subr.bf16.mxu0 0
        %4242 = vmatpush1.bf16.msra.mxu0 0
        %4243 = vmatprep.subr.bf16.mxu0 0
        %4244 = vmatpush1.bf16.msra.mxu0 0
        %4245 = vmatprep.subr.bf16.mxu0 0
        %4246 = vmatpush1.bf16.msra.mxu0 0
        %4247 = vmatprep.subr.bf16.mxu0 0
        %4248 = vmatpush1.bf16.msra.mxu0 0
        %4249 = vmatprep.subr.bf16.mxu0 0
        %4250 = vmatpush1.bf16.msra.mxu0 0
        %4251 = vmatprep.subr.bf16.mxu0 0
        %4252 = vmatpush1.bf16.msra.mxu0 0
        %4253 = vmatprep.subr.bf16.mxu0 0
        %4254 = vmatpush1.bf16.msra.mxu0 0
        %4255 = vmatprep.subr.bf16.mxu0 0
        %4256 = vmatpush1.bf16.msra.mxu0 0
        %4257 = vmatprep.subr.bf16.mxu0 0
        %4258 = vmatpush1.bf16.msra.mxu0 0
        %4259 = vmatprep.subr.bf16.mxu0 0
        %4260 = vmatpush1.bf16.msra.mxu0 0
        %4261 = vmatprep.subr.bf16.mxu0 0
        %4262 = vmatpush1.bf16.msra.mxu0 0
        %4263 = vmatprep.subr.bf16.mxu0 0
        %4264 = vmatpush1.bf16.msra.mxu0 0
        %4265 = vmatprep.mubr.bf16.mxu0 0
        %4266 = vmatmul.mubr.bf16.gmra.mrb[0].mxu0 %v4231
        %v4267 = vpop.f32.mrb[0].mxu0
        %v4268 = vadd.f32 0.0, %v4267
        %v4269 = vpop.f32.mrb[0].mxu0
        %v4270 = vpop.f32.mrb[0].mxu0
        %v4271 = vpop.f32.mrb[0].mxu0
        %4272 = vdwg.mxu0
        %v4273 = vpack.c.bf16 %v4268, %v4268
        %s4274 = scalar_lea.vmem [#allocation7], 160
        %v4275 = vld [vmem:[%s4274] sm:$0xf]
        %v4276 = vld [vmem:[%s4274 + $0x4] sm:$0xf]
        %v4277 = vld [vmem:[%s4274 + $0x8] sm:$0xf]
        %v4278 = vld [vmem:[%s4274 + $0xc] sm:$0xf]
        %v4279 = vld [vmem:[%s4274 + $0x10] sm:$0xf]
        %v4280 = vld [vmem:[%s4274 + $0x14] sm:$0xf]
        %v4281 = vld [vmem:[%s4274 + $0x18] sm:$0xf]
        %v4282 = vld [vmem:[%s4274 + $0x1c] sm:$0xf]
        %v4291 = vunpack.c.l.b16 %v4275
        %v4292 = vunpack.c.l.b16 %v4276
        %v4293 = vunpack.c.l.b16 %v4277
        %v4294 = vunpack.c.l.b16 %v4278
        %v4295 = vunpack.c.l.b16 %v4279
        %v4296 = vunpack.c.l.b16 %v4280
        %v4297 = vunpack.c.l.b16 %v4281
        %v4298 = vunpack.c.l.b16 %v4282
        %v4299 = vpack.c.b16 %v4292, %v4291
        %v4300 = vpack.c.b16 %v4294, %v4293
        %v4301 = vpack.c.b16 %v4296, %v4295
        %v4302 = vpack.c.b16 %v4298, %v4297
        %v4308 = vsel %vm2571, %v4273, 0
        %4310 = vmatprep.subr.bf16.mxu0 0
        %4311 = vmatpush1.bf16.msra.mxu0 %v4299
        %4312 = vmatprep.subr.bf16.mxu0 0
        %4313 = vmatpush1.bf16.msra.mxu0 %v4300
        %4314 = vmatprep.subr.bf16.mxu0 0
        %4315 = vmatpush1.bf16.msra.mxu0 %v4301
        %4316 = vmatprep.subr.bf16.mxu0 0
        %4317 = vmatpush1.bf16.msra.mxu0 %v4302
        %4318 = vmatprep.subr.bf16.mxu0 0
        %4319 = vmatpush1.bf16.msra.mxu0 0
        %4320 = vmatprep.subr.bf16.mxu0 0
        %4321 = vmatpush1.bf16.msra.mxu0 0
        %4322 = vmatprep.subr.bf16.mxu0 0
        %4323 = vmatpush1.bf16.msra.mxu0 0
        %4324 = vmatprep.subr.bf16.mxu0 0
        %4325 = vmatpush1.bf16.msra.mxu0 0
        %4326 = vmatprep.subr.bf16.mxu0 0
        %4327 = vmatpush1.bf16.msra.mxu0 0
        %4328 = vmatprep.subr.bf16.mxu0 0
        %4329 = vmatpush1.bf16.msra.mxu0 0
        %4330 = vmatprep.subr.bf16.mxu0 0
        %4331 = vmatpush1.bf16.msra.mxu0 0
        %4332 = vmatprep.subr.bf16.mxu0 0
        %4333 = vmatpush1.bf16.msra.mxu0 0
        %4334 = vmatprep.subr.bf16.mxu0 0
        %4335 = vmatpush1.bf16.msra.mxu0 0
        %4336 = vmatprep.subr.bf16.mxu0 0
        %4337 = vmatpush1.bf16.msra.mxu0 0
        %4338 = vmatprep.subr.bf16.mxu0 0
        %4339 = vmatpush1.bf16.msra.mxu0 0
        %4340 = vmatprep.subr.bf16.mxu0 0
        %4341 = vmatpush1.bf16.msra.mxu0 0
        %4342 = vmatprep.mubr.bf16.mxu0 0
        %4343 = vmatmul.mubr.bf16.gmra.mrb[0].mxu0 %v4308
        %v4344 = vpop.f32.mrb[0].mxu0
        %v4345 = vadd.f32 0.0, %v4344
        %v4346 = vpop.f32.mrb[0].mxu0
        %v4347 = vpop.f32.mrb[0].mxu0
        %v4348 = vpop.f32.mrb[0].mxu0
        %4349 = vdwg.mxu0
        %v4350 = vadd.f32 %v4227, %v4345
        %s4351 = scalar_lea.vmem %s7, 12
        %v4352 = vld [vmem:[%s4351] sm:$0x3]
        %v4354 = vsel %vm3617, %v4352, 0
        %4356 = vmatprep.subr.bf16.mxu0 0
        %4357 = vmatpush1.bf16.msra.mxu0 %v3615
        %4358 = vmatprep.subr.bf16.mxu0 0
        %4359 = vmatpush1.bf16.msra.mxu0 0
        %4360 = vmatprep.subr.bf16.mxu0 0
        %4361 = vmatpush1.bf16.msra.mxu0 0
        %4362 = vmatprep.subr.bf16.mxu0 0
        %4363 = vmatpush1.bf16.msra.mxu0 0
        %4364 = vmatprep.subr.bf16.mxu0 0
        %4365 = vmatpush1.bf16.msra.mxu0 0
        %4366 = vmatprep.subr.bf16.mxu0 0
        %4367 = vmatpush1.bf16.msra.mxu0 0
        %4368 = vmatprep.subr.bf16.mxu0 0
        %4369 = vmatpush1.bf16.msra.mxu0 0
        %4370 = vmatprep.subr.bf16.mxu0 0
        %4371 = vmatpush1.bf16.msra.mxu0 0
        %4372 = vmatprep.subr.bf16.mxu0 0
        %4373 = vmatpush1.bf16.msra.mxu0 0
        %4374 = vmatprep.subr.bf16.mxu0 0
        %4375 = vmatpush1.bf16.msra.mxu0 0
        %4376 = vmatprep.subr.bf16.mxu0 0
        %4377 = vmatpush1.bf16.msra.mxu0 0
        %4378 = vmatprep.subr.bf16.mxu0 0
        %4379 = vmatpush1.bf16.msra.mxu0 0
        %4380 = vmatprep.subr.bf16.mxu0 0
        %4381 = vmatpush1.bf16.msra.mxu0 0
        %4382 = vmatprep.subr.bf16.mxu0 0
        %4383 = vmatpush1.bf16.msra.mxu0 0
        %4384 = vmatprep.subr.bf16.mxu0 0
        %4385 = vmatpush1.bf16.msra.mxu0 0
        %4386 = vmatprep.subr.bf16.mxu0 0
        %4387 = vmatpush1.bf16.msra.mxu0 0
        %4388 = vmatprep.mubr.bf16.mxu0 0
        %4389 = vmatmul.mubr.bf16.gmra.mrb[0].mxu0 %v4354
        %v4390 = vpop.f32.mrb[0].mxu0
        %v4391 = vadd.f32 0.0, %v4390
        %v4392 = vpop.f32.mrb[0].mxu0
        %v4393 = vpop.f32.mrb[0].mxu0
        %v4394 = vpop.f32.mrb[0].mxu0
        %4395 = vdwg.mxu0
        %v4396 = vpack.c.bf16 %v4391, %v4391
        %s4397 = scalar_lea.vmem [#allocation7], 192
        %v4398 = vld [vmem:[%s4397] sm:$0xf]
        %v4399 = vld [vmem:[%s4397 + $0x4] sm:$0xf]
        %v4400 = vld [vmem:[%s4397 + $0x8] sm:$0xf]
        %v4401 = vld [vmem:[%s4397 + $0xc] sm:$0xf]
        %v4402 = vld [vmem:[%s4397 + $0x10] sm:$0xf]
        %v4403 = vld [vmem:[%s4397 + $0x14] sm:$0xf]
        %v4404 = vld [vmem:[%s4397 + $0x18] sm:$0xf]
        %v4405 = vld [vmem:[%s4397 + $0x1c] sm:$0xf]
        %v4414 = vunpack.c.l.b16 %v4398
        %v4415 = vunpack.c.l.b16 %v4399
        %v4416 = vunpack.c.l.b16 %v4400
        %v4417 = vunpack.c.l.b16 %v4401
        %v4418 = vunpack.c.l.b16 %v4402
        %v4419 = vunpack.c.l.b16 %v4403
        %v4420 = vunpack.c.l.b16 %v4404
        %v4421 = vunpack.c.l.b16 %v4405
        %v4422 = vpack.c.b16 %v4415, %v4414
        %v4423 = vpack.c.b16 %v4417, %v4416
        %v4424 = vpack.c.b16 %v4419, %v4418
        %v4425 = vpack.c.b16 %v4421, %v4420
        %v4431 = vsel %vm2571, %v4396, 0
        %4433 = vmatprep.subr.bf16.mxu0 0
        %4434 = vmatpush1.bf16.msra.mxu0 %v4422
        %4435 = vmatprep.subr.bf16.mxu0 0
        %4436 = vmatpush1.bf16.msra.mxu0 %v4423
        %4437 = vmatprep.subr.bf16.mxu0 0
        %4438 = vmatpush1.bf16.msra.mxu0 %v4424
        %4439 = vmatprep.subr.bf16.mxu0 0
        %4440 = vmatpush1.bf16.msra.mxu0 %v4425
        %4441 = vmatprep.subr.bf16.mxu0 0
        %4442 = vmatpush1.bf16.msra.mxu0 0
        %4443 = vmatprep.subr.bf16.mxu0 0
        %4444 = vmatpush1.bf16.msra.mxu0 0
        %4445 = vmatprep.subr.bf16.mxu0 0
        %4446 = vmatpush1.bf16.msra.mxu0 0
        %4447 = vmatprep.subr.bf16.mxu0 0
        %4448 = vmatpush1.bf16.msra.mxu0 0
        %4449 = vmatprep.subr.bf16.mxu0 0
        %4450 = vmatpush1.bf16.msra.mxu0 0
        %4451 = vmatprep.subr.bf16.mxu0 0
        %4452 = vmatpush1.bf16.msra.mxu0 0
        %4453 = vmatprep.subr.bf16.mxu0 0
        %4454 = vmatpush1.bf16.msra.mxu0 0
        %4455 = vmatprep.subr.bf16.mxu0 0
        %4456 = vmatpush1.bf16.msra.mxu0 0
        %4457 = vmatprep.subr.bf16.mxu0 0
        %4458 = vmatpush1.bf16.msra.mxu0 0
        %4459 = vmatprep.subr.bf16.mxu0 0
        %4460 = vmatpush1.bf16.msra.mxu0 0
        %4461 = vmatprep.subr.bf16.mxu0 0
        %4462 = vmatpush1.bf16.msra.mxu0 0
        %4463 = vmatprep.subr.bf16.mxu0 0
        %4464 = vmatpush1.bf16.msra.mxu0 0
        %4465 = vmatprep.mubr.bf16.mxu0 0
        %4466 = vmatmul.mubr.bf16.gmra.mrb[0].mxu0 %v4431
        %v4467 = vpop.f32.mrb[0].mxu0
        %v4468 = vadd.f32 0.0, %v4467
        %v4469 = vpop.f32.mrb[0].mxu0
        %v4470 = vpop.f32.mrb[0].mxu0
        %v4471 = vpop.f32.mrb[0].mxu0
        %4472 = vdwg.mxu0
        %v4473 = vadd.f32 %v4350, %v4468
        %s4474 = scalar_lea.vmem %s7, 14
        %v4475 = vld [vmem:[%s4474] sm:$0x3]
        %v4477 = vsel %vm3617, %v4475, 0
        %4479 = vmatprep.subr.bf16.mxu0 0
        %4480 = vmatpush1.bf16.msra.mxu0 %v3615
        %4481 = vmatprep.subr.bf16.mxu0 0
        %4482 = vmatpush1.bf16.msra.mxu0 0
        %4483 = vmatprep.subr.bf16.mxu0 0
        %4484 = vmatpush1.bf16.msra.mxu0 0
        %4485 = vmatprep.subr.bf16.mxu0 0
        %4486 = vmatpush1.bf16.msra.mxu0 0
        %4487 = vmatprep.subr.bf16.mxu0 0
        %4488 = vmatpush1.bf16.msra.mxu0 0
        %4489 = vmatprep.subr.bf16.mxu0 0
        %4490 = vmatpush1.bf16.msra.mxu0 0
        %4491 = vmatprep.subr.bf16.mxu0 0
        %4492 = vmatpush1.bf16.msra.mxu0 0
        %4493 = vmatprep.subr.bf16.mxu0 0
        %4494 = vmatpush1.bf16.msra.mxu0 0
        %4495 = vmatprep.subr.bf16.mxu0 0
        %4496 = vmatpush1.bf16.msra.mxu0 0
        %4497 = vmatprep.subr.bf16.mxu0 0
        %4498 = vmatpush1.bf16.msra.mxu0 0
        %4499 = vmatprep.subr.bf16.mxu0 0
        %4500 = vmatpush1.bf16.msra.mxu0 0
        %4501 = vmatprep.subr.bf16.mxu0 0
        %4502 = vmatpush1.bf16.msra.mxu0 0
        %4503 = vmatprep.subr.bf16.mxu0 0
        %4504 = vmatpush1.bf16.msra.mxu0 0
        %4505 = vmatprep.subr.bf16.mxu0 0
        %4506 = vmatpush1.bf16.msra.mxu0 0
        %4507 = vmatprep.subr.bf16.mxu0 0
        %4508 = vmatpush1.bf16.msra.mxu0 0
        %4509 = vmatprep.subr.bf16.mxu0 0
        %4510 = vmatpush1.bf16.msra.mxu0 0
        %4511 = vmatprep.mubr.bf16.mxu0 0
        %4512 = vmatmul.mubr.bf16.gmra.mrb[0].mxu0 %v4477
        %v4513 = vpop.f32.mrb[0].mxu0
        %v4514 = vadd.f32 0.0, %v4513
        %v4515 = vpop.f32.mrb[0].mxu0
        %v4516 = vpop.f32.mrb[0].mxu0
        %v4517 = vpop.f32.mrb[0].mxu0
        %4518 = vdwg.mxu0
        %v4519 = vpack.c.bf16 %v4514, %v4514
        %s4520 = scalar_lea.vmem [#allocation7], 224
        %v4521 = vld [vmem:[%s4520] sm:$0xf]
        %v4522 = vld [vmem:[%s4520 + $0x4] sm:$0xf]
        %v4523 = vld [vmem:[%s4520 + $0x8] sm:$0xf]
        %v4524 = vld [vmem:[%s4520 + $0xc] sm:$0xf]
        %v4525 = vld [vmem:[%s4520 + $0x10] sm:$0xf]
        %v4526 = vld [vmem:[%s4520 + $0x14] sm:$0xf]
        %v4527 = vld [vmem:[%s4520 + $0x18] sm:$0xf]
        %v4528 = vld [vmem:[%s4520 + $0x1c] sm:$0xf]
        %v4537 = vunpack.c.l.b16 %v4521
        %v4538 = vunpack.c.l.b16 %v4522
        %v4539 = vunpack.c.l.b16 %v4523
        %v4540 = vunpack.c.l.b16 %v4524
        %v4541 = vunpack.c.l.b16 %v4525
        %v4542 = vunpack.c.l.b16 %v4526
        %v4543 = vunpack.c.l.b16 %v4527
        %v4544 = vunpack.c.l.b16 %v4528
        %v4545 = vpack.c.b16 %v4538, %v4537
        %v4546 = vpack.c.b16 %v4540, %v4539
        %v4547 = vpack.c.b16 %v4542, %v4541
        %v4548 = vpack.c.b16 %v4544, %v4543
        %v4554 = vsel %vm2571, %v4519, 0
        %4556 = vmatprep.subr.bf16.mxu0 0
        %4557 = vmatpush1.bf16.msra.mxu0 %v4545
        %4558 = vmatprep.subr.bf16.mxu0 0
        %4559 = vmatpush1.bf16.msra.mxu0 %v4546
        %4560 = vmatprep.subr.bf16.mxu0 0
        %4561 = vmatpush1.bf16.msra.mxu0 %v4547
        %4562 = vmatprep.subr.bf16.mxu0 0
        %4563 = vmatpush1.bf16.msra.mxu0 %v4548
        %4564 = vmatprep.subr.bf16.mxu0 0
        %4565 = vmatpush1.bf16.msra.mxu0 0
        %4566 = vmatprep.subr.bf16.mxu0 0
        %4567 = vmatpush1.bf16.msra.mxu0 0
        %4568 = vmatprep.subr.bf16.mxu0 0
        %4569 = vmatpush1.bf16.msra.mxu0 0
        %4570 = vmatprep.subr.bf16.mxu0 0
        %4571 = vmatpush1.bf16.msra.mxu0 0
        %4572 = vmatprep.subr.bf16.mxu0 0
        %4573 = vmatpush1.bf16.msra.mxu0 0
        %4574 = vmatprep.subr.bf16.mxu0 0
        %4575 = vmatpush1.bf16.msra.mxu0 0
        %4576 = vmatprep.subr.bf16.mxu0 0
        %4577 = vmatpush1.bf16.msra.mxu0 0
        %4578 = vmatprep.subr.bf16.mxu0 0
        %4579 = vmatpush1.bf16.msra.mxu0 0
        %4580 = vmatprep.subr.bf16.mxu0 0
        %4581 = vmatpush1.bf16.msra.mxu0 0
        %4582 = vmatprep.subr.bf16.mxu0 0
        %4583 = vmatpush1.bf16.msra.mxu0 0
        %4584 = vmatprep.subr.bf16.mxu0 0
        %4585 = vmatpush1.bf16.msra.mxu0 0
        %4586 = vmatprep.subr.bf16.mxu0 0
        %4587 = vmatpush1.bf16.msra.mxu0 0
        %4588 = vmatprep.mubr.bf16.mxu0 0
        %4589 = vmatmul.mubr.bf16.gmra.mrb[0].mxu0 %v4554
        %v4590 = vpop.f32.mrb[0].mxu0
        %v4591 = vadd.f32 0.0, %v4590
        %v4592 = vpop.f32.mrb[0].mxu0
        %v4593 = vpop.f32.mrb[0].mxu0
        %v4594 = vpop.f32.mrb[0].mxu0
        %4595 = vdwg.mxu0
        %v4596 = vadd.f32 %v4473, %v4591
        %s4597 = scalar_lea.vmem %s7, 16
        %v4598 = vld [vmem:[%s4597] sm:$0x3]
        %v4600 = vsel %vm3617, %v4598, 0
        %4602 = vmatprep.subr.bf16.mxu0 0
        %4603 = vmatpush1.bf16.msra.mxu0 %v3615
        %4604 = vmatprep.subr.bf16.mxu0 0
        %4605 = vmatpush1.bf16.msra.mxu0 0
        %4606 = vmatprep.subr.bf16.mxu0 0
        %4607 = vmatpush1.bf16.msra.mxu0 0
        %4608 = vmatprep.subr.bf16.mxu0 0
        %4609 = vmatpush1.bf16.msra.mxu0 0
        %4610 = vmatprep.subr.bf16.mxu0 0
        %4611 = vmatpush1.bf16.msra.mxu0 0
        %4612 = vmatprep.subr.bf16.mxu0 0
        %4613 = vmatpush1.bf16.msra.mxu0 0
        %4614 = vmatprep.subr.bf16.mxu0 0
        %4615 = vmatpush1.bf16.msra.mxu0 0
        %4616 = vmatprep.subr.bf16.mxu0 0
        %4617 = vmatpush1.bf16.msra.mxu0 0
        %4618 = vmatprep.subr.bf16.mxu0 0
        %4619 = vmatpush1.bf16.msra.mxu0 0
        %4620 = vmatprep.subr.bf16.mxu0 0
        %4621 = vmatpush1.bf16.msra.mxu0 0
        %4622 = vmatprep.subr.bf16.mxu0 0
        %4623 = vmatpush1.bf16.msra.mxu0 0
        %4624 = vmatprep.subr.bf16.mxu0 0
        %4625 = vmatpush1.bf16.msra.mxu0 0
        %4626 = vmatprep.subr.bf16.mxu0 0
        %4627 = vmatpush1.bf16.msra.mxu0 0
        %4628 = vmatprep.subr.bf16.mxu0 0
        %4629 = vmatpush1.bf16.msra.mxu0 0
        %4630 = vmatprep.subr.bf16.mxu0 0
        %4631 = vmatpush1.bf16.msra.mxu0 0
        %4632 = vmatprep.subr.bf16.mxu0 0
        %4633 = vmatpush1.bf16.msra.mxu0 0
        %4634 = vmatprep.mubr.bf16.mxu0 0
        %4635 = vmatmul.mubr.bf16.gmra.mrb[0].mxu0 %v4600
        %v4636 = vpop.f32.mrb[0].mxu0
        %v4637 = vadd.f32 0.0, %v4636
        %v4638 = vpop.f32.mrb[0].mxu0
        %v4639 = vpop.f32.mrb[0].mxu0
        %v4640 = vpop.f32.mrb[0].mxu0
        %4641 = vdwg.mxu0
        %v4642 = vpack.c.bf16 %v4637, %v4637
        %s4643 = scalar_lea.vmem [#allocation7], 256
        %v4644 = vld [vmem:[%s4643] sm:$0xf]
        %v4645 = vld [vmem:[%s4643 + $0x4] sm:$0xf]
        %v4646 = vld [vmem:[%s4643 + $0x8] sm:$0xf]
        %v4647 = vld [vmem:[%s4643 + $0xc] sm:$0xf]
        %v4648 = vld [vmem:[%s4643 + $0x10] sm:$0xf]
        %v4649 = vld [vmem:[%s4643 + $0x14] sm:$0xf]
        %v4650 = vld [vmem:[%s4643 + $0x18] sm:$0xf]
        %v4651 = vld [vmem:[%s4643 + $0x1c] sm:$0xf]
        %v4660 = vunpack.c.l.b16 %v4644
        %v4661 = vunpack.c.l.b16 %v4645
        %v4662 = vunpack.c.l.b16 %v4646
        %v4663 = vunpack.c.l.b16 %v4647
        %v4664 = vunpack.c.l.b16 %v4648
        %v4665 = vunpack.c.l.b16 %v4649
        %v4666 = vunpack.c.l.b16 %v4650
        %v4667 = vunpack.c.l.b16 %v4651
        %v4668 = vpack.c.b16 %v4661, %v4660
        %v4669 = vpack.c.b16 %v4663, %v4662
        %v4670 = vpack.c.b16 %v4665, %v4664
        %v4671 = vpack.c.b16 %v4667, %v4666
        %v4677 = vsel %vm2571, %v4642, 0
        %4679 = vmatprep.subr.bf16.mxu0 0
        %4680 = vmatpush1.bf16.msra.mxu0 %v4668
        %4681 = vmatprep.subr.bf16.mxu0 0
        %4682 = vmatpush1.bf16.msra.mxu0 %v4669
        %4683 = vmatprep.subr.bf16.mxu0 0
        %4684 = vmatpush1.bf16.msra.mxu0 %v4670
        %4685 = vmatprep.subr.bf16.mxu0 0
        %4686 = vmatpush1.bf16.msra.mxu0 %v4671
        %4687 = vmatprep.subr.bf16.mxu0 0
        %4688 = vmatpush1.bf16.msra.mxu0 0
        %4689 = vmatprep.subr.bf16.mxu0 0
        %4690 = vmatpush1.bf16.msra.mxu0 0
        %4691 = vmatprep.subr.bf16.mxu0 0
        %4692 = vmatpush1.bf16.msra.mxu0 0
        %4693 = vmatprep.subr.bf16.mxu0 0
        %4694 = vmatpush1.bf16.msra.mxu0 0
        %4695 = vmatprep.subr.bf16.mxu0 0
        %4696 = vmatpush1.bf16.msra.mxu0 0
        %4697 = vmatprep.subr.bf16.mxu0 0
        %4698 = vmatpush1.bf16.msra.mxu0 0
        %4699 = vmatprep.subr.bf16.mxu0 0
        %4700 = vmatpush1.bf16.msra.mxu0 0
        %4701 = vmatprep.subr.bf16.mxu0 0
        %4702 = vmatpush1.bf16.msra.mxu0 0
        %4703 = vmatprep.subr.bf16.mxu0 0
        %4704 = vmatpush1.bf16.msra.mxu0 0
        %4705 = vmatprep.subr.bf16.mxu0 0
        %4706 = vmatpush1.bf16.msra.mxu0 0
        %4707 = vmatprep.subr.bf16.mxu0 0
        %4708 = vmatpush1.bf16.msra.mxu0 0
        %4709 = vmatprep.subr.bf16.mxu0 0
        %4710 = vmatpush1.bf16.msra.mxu0 0
        %4711 = vmatprep.mubr.bf16.mxu0 0
        %4712 = vmatmul.mubr.bf16.gmra.mrb[0].mxu0 %v4677
        %v4713 = vpop.f32.mrb[0].mxu0
        %v4714 = vadd.f32 0.0, %v4713
        %v4715 = vpop.f32.mrb[0].mxu0
        %v4716 = vpop.f32.mrb[0].mxu0
        %v4717 = vpop.f32.mrb[0].mxu0
        %4718 = vdwg.mxu0
        %v4719 = vadd.f32 %v4596, %v4714
        %v4720 = vld [vmem:[%s9] sm:$0x1]
        %v4722 = vlaneseq
        %v4723 = vshrl.u32 %v4722, 7
        %v4724 = vsub.s32 0, %v4723
        %v4725 = vrot.slane %v4720, %v4724
        %v4727 = vadd.f32 %v4719, %v4725
        %v4728 = vmax.f32 %v4727, 0.0
        %v4729 = vpack.c.bf16 %v4728, %v4728
        %v4730 = vld [vmem:[%s10] sm:$0x1]
        %vm4731 = vcmask 31744
        %v4733 = vsel %vm4731, %v4730, 0
        %vm4735 = vcmask 1041408
        %v4737 = vsel %vm4735, %v4729, 0
        %4739 = vmatprep.subr.bf16.mxu0 0
        %4740 = vmatpush1.bf16.msra.mxu0 %v4737
        %4741 = vmatprep.subr.bf16.mxu0 0
        %4742 = vmatpush1.bf16.msra.mxu0 0
        %4743 = vmatprep.subr.bf16.mxu0 0
        %4744 = vmatpush1.bf16.msra.mxu0 0
        %4745 = vmatprep.subr.bf16.mxu0 0
        %4746 = vmatpush1.bf16.msra.mxu0 0
        %4747 = vmatprep.subr.bf16.mxu0 0
        %4748 = vmatpush1.bf16.msra.mxu0 0
        %4749 = vmatprep.subr.bf16.mxu0 0
        %4750 = vmatpush1.bf16.msra.mxu0 0
        %4751 = vmatprep.subr.bf16.mxu0 0
        %4752 = vmatpush1.bf16.msra.mxu0 0
        %4753 = vmatprep.subr.bf16.mxu0 0
        %4754 = vmatpush1.bf16.msra.mxu0 0
        %4755 = vmatprep.subr.bf16.mxu0 0
        %4756 = vmatpush1.bf16.msra.mxu0 0
        %4757 = vmatprep.subr.bf16.mxu0 0
        %4758 = vmatpush1.bf16.msra.mxu0 0
        %4759 = vmatprep.subr.bf16.mxu0 0
        %4760 = vmatpush1.bf16.msra.mxu0 0
        %4761 = vmatprep.subr.bf16.mxu0 0
        %4762 = vmatpush1.bf16.msra.mxu0 0
        %4763 = vmatprep.subr.bf16.mxu0 0
        %4764 = vmatpush1.bf16.msra.mxu0 0
        %4765 = vmatprep.subr.bf16.mxu0 0
        %4766 = vmatpush1.bf16.msra.mxu0 0
        %4767 = vmatprep.subr.bf16.mxu0 0
        %4768 = vmatpush1.bf16.msra.mxu0 0
        %4769 = vmatprep.subr.bf16.mxu0 0
        %4770 = vmatpush1.bf16.msra.mxu0 0
        %4771 = vmatprep.mubr.bf16.mxu0 0
        %4772 = vmatmul.mubr.bf16.gmra.mrb[0].mxu0 %v4733
        %v4773 = vpop.f32.mrb[0].mxu0
        %v4774 = vadd.f32 0.0, %v4773
        %v4775 = vpop.f32.mrb[0].mxu0
        %v4776 = vpop.f32.mrb[0].mxu0
        %v4777 = vpop.f32.mrb[0].mxu0
        %4778 = vdwg.mxu0
        %v4779 = vpack.c.bf16 %v4774, %v4774
        %v4780 = vld [vmem:[#allocation8] sm:$0xf]
        %v4781 = vld [vmem:[#allocation8 + $0x4] sm:$0xf]
        %v4782 = vld [vmem:[#allocation8 + $0x8] sm:$0xf]
        %v4783 = vld [vmem:[#allocation8 + $0xc] sm:$0xf]
        %v4784 = vld [vmem:[#allocation8 + $0x10] sm:$0xf]
        %v4785 = vld [vmem:[#allocation8 + $0x14] sm:$0xf]
        %v4786 = vld [vmem:[#allocation8 + $0x18] sm:$0xf]
        %v4787 = vld [vmem:[#allocation8 + $0x1c] sm:$0xf]
        %s4788 = scalar_lea.vmem %s10, 1
        %v4789 = vld [vmem:[%s4788] sm:$0x1]
        %v4791 = vsel %vm4731, %v4789, 0
        %4793 = vmatprep.subr.bf16.mxu0 0
        %4794 = vmatpush1.bf16.msra.mxu0 %v4737
        %4795 = vmatprep.subr.bf16.mxu0 0
        %4796 = vmatpush1.bf16.msra.mxu0 0
        %4797 = vmatprep.subr.bf16.mxu0 0
        %4798 = vmatpush1.bf16.msra.mxu0 0
        %4799 = vmatprep.subr.bf16.mxu0 0
        %4800 = vmatpush1.bf16.msra.mxu0 0
        %4801 = vmatprep.subr.bf16.mxu0 0
        %4802 = vmatpush1.bf16.msra.mxu0 0
        %4803 = vmatprep.subr.bf16.mxu0 0
        %4804 = vmatpush1.bf16.msra.mxu0 0
        %4805 = vmatprep.subr.bf16.mxu0 0
        %4806 = vmatpush1.bf16.msra.mxu0 0
        %4807 = vmatprep.subr.bf16.mxu0 0
        %4808 = vmatpush1.bf16.msra.mxu0 0
        %4809 = vmatprep.subr.bf16.mxu0 0
        %4810 = vmatpush1.bf16.msra.mxu0 0
        %4811 = vmatprep.subr.bf16.mxu0 0
        %4812 = vmatpush1.bf16.msra.mxu0 0
        %4813 = vmatprep.subr.bf16.mxu0 0
        %4814 = vmatpush1.bf16.msra.mxu0 0
        %4815 = vmatprep.subr.bf16.mxu0 0
        %4816 = vmatpush1.bf16.msra.mxu0 0
        %4817 = vmatprep.subr.bf16.mxu0 0
        %4818 = vmatpush1.bf16.msra.mxu0 0
        %4819 = vmatprep.subr.bf16.mxu0 0
        %4820 = vmatpush1.bf16.msra.mxu0 0
        %4821 = vmatprep.subr.bf16.mxu0 0
        %4822 = vmatpush1.bf16.msra.mxu0 0
        %4823 = vmatprep.subr.bf16.mxu0 0
        %4824 = vmatpush1.bf16.msra.mxu0 0
        %4825 = vmatprep.mubr.bf16.mxu0 0
        %4826 = vmatmul.mubr.bf16.gmra.mrb[0].mxu0 %v4791
        %v4827 = vpop.f32.mrb[0].mxu0
        %v4828 = vadd.f32 0.0, %v4827
        %v4829 = vpop.f32.mrb[0].mxu0
        %v4830 = vpop.f32.mrb[0].mxu0
        %v4831 = vpop.f32.mrb[0].mxu0
        %4832 = vdwg.mxu0
        %v4833 = vpack.c.bf16 %v4828, %v4828
        %s4834 = scalar_lea.vmem [#allocation8], 32
        %v4835 = vld [vmem:[%s4834] sm:$0xf]
        %v4836 = vld [vmem:[%s4834 + $0x4] sm:$0xf]
        %v4837 = vld [vmem:[%s4834 + $0x8] sm:$0xf]
        %v4838 = vld [vmem:[%s4834 + $0xc] sm:$0xf]
        %v4839 = vld [vmem:[%s4834 + $0x10] sm:$0xf]
        %v4840 = vld [vmem:[%s4834 + $0x14] sm:$0xf]
        %v4841 = vld [vmem:[%s4834 + $0x18] sm:$0xf]
        %v4842 = vld [vmem:[%s4834 + $0x1c] sm:$0xf]
        %v4851 = vunpack.c.l.b16 %v4835
        %v4852 = vunpack.c.l.b16 %v4836
        %v4853 = vunpack.c.l.b16 %v4837
        %v4854 = vunpack.c.l.b16 %v4838
        %v4855 = vunpack.c.l.b16 %v4839
        %v4856 = vunpack.c.l.b16 %v4840
        %v4857 = vunpack.c.l.b16 %v4841
        %v4858 = vunpack.c.l.b16 %v4842
        %v4859 = vpack.c.b16 %v4852, %v4851
        %v4860 = vpack.c.b16 %v4854, %v4853
        %v4861 = vpack.c.b16 %v4856, %v4855
        %v4862 = vpack.c.b16 %v4858, %v4857
        %v4868 = vsel %vm2571, %v4833, 0
        %4870 = vmatprep.subr.bf16.mxu0 0
        %4871 = vmatpush1.bf16.msra.mxu0 %v4859
        %4872 = vmatprep.subr.bf16.mxu0 0
        %4873 = vmatpush1.bf16.msra.mxu0 %v4860
        %4874 = vmatprep.subr.bf16.mxu0 0
        %4875 = vmatpush1.bf16.msra.mxu0 %v4861
        %4876 = vmatprep.subr.bf16.mxu0 0
        %4877 = vmatpush1.bf16.msra.mxu0 %v4862
        %4878 = vmatprep.subr.bf16.mxu0 0
        %4879 = vmatpush1.bf16.msra.mxu0 0
        %4880 = vmatprep.subr.bf16.mxu0 0
        %4881 = vmatpush1.bf16.msra.mxu0 0
        %4882 = vmatprep.subr.bf16.mxu0 0
        %4883 = vmatpush1.bf16.msra.mxu0 0
        %4884 = vmatprep.subr.bf16.mxu0 0
        %4885 = vmatpush1.bf16.msra.mxu0 0
        %4886 = vmatprep.subr.bf16.mxu0 0
        %4887 = vmatpush1.bf16.msra.mxu0 0
        %4888 = vmatprep.subr.bf16.mxu0 0
        %4889 = vmatpush1.bf16.msra.mxu0 0
        %4890 = vmatprep.subr.bf16.mxu0 0
        %4891 = vmatpush1.bf16.msra.mxu0 0
        %4892 = vmatprep.subr.bf16.mxu0 0
        %4893 = vmatpush1.bf16.msra.mxu0 0
        %4894 = vmatprep.subr.bf16.mxu0 0
        %4895 = vmatpush1.bf16.msra.mxu0 0
        %4896 = vmatprep.subr.bf16.mxu0 0
        %4897 = vmatpush1.bf16.msra.mxu0 0
        %4898 = vmatprep.subr.bf16.mxu0 0
        %4899 = vmatpush1.bf16.msra.mxu0 0
        %4900 = vmatprep.subr.bf16.mxu0 0
        %4901 = vmatpush1.bf16.msra.mxu0 0
        %4902 = vmatprep.mubr.bf16.mxu0 0
        %4903 = vmatmul.mubr.bf16.gmra.mrb[0].mxu0 %v4868
        %v4904 = vpop.f32.mrb[0].mxu0
        %v4905 = vadd.f32 0.0, %v4904
        %v4906 = vpop.f32.mrb[0].mxu0
        %v4907 = vpop.f32.mrb[0].mxu0
        %v4908 = vpop.f32.mrb[0].mxu0
        %4909 = vdwg.mxu0
        %v4918 = vunpack.c.l.b16 %v4780
        %v4919 = vunpack.c.l.b16 %v4781
        %v4920 = vunpack.c.l.b16 %v4782
        %v4921 = vunpack.c.l.b16 %v4783
        %v4922 = vunpack.c.l.b16 %v4784
        %v4923 = vunpack.c.l.b16 %v4785
        %v4924 = vunpack.c.l.b16 %v4786
        %v4925 = vunpack.c.l.b16 %v4787
        %v4926 = vpack.c.b16 %v4919, %v4918
        %v4927 = vpack.c.b16 %v4921, %v4920
        %v4928 = vpack.c.b16 %v4923, %v4922
        %v4929 = vpack.c.b16 %v4925, %v4924
        %v4935 = vsel %vm2571, %v4779, 0
        %4937 = vmatprep.subr.bf16.mxu0 0
        %4938 = vmatpush1.bf16.msra.mxu0 %v4926
        %4939 = vmatprep.subr.bf16.mxu0 0
        %4940 = vmatpush1.bf16.msra.mxu0 %v4927
        %4941 = vmatprep.subr.bf16.mxu0 0
        %4942 = vmatpush1.bf16.msra.mxu0 %v4928
        %4943 = vmatprep.subr.bf16.mxu0 0
        %4944 = vmatpush1.bf16.msra.mxu0 %v4929
        %4945 = vmatprep.subr.bf16.mxu0 0
        %4946 = vmatpush1.bf16.msra.mxu0 0
        %4947 = vmatprep.subr.bf16.mxu0 0
        %4948 = vmatpush1.bf16.msra.mxu0 0
        %4949 = vmatprep.subr.bf16.mxu0 0
        %4950 = vmatpush1.bf16.msra.mxu0 0
        %4951 = vmatprep.subr.bf16.mxu0 0
        %4952 = vmatpush1.bf16.msra.mxu0 0
        %4953 = vmatprep.subr.bf16.mxu0 0
        %4954 = vmatpush1.bf16.msra.mxu0 0
        %4955 = vmatprep.subr.bf16.mxu0 0
        %4956 = vmatpush1.bf16.msra.mxu0 0
        %4957 = vmatprep.subr.bf16.mxu0 0
        %4958 = vmatpush1.bf16.msra.mxu0 0
        %4959 = vmatprep.subr.bf16.mxu0 0
        %4960 = vmatpush1.bf16.msra.mxu0 0
        %4961 = vmatprep.subr.bf16.mxu0 0
        %4962 = vmatpush1.bf16.msra.mxu0 0
        %4963 = vmatprep.subr.bf16.mxu0 0
        %4964 = vmatpush1.bf16.msra.mxu0 0
        %4965 = vmatprep.subr.bf16.mxu0 0
        %4966 = vmatpush1.bf16.msra.mxu0 0
        %4967 = vmatprep.subr.bf16.mxu0 0
        %4968 = vmatpush1.bf16.msra.mxu0 0
        %4969 = vmatprep.mubr.bf16.mxu0 0
        %4970 = vmatmul.mubr.bf16.gmra.mrb[0].mxu0 %v4935
        %v4971 = vpop.f32.mrb[0].mxu0
        %v4972 = vadd.f32 %v4905, %v4971
        %v4973 = vpop.f32.mrb[0].mxu0
        %v4974 = vpop.f32.mrb[0].mxu0
        %v4975 = vpop.f32.mrb[0].mxu0
        %4976 = vdwg.mxu0
        %s4977 = scalar_lea.vmem %s10, 2
        %v4978 = vld [vmem:[%s4977] sm:$0x1]
        %v4980 = vsel %vm4731, %v4978, 0
        %4982 = vmatprep.subr.bf16.mxu0 0
        %4983 = vmatpush1.bf16.msra.mxu0 %v4737
        %4984 = vmatprep.subr.bf16.mxu0 0
        %4985 = vmatpush1.bf16.msra.mxu0 0
        %4986 = vmatprep.subr.bf16.mxu0 0
        %4987 = vmatpush1.bf16.msra.mxu0 0
        %4988 = vmatprep.subr.bf16.mxu0 0
        %4989 = vmatpush1.bf16.msra.mxu0 0
        %4990 = vmatprep.subr.bf16.mxu0 0
        %4991 = vmatpush1.bf16.msra.mxu0 0
        %4992 = vmatprep.subr.bf16.mxu0 0
        %4993 = vmatpush1.bf16.msra.mxu0 0
        %4994 = vmatprep.subr.bf16.mxu0 0
        %4995 = vmatpush1.bf16.msra.mxu0 0
        %4996 = vmatprep.subr.bf16.mxu0 0
        %4997 = vmatpush1.bf16.msra.mxu0 0
        %4998 = vmatprep.subr.bf16.mxu0 0
        %4999 = vmatpush1.bf16.msra.mxu0 0
        %5000 = vmatprep.subr.bf16.mxu0 0
        %5001 = vmatpush1.bf16.msra.mxu0 0
        %5002 = vmatprep.subr.bf16.mxu0 0
        %5003 = vmatpush1.bf16.msra.mxu0 0
        %5004 = vmatprep.subr.bf16.mxu0 0
        %5005 = vmatpush1.bf16.msra.mxu0 0
        %5006 = vmatprep.subr.bf16.mxu0 0
        %5007 = vmatpush1.bf16.msra.mxu0 0
        %5008 = vmatprep.subr.bf16.mxu0 0
        %5009 = vmatpush1.bf16.msra.mxu0 0
        %5010 = vmatprep.subr.bf16.mxu0 0
        %5011 = vmatpush1.bf16.msra.mxu0 0
        %5012 = vmatprep.subr.bf16.mxu0 0
        %5013 = vmatpush1.bf16.msra.mxu0 0
        %5014 = vmatprep.mubr.bf16.mxu0 0
        %5015 = vmatmul.mubr.bf16.gmra.mrb[0].mxu0 %v4980
        %v5016 = vpop.f32.mrb[0].mxu0
        %v5017 = vadd.f32 0.0, %v5016
        %v5018 = vpop.f32.mrb[0].mxu0
        %v5019 = vpop.f32.mrb[0].mxu0
        %v5020 = vpop.f32.mrb[0].mxu0
        %5021 = vdwg.mxu0
        %v5022 = vpack.c.bf16 %v5017, %v5017
        %s5023 = scalar_lea.vmem [#allocation8], 64
        %v5024 = vld [vmem:[%s5023] sm:$0xf]
        %v5025 = vld [vmem:[%s5023 + $0x4] sm:$0xf]
        %v5026 = vld [vmem:[%s5023 + $0x8] sm:$0xf]
        %v5027 = vld [vmem:[%s5023 + $0xc] sm:$0xf]
        %v5028 = vld [vmem:[%s5023 + $0x10] sm:$0xf]
        %v5029 = vld [vmem:[%s5023 + $0x14] sm:$0xf]
        %v5030 = vld [vmem:[%s5023 + $0x18] sm:$0xf]
        %v5031 = vld [vmem:[%s5023 + $0x1c] sm:$0xf]
        %v5040 = vunpack.c.l.b16 %v5024
        %v5041 = vunpack.c.l.b16 %v5025
        %v5042 = vunpack.c.l.b16 %v5026
        %v5043 = vunpack.c.l.b16 %v5027
        %v5044 = vunpack.c.l.b16 %v5028
        %v5045 = vunpack.c.l.b16 %v5029
        %v5046 = vunpack.c.l.b16 %v5030
        %v5047 = vunpack.c.l.b16 %v5031
        %v5048 = vpack.c.b16 %v5041, %v5040
        %v5049 = vpack.c.b16 %v5043, %v5042
        %v5050 = vpack.c.b16 %v5045, %v5044
        %v5051 = vpack.c.b16 %v5047, %v5046
        %v5057 = vsel %vm2571, %v5022, 0
        %5059 = vmatprep.subr.bf16.mxu0 0
        %5060 = vmatpush1.bf16.msra.mxu0 %v5048
        %5061 = vmatprep.subr.bf16.mxu0 0
        %5062 = vmatpush1.bf16.msra.mxu0 %v5049
        %5063 = vmatprep.subr.bf16.mxu0 0
        %5064 = vmatpush1.bf16.msra.mxu0 %v5050
        %5065 = vmatprep.subr.bf16.mxu0 0
        %5066 = vmatpush1.bf16.msra.mxu0 %v5051
        %5067 = vmatprep.subr.bf16.mxu0 0
        %5068 = vmatpush1.bf16.msra.mxu0 0
        %5069 = vmatprep.subr.bf16.mxu0 0
        %5070 = vmatpush1.bf16.msra.mxu0 0
        %5071 = vmatprep.subr.bf16.mxu0 0
        %5072 = vmatpush1.bf16.msra.mxu0 0
        %5073 = vmatprep.subr.bf16.mxu0 0
        %5074 = vmatpush1.bf16.msra.mxu0 0
        %5075 = vmatprep.subr.bf16.mxu0 0
        %5076 = vmatpush1.bf16.msra.mxu0 0
        %5077 = vmatprep.subr.bf16.mxu0 0
        %5078 = vmatpush1.bf16.msra.mxu0 0
        %5079 = vmatprep.subr.bf16.mxu0 0
        %5080 = vmatpush1.bf16.msra.mxu0 0
        %5081 = vmatprep.subr.bf16.mxu0 0
        %5082 = vmatpush1.bf16.msra.mxu0 0
        %5083 = vmatprep.subr.bf16.mxu0 0
        %5084 = vmatpush1.bf16.msra.mxu0 0
        %5085 = vmatprep.subr.bf16.mxu0 0
        %5086 = vmatpush1.bf16.msra.mxu0 0
        %5087 = vmatprep.subr.bf16.mxu0 0
        %5088 = vmatpush1.bf16.msra.mxu0 0
        %5089 = vmatprep.subr.bf16.mxu0 0
        %5090 = vmatpush1.bf16.msra.mxu0 0
        %5091 = vmatprep.mubr.bf16.mxu0 0
        %5092 = vmatmul.mubr.bf16.gmra.mrb[0].mxu0 %v5057
        %v5093 = vpop.f32.mrb[0].mxu0
        %v5094 = vadd.f32 0.0, %v5093
        %v5095 = vpop.f32.mrb[0].mxu0
        %v5096 = vpop.f32.mrb[0].mxu0
        %v5097 = vpop.f32.mrb[0].mxu0
        %5098 = vdwg.mxu0
        %v5099 = vadd.f32 %v4972, %v5094
        %s5100 = scalar_lea.vmem %s10, 3
        %v5101 = vld [vmem:[%s5100] sm:$0x1]
        %v5103 = vsel %vm4731, %v5101, 0
        %5105 = vmatprep.subr.bf16.mxu0 0
        %5106 = vmatpush1.bf16.msra.mxu0 %v4737
        %5107 = vmatprep.subr.bf16.mxu0 0
        %5108 = vmatpush1.bf16.msra.mxu0 0
        %5109 = vmatprep.subr.bf16.mxu0 0
        %5110 = vmatpush1.bf16.msra.mxu0 0
        %5111 = vmatprep.subr.bf16.mxu0 0
        %5112 = vmatpush1.bf16.msra.mxu0 0
        %5113 = vmatprep.subr.bf16.mxu0 0
        %5114 = vmatpush1.bf16.msra.mxu0 0
        %5115 = vmatprep.subr.bf16.mxu0 0
        %5116 = vmatpush1.bf16.msra.mxu0 0
        %5117 = vmatprep.subr.bf16.mxu0 0
        %5118 = vmatpush1.bf16.msra.mxu0 0
        %5119 = vmatprep.subr.bf16.mxu0 0
        %5120 = vmatpush1.bf16.msra.mxu0 0
        %5121 = vmatprep.subr.bf16.mxu0 0
        %5122 = vmatpush1.bf16.msra.mxu0 0
        %5123 = vmatprep.subr.bf16.mxu0 0
        %5124 = vmatpush1.bf16.msra.mxu0 0
        %5125 = vmatprep.subr.bf16.mxu0 0
        %5126 = vmatpush1.bf16.msra.mxu0 0
        %5127 = vmatprep.subr.bf16.mxu0 0
        %5128 = vmatpush1.bf16.msra.mxu0 0
        %5129 = vmatprep.subr.bf16.mxu0 0
        %5130 = vmatpush1.bf16.msra.mxu0 0
        %5131 = vmatprep.subr.bf16.mxu0 0
        %5132 = vmatpush1.bf16.msra.mxu0 0
        %5133 = vmatprep.subr.bf16.mxu0 0
        %5134 = vmatpush1.bf16.msra.mxu0 0
        %5135 = vmatprep.subr.bf16.mxu0 0
        %5136 = vmatpush1.bf16.msra.mxu0 0
        %5137 = vmatprep.mubr.bf16.mxu0 0
        %5138 = vmatmul.mubr.bf16.gmra.mrb[0].mxu0 %v5103
        %v5139 = vpop.f32.mrb[0].mxu0
        %v5140 = vadd.f32 0.0, %v5139
        %v5141 = vpop.f32.mrb[0].mxu0
        %v5142 = vpop.f32.mrb[0].mxu0
        %v5143 = vpop.f32.mrb[0].mxu0
        %5144 = vdwg.mxu0
        %v5145 = vpack.c.bf16 %v5140, %v5140
        %s5146 = scalar_lea.vmem [#allocation8], 96
        %v5147 = vld [vmem:[%s5146] sm:$0xf]
        %v5148 = vld [vmem:[%s5146 + $0x4] sm:$0xf]
        %v5149 = vld [vmem:[%s5146 + $0x8] sm:$0xf]
        %v5150 = vld [vmem:[%s5146 + $0xc] sm:$0xf]
        %v5151 = vld [vmem:[%s5146 + $0x10] sm:$0xf]
        %v5152 = vld [vmem:[%s5146 + $0x14] sm:$0xf]
        %v5153 = vld [vmem:[%s5146 + $0x18] sm:$0xf]
        %v5154 = vld [vmem:[%s5146 + $0x1c] sm:$0xf]
        %v5163 = vunpack.c.l.b16 %v5147
        %v5164 = vunpack.c.l.b16 %v5148
        %v5165 = vunpack.c.l.b16 %v5149
        %v5166 = vunpack.c.l.b16 %v5150
        %v5167 = vunpack.c.l.b16 %v5151
        %v5168 = vunpack.c.l.b16 %v5152
        %v5169 = vunpack.c.l.b16 %v5153
        %v5170 = vunpack.c.l.b16 %v5154
        %v5171 = vpack.c.b16 %v5164, %v5163
        %v5172 = vpack.c.b16 %v5166, %v5165
        %v5173 = vpack.c.b16 %v5168, %v5167
        %v5174 = vpack.c.b16 %v5170, %v5169
        %v5180 = vsel %vm2571, %v5145, 0
        %5182 = vmatprep.subr.bf16.mxu0 0
        %5183 = vmatpush1.bf16.msra.mxu0 %v5171
        %5184 = vmatprep.subr.bf16.mxu0 0
        %5185 = vmatpush1.bf16.msra.mxu0 %v5172
        %5186 = vmatprep.subr.bf16.mxu0 0
        %5187 = vmatpush1.bf16.msra.mxu0 %v5173
        %5188 = vmatprep.subr.bf16.mxu0 0
        %5189 = vmatpush1.bf16.msra.mxu0 %v5174
        %5190 = vmatprep.subr.bf16.mxu0 0
        %5191 = vmatpush1.bf16.msra.mxu0 0
        %5192 = vmatprep.subr.bf16.mxu0 0
        %5193 = vmatpush1.bf16.msra.mxu0 0
        %5194 = vmatprep.subr.bf16.mxu0 0
        %5195 = vmatpush1.bf16.msra.mxu0 0
        %5196 = vmatprep.subr.bf16.mxu0 0
        %5197 = vmatpush1.bf16.msra.mxu0 0
        %5198 = vmatprep.subr.bf16.mxu0 0
        %5199 = vmatpush1.bf16.msra.mxu0 0
        %5200 = vmatprep.subr.bf16.mxu0 0
        %5201 = vmatpush1.bf16.msra.mxu0 0
        %5202 = vmatprep.subr.bf16.mxu0 0
        %5203 = vmatpush1.bf16.msra.mxu0 0
        %5204 = vmatprep.subr.bf16.mxu0 0
        %5205 = vmatpush1.bf16.msra.mxu0 0
        %5206 = vmatprep.subr.bf16.mxu0 0
        %5207 = vmatpush1.bf16.msra.mxu0 0
        %5208 = vmatprep.subr.bf16.mxu0 0
        %5209 = vmatpush1.bf16.msra.mxu0 0
        %5210 = vmatprep.subr.bf16.mxu0 0
        %5211 = vmatpush1.bf16.msra.mxu0 0
        %5212 = vmatprep.subr.bf16.mxu0 0
        %5213 = vmatpush1.bf16.msra.mxu0 0
        %5214 = vmatprep.mubr.bf16.mxu0 0
        %5215 = vmatmul.mubr.bf16.gmra.mrb[0].mxu0 %v5180
        %v5216 = vpop.f32.mrb[0].mxu0
        %v5217 = vadd.f32 0.0, %v5216
        %v5218 = vpop.f32.mrb[0].mxu0
        %v5219 = vpop.f32.mrb[0].mxu0
        %v5220 = vpop.f32.mrb[0].mxu0
        %5221 = vdwg.mxu0
        %v5222 = vadd.f32 %v5099, %v5217
        %s5223 = scalar_lea.vmem %s10, 4
        %v5224 = vld [vmem:[%s5223] sm:$0x1]
        %v5226 = vsel %vm4731, %v5224, 0
        %5228 = vmatprep.subr.bf16.mxu0 0
        %5229 = vmatpush1.bf16.msra.mxu0 %v4737
        %5230 = vmatprep.subr.bf16.mxu0 0
        %5231 = vmatpush1.bf16.msra.mxu0 0
        %5232 = vmatprep.subr.bf16.mxu0 0
        %5233 = vmatpush1.bf16.msra.mxu0 0
        %5234 = vmatprep.subr.bf16.mxu0 0
        %5235 = vmatpush1.bf16.msra.mxu0 0
        %5236 = vmatprep.subr.bf16.mxu0 0
        %5237 = vmatpush1.bf16.msra.mxu0 0
        %5238 = vmatprep.subr.bf16.mxu0 0
        %5239 = vmatpush1.bf16.msra.mxu0 0
        %5240 = vmatprep.subr.bf16.mxu0 0
        %5241 = vmatpush1.bf16.msra.mxu0 0
        %5242 = vmatprep.subr.bf16.mxu0 0
        %5243 = vmatpush1.bf16.msra.mxu0 0
        %5244 = vmatprep.subr.bf16.mxu0 0
        %5245 = vmatpush1.bf16.msra.mxu0 0
        %5246 = vmatprep.subr.bf16.mxu0 0
        %5247 = vmatpush1.bf16.msra.mxu0 0
        %5248 = vmatprep.subr.bf16.mxu0 0
        %5249 = vmatpush1.bf16.msra.mxu0 0
        %5250 = vmatprep.subr.bf16.mxu0 0
        %5251 = vmatpush1.bf16.msra.mxu0 0
        %5252 = vmatprep.subr.bf16.mxu0 0
        %5253 = vmatpush1.bf16.msra.mxu0 0
        %5254 = vmatprep.subr.bf16.mxu0 0
        %5255 = vmatpush1.bf16.msra.mxu0 0
        %5256 = vmatprep.subr.bf16.mxu0 0
        %5257 = vmatpush1.bf16.msra.mxu0 0
        %5258 = vmatprep.subr.bf16.mxu0 0
        %5259 = vmatpush1.bf16.msra.mxu0 0
        %5260 = vmatprep.mubr.bf16.mxu0 0
        %5261 = vmatmul.mubr.bf16.gmra.mrb[0].mxu0 %v5226
        %v5262 = vpop.f32.mrb[0].mxu0
        %v5263 = vadd.f32 0.0, %v5262
        %v5264 = vpop.f32.mrb[0].mxu0
        %v5265 = vpop.f32.mrb[0].mxu0
        %v5266 = vpop.f32.mrb[0].mxu0
        %5267 = vdwg.mxu0
        %v5268 = vpack.c.bf16 %v5263, %v5263
        %s5269 = scalar_lea.vmem [#allocation8], 128
        %v5270 = vld [vmem:[%s5269] sm:$0xf]
        %v5271 = vld [vmem:[%s5269 + $0x4] sm:$0xf]
        %v5272 = vld [vmem:[%s5269 + $0x8] sm:$0xf]
        %v5273 = vld [vmem:[%s5269 + $0xc] sm:$0xf]
        %v5274 = vld [vmem:[%s5269 + $0x10] sm:$0xf]
        %v5275 = vld [vmem:[%s5269 + $0x14] sm:$0xf]
        %v5276 = vld [vmem:[%s5269 + $0x18] sm:$0xf]
        %v5277 = vld [vmem:[%s5269 + $0x1c] sm:$0xf]
        %v5286 = vunpack.c.l.b16 %v5270
        %v5287 = vunpack.c.l.b16 %v5271
        %v5288 = vunpack.c.l.b16 %v5272
        %v5289 = vunpack.c.l.b16 %v5273
        %v5290 = vunpack.c.l.b16 %v5274
        %v5291 = vunpack.c.l.b16 %v5275
        %v5292 = vunpack.c.l.b16 %v5276
        %v5293 = vunpack.c.l.b16 %v5277
        %v5294 = vpack.c.b16 %v5287, %v5286
        %v5295 = vpack.c.b16 %v5289, %v5288
        %v5296 = vpack.c.b16 %v5291, %v5290
        %v5297 = vpack.c.b16 %v5293, %v5292
        %v5303 = vsel %vm2571, %v5268, 0
        %5305 = vmatprep.subr.bf16.mxu0 0
        %5306 = vmatpush1.bf16.msra.mxu0 %v5294
        %5307 = vmatprep.subr.bf16.mxu0 0
        %5308 = vmatpush1.bf16.msra.mxu0 %v5295
        %5309 = vmatprep.subr.bf16.mxu0 0
        %5310 = vmatpush1.bf16.msra.mxu0 %v5296
        %5311 = vmatprep.subr.bf16.mxu0 0
        %5312 = vmatpush1.bf16.msra.mxu0 %v5297
        %5313 = vmatprep.subr.bf16.mxu0 0
        %5314 = vmatpush1.bf16.msra.mxu0 0
        %5315 = vmatprep.subr.bf16.mxu0 0
        %5316 = vmatpush1.bf16.msra.mxu0 0
        %5317 = vmatprep.subr.bf16.mxu0 0
        %5318 = vmatpush1.bf16.msra.mxu0 0
        %5319 = vmatprep.subr.bf16.mxu0 0
        %5320 = vmatpush1.bf16.msra.mxu0 0
        %5321 = vmatprep.subr.bf16.mxu0 0
        %5322 = vmatpush1.bf16.msra.mxu0 0
        %5323 = vmatprep.subr.bf16.mxu0 0
        %5324 = vmatpush1.bf16.msra.mxu0 0
        %5325 = vmatprep.subr.bf16.mxu0 0
        %5326 = vmatpush1.bf16.msra.mxu0 0
        %5327 = vmatprep.subr.bf16.mxu0 0
        %5328 = vmatpush1.bf16.msra.mxu0 0
        %5329 = vmatprep.subr.bf16.mxu0 0
        %5330 = vmatpush1.bf16.msra.mxu0 0
        %5331 = vmatprep.subr.bf16.mxu0 0
        %5332 = vmatpush1.bf16.msra.mxu0 0
        %5333 = vmatprep.subr.bf16.mxu0 0
        %5334 = vmatpush1.bf16.msra.mxu0 0
        %5335 = vmatprep.subr.bf16.mxu0 0
        %5336 = vmatpush1.bf16.msra.mxu0 0
        %5337 = vmatprep.mubr.bf16.mxu0 0
        %5338 = vmatmul.mubr.bf16.gmra.mrb[0].mxu0 %v5303
        %v5339 = vpop.f32.mrb[0].mxu0
        %v5340 = vadd.f32 0.0, %v5339
        %v5341 = vpop.f32.mrb[0].mxu0
        %v5342 = vpop.f32.mrb[0].mxu0
        %v5343 = vpop.f32.mrb[0].mxu0
        %5344 = vdwg.mxu0
        %v5345 = vadd.f32 %v5222, %v5340
        %s5346 = scalar_lea.vmem %s10, 5
        %v5347 = vld [vmem:[%s5346] sm:$0x1]
        %v5349 = vsel %vm4731, %v5347, 0
        %5351 = vmatprep.subr.bf16.mxu0 0
        %5352 = vmatpush1.bf16.msra.mxu0 %v4737
        %5353 = vmatprep.subr.bf16.mxu0 0
        %5354 = vmatpush1.bf16.msra.mxu0 0
        %5355 = vmatprep.subr.bf16.mxu0 0
        %5356 = vmatpush1.bf16.msra.mxu0 0
        %5357 = vmatprep.subr.bf16.mxu0 0
        %5358 = vmatpush1.bf16.msra.mxu0 0
        %5359 = vmatprep.subr.bf16.mxu0 0
        %5360 = vmatpush1.bf16.msra.mxu0 0
        %5361 = vmatprep.subr.bf16.mxu0 0
        %5362 = vmatpush1.bf16.msra.mxu0 0
        %5363 = vmatprep.subr.bf16.mxu0 0
        %5364 = vmatpush1.bf16.msra.mxu0 0
        %5365 = vmatprep.subr.bf16.mxu0 0
        %5366 = vmatpush1.bf16.msra.mxu0 0
        %5367 = vmatprep.subr.bf16.mxu0 0
        %5368 = vmatpush1.bf16.msra.mxu0 0
        %5369 = vmatprep.subr.bf16.mxu0 0
        %5370 = vmatpush1.bf16.msra.mxu0 0
        %5371 = vmatprep.subr.bf16.mxu0 0
        %5372 = vmatpush1.bf16.msra.mxu0 0
        %5373 = vmatprep.subr.bf16.mxu0 0
        %5374 = vmatpush1.bf16.msra.mxu0 0
        %5375 = vmatprep.subr.bf16.mxu0 0
        %5376 = vmatpush1.bf16.msra.mxu0 0
        %5377 = vmatprep.subr.bf16.mxu0 0
        %5378 = vmatpush1.bf16.msra.mxu0 0
        %5379 = vmatprep.subr.bf16.mxu0 0
        %5380 = vmatpush1.bf16.msra.mxu0 0
        %5381 = vmatprep.subr.bf16.mxu0 0
        %5382 = vmatpush1.bf16.msra.mxu0 0
        %5383 = vmatprep.mubr.bf16.mxu0 0
        %5384 = vmatmul.mubr.bf16.gmra.mrb[0].mxu0 %v5349
        %v5385 = vpop.f32.mrb[0].mxu0
        %v5386 = vadd.f32 0.0, %v5385
        %v5387 = vpop.f32.mrb[0].mxu0
        %v5388 = vpop.f32.mrb[0].mxu0
        %v5389 = vpop.f32.mrb[0].mxu0
        %5390 = vdwg.mxu0
        %v5391 = vpack.c.bf16 %v5386, %v5386
        %s5392 = scalar_lea.vmem [#allocation8], 160
        %v5393 = vld [vmem:[%s5392] sm:$0xf]
        %v5394 = vld [vmem:[%s5392 + $0x4] sm:$0xf]
        %v5395 = vld [vmem:[%s5392 + $0x8] sm:$0xf]
        %v5396 = vld [vmem:[%s5392 + $0xc] sm:$0xf]
        %v5397 = vld [vmem:[%s5392 + $0x10] sm:$0xf]
        %v5398 = vld [vmem:[%s5392 + $0x14] sm:$0xf]
        %v5399 = vld [vmem:[%s5392 + $0x18] sm:$0xf]
        %v5400 = vld [vmem:[%s5392 + $0x1c] sm:$0xf]
        %v5409 = vunpack.c.l.b16 %v5393
        %v5410 = vunpack.c.l.b16 %v5394
        %v5411 = vunpack.c.l.b16 %v5395
        %v5412 = vunpack.c.l.b16 %v5396
        %v5413 = vunpack.c.l.b16 %v5397
        %v5414 = vunpack.c.l.b16 %v5398
        %v5415 = vunpack.c.l.b16 %v5399
        %v5416 = vunpack.c.l.b16 %v5400
        %v5417 = vpack.c.b16 %v5410, %v5409
        %v5418 = vpack.c.b16 %v5412, %v5411
        %v5419 = vpack.c.b16 %v5414, %v5413
        %v5420 = vpack.c.b16 %v5416, %v5415
        %v5426 = vsel %vm2571, %v5391, 0
        %5428 = vmatprep.subr.bf16.mxu0 0
        %5429 = vmatpush1.bf16.msra.mxu0 %v5417
        %5430 = vmatprep.subr.bf16.mxu0 0
        %5431 = vmatpush1.bf16.msra.mxu0 %v5418
        %5432 = vmatprep.subr.bf16.mxu0 0
        %5433 = vmatpush1.bf16.msra.mxu0 %v5419
        %5434 = vmatprep.subr.bf16.mxu0 0
        %5435 = vmatpush1.bf16.msra.mxu0 %v5420
        %5436 = vmatprep.subr.bf16.mxu0 0
        %5437 = vmatpush1.bf16.msra.mxu0 0
        %5438 = vmatprep.subr.bf16.mxu0 0
        %5439 = vmatpush1.bf16.msra.mxu0 0
        %5440 = vmatprep.subr.bf16.mxu0 0
        %5441 = vmatpush1.bf16.msra.mxu0 0
        %5442 = vmatprep.subr.bf16.mxu0 0
        %5443 = vmatpush1.bf16.msra.mxu0 0
        %5444 = vmatprep.subr.bf16.mxu0 0
        %5445 = vmatpush1.bf16.msra.mxu0 0
        %5446 = vmatprep.subr.bf16.mxu0 0
        %5447 = vmatpush1.bf16.msra.mxu0 0
        %5448 = vmatprep.subr.bf16.mxu0 0
        %5449 = vmatpush1.bf16.msra.mxu0 0
        %5450 = vmatprep.subr.bf16.mxu0 0
        %5451 = vmatpush1.bf16.msra.mxu0 0
        %5452 = vmatprep.subr.bf16.mxu0 0
        %5453 = vmatpush1.bf16.msra.mxu0 0
        %5454 = vmatprep.subr.bf16.mxu0 0
        %5455 = vmatpush1.bf16.msra.mxu0 0
        %5456 = vmatprep.subr.bf16.mxu0 0
        %5457 = vmatpush1.bf16.msra.mxu0 0
        %5458 = vmatprep.subr.bf16.mxu0 0
        %5459 = vmatpush1.bf16.msra.mxu0 0
        %5460 = vmatprep.mubr.bf16.mxu0 0
        %5461 = vmatmul.mubr.bf16.gmra.mrb[0].mxu0 %v5426
        %v5462 = vpop.f32.mrb[0].mxu0
        %v5463 = vadd.f32 0.0, %v5462
        %v5464 = vpop.f32.mrb[0].mxu0
        %v5465 = vpop.f32.mrb[0].mxu0
        %v5466 = vpop.f32.mrb[0].mxu0
        %5467 = vdwg.mxu0
        %v5468 = vadd.f32 %v5345, %v5463
        %s5469 = scalar_lea.vmem %s10, 6
        %v5470 = vld [vmem:[%s5469] sm:$0x1]
        %v5472 = vsel %vm4731, %v5470, 0
        %5474 = vmatprep.subr.bf16.mxu0 0
        %5475 = vmatpush1.bf16.msra.mxu0 %v4737
        %5476 = vmatprep.subr.bf16.mxu0 0
        %5477 = vmatpush1.bf16.msra.mxu0 0
        %5478 = vmatprep.subr.bf16.mxu0 0
        %5479 = vmatpush1.bf16.msra.mxu0 0
        %5480 = vmatprep.subr.bf16.mxu0 0
        %5481 = vmatpush1.bf16.msra.mxu0 0
        %5482 = vmatprep.subr.bf16.mxu0 0
        %5483 = vmatpush1.bf16.msra.mxu0 0
        %5484 = vmatprep.subr.bf16.mxu0 0
        %5485 = vmatpush1.bf16.msra.mxu0 0
        %5486 = vmatprep.subr.bf16.mxu0 0
        %5487 = vmatpush1.bf16.msra.mxu0 0
        %5488 = vmatprep.subr.bf16.mxu0 0
        %5489 = vmatpush1.bf16.msra.mxu0 0
        %5490 = vmatprep.subr.bf16.mxu0 0
        %5491 = vmatpush1.bf16.msra.mxu0 0
        %5492 = vmatprep.subr.bf16.mxu0 0
        %5493 = vmatpush1.bf16.msra.mxu0 0
        %5494 = vmatprep.subr.bf16.mxu0 0
        %5495 = vmatpush1.bf16.msra.mxu0 0
        %5496 = vmatprep.subr.bf16.mxu0 0
        %5497 = vmatpush1.bf16.msra.mxu0 0
        %5498 = vmatprep.subr.bf16.mxu0 0
        %5499 = vmatpush1.bf16.msra.mxu0 0
        %5500 = vmatprep.subr.bf16.mxu0 0
        %5501 = vmatpush1.bf16.msra.mxu0 0
        %5502 = vmatprep.subr.bf16.mxu0 0
        %5503 = vmatpush1.bf16.msra.mxu0 0
        %5504 = vmatprep.subr.bf16.mxu0 0
        %5505 = vmatpush1.bf16.msra.mxu0 0
        %5506 = vmatprep.mubr.bf16.mxu0 0
        %5507 = vmatmul.mubr.bf16.gmra.mrb[0].mxu0 %v5472
        %v5508 = vpop.f32.mrb[0].mxu0
        %v5509 = vadd.f32 0.0, %v5508
        %v5510 = vpop.f32.mrb[0].mxu0
        %v5511 = vpop.f32.mrb[0].mxu0
        %v5512 = vpop.f32.mrb[0].mxu0
        %5513 = vdwg.mxu0
        %v5514 = vpack.c.bf16 %v5509, %v5509
        %s5515 = scalar_lea.vmem [#allocation8], 192
        %v5516 = vld [vmem:[%s5515] sm:$0xf]
        %v5517 = vld [vmem:[%s5515 + $0x4] sm:$0xf]
        %v5518 = vld [vmem:[%s5515 + $0x8] sm:$0xf]
        %v5519 = vld [vmem:[%s5515 + $0xc] sm:$0xf]
        %v5520 = vld [vmem:[%s5515 + $0x10] sm:$0xf]
        %v5521 = vld [vmem:[%s5515 + $0x14] sm:$0xf]
        %v5522 = vld [vmem:[%s5515 + $0x18] sm:$0xf]
        %v5523 = vld [vmem:[%s5515 + $0x1c] sm:$0xf]
        %v5532 = vunpack.c.l.b16 %v5516
        %v5533 = vunpack.c.l.b16 %v5517
        %v5534 = vunpack.c.l.b16 %v5518
        %v5535 = vunpack.c.l.b16 %v5519
        %v5536 = vunpack.c.l.b16 %v5520
        %v5537 = vunpack.c.l.b16 %v5521
        %v5538 = vunpack.c.l.b16 %v5522
        %v5539 = vunpack.c.l.b16 %v5523
        %v5540 = vpack.c.b16 %v5533, %v5532
        %v5541 = vpack.c.b16 %v5535, %v5534
        %v5542 = vpack.c.b16 %v5537, %v5536
        %v5543 = vpack.c.b16 %v5539, %v5538
        %v5549 = vsel %vm2571, %v5514, 0
        %5551 = vmatprep.subr.bf16.mxu0 0
        %5552 = vmatpush1.bf16.msra.mxu0 %v5540
        %5553 = vmatprep.subr.bf16.mxu0 0
        %5554 = vmatpush1.bf16.msra.mxu0 %v5541
        %5555 = vmatprep.subr.bf16.mxu0 0
        %5556 = vmatpush1.bf16.msra.mxu0 %v5542
        %5557 = vmatprep.subr.bf16.mxu0 0
        %5558 = vmatpush1.bf16.msra.mxu0 %v5543
        %5559 = vmatprep.subr.bf16.mxu0 0
        %5560 = vmatpush1.bf16.msra.mxu0 0
        %5561 = vmatprep.subr.bf16.mxu0 0
        %5562 = vmatpush1.bf16.msra.mxu0 0
        %5563 = vmatprep.subr.bf16.mxu0 0
        %5564 = vmatpush1.bf16.msra.mxu0 0
        %5565 = vmatprep.subr.bf16.mxu0 0
        %5566 = vmatpush1.bf16.msra.mxu0 0
        %5567 = vmatprep.subr.bf16.mxu0 0
        %5568 = vmatpush1.bf16.msra.mxu0 0
        %5569 = vmatprep.subr.bf16.mxu0 0
        %5570 = vmatpush1.bf16.msra.mxu0 0
        %5571 = vmatprep.subr.bf16.mxu0 0
        %5572 = vmatpush1.bf16.msra.mxu0 0
        %5573 = vmatprep.subr.bf16.mxu0 0
        %5574 = vmatpush1.bf16.msra.mxu0 0
        %5575 = vmatprep.subr.bf16.mxu0 0
        %5576 = vmatpush1.bf16.msra.mxu0 0
        %5577 = vmatprep.subr.bf16.mxu0 0
        %5578 = vmatpush1.bf16.msra.mxu0 0
        %5579 = vmatprep.subr.bf16.mxu0 0
        %5580 = vmatpush1.bf16.msra.mxu0 0
        %5581 = vmatprep.subr.bf16.mxu0 0
        %5582 = vmatpush1.bf16.msra.mxu0 0
        %5583 = vmatprep.mubr.bf16.mxu0 0
        %5584 = vmatmul.mubr.bf16.gmra.mrb[0].mxu0 %v5549
        %v5585 = vpop.f32.mrb[0].mxu0
        %v5586 = vadd.f32 0.0, %v5585
        %v5587 = vpop.f32.mrb[0].mxu0
        %v5588 = vpop.f32.mrb[0].mxu0
        %v5589 = vpop.f32.mrb[0].mxu0
        %5590 = vdwg.mxu0
        %v5591 = vadd.f32 %v5468, %v5586
        %s5592 = scalar_lea.vmem %s10, 7
        %v5593 = vld [vmem:[%s5592] sm:$0x1]
        %v5595 = vsel %vm4731, %v5593, 0
        %5597 = vmatprep.subr.bf16.mxu0 0
        %5598 = vmatpush1.bf16.msra.mxu0 %v4737
        %5599 = vmatprep.subr.bf16.mxu0 0
        %5600 = vmatpush1.bf16.msra.mxu0 0
        %5601 = vmatprep.subr.bf16.mxu0 0
        %5602 = vmatpush1.bf16.msra.mxu0 0
        %5603 = vmatprep.subr.bf16.mxu0 0
        %5604 = vmatpush1.bf16.msra.mxu0 0
        %5605 = vmatprep.subr.bf16.mxu0 0
        %5606 = vmatpush1.bf16.msra.mxu0 0
        %5607 = vmatprep.subr.bf16.mxu0 0
        %5608 = vmatpush1.bf16.msra.mxu0 0
        %5609 = vmatprep.subr.bf16.mxu0 0
        %5610 = vmatpush1.bf16.msra.mxu0 0
        %5611 = vmatprep.subr.bf16.mxu0 0
        %5612 = vmatpush1.bf16.msra.mxu0 0
        %5613 = vmatprep.subr.bf16.mxu0 0
        %5614 = vmatpush1.bf16.msra.mxu0 0
        %5615 = vmatprep.subr.bf16.mxu0 0
        %5616 = vmatpush1.bf16.msra.mxu0 0
        %5617 = vmatprep.subr.bf16.mxu0 0
        %5618 = vmatpush1.bf16.msra.mxu0 0
        %5619 = vmatprep.subr.bf16.mxu0 0
        %5620 = vmatpush1.bf16.msra.mxu0 0
        %5621 = vmatprep.subr.bf16.mxu0 0
        %5622 = vmatpush1.bf16.msra.mxu0 0
        %5623 = vmatprep.subr.bf16.mxu0 0
        %5624 = vmatpush1.bf16.msra.mxu0 0
        %5625 = vmatprep.subr.bf16.mxu0 0
        %5626 = vmatpush1.bf16.msra.mxu0 0
        %5627 = vmatprep.subr.bf16.mxu0 0
        %5628 = vmatpush1.bf16.msra.mxu0 0
        %5629 = vmatprep.mubr.bf16.mxu0 0
        %5630 = vmatmul.mubr.bf16.gmra.mrb[0].mxu0 %v5595
        %v5631 = vpop.f32.mrb[0].mxu0
        %v5632 = vadd.f32 0.0, %v5631
        %v5633 = vpop.f32.mrb[0].mxu0
        %v5634 = vpop.f32.mrb[0].mxu0
        %v5635 = vpop.f32.mrb[0].mxu0
        %5636 = vdwg.mxu0
        %v5637 = vpack.c.bf16 %v5632, %v5632
        %s5638 = scalar_lea.vmem [#allocation8], 224
        %v5639 = vld [vmem:[%s5638] sm:$0xf]
        %v5640 = vld [vmem:[%s5638 + $0x4] sm:$0xf]
        %v5641 = vld [vmem:[%s5638 + $0x8] sm:$0xf]
        %v5642 = vld [vmem:[%s5638 + $0xc] sm:$0xf]
        %v5643 = vld [vmem:[%s5638 + $0x10] sm:$0xf]
        %v5644 = vld [vmem:[%s5638 + $0x14] sm:$0xf]
        %v5645 = vld [vmem:[%s5638 + $0x18] sm:$0xf]
        %v5646 = vld [vmem:[%s5638 + $0x1c] sm:$0xf]
        %v5655 = vunpack.c.l.b16 %v5639
        %v5656 = vunpack.c.l.b16 %v5640
        %v5657 = vunpack.c.l.b16 %v5641
        %v5658 = vunpack.c.l.b16 %v5642
        %v5659 = vunpack.c.l.b16 %v5643
        %v5660 = vunpack.c.l.b16 %v5644
        %v5661 = vunpack.c.l.b16 %v5645
        %v5662 = vunpack.c.l.b16 %v5646
        %v5663 = vpack.c.b16 %v5656, %v5655
        %v5664 = vpack.c.b16 %v5658, %v5657
        %v5665 = vpack.c.b16 %v5660, %v5659
        %v5666 = vpack.c.b16 %v5662, %v5661
        %v5672 = vsel %vm2571, %v5637, 0
        %5674 = vmatprep.subr.bf16.mxu0 0
        %5675 = vmatpush1.bf16.msra.mxu0 %v5663
        %5676 = vmatprep.subr.bf16.mxu0 0
        %5677 = vmatpush1.bf16.msra.mxu0 %v5664
        %5678 = vmatprep.subr.bf16.mxu0 0
        %5679 = vmatpush1.bf16.msra.mxu0 %v5665
        %5680 = vmatprep.subr.bf16.mxu0 0
        %5681 = vmatpush1.bf16.msra.mxu0 %v5666
        %5682 = vmatprep.subr.bf16.mxu0 0
        %5683 = vmatpush1.bf16.msra.mxu0 0
        %5684 = vmatprep.subr.bf16.mxu0 0
        %5685 = vmatpush1.bf16.msra.mxu0 0
        %5686 = vmatprep.subr.bf16.mxu0 0
        %5687 = vmatpush1.bf16.msra.mxu0 0
        %5688 = vmatprep.subr.bf16.mxu0 0
        %5689 = vmatpush1.bf16.msra.mxu0 0
        %5690 = vmatprep.subr.bf16.mxu0 0
        %5691 = vmatpush1.bf16.msra.mxu0 0
        %5692 = vmatprep.subr.bf16.mxu0 0
        %5693 = vmatpush1.bf16.msra.mxu0 0
        %5694 = vmatprep.subr.bf16.mxu0 0
        %5695 = vmatpush1.bf16.msra.mxu0 0
        %5696 = vmatprep.subr.bf16.mxu0 0
        %5697 = vmatpush1.bf16.msra.mxu0 0
        %5698 = vmatprep.subr.bf16.mxu0 0
        %5699 = vmatpush1.bf16.msra.mxu0 0
        %5700 = vmatprep.subr.bf16.mxu0 0
        %5701 = vmatpush1.bf16.msra.mxu0 0
        %5702 = vmatprep.subr.bf16.mxu0 0
        %5703 = vmatpush1.bf16.msra.mxu0 0
        %5704 = vmatprep.subr.bf16.mxu0 0
        %5705 = vmatpush1.bf16.msra.mxu0 0
        %5706 = vmatprep.mubr.bf16.mxu0 0
        %5707 = vmatmul.mubr.bf16.gmra.mrb[0].mxu0 %v5672
        %v5708 = vpop.f32.mrb[0].mxu0
        %v5709 = vadd.f32 0.0, %v5708
        %v5710 = vpop.f32.mrb[0].mxu0
        %v5711 = vpop.f32.mrb[0].mxu0
        %v5712 = vpop.f32.mrb[0].mxu0
        %5713 = vdwg.mxu0
        %v5714 = vadd.f32 %v5591, %v5709
        %s5715 = scalar_lea.vmem %s10, 8
        %v5716 = vld [vmem:[%s5715] sm:$0x1]
        %v5718 = vsel %vm4731, %v5716, 0
        %5720 = vmatprep.subr.bf16.mxu0 0
        %5721 = vmatpush1.bf16.msra.mxu0 %v4737
        %5722 = vmatprep.subr.bf16.mxu0 0
        %5723 = vmatpush1.bf16.msra.mxu0 0
        %5724 = vmatprep.subr.bf16.mxu0 0
        %5725 = vmatpush1.bf16.msra.mxu0 0
        %5726 = vmatprep.subr.bf16.mxu0 0
        %5727 = vmatpush1.bf16.msra.mxu0 0
        %5728 = vmatprep.subr.bf16.mxu0 0
        %5729 = vmatpush1.bf16.msra.mxu0 0
        %5730 = vmatprep.subr.bf16.mxu0 0
        %5731 = vmatpush1.bf16.msra.mxu0 0
        %5732 = vmatprep.subr.bf16.mxu0 0
        %5733 = vmatpush1.bf16.msra.mxu0 0
        %5734 = vmatprep.subr.bf16.mxu0 0
        %5735 = vmatpush1.bf16.msra.mxu0 0
        %5736 = vmatprep.subr.bf16.mxu0 0
        %5737 = vmatpush1.bf16.msra.mxu0 0
        %5738 = vmatprep.subr.bf16.mxu0 0
        %5739 = vmatpush1.bf16.msra.mxu0 0
        %5740 = vmatprep.subr.bf16.mxu0 0
        %5741 = vmatpush1.bf16.msra.mxu0 0
        %5742 = vmatprep.subr.bf16.mxu0 0
        %5743 = vmatpush1.bf16.msra.mxu0 0
        %5744 = vmatprep.subr.bf16.mxu0 0
        %5745 = vmatpush1.bf16.msra.mxu0 0
        %5746 = vmatprep.subr.bf16.mxu0 0
        %5747 = vmatpush1.bf16.msra.mxu0 0
        %5748 = vmatprep.subr.bf16.mxu0 0
        %5749 = vmatpush1.bf16.msra.mxu0 0
        %5750 = vmatprep.subr.bf16.mxu0 0
        %5751 = vmatpush1.bf16.msra.mxu0 0
        %5752 = vmatprep.mubr.bf16.mxu0 0
        %5753 = vmatmul.mubr.bf16.gmra.mrb[0].mxu0 %v5718
        %v5754 = vpop.f32.mrb[0].mxu0
        %v5755 = vadd.f32 0.0, %v5754
        %v5756 = vpop.f32.mrb[0].mxu0
        %v5757 = vpop.f32.mrb[0].mxu0
        %v5758 = vpop.f32.mrb[0].mxu0
        %5759 = vdwg.mxu0
        %v5760 = vpack.c.bf16 %v5755, %v5755
        %s5761 = scalar_lea.vmem [#allocation8], 256
        %v5762 = vld [vmem:[%s5761] sm:$0xf]
        %v5763 = vld [vmem:[%s5761 + $0x4] sm:$0xf]
        %v5764 = vld [vmem:[%s5761 + $0x8] sm:$0xf]
        %v5765 = vld [vmem:[%s5761 + $0xc] sm:$0xf]
        %v5766 = vld [vmem:[%s5761 + $0x10] sm:$0xf]
        %v5767 = vld [vmem:[%s5761 + $0x14] sm:$0xf]
        %v5768 = vld [vmem:[%s5761 + $0x18] sm:$0xf]
        %v5769 = vld [vmem:[%s5761 + $0x1c] sm:$0xf]
        %v5778 = vunpack.c.l.b16 %v5762
        %v5779 = vunpack.c.l.b16 %v5763
        %v5780 = vunpack.c.l.b16 %v5764
        %v5781 = vunpack.c.l.b16 %v5765
        %v5782 = vunpack.c.l.b16 %v5766
        %v5783 = vunpack.c.l.b16 %v5767
        %v5784 = vunpack.c.l.b16 %v5768
        %v5785 = vunpack.c.l.b16 %v5769
        %v5786 = vpack.c.b16 %v5779, %v5778
        %v5787 = vpack.c.b16 %v5781, %v5780
        %v5788 = vpack.c.b16 %v5783, %v5782
        %v5789 = vpack.c.b16 %v5785, %v5784
        %v5795 = vsel %vm2571, %v5760, 0
        %5797 = vmatprep.subr.bf16.mxu0 0
        %5798 = vmatpush1.bf16.msra.mxu0 %v5786
        %5799 = vmatprep.subr.bf16.mxu0 0
        %5800 = vmatpush1.bf16.msra.mxu0 %v5787
        %5801 = vmatprep.subr.bf16.mxu0 0
        %5802 = vmatpush1.bf16.msra.mxu0 %v5788
        %5803 = vmatprep.subr.bf16.mxu0 0
        %5804 = vmatpush1.bf16.msra.mxu0 %v5789
        %5805 = vmatprep.subr.bf16.mxu0 0
        %5806 = vmatpush1.bf16.msra.mxu0 0
        %5807 = vmatprep.subr.bf16.mxu0 0
        %5808 = vmatpush1.bf16.msra.mxu0 0
        %5809 = vmatprep.subr.bf16.mxu0 0
        %5810 = vmatpush1.bf16.msra.mxu0 0
        %5811 = vmatprep.subr.bf16.mxu0 0
        %5812 = vmatpush1.bf16.msra.mxu0 0
        %5813 = vmatprep.subr.bf16.mxu0 0
        %5814 = vmatpush1.bf16.msra.mxu0 0
        %5815 = vmatprep.subr.bf16.mxu0 0
        %5816 = vmatpush1.bf16.msra.mxu0 0
        %5817 = vmatprep.subr.bf16.mxu0 0
        %5818 = vmatpush1.bf16.msra.mxu0 0
        %5819 = vmatprep.subr.bf16.mxu0 0
        %5820 = vmatpush1.bf16.msra.mxu0 0
        %5821 = vmatprep.subr.bf16.mxu0 0
        %5822 = vmatpush1.bf16.msra.mxu0 0
        %5823 = vmatprep.subr.bf16.mxu0 0
        %5824 = vmatpush1.bf16.msra.mxu0 0
        %5825 = vmatprep.subr.bf16.mxu0 0
        %5826 = vmatpush1.bf16.msra.mxu0 0
        %5827 = vmatprep.subr.bf16.mxu0 0
        %5828 = vmatpush1.bf16.msra.mxu0 0
        %5829 = vmatprep.mubr.bf16.mxu0 0
        %5830 = vmatmul.mubr.bf16.gmra.mrb[0].mxu0 %v5795
        %v5831 = vpop.f32.mrb[0].mxu0
        %v5832 = vadd.f32 0.0, %v5831
        %v5833 = vpop.f32.mrb[0].mxu0
        %v5834 = vpop.f32.mrb[0].mxu0
        %v5835 = vpop.f32.mrb[0].mxu0
        %5836 = vdwg.mxu0
        %v5837 = vadd.f32 %v5714, %v5832
        %v5838 = vld [vmem:[%s12] sm:$0x1]
        %v5839 = vadd.f32 %v5837, %v5838
        %v5840 = vmax.f32 %v5839, 0.0
        %v5841 = vpack.c.bf16 %v5840, %v5840
        %v5842 = vunpack.c.l.bf16 %v5841
        %v5843 = vld [vmem:[%s13] sm:$0x1]
        %v5844 = vmul.f32 %v5842, %v5843
        %vm5845 = vcmask 1040384
        %v5846 = vsel %vm5845, %v5844, 0.0
        %5847 = vadd.xlane.f32.xlu0 %v5846
        %v5848 = vpop.xlane.xlu0 %5847
        %v5849 = vadd.f32 %v5848, 0.0
        %v5850 = vld [vmem:[#allocation2] sm:$0x1]
        %v5851 = vadd.f32 %v5849, %v5850
        %5853 = vset.pattern.permute.xlu0 0
        %5854 = vperm.xlu0 %5853, %v5851
        %v5855 = vpop.permute.xlu0 %5854
        %v5857 = vadd.f32 %v5855, 0.0
        %5858 = vst [vmem:[%s551] sm:$0x1] %v5857
        %p5859 = scmp.lt.s32.totalorder %s31, 1
        %s5860 = scalar_select %p5859, %s31, 1
        %s5861 = scalar_lea.vmem %s15, %s5860
        // Predicated region
        $region97: #{critic_forward.1} parent=79 // pred_check
          %p5862 = pneg %p369
        $region98: #{critic_forward.1} parent=79 // pred_check_branch
          %5864 = sbr.rel (%p5862) target = $region100
        $region99: #{critic_forward.1} parent=79 // pred_region
          _
        $region100: #{critic_forward.1} parent=79 // pred_fallthru
          _
      $region80: #{critic_forward.1} parent=5 // pred_fallthru
        _
      %p5865 = scmp.le.s32.totalorder 2, %s26
      // Predicated region
      $region101: #{critic_forward.1} parent=5 // pred_check
        %p5866 = pneg %p5865
      $region102: #{critic_forward.1} parent=5 // pred_check_branch
        %5868 = sbr.rel (%p5866) target = $region104
      $region103: #{critic_forward.1} parent=5 // pred_region
        %s5869 = ssub.s32 %s26, 2
        // Predicated region
        $region105: #{critic_forward.1} parent=103 // pred_check
          %p5870 = pneg %p375
        $region106: #{critic_forward.1} parent=103 // pred_check_branch
          %5872 = sbr.rel (%p5870) target = $region108
        $region107: #{critic_forward.1} parent=103 // pred_region
          %p5873 = scmp.lt.s32.totalorder %s32, 1
          %s5874 = scalar_select %p5873, %s32, 1
          %s5875 = scalar_lea.vmem %s15, %s5874
        $region108: #{critic_forward.1} parent=103 // pred_fallthru
          _
      $region104: #{critic_forward.1} parent=5 // pred_fallthru
        _
    $region6: #{critic_forward.1} parent=1 // loop_footer
      %s30 = sadd.s32 1, %s26
    $region7: #{critic_forward.1} parent=1 // loop_footer_branch
      %25 = sbr.rel target = $region3
    $region8: #{critic_forward.1} parent=1 // loop_exit
      _
    %5876 = vsyncpa [#allocation4], 1
    %s5877 = scalar_lea.sflag [#allocation4], 1
    %5878 = vsyncpa %s5877, 1
    %5879 = vsyncpa [#allocation6], 1
    %5880 = vsyncpa [#allocation9], 1

</llo_original>
